<compile_context>
chip_gen: v7x
topology: tpu7x:2x2x1
jax: 0.10.0
libtpu: 0.0.40
codegen_flags: <defaults>
</compile_context>

<pallas_src>
import functools

import jax
import jax.numpy as jnp
import numpy as np
from jax import lax
from jax.experimental import pallas as pl
from jax.experimental.pallas import tpu as pltpu


# ----------------------------------------------------------------------------
# Fused conv trunk: conv1+relu+pool -> conv2+relu+pool, one kernel per block.
#
# Layout convention ("folded" layout): an activation of shape (H, W, C) is
# kept as (H rows, W*C lanes).  A 3x3 SAME conv then becomes, for each kernel
# row kh, a matmul of the H-shifted row window against a banded weight of
# shape (W*Cin, W*Cout); the kw taps and the W zero-padding live inside the
# band.  Output columns are ordered even-w first then odd-w so the 2x2 max
# pool along W is jnp.maximum of the two 512-lane halves.
# ----------------------------------------------------------------------------
def _cnn_trunk_kernel(x_ref, wf1_ref, b1_ref, wf2_ref, b2_ref, o_ref, pad_ref):
    # x_ref:   (B, 34, 128)      H-padded, (W,Cin)-folded, lane-padded, bf16
    # wf1_ref: (3, 128, 1024)    banded conv1 weights, bf16
    # b1_ref:  (1, 1024)         conv1 bias tiled over W, f32
    # wf2_ref: (3, 512, 1024)    banded conv2 weights, bf16
    # b2_ref:  (1, 1024)         conv2 bias tiled over W, f32
    # o_ref:   (B, 8, 512)       pooled conv2 output (h, w*64+c), bf16
    # pad_ref: (B, 25, 512)      H-padded conv2 input scratch (rows 8..23 data)
    B = x_ref.shape[0]

    def banded_conv(read_tap, w_ref, bias, rows, k):
        acc = None
        for kh in range(3):                      # 3 value-chained MXU taps
            lhs = read_tap(kh).reshape(rows, k)
            d = jnp.dot(lhs, w_ref[kh], preferred_element_type=jnp.float32)
            acc = d if acc is None else acc + d
        return jnp.maximum(acc + bias, 0.0)      # bias + ReLU

    def pool(y, b, h):
        # y: (b*h, 1024); even-w outputs in lanes [0,512), odd-w in [512,1024)
        p = jnp.maximum(y[:, :512], y[:, 512:])          # W pair-max (aligned)
        p = p.reshape(b, h // 2, 2, 512)                 # split major rows
        return jnp.maximum(p[:, :, 0, :], p[:, :, 1, :])  # H pair-max

    # conv1 + relu + pool  -> (B, 16, 512) with lanes = 32*w + c
    y1 = banded_conv(lambda kh: x_ref[:, kh:kh + 32, :], wf1_ref,
                     b1_ref[...], B * 32, 128)
    p1 = pool(y1, B, 32)

    # H-pad pool1 into the conv2 input scratch (rows 7 and 24 are the zero pad;
    # the whole scratch is re-zeroed each step -> megacore-safe, ~100 cycles).
    pad_ref[...] = jnp.zeros_like(pad_ref)
    pad_ref[:, 8:24, :] = p1.astype(pad_ref.dtype)

    # conv2 + relu + pool  -> (B, 8, 512) with lanes = 64*w + c
    y2 = banded_conv(lambda kh: pad_ref[:, 7 + kh:23 + kh, :], wf2_ref,
                     b2_ref[...], B * 16, 512)
    p2 = pool(y2, B, 16)
    o_ref[...] = p2.astype(o_ref.dtype)


def conv_trunk(x_nhwc, kp, *, batch_block=16):
    N, H, W, Cin = x_nhwc.shape
    assert (H, W, Cin) == (32, 32, 3), "SimpleCNN expects 3x32x32 inputs"
    B = min(batch_block, N)
    pad_n = (-N) % B                              # pad batch instead of B -> 1
    xf = x_nhwc.reshape(N, H, W * Cin)            # fold (W, C) -> 96 lanes
    xf = jnp.pad(xf, ((0, pad_n), (1, 1), (0, 128 - W * Cin)))  # H pad + lane pad
    xf = xf.astype(jnp.bfloat16)
    Ng = N + pad_n

    out = pl.pallas_call(
        _cnn_trunk_kernel,
        out_shape=jax.ShapeDtypeStruct((Ng, 8, 512), jnp.bfloat16),
        grid_spec=pltpu.PrefetchScalarGridSpec(
            num_scalar_prefetch=0,
            grid=(Ng // B,),
            in_specs=[
                pl.BlockSpec((B, 34, 128), lambda n: (n, 0, 0)),
                pl.BlockSpec((3, 128, 1024), lambda n: (0, 0, 0)),
                pl.BlockSpec((1, 1024), lambda n: (0, 0)),
                pl.BlockSpec((3, 512, 1024), lambda n: (0, 0, 0)),
                pl.BlockSpec((1, 1024), lambda n: (0, 0)),
            ],
            out_specs=pl.BlockSpec((B, 8, 512), lambda n: (n, 0, 0)),
            scratch_shapes=[pltpu.VMEM((B, 25, 512), jnp.bfloat16)],
        ),
        compiler_params=pltpu.CompilerParams(
            dimension_semantics=("parallel",),
            vmem_limit_bytes=48 * 1024 * 1024,    # fits v7x's 64 MiB VMEM
        ),
    )(xf, kp["wf1"], kp["b1f"], kp["wf2"], kp["b2f"])
    return out[:N] if pad_n else out


# ----------------------------------------------------------------------------
# Linear: y = x @ W + b (optional ReLU).  Grid (N-tiles, M-tiles, K-tiles),
# accumulating directly into the resident f32 output block.
# ----------------------------------------------------------------------------
def _linear_kernel(x_ref, w_ref, b_ref, o_ref, *, apply_relu):
    k = pl.program_id(2)

    @pl.when(k == 0)
    def _():
        o_ref[...] = jnp.zeros_like(o_ref)

    o_ref[...] += jnp.dot(x_ref[...], w_ref[...],
                          preferred_element_type=jnp.float32)

    @pl.when(k == pl.num_programs(2) - 1)
    def _():
        y = o_ref[...] + b_ref[...]
        if apply_relu:
            y = jnp.maximum(y, 0.0)
        o_ref[...] = y


def linear(x, w, b, *, apply_relu, block_n=256, block_k=512, block_m=256):
    N, K = x.shape
    Kw, M = w.shape
    assert K == Kw
    tb = N if N <= block_n else block_n
    pad_n = (-N) % tb
    if pad_n:
        x = jnp.pad(x, ((0, pad_n), (0, 0)))
    Ng = N + pad_n
    tk = block_k if K % block_k == 0 else K       # fc1: 512 -> 8 k-steps
    tn = block_m if (M % block_m == 0 and M > block_m) else M
    if x.dtype != w.dtype:
        x = x.astype(w.dtype)

    out = pl.pallas_call(
        functools.partial(_linear_kernel, apply_relu=apply_relu),
        out_shape=jax.ShapeDtypeStruct((Ng, M), jnp.float32),
        grid_spec=pltpu.PrefetchScalarGridSpec(
            num_scalar_prefetch=0,
            grid=(Ng // tb, M // tn, K // tk),
            in_specs=[
                pl.BlockSpec((tb, tk), lambda n, m, k: (n, k)),
                pl.BlockSpec((tk, tn), lambda n, m, k: (k, m)),
                pl.BlockSpec((1, tn), lambda n, m, k: (0, m)),
            ],
            out_specs=pl.BlockSpec((tb, tn), lambda n, m, k: (n, m)),
        ),
        compiler_params=pltpu.CompilerParams(
            dimension_semantics=("parallel", "parallel", "arbitrary"),
            vmem_limit_bytes=32 * 1024 * 1024,
        ),
    )(x, w, b.reshape(1, M).astype(jnp.float32))
    return out[:N] if pad_n else out


# ----------------------------------------------------------------------------
# SimpleCNN forward
# ----------------------------------------------------------------------------
def simple_cnn_forward(x_nchw, kp):
    N = x_nchw.shape[0]
    x = jnp.transpose(x_nchw, (0, 2, 3, 1))                  # NCHW -> NHWC
    x = conv_trunk(x, kp)                                    # (N, 8, 512) bf16
    x = x.reshape(N, 64 * 8 * 8)                             # NHWC flatten
    x = linear(x, kp["wfc1"], kp["bfc1"], apply_relu=True)   # (N, 512)
    x = linear(x, kp["wfc2"], kp["bfc2"], apply_relu=False)  # (N, class_num)
    return x


def init_params(key, class_num):
    ks = jax.random.split(key, 8)
    f32 = jnp.float32
    return {
        "w1": 0.1 * jax.random.normal(ks[0], (3, 3, 3, 32), f32),      # HWIO
        "b1": 0.1 * jax.random.normal(ks[1], (32,), f32),
        "w2": 0.1 * jax.random.normal(ks[2], (3, 3, 32, 64), f32),     # HWIO
        "b2": 0.1 * jax.random.normal(ks[3], (64,), f32),
        "wfc1": 0.02 * jax.random.normal(ks[4], (64 * 8 * 8, 512), f32),
        "bfc1": 0.02 * jax.random.normal(ks[5], (512,), f32),
        "wfc2": 0.05 * jax.random.normal(ks[6], (512, class_num), f32),
        "bfc2": 0.05 * jax.random.normal(ks[7], (class_num,), f32),
    }


def _band_fold_conv_weight(w_hwio, width):
    """Fold a (3,3,Cin,Cout) SAME-conv weight into 3 banded matrices of shape
    (width*Cin, width*Cout).  Output columns are ordered even-w first then
    odd-w (each chunk (w//2, Cout) row-major) so a 2x2 W-pool is a half/half
    lane max.  W zero-padding is absorbed by dropping out-of-range rows."""
    _, _, cin, cout = w_hwio.shape
    w_np = np.asarray(w_hwio, np.float32)
    half = (width // 2) * cout
    out = np.zeros((3, width * cin, width * cout), np.float32)
    for kh in range(3):
        for w in range(width):
            col0 = (w % 2) * half + (w // 2) * cout
            for kw in range(3):
                wi = w + kw - 1
                if 0 <= wi < width:
                    out[kh, wi * cin:(wi + 1) * cin, col0:col0 + cout] = w_np[kh, kw]
    return out


def prepare_params(p):
    """One-time kernel-layout prep: banded/folded conv weights + tiled biases,
    fold the PyTorch NCHW flatten into fc1's rows, cast conv/fc1 weights to
    bf16 (all in-kernel accumulation stays f32; fc2 stays f32 -- it's tiny)."""
    wf1 = _band_fold_conv_weight(p["w1"], 32)                # (3, 96, 1024)
    wf1 = np.pad(wf1, ((0, 0), (0, 32), (0, 0)))             # K -> 128 (zeros)
    wf2 = _band_fold_conv_weight(p["w2"], 16)                # (3, 512, 1024)
    b1f = np.tile(np.asarray(p["b1"], np.float32), 32).reshape(1, 1024)
    b2f = np.tile(np.asarray(p["b2"], np.float32), 16).reshape(1, 1024)
    wfc1_nhwc = (np.asarray(p["wfc1"], np.float32).reshape(64, 8, 8, 512)
                 .transpose(1, 2, 0, 3).reshape(64 * 8 * 8, 512))
    return {
        "wf1": jnp.asarray(wf1, jnp.bfloat16),
        "b1f": jnp.asarray(b1f, jnp.float32),
        "wf2": jnp.asarray(wf2, jnp.bfloat16),
        "b2f": jnp.asarray(b2f, jnp.float32),
        "wfc1": jnp.asarray(wfc1_nhwc, jnp.bfloat16),
        "bfc1": p["bfc1"],
        "wfc2": p["wfc2"],                                   # f32
        "bfc2": p["bfc2"],
    }


# Pure-JAX reference mirroring the PyTorch module (f32, NCHW flatten).
def reference_forward(x_nchw, p):
    hi = lax.Precision.HIGHEST
    x = jnp.transpose(x_nchw, (0, 2, 3, 1))

    def block(x, w, b):
        y = lax.conv_general_dilated(
            x, w, window_strides=(1, 1), padding="SAME",
            dimension_numbers=("NHWC", "HWIO", "NHWC"), precision=hi)
        y = jnp.maximum(y + b, 0.0)
        return lax.reduce_window(y, -jnp.inf, lax.max,
                                 (1, 2, 2, 1), (1, 2, 2, 1), "VALID")

    x = block(x, p["w1"], p["b1"])
    x = block(x, p["w2"], p["b2"])
    x = jnp.transpose(x, (0, 3, 1, 2)).reshape(x.shape[0], -1)   # NCHW flatten
    x = jnp.maximum(jnp.dot(x, p["wfc1"], precision=hi) + p["bfc1"], 0.0)
    return jnp.dot(x, p["wfc2"], precision=hi) + p["bfc2"]


if __name__ == "__main__":
    class_num = 10
    key = jax.random.PRNGKey(0)
    k_x, k_p = jax.random.split(key)
    # Input must be 32x32 for the `view(-1, 64*8*8)` flatten to be valid.
    x = jax.random.normal(k_x, (2, 3, 32, 32), jnp.float32)
    params = init_params(k_p, class_num)
    kparams = prepare_params(params)

    out = jax.jit(simple_cnn_forward)(x, kparams)
    out = jax.block_until_ready(out)
    assert out.shape == (2, class_num)

    ref = jax.block_until_ready(reference_forward(x, params))
    np.testing.assert_allclose(np.asarray(out), np.asarray(ref),
                               rtol=2e-2, atol=2e-2)
    print("KERNEL_OK")
</pallas_src>

<mosaic_0001>
module attributes {stable_mosaic.version = 11 : i64} {
  func.func @_linear_kernel(%arg0: i32, %arg1: i32, %arg2: i32, %arg3: memref<2x512xbf16, #tpu.memory_space<vmem>>, %arg4: memref<512x256xbf16, #tpu.memory_space<vmem>>, %arg5: memref<1x256xf32, #tpu.memory_space<vmem>>, %arg6: memref<2x256xf32, #tpu.memory_space<vmem>>) attributes {dimension_semantics = [#tpu.dimension_semantics<parallel>, #tpu.dimension_semantics<parallel>, #tpu.dimension_semantics<arbitrary>], iteration_bounds = array<i64: 1, 2, 8>, scalar_prefetch = 0 : i64, scratch_operands = 0 : i64, tpu.core_type = #tpu.core_type<tc>, window_params = [{transform_indices = @transform_0, window_bounds = array<i64: 2, 512>}, {transform_indices = @transform_1, window_bounds = array<i64: 512, 256>}, {transform_indices = @transform_2, window_bounds = array<i64: 1, 256>}, {transform_indices = @transform_3, window_bounds = array<i64: 2, 256>}]} {
    %c0_i32 = arith.constant 0 : i32
    %0 = arith.cmpi eq, %arg2, %c0_i32 : i32
    %1 = arith.extui %0 : i1 to i32
    %c0_i32_0 = arith.constant 0 : i32
    %2 = arith.cmpi ne, %1, %c0_i32_0 : i32
    scf.if %2 {
      %cst_9 = arith.constant 0.000000e+00 : f32
      %12 = vector.broadcast %cst_9 : f32 to vector<2x256xf32>
      %c0_10 = arith.constant 0 : index
      %c0_11 = arith.constant 0 : index
      %13 = vector.load %arg6[%c0_10, %c0_11] : memref<2x256xf32, #tpu.memory_space<vmem>>, vector<2x256xf32>
      tpu.vector_store %arg6[%c0_10, %c0_11], %12 {strides = array<i32>} : memref<2x256xf32, #tpu.memory_space<vmem>>, vector<2x256xf32>,
    } else {
    }
    %c0 = arith.constant 0 : index
    %c0_1 = arith.constant 0 : index
    %3 = vector.load %arg6[%c0, %c0_1] : memref<2x256xf32, #tpu.memory_space<vmem>>, vector<2x256xf32>
    %c0_2 = arith.constant 0 : index
    %c0_3 = arith.constant 0 : index
    %4 = vector.load %arg3[%c0_2, %c0_3] : memref<2x512xbf16, #tpu.memory_space<vmem>>, vector<2x512xbf16>
    %c0_4 = arith.constant 0 : index
    %c0_5 = arith.constant 0 : index
    %5 = vector.load %arg4[%c0_4, %c0_5] : memref<512x256xbf16, #tpu.memory_space<vmem>>, vector<512x256xbf16>
    %cst = arith.constant dense<0.000000e+00> : vector<2x256xf32>
    %6 = tpu.matmul %4, %5, %cst {dimension_numbers = #tpu.dot_dimension_numbers<[1], [0], [0], [1], [0, 0, 1, 1], [], []>} : vector<2x512xbf16>, vector<512x256xbf16>, vector<2x256xf32> -> vector<2x256xf32>
    %7 = arith.addf %3, %6 : vector<2x256xf32>
    %c0_6 = arith.constant 0 : index
    %c0_7 = arith.constant 0 : index
    %8 = vector.load %arg6[%c0_6, %c0_7] : memref<2x256xf32, #tpu.memory_space<vmem>>, vector<2x256xf32>
    tpu.vector_store %arg6[%c0_6, %c0_7], %7 {strides = array<i32>} : memref<2x256xf32, #tpu.memory_space<vmem>>, vector<2x256xf32>,
    %c7_i32 = arith.constant 7 : i32
    %9 = arith.cmpi eq, %arg2, %c7_i32 : i32
    %10 = arith.extui %9 : i1 to i32
    %c0_i32_8 = arith.constant 0 : i32
    %11 = arith.cmpi ne, %10, %c0_i32_8 : i32
    scf.if %11 {
      %c0_9 = arith.constant 0 : index
      %c0_10 = arith.constant 0 : index
      %12 = vector.load %arg6[%c0_9, %c0_10] : memref<2x256xf32, #tpu.memory_space<vmem>>, vector<2x256xf32>
      %c0_11 = arith.constant 0 : index
      %c0_12 = arith.constant 0 : index
      %13 = vector.load %arg5[%c0_11, %c0_12] : memref<1x256xf32, #tpu.memory_space<vmem>>, vector<1x256xf32>
      %14 = vector.broadcast %13 : vector<1x256xf32> to vector<2x256xf32>
      %15 = arith.addf %12, %14 : vector<2x256xf32>
      %cst_13 = arith.constant 0.000000e+00 : f32
      %16 = vector.broadcast %cst_13 : f32 to vector<2x256xf32>
      %17 = arith.maximumf %15, %16 : vector<2x256xf32>
      %c0_14 = arith.constant 0 : index
      %c0_15 = arith.constant 0 : index
      %18 = vector.load %arg6[%c0_14, %c0_15] : memref<2x256xf32, #tpu.memory_space<vmem>>, vector<2x256xf32>
      tpu.vector_store %arg6[%c0_14, %c0_15], %17 {strides = array<i32>} : memref<2x256xf32, #tpu.memory_space<vmem>>, vector<2x256xf32>,
    } else {
    }
    return
  }
  func.func @transform_0(%arg0: i32, %arg1: i32, %arg2: i32) -> (i32, i32) {
    %c0_i32 = arith.constant 0 : i32
    return %arg0, %arg2 : i32, i32
  }
  func.func @transform_1(%arg0: i32, %arg1: i32, %arg2: i32) -> (i32, i32) {
    %c0_i32 = arith.constant 0 : i32
    return %arg2, %arg1 : i32, i32
  }
  func.func @transform_2(%arg0: i32, %arg1: i32, %arg2: i32) -> (i32, i32) {
    %c0_i32 = arith.constant 0 : i32
    %c0_i32_0 = arith.constant 0 : i32
    return %c0_i32, %arg1 : i32, i32
  }
  func.func @transform_3(%arg0: i32, %arg1: i32, %arg2: i32) -> (i32, i32) {
    %c0_i32 = arith.constant 0 : i32
    return %arg0, %arg1 : i32, i32
  }
}

module attributes {stable_mosaic.version = 11 : i64} {
  func.func @_cnn_trunk_kernel(%arg0: i32, %arg1: memref<2x34x128xbf16, #tpu.memory_space<vmem>>, %arg2: memref<3x128x1024xbf16, #tpu.memory_space<vmem>>, %arg3: memref<1x1024xf32, #tpu.memory_space<vmem>>, %arg4: memref<3x512x1024xbf16, #tpu.memory_space<vmem>>, %arg5: memref<1x1024xf32, #tpu.memory_space<vmem>>, %arg6: memref<2x8x512xbf16, #tpu.memory_space<vmem>>, %arg7: memref<2x25x512xbf16, #tpu.memory_space<vmem>>) attributes {dimension_semantics = [#tpu.dimension_semantics<parallel>], iteration_bounds = array<i64: 1>, scalar_prefetch = 0 : i64, scratch_operands = 1 : i64, tpu.core_type = #tpu.core_type<tc>, window_params = [{transform_indices = @transform_0, window_bounds = array<i64: 2, 34, 128>}, {pipeline_mode = #tpu.pipeline_mode<synchronous>, transform_indices = @transform_1, window_bounds = array<i64: 3, 128, 1024>}, {pipeline_mode = #tpu.pipeline_mode<synchronous>, transform_indices = @transform_2, window_bounds = array<i64: 1, 1024>}, {pipeline_mode = #tpu.pipeline_mode<synchronous>, transform_indices = @transform_3, window_bounds = array<i64: 3, 512, 1024>}, {pipeline_mode = #tpu.pipeline_mode<synchronous>, transform_indices = @transform_4, window_bounds = array<i64: 1, 1024>}, {transform_indices = @transform_5, window_bounds = array<i64: 2, 8, 512>}]} {
    %c0 = arith.constant 0 : index
    %c0_0 = arith.constant 0 : index
    %0 = vector.load %arg3[%c0, %c0_0] : memref<1x1024xf32, #tpu.memory_space<vmem>>, vector<1x1024xf32>
    %c0_1 = arith.constant 0 : index
    %c0_2 = arith.constant 0 : index
    %c0_3 = arith.constant 0 : index
    %1 = vector.load %arg1[%c0_1, %c0_2, %c0_3] : memref<2x34x128xbf16, #tpu.memory_space<vmem>>, vector<2x32x128xbf16>
    %2 = vector.shape_cast %1 : vector<2x32x128xbf16> to vector<64x128xbf16>
    %c0_4 = arith.constant 0 : index
    %c0_5 = arith.constant 0 : index
    %c0_6 = arith.constant 0 : index
    %3 = vector.load %arg2[%c0_4, %c0_5, %c0_6] : memref<3x128x1024xbf16, #tpu.memory_space<vmem>>, vector<1x128x1024xbf16>
    %4 = vector.shape_cast %3 : vector<1x128x1024xbf16> to vector<128x1024xbf16>
    %cst = arith.constant dense<0.000000e+00> : vector<64x1024xf32>
    %5 = tpu.matmul %2, %4, %cst {dimension_numbers = #tpu.dot_dimension_numbers<[1], [0], [0], [1], [0, 0, 1, 1], [], []>} : vector<64x128xbf16>, vector<128x1024xbf16>, vector<64x1024xf32> -> vector<64x1024xf32>
    %c0_7 = arith.constant 0 : index
    %c1 = arith.constant 1 : index
    %c0_8 = arith.constant 0 : index
    %6 = vector.load %arg1[%c0_7, %c1, %c0_8] : memref<2x34x128xbf16, #tpu.memory_space<vmem>>, vector<2x32x128xbf16>
    %7 = vector.shape_cast %6 : vector<2x32x128xbf16> to vector<64x128xbf16>
    %c1_9 = arith.constant 1 : index
    %c0_10 = arith.constant 0 : index
    %c0_11 = arith.constant 0 : index
    %8 = vector.load %arg2[%c1_9, %c0_10, %c0_11] : memref<3x128x1024xbf16, #tpu.memory_space<vmem>>, vector<1x128x1024xbf16>
    %9 = vector.shape_cast %8 : vector<1x128x1024xbf16> to vector<128x1024xbf16>
    %cst_12 = arith.constant dense<0.000000e+00> : vector<64x1024xf32>
    %10 = tpu.matmul %7, %9, %cst_12 {dimension_numbers = #tpu.dot_dimension_numbers<[1], [0], [0], [1], [0, 0, 1, 1], [], []>} : vector<64x128xbf16>, vector<128x1024xbf16>, vector<64x1024xf32> -> vector<64x1024xf32>
    %11 = arith.addf %5, %10 : vector<64x1024xf32>
    %c0_13 = arith.constant 0 : index
    %c2 = arith.constant 2 : index
    %c0_14 = arith.constant 0 : index
    %12 = vector.load %arg1[%c0_13, %c2, %c0_14] : memref<2x34x128xbf16, #tpu.memory_space<vmem>>, vector<2x32x128xbf16>
    %13 = vector.shape_cast %12 : vector<2x32x128xbf16> to vector<64x128xbf16>
    %c2_15 = arith.constant 2 : index
    %c0_16 = arith.constant 0 : index
    %c0_17 = arith.constant 0 : index
    %14 = vector.load %arg2[%c2_15, %c0_16, %c0_17] : memref<3x128x1024xbf16, #tpu.memory_space<vmem>>, vector<1x128x1024xbf16>
    %15 = vector.shape_cast %14 : vector<1x128x1024xbf16> to vector<128x1024xbf16>
    %cst_18 = arith.constant dense<0.000000e+00> : vector<64x1024xf32>
    %16 = tpu.matmul %13, %15, %cst_18 {dimension_numbers = #tpu.dot_dimension_numbers<[1], [0], [0], [1], [0, 0, 1, 1], [], []>} : vector<64x128xbf16>, vector<128x1024xbf16>, vector<64x1024xf32> -> vector<64x1024xf32>
    %17 = arith.addf %11, %16 : vector<64x1024xf32>
    %18 = vector.broadcast %0 : vector<1x1024xf32> to vector<64x1024xf32>
    %19 = arith.addf %17, %18 : vector<64x1024xf32>
    %cst_19 = arith.constant 0.000000e+00 : f32
    %20 = vector.broadcast %cst_19 : f32 to vector<64x1024xf32>
    %21 = arith.maximumf %19, %20 : vector<64x1024xf32>
    %22 = vector.extract_strided_slice %21 {offsets = [0, 0], sizes = [64, 512], strides = [1, 1]} : vector<64x1024xf32> to vector<64x512xf32>
    %23 = vector.extract_strided_slice %21 {offsets = [0, 512], sizes = [64, 512], strides = [1, 1]} : vector<64x1024xf32> to vector<64x512xf32>
    %24 = arith.maximumf %22, %23 : vector<64x512xf32>
    %25 = vector.shape_cast %24 : vector<64x512xf32> to vector<2x16x2x512xf32>
    %26 = vector.extract_strided_slice %25 {offsets = [0, 0, 0, 0], sizes = [2, 16, 1, 512], strides = [1, 1, 1, 1]} : vector<2x16x2x512xf32> to vector<2x16x1x512xf32>
    %27 = vector.shape_cast %26 : vector<2x16x1x512xf32> to vector<2x16x512xf32>
    %28 = vector.extract_strided_slice %25 {offsets = [0, 0, 1, 0], sizes = [2, 16, 1, 512], strides = [1, 1, 1, 1]} : vector<2x16x2x512xf32> to vector<2x16x1x512xf32>
    %29 = vector.shape_cast %28 : vector<2x16x1x512xf32> to vector<2x16x512xf32>
    %30 = arith.maximumf %27, %29 : vector<2x16x512xf32>
    %cst_20 = arith.constant 0.000000e+00 : bf16
    %31 = vector.broadcast %cst_20 : bf16 to vector<2x25x512xbf16>
    %c0_21 = arith.constant 0 : index
    %c0_22 = arith.constant 0 : index
    %c0_23 = arith.constant 0 : index
    %32 = vector.load %arg7[%c0_21, %c0_22, %c0_23] : memref<2x25x512xbf16, #tpu.memory_space<vmem>>, vector<2x25x512xbf16>
    tpu.vector_store %arg7[%c0_21, %c0_22, %c0_23], %31 {strides = array<i32>} : memref<2x25x512xbf16, #tpu.memory_space<vmem>>, vector<2x25x512xbf16>,
    %33 = arith.truncf %30 : vector<2x16x512xf32> to vector<2x16x512xbf16>
    %c0_24 = arith.constant 0 : index
    %c8 = arith.constant 8 : index
    %c0_25 = arith.constant 0 : index
    %34 = vector.load %arg7[%c0_24, %c8, %c0_25] : memref<2x25x512xbf16, #tpu.memory_space<vmem>>, vector<2x16x512xbf16>
    tpu.vector_store %arg7[%c0_24, %c8, %c0_25], %33 {strides = array<i32>} : memref<2x25x512xbf16, #tpu.memory_space<vmem>>, vector<2x16x512xbf16>,
    %c0_26 = arith.constant 0 : index
    %c0_27 = arith.constant 0 : index
    %35 = vector.load %arg5[%c0_26, %c0_27] : memref<1x1024xf32, #tpu.memory_space<vmem>>, vector<1x1024xf32>
    %c0_28 = arith.constant 0 : index
    %c7 = arith.constant 7 : index
    %c0_29 = arith.constant 0 : index
    %36 = vector.load %arg7[%c0_28, %c7, %c0_29] : memref<2x25x512xbf16, #tpu.memory_space<vmem>>, vector<2x16x512xbf16>
    %37 = vector.shape_cast %36 : vector<2x16x512xbf16> to vector<32x512xbf16>
    %c0_30 = arith.constant 0 : index
    %c0_31 = arith.constant 0 : index
    %c0_32 = arith.constant 0 : index
    %38 = vector.load %arg4[%c0_30, %c0_31, %c0_32] : memref<3x512x1024xbf16, #tpu.memory_space<vmem>>, vector<1x512x1024xbf16>
    %39 = vector.shape_cast %38 : vector<1x512x1024xbf16> to vector<512x1024xbf16>
    %cst_33 = arith.constant dense<0.000000e+00> : vector<32x1024xf32>
    %40 = tpu.matmul %37, %39, %cst_33 {dimension_numbers = #tpu.dot_dimension_numbers<[1], [0], [0], [1], [0, 0, 1, 1], [], []>} : vector<32x512xbf16>, vector<512x1024xbf16>, vector<32x1024xf32> -> vector<32x1024xf32>
    %c0_34 = arith.constant 0 : index
    %c8_35 = arith.constant 8 : index
    %c0_36 = arith.constant 0 : index
    %41 = vector.load %arg7[%c0_34, %c8_35, %c0_36] : memref<2x25x512xbf16, #tpu.memory_space<vmem>>, vector<2x16x512xbf16>
    %42 = vector.shape_cast %41 : vector<2x16x512xbf16> to vector<32x512xbf16>
    %c1_37 = arith.constant 1 : index
    %c0_38 = arith.constant 0 : index
    %c0_39 = arith.constant 0 : index
    %43 = vector.load %arg4[%c1_37, %c0_38, %c0_39] : memref<3x512x1024xbf16, #tpu.memory_space<vmem>>, vector<1x512x1024xbf16>
    %44 = vector.shape_cast %43 : vector<1x512x1024xbf16> to vector<512x1024xbf16>
    %cst_40 = arith.constant dense<0.000000e+00> : vector<32x1024xf32>
    %45 = tpu.matmul %42, %44, %cst_40 {dimension_numbers = #tpu.dot_dimension_numbers<[1], [0], [0], [1], [0, 0, 1, 1], [], []>} : vector<32x512xbf16>, vector<512x1024xbf16>, vector<32x1024xf32> -> vector<32x1024xf32>
    %46 = arith.addf %40, %45 : vector<32x1024xf32>
    %c0_41 = arith.constant 0 : index
    %c9 = arith.constant 9 : index
    %c0_42 = arith.constant 0 : index
    %47 = vector.load %arg7[%c0_41, %c9, %c0_42] : memref<2x25x512xbf16, #tpu.memory_space<vmem>>, vector<2x16x512xbf16>
    %48 = vector.shape_cast %47 : vector<2x16x512xbf16> to vector<32x512xbf16>
    %c2_43 = arith.constant 2 : index
    %c0_44 = arith.constant 0 : index
    %c0_45 = arith.constant 0 : index
    %49 = vector.load %arg4[%c2_43, %c0_44, %c0_45] : memref<3x512x1024xbf16, #tpu.memory_space<vmem>>, vector<1x512x1024xbf16>
    %50 = vector.shape_cast %49 : vector<1x512x1024xbf16> to vector<512x1024xbf16>
    %cst_46 = arith.constant dense<0.000000e+00> : vector<32x1024xf32>
    %51 = tpu.matmul %48, %50, %cst_46 {dimension_numbers = #tpu.dot_dimension_numbers<[1], [0], [0], [1], [0, 0, 1, 1], [], []>} : vector<32x512xbf16>, vector<512x1024xbf16>, vector<32x1024xf32> -> vector<32x1024xf32>
    %52 = arith.addf %46, %51 : vector<32x1024xf32>
    %53 = vector.broadcast %35 : vector<1x1024xf32> to vector<32x1024xf32>
    %54 = arith.addf %52, %53 : vector<32x1024xf32>
    %cst_47 = arith.constant 0.000000e+00 : f32
    %55 = vector.broadcast %cst_47 : f32 to vector<32x1024xf32>
    %56 = arith.maximumf %54, %55 : vector<32x1024xf32>
    %57 = vector.extract_strided_slice %56 {offsets = [0, 0], sizes = [32, 512], strides = [1, 1]} : vector<32x1024xf32> to vector<32x512xf32>
    %58 = vector.extract_strided_slice %56 {offsets = [0, 512], sizes = [32, 512], strides = [1, 1]} : vector<32x1024xf32> to vector<32x512xf32>
    %59 = arith.maximumf %57, %58 : vector<32x512xf32>
    %60 = vector.shape_cast %59 : vector<32x512xf32> to vector<2x8x2x512xf32>
    %61 = vector.extract_strided_slice %60 {offsets = [0, 0, 0, 0], sizes = [2, 8, 1, 512], strides = [1, 1, 1, 1]} : vector<2x8x2x512xf32> to vector<2x8x1x512xf32>
    %62 = vector.shape_cast %61 : vector<2x8x1x512xf32> to vector<2x8x512xf32>
    %63 = vector.extract_strided_slice %60 {offsets = [0, 0, 1, 0], sizes = [2, 8, 1, 512], strides = [1, 1, 1, 1]} : vector<2x8x2x512xf32> to vector<2x8x1x512xf32>
    %64 = vector.shape_cast %63 : vector<2x8x1x512xf32> to vector<2x8x512xf32>
    %65 = arith.maximumf %62, %64 : vector<2x8x512xf32>
    %66 = arith.truncf %65 : vector<2x8x512xf32> to vector<2x8x512xbf16>
    %c0_48 = arith.constant 0 : index
    %c0_49 = arith.constant 0 : index
    %c0_50 = arith.constant 0 : index
    %67 = vector.load %arg6[%c0_48, %c0_49, %c0_50] : memref<2x8x512xbf16, #tpu.memory_space<vmem>>, vector<2x8x512xbf16>
    tpu.vector_store %arg6[%c0_48, %c0_49, %c0_50], %66 {strides = array<i32>} : memref<2x8x512xbf16, #tpu.memory_space<vmem>>, vector<2x8x512xbf16>,
    return
  }
  func.func @transform_0(%arg0: i32) -> (i32, i32, i32) {
    %c0_i32 = arith.constant 0 : i32
    %c0_i32_0 = arith.constant 0 : i32
    %c0_i32_1 = arith.constant 0 : i32
    return %arg0, %c0_i32, %c0_i32_0 : i32, i32, i32
  }
  func.func @transform_1(%arg0: i32) -> (i32, i32, i32) {
    %c0_i32 = arith.constant 0 : i32
    %c0_i32_0 = arith.constant 0 : i32
    %c0_i32_1 = arith.constant 0 : i32
    %c0_i32_2 = arith.constant 0 : i32
    return %c0_i32, %c0_i32_0, %c0_i32_1 : i32, i32, i32
  }
  func.func @transform_2(%arg0: i32) -> (i32, i32) {
    %c0_i32 = arith.constant 0 : i32
    %c0_i32_0 = arith.constant 0 : i32
    %c0_i32_1 = arith.constant 0 : i32
    return %c0_i32, %c0_i32_0 : i32, i32
  }
  func.func @transform_3(%arg0: i32) -> (i32, i32, i32) {
    %c0_i32 = arith.constant 0 : i32
    %c0_i32_0 = arith.constant 0 : i32
    %c0_i32_1 = arith.constant 0 : i32
    %c0_i32_2 = arith.constant 0 : i32
    return %c0_i32, %c0_i32_0, %c0_i32_1 : i32, i32, i32
  }
  func.func @transform_4(%arg0: i32) -> (i32, i32) {
    %c0_i32 = arith.constant 0 : i32
    %c0_i32_0 = arith.constant 0 : i32
    %c0_i32_1 = arith.constant 0 : i32
    return %c0_i32, %c0_i32_0 : i32, i32
  }
  func.func @transform_5(%arg0: i32) -> (i32, i32, i32) {
    %c0_i32 = arith.constant 0 : i32
    %c0_i32_0 = arith.constant 0 : i32
    %c0_i32_1 = arith.constant 0 : i32
    return %arg0, %c0_i32, %c0_i32_0 : i32, i32, i32
  }
}

module attributes {stable_mosaic.version = 11 : i64} {
  func.func @_linear_kernel(%arg0: i32, %arg1: i32, %arg2: i32, %arg3: memref<2x512xf32, #tpu.memory_space<vmem>>, %arg4: memref<512x10xf32, #tpu.memory_space<vmem>>, %arg5: memref<1x10xf32, #tpu.memory_space<vmem>>, %arg6: memref<2x10xf32, #tpu.memory_space<vmem>>) attributes {dimension_semantics = [#tpu.dimension_semantics<parallel>, #tpu.dimension_semantics<parallel>, #tpu.dimension_semantics<arbitrary>], iteration_bounds = array<i64: 1, 1, 1>, scalar_prefetch = 0 : i64, scratch_operands = 0 : i64, tpu.core_type = #tpu.core_type<tc>, window_params = [{transform_indices = @transform_0, window_bounds = array<i64: 2, 512>}, {transform_indices = @transform_1, window_bounds = array<i64: 512, 10>}, {transform_indices = @transform_2, window_bounds = array<i64: 1, 10>}, {transform_indices = @transform_3, window_bounds = array<i64: 2, 10>}]} {
    %c0_i32 = arith.constant 0 : i32
    %0 = arith.cmpi eq, %arg2, %c0_i32 : i32
    %1 = arith.extui %0 : i1 to i32
    %c0_i32_0 = arith.constant 0 : i32
    %2 = arith.cmpi ne, %1, %c0_i32_0 : i32
    scf.if %2 {
      %cst_10 = arith.constant 0.000000e+00 : f32
      %12 = vector.broadcast %cst_10 : f32 to vector<2x10xf32>
      %c0_11 = arith.constant 0 : index
      %c0_12 = arith.constant 0 : index
      %13 = vector.load %arg6[%c0_11, %c0_12] : memref<2x10xf32, #tpu.memory_space<vmem>>, vector<2x10xf32>
      tpu.vector_store %arg6[%c0_11, %c0_12], %12 {strides = array<i32>} : memref<2x10xf32, #tpu.memory_space<vmem>>, vector<2x10xf32>,
    } else {
    }
    %c0 = arith.constant 0 : index
    %c0_1 = arith.constant 0 : index
    %3 = vector.load %arg6[%c0, %c0_1] : memref<2x10xf32, #tpu.memory_space<vmem>>, vector<2x10xf32>
    %c0_2 = arith.constant 0 : index
    %c0_3 = arith.constant 0 : index
    %4 = vector.load %arg3[%c0_2, %c0_3] : memref<2x512xf32, #tpu.memory_space<vmem>>, vector<2x512xf32>
    %c0_4 = arith.constant 0 : index
    %c0_5 = arith.constant 0 : index
    %5 = vector.load %arg4[%c0_4, %c0_5] : memref<512x10xf32, #tpu.memory_space<vmem>>, vector<512x10xf32>
    %cst = arith.constant dense<0.000000e+00> : vector<2x10xf32>
    %6 = tpu.matmul %4, %5, %cst {dimension_numbers = #tpu.dot_dimension_numbers<[1], [0], [0], [1], [0, 0, 1, 1], [], []>} : vector<2x512xf32>, vector<512x10xf32>, vector<2x10xf32> -> vector<2x10xf32>
    %7 = arith.addf %3, %6 : vector<2x10xf32>
    %c0_6 = arith.constant 0 : index
    %c0_7 = arith.constant 0 : index
    %8 = vector.load %arg6[%c0_6, %c0_7] : memref<2x10xf32, #tpu.memory_space<vmem>>, vector<2x10xf32>
    tpu.vector_store %arg6[%c0_6, %c0_7], %7 {strides = array<i32>} : memref<2x10xf32, #tpu.memory_space<vmem>>, vector<2x10xf32>,
    %c0_i32_8 = arith.constant 0 : i32
    %9 = arith.cmpi eq, %arg2, %c0_i32_8 : i32
    %10 = arith.extui %9 : i1 to i32
    %c0_i32_9 = arith.constant 0 : i32
    %11 = arith.cmpi ne, %10, %c0_i32_9 : i32
    scf.if %11 {
      %c0_10 = arith.constant 0 : index
      %c0_11 = arith.constant 0 : index
      %12 = vector.load %arg6[%c0_10, %c0_11] : memref<2x10xf32, #tpu.memory_space<vmem>>, vector<2x10xf32>
      %c0_12 = arith.constant 0 : index
      %c0_13 = arith.constant 0 : index
      %13 = vector.load %arg5[%c0_12, %c0_13] : memref<1x10xf32, #tpu.memory_space<vmem>>, vector<1x10xf32>
      %14 = vector.broadcast %13 : vector<1x10xf32> to vector<2x10xf32>
      %15 = arith.addf %12, %14 : vector<2x10xf32>
      %c0_14 = arith.constant 0 : index
      %c0_15 = arith.constant 0 : index
      %16 = vector.load %arg6[%c0_14, %c0_15] : memref<2x10xf32, #tpu.memory_space<vmem>>, vector<2x10xf32>
      tpu.vector_store %arg6[%c0_14, %c0_15], %15 {strides = array<i32>} : memref<2x10xf32, #tpu.memory_space<vmem>>, vector<2x10xf32>,
    } else {
    }
    return
  }
  func.func @transform_0(%arg0: i32, %arg1: i32, %arg2: i32) -> (i32, i32) {
    %c0_i32 = arith.constant 0 : i32
    return %arg0, %arg2 : i32, i32
  }
  func.func @transform_1(%arg0: i32, %arg1: i32, %arg2: i32) -> (i32, i32) {
    %c0_i32 = arith.constant 0 : i32
    return %arg2, %arg1 : i32, i32
  }
  func.func @transform_2(%arg0: i32, %arg1: i32, %arg2: i32) -> (i32, i32) {
    %c0_i32 = arith.constant 0 : i32
    %c0_i32_0 = arith.constant 0 : i32
    return %c0_i32, %arg1 : i32, i32
  }
  func.func @transform_3(%arg0: i32, %arg1: i32, %arg2: i32) -> (i32, i32) {
    %c0_i32 = arith.constant 0 : i32
    return %arg0, %arg1 : i32, i32
  }
}

</mosaic_0001>

<llo_original>
// kernel: simple_cnn_forward.5
$region0: #{simple_cnn_forward.5}
  #allocation0 [shape = 'u32[]', space=smem, size = 0x4, offset = 0x4, fixed_abs, tag = 'smem constant byte address 0x4 - core index']
  #allocation1 [shape = 'u32[144,128]{1,0:T(1,128)}', space=vmem, size = 0x12000, scoped, tag = 'internal scratch']
  %s0 = inlined_call_operand.vmem [shape: f32[2,512], index: 0, kind: input, shape index: {}]
  %s1 = inlined_call_operand.vmem [shape: f32[512,10], index: 1, kind: input, shape index: {}]
  %s2 = inlined_call_operand.vmem [shape: f32[1,10], index: 2, kind: input, shape index: {}]
  %s3 = inlined_call_operand.hbm [shape: f32[2,10], index: 3, kind: output, shape index: {}]
  %s4 = sld [smem:[#allocation0]]
  $region30: #{simple_cnn_forward.5} parent=0
    _
  %s6 = ssub.s32 1, %s4
  %s7 = scalar_select 0, %s6, %s4
  $region1: #{simple_cnn_forward.5} parent=0
    #allocation2 [shape = 'u8[1024]{0}', space=vmem, size = 0x400, scoped, tag = 'output window, operand 0, single buffered']
    #allocation3 [shape = 's32[1]{0}', space=sflag, size = 0x4, scoped, tag = 'scoped memory for simple_cnn_forward.5']
    %8 = vsyncpa [#allocation3], 0
    // Predicated region
    $region2: #{simple_cnn_forward.5} parent=1 // pred_check
      _
    $region3: #{simple_cnn_forward.5} parent=1 // pred_check_branch
      %10 = sbr.rel (0) target = $region5
    $region4: #{simple_cnn_forward.5} parent=1 // pred_region
      _
    $region5: #{simple_cnn_forward.5} parent=1 // pred_fallthru
      _
    // Predicated region
    $region6: #{simple_cnn_forward.5} parent=1 // pred_check
      _
    $region7: #{simple_cnn_forward.5} parent=1 // pred_check_branch
      %12 = sbr.rel (0) target = $region9
    $region8: #{simple_cnn_forward.5} parent=1 // pred_region
      _
    $region9: #{simple_cnn_forward.5} parent=1 // pred_fallthru
      _
    // Predicated region
    $region10: #{simple_cnn_forward.5} parent=1 // pred_check
      _
    $region11: #{simple_cnn_forward.5} parent=1 // pred_check_branch
      %14 = sbr.rel (0) target = $region13
    $region12: #{simple_cnn_forward.5} parent=1 // pred_region
      _
    $region13: #{simple_cnn_forward.5} parent=1 // pred_fallthru
      _
    %p15 = scmp.eq.s32.totalorder 0, 0
    // Predicated region
    $region14: #{simple_cnn_forward.5} parent=1 // pred_check
      %p16 = pneg %p15
    $region15: #{simple_cnn_forward.5} parent=1 // pred_check_branch
      %18 = sbr.rel (%p16) target = $region17
    $region16: #{simple_cnn_forward.5} parent=1 // pred_region
      %vm19 = vcmask 74752
      %20 = vst.msk [vmem:[#allocation2] sm:$0x3] %vm19, 0.0
    $region17: #{simple_cnn_forward.5} parent=1 // pred_fallthru
      _
    %v21 = vld [vmem:[#allocation2] sm:$0x3]
    %v22 = vld [vmem:[%s0] sm:$0xff]
    %v23 = vld [vmem:[%s1] sm:$0xff]
    %v24 = vld [vmem:[%s1 + $0x8] sm:$0xff]
    %v25 = vld [vmem:[%s1 + $0x10] sm:$0xff]
    %v26 = vld [vmem:[%s1 + $0x18] sm:$0xff]
    %v27 = vld [vmem:[%s1 + $0x20] sm:$0xff]
    %v28 = vld [vmem:[%s1 + $0x28] sm:$0xff]
    %v29 = vld [vmem:[%s1 + $0x30] sm:$0xff]
    %v30 = vld [vmem:[%s1 + $0x38] sm:$0xff]
    %v31 = vld [vmem:[%s1 + $0x40] sm:$0xff]
    %v32 = vld [vmem:[%s1 + $0x48] sm:$0xff]
    %v33 = vld [vmem:[%s1 + $0x50] sm:$0xff]
    %v34 = vld [vmem:[%s1 + $0x58] sm:$0xff]
    %v35 = vld [vmem:[%s1 + $0x60] sm:$0xff]
    %v36 = vld [vmem:[%s1 + $0x68] sm:$0xff]
    %v37 = vld [vmem:[%s1 + $0x70] sm:$0xff]
    %v38 = vld [vmem:[%s1 + $0x78] sm:$0xff]
    %v39 = vld [vmem:[%s1 + $0x80] sm:$0xff]
    %v40 = vld [vmem:[%s1 + $0x88] sm:$0xff]
    %v41 = vld [vmem:[%s1 + $0x90] sm:$0xff]
    %v42 = vld [vmem:[%s1 + $0x98] sm:$0xff]
    %v43 = vld [vmem:[%s1 + $0xa0] sm:$0xff]
    %v44 = vld [vmem:[%s1 + $0xa8] sm:$0xff]
    %v45 = vld [vmem:[%s1 + $0xb0] sm:$0xff]
    %v46 = vld [vmem:[%s1 + $0xb8] sm:$0xff]
    %v47 = vld [vmem:[%s1 + $0xc0] sm:$0xff]
    %v48 = vld [vmem:[%s1 + $0xc8] sm:$0xff]
    %v49 = vld [vmem:[%s1 + $0xd0] sm:$0xff]
    %v50 = vld [vmem:[%s1 + $0xd8] sm:$0xff]
    %v51 = vld [vmem:[%s1 + $0xe0] sm:$0xff]
    %v52 = vld [vmem:[%s1 + $0xe8] sm:$0xff]
    %v53 = vld [vmem:[%s1 + $0xf0] sm:$0xff]
    %v54 = vld [vmem:[%s1 + $0xf8] sm:$0xff]
    %v55 = vld [vmem:[%s1 + $0x100] sm:$0xff]
    %v56 = vld [vmem:[%s1 + $0x108] sm:$0xff]
    %v57 = vld [vmem:[%s1 + $0x110] sm:$0xff]
    %v58 = vld [vmem:[%s1 + $0x118] sm:$0xff]
    %v59 = vld [vmem:[%s1 + $0x120] sm:$0xff]
    %v60 = vld [vmem:[%s1 + $0x128] sm:$0xff]
    %v61 = vld [vmem:[%s1 + $0x130] sm:$0xff]
    %v62 = vld [vmem:[%s1 + $0x138] sm:$0xff]
    %v63 = vld [vmem:[%s1 + $0x140] sm:$0xff]
    %v64 = vld [vmem:[%s1 + $0x148] sm:$0xff]
    %v65 = vld [vmem:[%s1 + $0x150] sm:$0xff]
    %v66 = vld [vmem:[%s1 + $0x158] sm:$0xff]
    %v67 = vld [vmem:[%s1 + $0x160] sm:$0xff]
    %v68 = vld [vmem:[%s1 + $0x168] sm:$0xff]
    %v69 = vld [vmem:[%s1 + $0x170] sm:$0xff]
    %v70 = vld [vmem:[%s1 + $0x178] sm:$0xff]
    %v71 = vld [vmem:[%s1 + $0x180] sm:$0xff]
    %v72 = vld [vmem:[%s1 + $0x188] sm:$0xff]
    %v73 = vld [vmem:[%s1 + $0x190] sm:$0xff]
    %v74 = vld [vmem:[%s1 + $0x198] sm:$0xff]
    %v75 = vld [vmem:[%s1 + $0x1a0] sm:$0xff]
    %v76 = vld [vmem:[%s1 + $0x1a8] sm:$0xff]
    %v77 = vld [vmem:[%s1 + $0x1b0] sm:$0xff]
    %v78 = vld [vmem:[%s1 + $0x1b8] sm:$0xff]
    %v79 = vld [vmem:[%s1 + $0x1c0] sm:$0xff]
    %v80 = vld [vmem:[%s1 + $0x1c8] sm:$0xff]
    %v81 = vld [vmem:[%s1 + $0x1d0] sm:$0xff]
    %v82 = vld [vmem:[%s1 + $0x1d8] sm:$0xff]
    %v83 = vld [vmem:[%s1 + $0x1e0] sm:$0xff]
    %v84 = vld [vmem:[%s1 + $0x1e8] sm:$0xff]
    %v85 = vld [vmem:[%s1 + $0x1f0] sm:$0xff]
    %v86 = vld [vmem:[%s1 + $0x1f8] sm:$0xff]
    %v88 = vcombine.high %v22, %v22
    %v90 = vunpack.c.l.s4 1983009808
    %v91 = vunpack.c.0.s8 %v90
    %v92 = vlaneseq
    %v93 = vshrl.u32 %v92, 7
    %v94 = vsub.s32 %v91, %v93
    %v95 = vrot.slane %v22, %v94
    %v97 = vunpack.c.l.s4 1983009808
    %v98 = vunpack.c.0.s8 %v97
    %v99 = vlaneseq
    %v100 = vshrl.u32 %v99, 7
    %v101 = vsub.s32 %v98, %v100
    %v102 = vrot.slane %v88, %v101
    %v103 = vcombine.high %v95, %v95
    %v104 = vcombine.high %v102, %v102
    %109 = vmatprep.subr.mxu0 0.0
    %110 = vmatpush1.msra.mxu0 %v23
    %111 = vmatprep.subr.mxu0 0.0
    %112 = vmatpush1.msra.mxu0 %v24
    %113 = vmatprep.subr.mxu0 0.0
    %114 = vmatpush1.msra.mxu0 %v25
    %115 = vmatprep.subr.mxu0 0.0
    %116 = vmatpush1.msra.mxu0 %v26
    %117 = vmatprep.subr.mxu0 0.0
    %118 = vmatpush1.msra.mxu0 %v27
    %119 = vmatprep.subr.mxu0 0.0
    %120 = vmatpush1.msra.mxu0 %v28
    %121 = vmatprep.subr.mxu0 0.0
    %122 = vmatpush1.msra.mxu0 %v29
    %123 = vmatprep.subr.mxu0 0.0
    %124 = vmatpush1.msra.mxu0 %v30
    %125 = vmatprep.subr.mxu0 0.0
    %126 = vmatpush1.msra.mxu0 %v31
    %127 = vmatprep.subr.mxu0 0.0
    %128 = vmatpush1.msra.mxu0 %v32
    %129 = vmatprep.subr.mxu0 0.0
    %130 = vmatpush1.msra.mxu0 %v33
    %131 = vmatprep.subr.mxu0 0.0
    %132 = vmatpush1.msra.mxu0 %v34
    %133 = vmatprep.subr.mxu0 0.0
    %134 = vmatpush1.msra.mxu0 %v35
    %135 = vmatprep.subr.mxu0 0.0
    %136 = vmatpush1.msra.mxu0 %v36
    %137 = vmatprep.subr.mxu0 0.0
    %138 = vmatpush1.msra.mxu0 %v37
    %139 = vmatprep.subr.mxu0 0.0
    %140 = vmatpush1.msra.mxu0 %v38
    %141 = vmatprep.subr.mxu0 0.0
    %142 = vmatpush1.msra.mxu0 %v39
    %143 = vmatprep.subr.mxu0 0.0
    %144 = vmatpush1.msra.mxu0 %v40
    %145 = vmatprep.subr.mxu0 0.0
    %146 = vmatpush1.msra.mxu0 %v41
    %147 = vmatprep.subr.mxu0 0.0
    %148 = vmatpush1.msra.mxu0 %v42
    %149 = vmatprep.subr.mxu0 0.0
    %150 = vmatpush1.msra.mxu0 %v43
    %151 = vmatprep.subr.mxu0 0.0
    %152 = vmatpush1.msra.mxu0 %v44
    %153 = vmatprep.subr.mxu0 0.0
    %154 = vmatpush1.msra.mxu0 %v45
    %155 = vmatprep.subr.mxu0 0.0
    %156 = vmatpush1.msra.mxu0 %v46
    %157 = vmatprep.subr.mxu0 0.0
    %158 = vmatpush1.msra.mxu0 %v47
    %159 = vmatprep.subr.mxu0 0.0
    %160 = vmatpush1.msra.mxu0 %v48
    %161 = vmatprep.subr.mxu0 0.0
    %162 = vmatpush1.msra.mxu0 %v49
    %163 = vmatprep.subr.mxu0 0.0
    %164 = vmatpush1.msra.mxu0 %v50
    %165 = vmatprep.subr.mxu0 0.0
    %166 = vmatpush1.msra.mxu0 %v51
    %167 = vmatprep.subr.mxu0 0.0
    %168 = vmatpush1.msra.mxu0 %v52
    %169 = vmatprep.subr.mxu0 0.0
    %170 = vmatpush1.msra.mxu0 %v53
    %171 = vmatprep.subr.mxu0 0.0
    %172 = vmatpush1.msra.mxu0 %v54
    %173 = vmatprep.mubr.f32.mxu0 %v103
    %174 = vmatmul.mubr.f32.gmra.mrb[0].mxu0 %v95
    %v175 = vpop.f32.mrb[0].mxu0
    %v176 = vadd.f32 0.0, %v175
    %v177 = vpop.f32.mrb[0].mxu0
    %178 = vdwg.mxu0
    %179 = vmatprep.subr.mxu0 0.0
    %180 = vmatpush1.msra.mxu0 %v55
    %181 = vmatprep.subr.mxu0 0.0
    %182 = vmatpush1.msra.mxu0 %v56
    %183 = vmatprep.subr.mxu0 0.0
    %184 = vmatpush1.msra.mxu0 %v57
    %185 = vmatprep.subr.mxu0 0.0
    %186 = vmatpush1.msra.mxu0 %v58
    %187 = vmatprep.subr.mxu0 0.0
    %188 = vmatpush1.msra.mxu0 %v59
    %189 = vmatprep.subr.mxu0 0.0
    %190 = vmatpush1.msra.mxu0 %v60
    %191 = vmatprep.subr.mxu0 0.0
    %192 = vmatpush1.msra.mxu0 %v61
    %193 = vmatprep.subr.mxu0 0.0
    %194 = vmatpush1.msra.mxu0 %v62
    %195 = vmatprep.subr.mxu0 0.0
    %196 = vmatpush1.msra.mxu0 %v63
    %197 = vmatprep.subr.mxu0 0.0
    %198 = vmatpush1.msra.mxu0 %v64
    %199 = vmatprep.subr.mxu0 0.0
    %200 = vmatpush1.msra.mxu0 %v65
    %201 = vmatprep.subr.mxu0 0.0
    %202 = vmatpush1.msra.mxu0 %v66
    %203 = vmatprep.subr.mxu0 0.0
    %204 = vmatpush1.msra.mxu0 %v67
    %205 = vmatprep.subr.mxu0 0.0
    %206 = vmatpush1.msra.mxu0 %v68
    %207 = vmatprep.subr.mxu0 0.0
    %208 = vmatpush1.msra.mxu0 %v69
    %209 = vmatprep.subr.mxu0 0.0
    %210 = vmatpush1.msra.mxu0 %v70
    %211 = vmatprep.subr.mxu0 0.0
    %212 = vmatpush1.msra.mxu0 %v71
    %213 = vmatprep.subr.mxu0 0.0
    %214 = vmatpush1.msra.mxu0 %v72
    %215 = vmatprep.subr.mxu0 0.0
    %216 = vmatpush1.msra.mxu0 %v73
    %217 = vmatprep.subr.mxu0 0.0
    %218 = vmatpush1.msra.mxu0 %v74
    %219 = vmatprep.subr.mxu0 0.0
    %220 = vmatpush1.msra.mxu0 %v75
    %221 = vmatprep.subr.mxu0 0.0
    %222 = vmatpush1.msra.mxu0 %v76
    %223 = vmatprep.subr.mxu0 0.0
    %224 = vmatpush1.msra.mxu0 %v77
    %225 = vmatprep.subr.mxu0 0.0
    %226 = vmatpush1.msra.mxu0 %v78
    %227 = vmatprep.subr.mxu0 0.0
    %228 = vmatpush1.msra.mxu0 %v79
    %229 = vmatprep.subr.mxu0 0.0
    %230 = vmatpush1.msra.mxu0 %v80
    %231 = vmatprep.subr.mxu0 0.0
    %232 = vmatpush1.msra.mxu0 %v81
    %233 = vmatprep.subr.mxu0 0.0
    %234 = vmatpush1.msra.mxu0 %v82
    %235 = vmatprep.subr.mxu0 0.0
    %236 = vmatpush1.msra.mxu0 %v83
    %237 = vmatprep.subr.mxu0 0.0
    %238 = vmatpush1.msra.mxu0 %v84
    %239 = vmatprep.subr.mxu0 0.0
    %240 = vmatpush1.msra.mxu0 %v85
    %241 = vmatprep.subr.mxu0 0.0
    %242 = vmatpush1.msra.mxu0 %v86
    %243 = vmatprep.mubr.f32.mxu0 %v104
    %244 = vmatmul.mubr.f32.gmra.mrb[0].mxu0 %v102
    %v245 = vpop.f32.mrb[0].mxu0
    %v246 = vadd.f32 %v176, %v245
    %v247 = vpop.f32.mrb[0].mxu0
    %248 = vdwg.mxu0
    %v249 = vadd.f32 %v21, %v246
    %vm250 = vcmask 74752
    %251 = vst.msk [vmem:[#allocation2] sm:$0x3] %vm250, %v249
    // Predicated region
    $region18: #{simple_cnn_forward.5} parent=1 // pred_check
      %p252 = pneg %p15
    $region19: #{simple_cnn_forward.5} parent=1 // pred_check_branch
      %254 = sbr.rel (%p252) target = $region21
    $region20: #{simple_cnn_forward.5} parent=1 // pred_region
      %v255 = vld [vmem:[#allocation2] sm:$0x3]
      %v256 = vld [vmem:[%s2] sm:$0x1]
      %v258 = vlaneseq
      %v259 = vshrl.u32 %v258, 7
      %v260 = vsub.s32 0, %v259
      %v261 = vrot.slane %v256, %v260
      %v263 = vadd.f32 %v255, %v261
      %264 = vst.msk [vmem:[#allocation2] sm:$0x3] %vm250, %v263
    $region21: #{simple_cnn_forward.5} parent=1 // pred_fallthru
      _
    // Predicated region
    $region22: #{simple_cnn_forward.5} parent=1 // pred_check
      _
    $region23: #{simple_cnn_forward.5} parent=1 // pred_check_branch
      %266 = sbr.rel (0) target = $region25
    $region24: #{simple_cnn_forward.5} parent=1 // pred_region
      %s268 = ssub.s32 32, 32
      %269 = vsyncadd [#allocation3], %s268
      %s271 = sshll.u32 [#allocation2], 4
      %s272 = int_to_ptr.vmem [resolvable:$true] %s271
      %274 = dma.vmem_to_hbm [thread:$0]  %s272, 32, %s3, [#allocation3]
    $region25: #{simple_cnn_forward.5} parent=1 // pred_fallthru
      _
    // Predicated region
    $region26: #{simple_cnn_forward.5} parent=1 // pred_check
      _
    $region27: #{simple_cnn_forward.5} parent=1 // pred_check_branch
      %276 = sbr.rel (0) target = $region29
    $region28: #{simple_cnn_forward.5} parent=1 // pred_region
      %277 = dma.done [#allocation3], 32
    $region29: #{simple_cnn_forward.5} parent=1 // pred_fallthru
      _
    %278 = vsyncpa [#allocation3], 1

// kernel: simple_cnn_forward.4
$region0: #{simple_cnn_forward.4}
  #allocation0 [shape = 'u32[]', space=smem, size = 0x4, offset = 0x4, fixed_abs, tag = 'smem constant byte address 0x4 - core index']
  #allocation1 [shape = 'u32[144,128]{1,0:T(1,128)}', space=vmem, size = 0x12000, scoped, tag = 'internal scratch']
  %s0 = inlined_call_operand.vmem [shape: bf16[2,4096], index: 0, kind: input, shape index: {}]
  %s1 = inlined_call_operand.vmem [shape: bf16[4096,512], index: 1, kind: input, shape index: {}]
  %s2 = inlined_call_operand.vmem [shape: f32[1,512], index: 2, kind: input, shape index: {}]
  %s3 = inlined_call_operand.vmem [shape: f32[2,512], index: 3, kind: output, shape index: {}]
  %s4 = sld [smem:[#allocation0]]
  $region91: #{simple_cnn_forward.4} parent=0
    _
  %s6 = ssub.s32 1, %s4
  %s7 = scalar_select 0, %s6, %s4
  $region1: #{simple_cnn_forward.4} parent=0
    #allocation2 [shape = 'u8[524288]{0}', space=vmem, size = 0x80000, scoped, tag = 'input window, operand 1']
    loop: start=0, step=1, limit=18
    $region2: #{simple_cnn_forward.4} parent=1 // loop_pre_header
      _
    $region3: #{simple_cnn_forward.4} parent=1 // loop_header
      %s9 = sphi 0, %s13
      %p10 = scmp.ge.s32.totalorder %s9, 18
      %s16 = sphi 0, %s35
      %s17 = sphi 0, %s31
      %s18 = sphi 0, %s27
      %s19 = sphi 0, %s16
      %s20 = sphi 0, %s17
      %s21 = sphi 0, %s18
      %s22 = sphi 0, %s19
      %s23 = sphi 0, %s20
      %s24 = sphi 0, %s21
      %s40 = sphi 0, %s42
      %s43 = sphi 0, %s40
      %s44 = sphi 0, %s43
      %s60 = sphi 0, %s44
      %s68 = sphi 0, %s70
      %s71 = sphi 0, %s68
      %s72 = sphi 0, %s71
      %s88 = sphi 0, %s72
      %s94 = sphi 0, %s96
      %s97 = sphi 0, %s94
      %s98 = sphi 0, %s97
      %s114 = sphi 0, %s98
      %s122 = sphi 0, %s124
      %s125 = sphi 0, %s122
      %s126 = sphi 0, %s125
      %s142 = sphi 0, %s126
    $region4: #{simple_cnn_forward.4} parent=1 // loop_header_branch
      %12 = sbr.rel (%p10) target = $region8
    $region5: #{simple_cnn_forward.4} parent=1 // loop_body
      %s14 = ssub.s32 %s9, 1
      %s15 = ssub.s32 %s9, 2
      %s25 = sadd.s32 1, %s18
      %p26 = scmp.ge.s32.totalorder %s25, 8
      %s27 = scalar_select %p26, 0, %s25
      %s28 = sadd.s32 1, %s17
      %s29 = scalar_select %p26, %s28, %s17
      %p30 = scmp.ge.s32.totalorder %s29, 2
      %s31 = scalar_select %p30, 0, %s29
      %s32 = sadd.s32 1, %s16
      %s33 = scalar_select %p30, %s32, %s16
      %p34 = scmp.ge.s32.totalorder %s33, 1
      %s35 = scalar_select %p34, 0, %s33
      %s36 = ssub.s32 %s16, %s35
      %s37 = ssub.s32 %s18, %s27
      %s38 = sor.u32 %s36, %s37
      %p39 = scmp.eq.s32.totalorder %s38, 0
      %s41 = sadd.s32 %s40, 1
      %s42 = scalar_select %p39, %s40, %s41
      %p45 = pneg %p39
      %p46 = scmp.eq.s32.totalorder %s9, 15
      %p47 = por %p45, %p46
      %p48 = scmp.ne.s32.totalorder %s40, %s43
      %p49 = scmp.eq.s32.totalorder %s9, 0
      %p50 = por %p48, %p49
      %p51 = scmp.ne.s32.totalorder %s40, %s43
      %p52 = scmp.eq.s32.totalorder %s14, 15
      %p53 = por %p51, %p52
      %p54 = scmp.ne.s32.totalorder %s43, %s44
      %p55 = scmp.eq.s32.totalorder %s14, 0
      %p56 = por %p54, %p55
      %p57 = scmp.ne.s32.totalorder %s43, %s44
      %p58 = scmp.eq.s32.totalorder %s15, 15
      %p59 = por %p57, %p58
      %p61 = scmp.ne.s32.totalorder %s44, %s60
      %p62 = scmp.eq.s32.totalorder %s15, 0
      %p63 = por %p61, %p62
      %s64 = ssub.s32 %s18, %s27
      %s65 = ssub.s32 %s17, %s31
      %s66 = sor.u32 %s64, %s65
      %p67 = scmp.eq.s32.totalorder %s66, 0
      %s69 = sadd.s32 %s68, 1
      %s70 = scalar_select %p67, %s68, %s69
      %p73 = pneg %p67
      %p74 = scmp.eq.s32.totalorder %s9, 15
      %p75 = por %p73, %p74
      %p76 = scmp.ne.s32.totalorder %s68, %s71
      %p77 = scmp.eq.s32.totalorder %s9, 0
      %p78 = por %p76, %p77
      %p79 = scmp.ne.s32.totalorder %s68, %s71
      %p80 = scmp.eq.s32.totalorder %s14, 15
      %p81 = por %p79, %p80
      %p82 = scmp.ne.s32.totalorder %s71, %s72
      %p83 = scmp.eq.s32.totalorder %s14, 0
      %p84 = por %p82, %p83
      %p85 = scmp.ne.s32.totalorder %s71, %s72
      %p86 = scmp.eq.s32.totalorder %s15, 15
      %p87 = por %p85, %p86
      %p89 = scmp.ne.s32.totalorder %s72, %s88
      %p90 = scmp.eq.s32.totalorder %s15, 0
      %p91 = por %p89, %p90
      %s92 = ssub.s32 %s17, %s31
      %p93 = scmp.eq.s32.totalorder %s92, 0
      %s95 = sadd.s32 %s94, 1
      %s96 = scalar_select %p93, %s94, %s95
      %p99 = pneg %p93
      %p100 = scmp.eq.s32.totalorder %s9, 15
      %p101 = por %p99, %p100
      %p102 = scmp.ne.s32.totalorder %s94, %s97
      %p103 = scmp.eq.s32.totalorder %s9, 0
      %p104 = por %p102, %p103
      %p105 = scmp.ne.s32.totalorder %s94, %s97
      %p106 = scmp.eq.s32.totalorder %s14, 15
      %p107 = por %p105, %p106
      %p108 = scmp.ne.s32.totalorder %s97, %s98
      %p109 = scmp.eq.s32.totalorder %s14, 0
      %p110 = por %p108, %p109
      %p111 = scmp.ne.s32.totalorder %s97, %s98
      %p112 = scmp.eq.s32.totalorder %s15, 15
      %p113 = por %p111, %p112
      %p115 = scmp.ne.s32.totalorder %s98, %s114
      %p116 = scmp.eq.s32.totalorder %s15, 0
      %p117 = por %p115, %p116
      %s118 = ssub.s32 %s16, %s35
      %s119 = ssub.s32 %s17, %s31
      %s120 = sor.u32 %s118, %s119
      %p121 = scmp.eq.s32.totalorder %s120, 0
      %s123 = sadd.s32 %s122, 1
      %s124 = scalar_select %p121, %s122, %s123
      %p127 = pneg %p121
      %p128 = scmp.eq.s32.totalorder %s9, 15
      %p129 = por %p127, %p128
      %p130 = scmp.ne.s32.totalorder %s122, %s125
      %p131 = scmp.eq.s32.totalorder %s9, 0
      %p132 = por %p130, %p131
      %p133 = scmp.ne.s32.totalorder %s122, %s125
      %p134 = scmp.eq.s32.totalorder %s14, 15
      %p135 = por %p133, %p134
      %p136 = scmp.ne.s32.totalorder %s125, %s126
      %p137 = scmp.eq.s32.totalorder %s14, 0
      %p138 = por %p136, %p137
      %p139 = scmp.ne.s32.totalorder %s125, %s126
      %p140 = scmp.eq.s32.totalorder %s15, 15
      %p141 = por %p139, %p140
      %p143 = scmp.ne.s32.totalorder %s126, %s142
      %p144 = scmp.eq.s32.totalorder %s15, 0
      %p145 = por %p143, %p144
      %p146 = scmp.le.s32.totalorder 1, %s9
      %p147 = scmp.lt.s32.totalorder %s9, 17
      %p148 = pnand %p146, %p147
      %p149 = pneg %p148
      // Predicated region
      $region9: #{simple_cnn_forward.4} parent=5 // pred_check
        _
      $region10: #{simple_cnn_forward.4} parent=5 // pred_check_branch
        %151 = sbr.rel (%p148) target = $region12
      $region11: #{simple_cnn_forward.4} parent=5 // pred_region
        %s152 = ssub.s32 %s9, 1
      $region12: #{simple_cnn_forward.4} parent=5 // pred_fallthru
        _
      %p153 = scmp.lt.s32.totalorder %s9, 16
      // Predicated region
      $region13: #{simple_cnn_forward.4} parent=5 // pred_check
        %p154 = pneg %p153
      $region14: #{simple_cnn_forward.4} parent=5 // pred_check_branch
        %156 = sbr.rel (%p154) target = $region16
      $region15: #{simple_cnn_forward.4} parent=5 // pred_region
        // Predicated region
        $region17: #{simple_cnn_forward.4} parent=15 // pred_check
          %p157 = pneg %p50
        $region18: #{simple_cnn_forward.4} parent=15 // pred_check_branch
          %159 = sbr.rel (%p157) target = $region20
        $region19: #{simple_cnn_forward.4} parent=15 // pred_region
          %s160 = smul.u32 4, %s18
          %p161 = scmp.lt.s32.totalorder %s16, 0
          %s162 = scalar_select %p161, %s16, 0
          %p163 = scmp.lt.s32.totalorder %s160, 31
          %s164 = scalar_select %p163, %s160, 31
          %s165 = smul.addr %s162, 32
          %s166 = sadd.s32 %s164, %s165
          %s167 = scalar_lea.vmem %s0, %s166
          %s168 = smul.u32 4, %s18
        $region20: #{simple_cnn_forward.4} parent=15 // pred_fallthru
          _
        // Predicated region
        $region21: #{simple_cnn_forward.4} parent=15 // pred_check
          %p169 = pneg %p78
        $region22: #{simple_cnn_forward.4} parent=15 // pred_check_branch
          %171 = sbr.rel (%p169) target = $region24
        $region23: #{simple_cnn_forward.4} parent=15 // pred_region
          %s172 = sand.u32 %s68, 1
          %s173 = sand.u32 %s68, 1
          %s174 = smul.addr %s173, 512
          %s175 = scalar_lea.vmem [#allocation2], %s174
          %s176 = smul.u32 64, %s18
          %s177 = smul.u32 2, %s17
          %s178 = smul.addr %s176, 4
          %s179 = sadd.s32 %s177, %s178
          %s180 = smul.addr %s179, 4
          %s181 = scalar_lea.vmem %s1, %s180
          // Predicated region
          $region25: #{simple_cnn_forward.4} parent=23 // pred_check
            _
          $region26: #{simple_cnn_forward.4} parent=23 // pred_check_branch
            %183 = sbr.rel (0) target = $region28
          $region27: #{simple_cnn_forward.4} parent=23 // pred_region
            // Predicated region
            $region29: #{simple_cnn_forward.4} parent=27 // pred_check
              _
            $region30: #{simple_cnn_forward.4} parent=27 // pred_check_branch
              %185 = sbr.rel (0) target = $region32
            $region31: #{simple_cnn_forward.4} parent=27 // pred_region
              // Predicated region
              $region44: #{simple_cnn_forward.4} parent=31 // pred_check
                _
              $region45: #{simple_cnn_forward.4} parent=31 // pred_check_branch
                %326 = sbr.rel (0) target = $region47
              $region46: #{simple_cnn_forward.4} parent=31 // pred_region
                loop: start=0, step=1, limit=1
                $region48: #{simple_cnn_forward.4} parent=46 // loop_pre_header
                  _
                $region49: #{simple_cnn_forward.4} parent=46 // loop_header
                  %s328 = sphi 0, %s332
                  %p329 = scmp.ge.s32.totalorder %s328, 1
                  %s333 = sphi %s181, %s181
                  %s334 = sphi %s175, %s175
                $region50: #{simple_cnn_forward.4} parent=46 // loop_header_branch
                  %331 = sbr.rel (%p329) target = $region54
                $region51: #{simple_cnn_forward.4} parent=46 // loop_body
                  %v335 = vld [vmem:[%s333] sm:$0xff]
                  %336 = vst [vmem:[%s334] sm:$0xff] %v335
                  %v337 = vld [vmem:[%s333 + $0x10] sm:$0xff]
                  %338 = vst [vmem:[%s334 + $0x8] sm:$0xff] %v337
                  %v339 = vld [vmem:[%s333 + $0x20] sm:$0xff]
                  %340 = vst [vmem:[%s334 + $0x10] sm:$0xff] %v339
                  %v341 = vld [vmem:[%s333 + $0x30] sm:$0xff]
                  %342 = vst [vmem:[%s334 + $0x18] sm:$0xff] %v341
                  %v343 = vld [vmem:[%s333 + $0x40] sm:$0xff]
                  %344 = vst [vmem:[%s334 + $0x20] sm:$0xff] %v343
                  %v345 = vld [vmem:[%s333 + $0x50] sm:$0xff]
                  %346 = vst [vmem:[%s334 + $0x28] sm:$0xff] %v345
                  %v347 = vld [vmem:[%s333 + $0x60] sm:$0xff]
                  %348 = vst [vmem:[%s334 + $0x30] sm:$0xff] %v347
                  %v349 = vld [vmem:[%s333 + $0x70] sm:$0xff]
                  %350 = vst [vmem:[%s334 + $0x38] sm:$0xff] %v349
                  %v351 = vld [vmem:[%s333 + $0x80] sm:$0xff]
                  %352 = vst [vmem:[%s334 + $0x40] sm:$0xff] %v351
                  %v353 = vld [vmem:[%s333 + $0x90] sm:$0xff]
                  %354 = vst [vmem:[%s334 + $0x48] sm:$0xff] %v353
                  %v355 = vld [vmem:[%s333 + $0xa0] sm:$0xff]
                  %356 = vst [vmem:[%s334 + $0x50] sm:$0xff] %v355
                  %v357 = vld [vmem:[%s333 + $0xb0] sm:$0xff]
                  %358 = vst [vmem:[%s334 + $0x58] sm:$0xff] %v357
                  %v359 = vld [vmem:[%s333 + $0xc0] sm:$0xff]
                  %360 = vst [vmem:[%s334 + $0x60] sm:$0xff] %v359
                  %v361 = vld [vmem:[%s333 + $0xd0] sm:$0xff]
                  %362 = vst [vmem:[%s334 + $0x68] sm:$0xff] %v361
                  %v363 = vld [vmem:[%s333 + $0xe0] sm:$0xff]
                  %364 = vst [vmem:[%s334 + $0x70] sm:$0xff] %v363
                  %v365 = vld [vmem:[%s333 + $0xf0] sm:$0xff]
                  %366 = vst [vmem:[%s334 + $0x78] sm:$0xff] %v365
                  %v367 = vld [vmem:[%s333 + $0x100] sm:$0xff]
                  %368 = vst [vmem:[%s334 + $0x80] sm:$0xff] %v367
                  %v369 = vld [vmem:[%s333 + $0x110] sm:$0xff]
                  %370 = vst [vmem:[%s334 + $0x88] sm:$0xff] %v369
                  %v371 = vld [vmem:[%s333 + $0x120] sm:$0xff]
                  %372 = vst [vmem:[%s334 + $0x90] sm:$0xff] %v371
                  %v373 = vld [vmem:[%s333 + $0x130] sm:$0xff]
                  %374 = vst [vmem:[%s334 + $0x98] sm:$0xff] %v373
                  %v375 = vld [vmem:[%s333 + $0x140] sm:$0xff]
                  %376 = vst [vmem:[%s334 + $0xa0] sm:$0xff] %v375
                  %v377 = vld [vmem:[%s333 + $0x150] sm:$0xff]
                  %378 = vst [vmem:[%s334 + $0xa8] sm:$0xff] %v377
                  %v379 = vld [vmem:[%s333 + $0x160] sm:$0xff]
                  %380 = vst [vmem:[%s334 + $0xb0] sm:$0xff] %v379
                  %v381 = vld [vmem:[%s333 + $0x170] sm:$0xff]
                  %382 = vst [vmem:[%s334 + $0xb8] sm:$0xff] %v381
                  %v383 = vld [vmem:[%s333 + $0x180] sm:$0xff]
                  %384 = vst [vmem:[%s334 + $0xc0] sm:$0xff] %v383
                  %v385 = vld [vmem:[%s333 + $0x190] sm:$0xff]
                  %386 = vst [vmem:[%s334 + $0xc8] sm:$0xff] %v385
                  %v387 = vld [vmem:[%s333 + $0x1a0] sm:$0xff]
                  %388 = vst [vmem:[%s334 + $0xd0] sm:$0xff] %v387
                  %v389 = vld [vmem:[%s333 + $0x1b0] sm:$0xff]
                  %390 = vst [vmem:[%s334 + $0xd8] sm:$0xff] %v389
                  %v391 = vld [vmem:[%s333 + $0x1c0] sm:$0xff]
                  %392 = vst [vmem:[%s334 + $0xe0] sm:$0xff] %v391
                  %v393 = vld [vmem:[%s333 + $0x1d0] sm:$0xff]
                  %394 = vst [vmem:[%s334 + $0xe8] sm:$0xff] %v393
                  %v395 = vld [vmem:[%s333 + $0x1e0] sm:$0xff]
                  %396 = vst [vmem:[%s334 + $0xf0] sm:$0xff] %v395
                  %v397 = vld [vmem:[%s333 + $0x1f0] sm:$0xff]
                  %398 = vst [vmem:[%s334 + $0xf8] sm:$0xff] %v397
                  %v399 = vld [vmem:[%s333 + $0x200] sm:$0xff]
                  %400 = vst [vmem:[%s334 + $0x100] sm:$0xff] %v399
                  %v401 = vld [vmem:[%s333 + $0x210] sm:$0xff]
                  %402 = vst [vmem:[%s334 + $0x108] sm:$0xff] %v401
                  %v403 = vld [vmem:[%s333 + $0x220] sm:$0xff]
                  %404 = vst [vmem:[%s334 + $0x110] sm:$0xff] %v403
                  %v405 = vld [vmem:[%s333 + $0x230] sm:$0xff]
                  %406 = vst [vmem:[%s334 + $0x118] sm:$0xff] %v405
                  %v407 = vld [vmem:[%s333 + $0x240] sm:$0xff]
                  %408 = vst [vmem:[%s334 + $0x120] sm:$0xff] %v407
                  %v409 = vld [vmem:[%s333 + $0x250] sm:$0xff]
                  %410 = vst [vmem:[%s334 + $0x128] sm:$0xff] %v409
                  %v411 = vld [vmem:[%s333 + $0x260] sm:$0xff]
                  %412 = vst [vmem:[%s334 + $0x130] sm:$0xff] %v411
                  %v413 = vld [vmem:[%s333 + $0x270] sm:$0xff]
                  %414 = vst [vmem:[%s334 + $0x138] sm:$0xff] %v413
                  %v415 = vld [vmem:[%s333 + $0x280] sm:$0xff]
                  %416 = vst [vmem:[%s334 + $0x140] sm:$0xff] %v415
                  %v417 = vld [vmem:[%s333 + $0x290] sm:$0xff]
                  %418 = vst [vmem:[%s334 + $0x148] sm:$0xff] %v417
                  %v419 = vld [vmem:[%s333 + $0x2a0] sm:$0xff]
                  %420 = vst [vmem:[%s334 + $0x150] sm:$0xff] %v419
                  %v421 = vld [vmem:[%s333 + $0x2b0] sm:$0xff]
                  %422 = vst [vmem:[%s334 + $0x158] sm:$0xff] %v421
                  %v423 = vld [vmem:[%s333 + $0x2c0] sm:$0xff]
                  %424 = vst [vmem:[%s334 + $0x160] sm:$0xff] %v423
                  %v425 = vld [vmem:[%s333 + $0x2d0] sm:$0xff]
                  %426 = vst [vmem:[%s334 + $0x168] sm:$0xff] %v425
                  %v427 = vld [vmem:[%s333 + $0x2e0] sm:$0xff]
                  %428 = vst [vmem:[%s334 + $0x170] sm:$0xff] %v427
                  %v429 = vld [vmem:[%s333 + $0x2f0] sm:$0xff]
                  %430 = vst [vmem:[%s334 + $0x178] sm:$0xff] %v429
                  %v431 = vld [vmem:[%s333 + $0x300] sm:$0xff]
                  %432 = vst [vmem:[%s334 + $0x180] sm:$0xff] %v431
                  %v433 = vld [vmem:[%s333 + $0x310] sm:$0xff]
                  %434 = vst [vmem:[%s334 + $0x188] sm:$0xff] %v433
                  %v435 = vld [vmem:[%s333 + $0x320] sm:$0xff]
                  %436 = vst [vmem:[%s334 + $0x190] sm:$0xff] %v435
                  %v437 = vld [vmem:[%s333 + $0x330] sm:$0xff]
                  %438 = vst [vmem:[%s334 + $0x198] sm:$0xff] %v437
                  %v439 = vld [vmem:[%s333 + $0x340] sm:$0xff]
                  %440 = vst [vmem:[%s334 + $0x1a0] sm:$0xff] %v439
                  %v441 = vld [vmem:[%s333 + $0x350] sm:$0xff]
                  %442 = vst [vmem:[%s334 + $0x1a8] sm:$0xff] %v441
                  %v443 = vld [vmem:[%s333 + $0x360] sm:$0xff]
                  %444 = vst [vmem:[%s334 + $0x1b0] sm:$0xff] %v443
                  %v445 = vld [vmem:[%s333 + $0x370] sm:$0xff]
                  %446 = vst [vmem:[%s334 + $0x1b8] sm:$0xff] %v445
                  %v447 = vld [vmem:[%s333 + $0x380] sm:$0xff]
                  %448 = vst [vmem:[%s334 + $0x1c0] sm:$0xff] %v447
                  %v449 = vld [vmem:[%s333 + $0x390] sm:$0xff]
                  %450 = vst [vmem:[%s334 + $0x1c8] sm:$0xff] %v449
                  %v451 = vld [vmem:[%s333 + $0x3a0] sm:$0xff]
                  %452 = vst [vmem:[%s334 + $0x1d0] sm:$0xff] %v451
                  %v453 = vld [vmem:[%s333 + $0x3b0] sm:$0xff]
                  %454 = vst [vmem:[%s334 + $0x1d8] sm:$0xff] %v453
                  %v455 = vld [vmem:[%s333 + $0x3c0] sm:$0xff]
                  %456 = vst [vmem:[%s334 + $0x1e0] sm:$0xff] %v455
                  %v457 = vld [vmem:[%s333 + $0x3d0] sm:$0xff]
                  %458 = vst [vmem:[%s334 + $0x1e8] sm:$0xff] %v457
                  %v459 = vld [vmem:[%s333 + $0x3e0] sm:$0xff]
                  %460 = vst [vmem:[%s334 + $0x1f0] sm:$0xff] %v459
                  %v461 = vld [vmem:[%s333 + $0x3f0] sm:$0xff]
                  %462 = vst [vmem:[%s334 + $0x1f8] sm:$0xff] %v461
                $region52: #{simple_cnn_forward.4} parent=46 // loop_footer
                  %s332 = sadd.s32 1, %s328
                $region53: #{simple_cnn_forward.4} parent=46 // loop_footer_branch
                  %327 = sbr.rel target = $region49
                $region54: #{simple_cnn_forward.4} parent=46 // loop_exit
                  _
              $region47: #{simple_cnn_forward.4} parent=31 // pred_fallthru
                _
              // Predicated region
              $region55: #{simple_cnn_forward.4} parent=31 // pred_check
                _
              $region56: #{simple_cnn_forward.4} parent=31 // pred_check_branch
                %464 = sbr.rel target = $region58
              $region57: #{simple_cnn_forward.4} parent=31 // pred_region
                _
              $region58: #{simple_cnn_forward.4} parent=31 // pred_fallthru
                _
            $region32: #{simple_cnn_forward.4} parent=27 // pred_fallthru
              _
            // Predicated region
            $region33: #{simple_cnn_forward.4} parent=27 // pred_check
              _
            $region34: #{simple_cnn_forward.4} parent=27 // pred_check_branch
              %187 = sbr.rel target = $region36
            $region35: #{simple_cnn_forward.4} parent=27 // pred_region
              loop: start=0, step=1, limit=1
              $region37: #{simple_cnn_forward.4} parent=35 // loop_pre_header
                _
              $region38: #{simple_cnn_forward.4} parent=35 // loop_header
                %s190 = sphi 0, %s194
                %p191 = scmp.ge.s32.totalorder %s190, 1
                %s195 = sphi %s181, %s181
                %s196 = sphi %s175, %s175
              $region39: #{simple_cnn_forward.4} parent=35 // loop_header_branch
                %193 = sbr.rel (%p191) target = $region43
              $region40: #{simple_cnn_forward.4} parent=35 // loop_body
                %v197 = vld [vmem:[%s195] sm:$0xff]
                %198 = vst [vmem:[%s196] sm:$0xff] %v197
                %v199 = vld [vmem:[%s195 + $0x10] sm:$0xff]
                %200 = vst [vmem:[%s196 + $0x8] sm:$0xff] %v199
                %v201 = vld [vmem:[%s195 + $0x20] sm:$0xff]
                %202 = vst [vmem:[%s196 + $0x10] sm:$0xff] %v201
                %v203 = vld [vmem:[%s195 + $0x30] sm:$0xff]
                %204 = vst [vmem:[%s196 + $0x18] sm:$0xff] %v203
                %v205 = vld [vmem:[%s195 + $0x40] sm:$0xff]
                %206 = vst [vmem:[%s196 + $0x20] sm:$0xff] %v205
                %v207 = vld [vmem:[%s195 + $0x50] sm:$0xff]
                %208 = vst [vmem:[%s196 + $0x28] sm:$0xff] %v207
                %v209 = vld [vmem:[%s195 + $0x60] sm:$0xff]
                %210 = vst [vmem:[%s196 + $0x30] sm:$0xff] %v209
                %v211 = vld [vmem:[%s195 + $0x70] sm:$0xff]
                %212 = vst [vmem:[%s196 + $0x38] sm:$0xff] %v211
                %v213 = vld [vmem:[%s195 + $0x80] sm:$0xff]
                %214 = vst [vmem:[%s196 + $0x40] sm:$0xff] %v213
                %v215 = vld [vmem:[%s195 + $0x90] sm:$0xff]
                %216 = vst [vmem:[%s196 + $0x48] sm:$0xff] %v215
                %v217 = vld [vmem:[%s195 + $0xa0] sm:$0xff]
                %218 = vst [vmem:[%s196 + $0x50] sm:$0xff] %v217
                %v219 = vld [vmem:[%s195 + $0xb0] sm:$0xff]
                %220 = vst [vmem:[%s196 + $0x58] sm:$0xff] %v219
                %v221 = vld [vmem:[%s195 + $0xc0] sm:$0xff]
                %222 = vst [vmem:[%s196 + $0x60] sm:$0xff] %v221
                %v223 = vld [vmem:[%s195 + $0xd0] sm:$0xff]
                %224 = vst [vmem:[%s196 + $0x68] sm:$0xff] %v223
                %v225 = vld [vmem:[%s195 + $0xe0] sm:$0xff]
                %226 = vst [vmem:[%s196 + $0x70] sm:$0xff] %v225
                %v227 = vld [vmem:[%s195 + $0xf0] sm:$0xff]
                %228 = vst [vmem:[%s196 + $0x78] sm:$0xff] %v227
                %v229 = vld [vmem:[%s195 + $0x100] sm:$0xff]
                %230 = vst [vmem:[%s196 + $0x80] sm:$0xff] %v229
                %v231 = vld [vmem:[%s195 + $0x110] sm:$0xff]
                %232 = vst [vmem:[%s196 + $0x88] sm:$0xff] %v231
                %v233 = vld [vmem:[%s195 + $0x120] sm:$0xff]
                %234 = vst [vmem:[%s196 + $0x90] sm:$0xff] %v233
                %v235 = vld [vmem:[%s195 + $0x130] sm:$0xff]
                %236 = vst [vmem:[%s196 + $0x98] sm:$0xff] %v235
                %v237 = vld [vmem:[%s195 + $0x140] sm:$0xff]
                %238 = vst [vmem:[%s196 + $0xa0] sm:$0xff] %v237
                %v239 = vld [vmem:[%s195 + $0x150] sm:$0xff]
                %240 = vst [vmem:[%s196 + $0xa8] sm:$0xff] %v239
                %v241 = vld [vmem:[%s195 + $0x160] sm:$0xff]
                %242 = vst [vmem:[%s196 + $0xb0] sm:$0xff] %v241
                %v243 = vld [vmem:[%s195 + $0x170] sm:$0xff]
                %244 = vst [vmem:[%s196 + $0xb8] sm:$0xff] %v243
                %v245 = vld [vmem:[%s195 + $0x180] sm:$0xff]
                %246 = vst [vmem:[%s196 + $0xc0] sm:$0xff] %v245
                %v247 = vld [vmem:[%s195 + $0x190] sm:$0xff]
                %248 = vst [vmem:[%s196 + $0xc8] sm:$0xff] %v247
                %v249 = vld [vmem:[%s195 + $0x1a0] sm:$0xff]
                %250 = vst [vmem:[%s196 + $0xd0] sm:$0xff] %v249
                %v251 = vld [vmem:[%s195 + $0x1b0] sm:$0xff]
                %252 = vst [vmem:[%s196 + $0xd8] sm:$0xff] %v251
                %v253 = vld [vmem:[%s195 + $0x1c0] sm:$0xff]
                %254 = vst [vmem:[%s196 + $0xe0] sm:$0xff] %v253
                %v255 = vld [vmem:[%s195 + $0x1d0] sm:$0xff]
                %256 = vst [vmem:[%s196 + $0xe8] sm:$0xff] %v255
                %v257 = vld [vmem:[%s195 + $0x1e0] sm:$0xff]
                %258 = vst [vmem:[%s196 + $0xf0] sm:$0xff] %v257
                %v259 = vld [vmem:[%s195 + $0x1f0] sm:$0xff]
                %260 = vst [vmem:[%s196 + $0xf8] sm:$0xff] %v259
                %v261 = vld [vmem:[%s195 + $0x200] sm:$0xff]
                %262 = vst [vmem:[%s196 + $0x100] sm:$0xff] %v261
                %v263 = vld [vmem:[%s195 + $0x210] sm:$0xff]
                %264 = vst [vmem:[%s196 + $0x108] sm:$0xff] %v263
                %v265 = vld [vmem:[%s195 + $0x220] sm:$0xff]
                %266 = vst [vmem:[%s196 + $0x110] sm:$0xff] %v265
                %v267 = vld [vmem:[%s195 + $0x230] sm:$0xff]
                %268 = vst [vmem:[%s196 + $0x118] sm:$0xff] %v267
                %v269 = vld [vmem:[%s195 + $0x240] sm:$0xff]
                %270 = vst [vmem:[%s196 + $0x120] sm:$0xff] %v269
                %v271 = vld [vmem:[%s195 + $0x250] sm:$0xff]
                %272 = vst [vmem:[%s196 + $0x128] sm:$0xff] %v271
                %v273 = vld [vmem:[%s195 + $0x260] sm:$0xff]
                %274 = vst [vmem:[%s196 + $0x130] sm:$0xff] %v273
                %v275 = vld [vmem:[%s195 + $0x270] sm:$0xff]
                %276 = vst [vmem:[%s196 + $0x138] sm:$0xff] %v275
                %v277 = vld [vmem:[%s195 + $0x280] sm:$0xff]
                %278 = vst [vmem:[%s196 + $0x140] sm:$0xff] %v277
                %v279 = vld [vmem:[%s195 + $0x290] sm:$0xff]
                %280 = vst [vmem:[%s196 + $0x148] sm:$0xff] %v279
                %v281 = vld [vmem:[%s195 + $0x2a0] sm:$0xff]
                %282 = vst [vmem:[%s196 + $0x150] sm:$0xff] %v281
                %v283 = vld [vmem:[%s195 + $0x2b0] sm:$0xff]
                %284 = vst [vmem:[%s196 + $0x158] sm:$0xff] %v283
                %v285 = vld [vmem:[%s195 + $0x2c0] sm:$0xff]
                %286 = vst [vmem:[%s196 + $0x160] sm:$0xff] %v285
                %v287 = vld [vmem:[%s195 + $0x2d0] sm:$0xff]
                %288 = vst [vmem:[%s196 + $0x168] sm:$0xff] %v287
                %v289 = vld [vmem:[%s195 + $0x2e0] sm:$0xff]
                %290 = vst [vmem:[%s196 + $0x170] sm:$0xff] %v289
                %v291 = vld [vmem:[%s195 + $0x2f0] sm:$0xff]
                %292 = vst [vmem:[%s196 + $0x178] sm:$0xff] %v291
                %v293 = vld [vmem:[%s195 + $0x300] sm:$0xff]
                %294 = vst [vmem:[%s196 + $0x180] sm:$0xff] %v293
                %v295 = vld [vmem:[%s195 + $0x310] sm:$0xff]
                %296 = vst [vmem:[%s196 + $0x188] sm:$0xff] %v295
                %v297 = vld [vmem:[%s195 + $0x320] sm:$0xff]
                %298 = vst [vmem:[%s196 + $0x190] sm:$0xff] %v297
                %v299 = vld [vmem:[%s195 + $0x330] sm:$0xff]
                %300 = vst [vmem:[%s196 + $0x198] sm:$0xff] %v299
                %v301 = vld [vmem:[%s195 + $0x340] sm:$0xff]
                %302 = vst [vmem:[%s196 + $0x1a0] sm:$0xff] %v301
                %v303 = vld [vmem:[%s195 + $0x350] sm:$0xff]
                %304 = vst [vmem:[%s196 + $0x1a8] sm:$0xff] %v303
                %v305 = vld [vmem:[%s195 + $0x360] sm:$0xff]
                %306 = vst [vmem:[%s196 + $0x1b0] sm:$0xff] %v305
                %v307 = vld [vmem:[%s195 + $0x370] sm:$0xff]
                %308 = vst [vmem:[%s196 + $0x1b8] sm:$0xff] %v307
                %v309 = vld [vmem:[%s195 + $0x380] sm:$0xff]
                %310 = vst [vmem:[%s196 + $0x1c0] sm:$0xff] %v309
                %v311 = vld [vmem:[%s195 + $0x390] sm:$0xff]
                %312 = vst [vmem:[%s196 + $0x1c8] sm:$0xff] %v311
                %v313 = vld [vmem:[%s195 + $0x3a0] sm:$0xff]
                %314 = vst [vmem:[%s196 + $0x1d0] sm:$0xff] %v313
                %v315 = vld [vmem:[%s195 + $0x3b0] sm:$0xff]
                %316 = vst [vmem:[%s196 + $0x1d8] sm:$0xff] %v315
                %v317 = vld [vmem:[%s195 + $0x3c0] sm:$0xff]
                %318 = vst [vmem:[%s196 + $0x1e0] sm:$0xff] %v317
                %v319 = vld [vmem:[%s195 + $0x3d0] sm:$0xff]
                %320 = vst [vmem:[%s196 + $0x1e8] sm:$0xff] %v319
                %v321 = vld [vmem:[%s195 + $0x3e0] sm:$0xff]
                %322 = vst [vmem:[%s196 + $0x1f0] sm:$0xff] %v321
                %v323 = vld [vmem:[%s195 + $0x3f0] sm:$0xff]
                %324 = vst [vmem:[%s196 + $0x1f8] sm:$0xff] %v323
              $region41: #{simple_cnn_forward.4} parent=35 // loop_footer
                %s194 = sadd.s32 1, %s190
              $region42: #{simple_cnn_forward.4} parent=35 // loop_footer_branch
                %189 = sbr.rel target = $region38
              $region43: #{simple_cnn_forward.4} parent=35 // loop_exit
                _
            $region36: #{simple_cnn_forward.4} parent=27 // pred_fallthru
              _
          $region28: #{simple_cnn_forward.4} parent=23 // pred_fallthru
            _
          %465 = vnop
        $region24: #{simple_cnn_forward.4} parent=15 // pred_fallthru
          _
        // Predicated region
        $region59: #{simple_cnn_forward.4} parent=15 // pred_check
          %p466 = pneg %p104
        $region60: #{simple_cnn_forward.4} parent=15 // pred_check_branch
          %468 = sbr.rel (%p466) target = $region62
        $region61: #{simple_cnn_forward.4} parent=15 // pred_region
          %s469 = smul.u32 2, %s17
          %p470 = scmp.lt.s32.totalorder %s469, 3
          %s471 = scalar_select %p470, %s469, 3
          %s472 = scalar_lea.vmem %s2, %s471
          %s473 = smul.u32 2, %s17
        $region62: #{simple_cnn_forward.4} parent=15 // pred_fallthru
          _
      $region16: #{simple_cnn_forward.4} parent=5 // pred_fallthru
        _
      %p474 = scmp.le.s32.totalorder 1, %s9
      %p475 = scmp.lt.s32.totalorder %s9, 17
      %p476 = pnand %p474, %p475
      %p477 = pneg %p476
      // Predicated region
      $region63: #{simple_cnn_forward.4} parent=5 // pred_check
        _
      $region64: #{simple_cnn_forward.4} parent=5 // pred_check_branch
        %479 = sbr.rel (%p476) target = $region66
      $region65: #{simple_cnn_forward.4} parent=5 // pred_region
        %s480 = ssub.s32 %s9, 1
        %s481 = sand.u32 %s71, 1
        %s482 = sand.u32 %s71, 1
        %s483 = smul.addr %s482, 512
        %s484 = scalar_lea.vmem [#allocation2], %s483
        // Predicated region
        $region67: #{simple_cnn_forward.4} parent=65 // pred_check
          %p485 = pneg %p84
        $region68: #{simple_cnn_forward.4} parent=65 // pred_check_branch
          %487 = sbr.rel (%p485) target = $region70
        $region69: #{simple_cnn_forward.4} parent=65 // pred_region
          _
        $region70: #{simple_cnn_forward.4} parent=65 // pred_fallthru
          _
        %s488 = smul.u32 4, %s21
        %p489 = scmp.lt.s32.totalorder %s19, 0
        %s490 = scalar_select %p489, %s19, 0
        %p491 = scmp.lt.s32.totalorder %s488, 31
        %s492 = scalar_select %p491, %s488, 31
        %s493 = smul.addr %s490, 32
        %s494 = sadd.s32 %s492, %s493
        %s495 = scalar_lea.vmem %s0, %s494
        %p496 = pneg %p56
        %p497 = pneg %p53
        %s498 = sand.u32 %s71, 1
        %s499 = sand.u32 %s71, 1
        %s500 = smul.addr %s499, 512
        %s501 = scalar_lea.vmem [#allocation2], %s500
        %p502 = pneg %p84
        %p503 = pneg %p81
        %s504 = smul.u32 2, %s20
        %p505 = scmp.lt.s32.totalorder %s504, 3
        %s506 = scalar_select %p505, %s504, 3
        %s507 = scalar_lea.vmem %s2, %s506
        %p508 = pneg %p110
        %p509 = pneg %p107
        %p510 = pneg %p138
        %p511 = pneg %p135
        %s512 = smul.u32 2, %s20
        %p513 = scmp.lt.s32.totalorder %s19, 0
        %s514 = scalar_select %p513, %s19, 0
        %p515 = scmp.lt.s32.totalorder %s512, 3
        %s516 = scalar_select %p515, %s512, 3
        %s517 = smul.addr %s514, 4
        %s518 = sadd.s32 %s516, %s517
        %s519 = smul.addr %s518, 2
        %s520 = scalar_lea.vmem %s3, %s519
        %s521 = smul.u32 4, %s21
        %p522 = scmp.lt.s32.totalorder %s19, 0
        %s523 = scalar_select %p522, %s19, 0
        %p524 = scmp.lt.s32.totalorder %s521, 31
        %s525 = scalar_select %p524, %s521, 31
        %s526 = smul.addr %s523, 32
        %s527 = sadd.s32 %s525, %s526
        %s528 = scalar_lea.vmem %s0, %s527
        %s529 = smul.u32 4, %s21
        %s530 = smul.u32 64, %s21
        %s531 = smul.u32 2, %s20
        %s532 = smul.u32 2, %s20
        %p533 = scmp.lt.s32.totalorder %s532, 3
        %s534 = scalar_select %p533, %s532, 3
        %s535 = scalar_lea.vmem %s2, %s534
        %s536 = smul.u32 2, %s20
        %s537 = smul.u32 2, %s20
        %p538 = scmp.lt.s32.totalorder %s19, 0
        %s539 = scalar_select %p538, %s19, 0
        %p540 = scmp.lt.s32.totalorder %s537, 3
        %s541 = scalar_select %p540, %s537, 3
        %s542 = smul.addr %s539, 4
        %s543 = sadd.s32 %s541, %s542
        %s544 = smul.addr %s543, 2
        %s545 = scalar_lea.vmem %s3, %s544
        %s546 = smul.u32 2, %s20
        %p547 = scmp.eq.s32.totalorder %s21, 0
        // Predicated region
        $region71: #{simple_cnn_forward.4} parent=65 // pred_check
          %p548 = pneg %p547
        $region72: #{simple_cnn_forward.4} parent=65 // pred_check_branch
          %550 = sbr.rel (%p548) target = $region74
        $region73: #{simple_cnn_forward.4} parent=65 // pred_region
          %551 = vst [vmem:[%s545] sm:$0xf] 0.0
        $region74: #{simple_cnn_forward.4} parent=65 // pred_fallthru
          _
        %v552 = vld [vmem:[%s545] sm:$0xf]
        %v553 = vld [vmem:[%s528] sm:$0xf]
        %v554 = vld [vmem:[%s484] sm:$0xff]
        %v555 = vld [vmem:[%s484 + $0x8] sm:$0xff]
        %v556 = vld [vmem:[%s484 + $0x10] sm:$0xff]
        %v557 = vld [vmem:[%s484 + $0x18] sm:$0xff]
        %v558 = vld [vmem:[%s484 + $0x20] sm:$0xff]
        %v559 = vld [vmem:[%s484 + $0x28] sm:$0xff]
        %v560 = vld [vmem:[%s484 + $0x30] sm:$0xff]
        %v561 = vld [vmem:[%s484 + $0x38] sm:$0xff]
        %v562 = vld [vmem:[%s484 + $0x40] sm:$0xff]
        %v563 = vld [vmem:[%s484 + $0x48] sm:$0xff]
        %v564 = vld [vmem:[%s484 + $0x50] sm:$0xff]
        %v565 = vld [vmem:[%s484 + $0x58] sm:$0xff]
        %v566 = vld [vmem:[%s484 + $0x60] sm:$0xff]
        %v567 = vld [vmem:[%s484 + $0x68] sm:$0xff]
        %v568 = vld [vmem:[%s484 + $0x70] sm:$0xff]
        %v569 = vld [vmem:[%s484 + $0x78] sm:$0xff]
        %v570 = vld [vmem:[%s484 + $0x80] sm:$0xff]
        %v571 = vld [vmem:[%s484 + $0x88] sm:$0xff]
        %v572 = vld [vmem:[%s484 + $0x90] sm:$0xff]
        %v573 = vld [vmem:[%s484 + $0x98] sm:$0xff]
        %v574 = vld [vmem:[%s484 + $0xa0] sm:$0xff]
        %v575 = vld [vmem:[%s484 + $0xa8] sm:$0xff]
        %v576 = vld [vmem:[%s484 + $0xb0] sm:$0xff]
        %v577 = vld [vmem:[%s484 + $0xb8] sm:$0xff]
        %v578 = vld [vmem:[%s484 + $0xc0] sm:$0xff]
        %v579 = vld [vmem:[%s484 + $0xc8] sm:$0xff]
        %v580 = vld [vmem:[%s484 + $0xd0] sm:$0xff]
        %v581 = vld [vmem:[%s484 + $0xd8] sm:$0xff]
        %v582 = vld [vmem:[%s484 + $0xe0] sm:$0xff]
        %v583 = vld [vmem:[%s484 + $0xe8] sm:$0xff]
        %v584 = vld [vmem:[%s484 + $0xf0] sm:$0xff]
        %v585 = vld [vmem:[%s484 + $0xf8] sm:$0xff]
        %v586 = vld [vmem:[%s484 + $0x100] sm:$0xff]
        %v587 = vld [vmem:[%s484 + $0x108] sm:$0xff]
        %v588 = vld [vmem:[%s484 + $0x110] sm:$0xff]
        %v589 = vld [vmem:[%s484 + $0x118] sm:$0xff]
        %v590 = vld [vmem:[%s484 + $0x120] sm:$0xff]
        %v591 = vld [vmem:[%s484 + $0x128] sm:$0xff]
        %v592 = vld [vmem:[%s484 + $0x130] sm:$0xff]
        %v593 = vld [vmem:[%s484 + $0x138] sm:$0xff]
        %v594 = vld [vmem:[%s484 + $0x140] sm:$0xff]
        %v595 = vld [vmem:[%s484 + $0x148] sm:$0xff]
        %v596 = vld [vmem:[%s484 + $0x150] sm:$0xff]
        %v597 = vld [vmem:[%s484 + $0x158] sm:$0xff]
        %v598 = vld [vmem:[%s484 + $0x160] sm:$0xff]
        %v599 = vld [vmem:[%s484 + $0x168] sm:$0xff]
        %v600 = vld [vmem:[%s484 + $0x170] sm:$0xff]
        %v601 = vld [vmem:[%s484 + $0x178] sm:$0xff]
        %v602 = vld [vmem:[%s484 + $0x180] sm:$0xff]
        %v603 = vld [vmem:[%s484 + $0x188] sm:$0xff]
        %v604 = vld [vmem:[%s484 + $0x190] sm:$0xff]
        %v605 = vld [vmem:[%s484 + $0x198] sm:$0xff]
        %v606 = vld [vmem:[%s484 + $0x1a0] sm:$0xff]
        %v607 = vld [vmem:[%s484 + $0x1a8] sm:$0xff]
        %v608 = vld [vmem:[%s484 + $0x1b0] sm:$0xff]
        %v609 = vld [vmem:[%s484 + $0x1b8] sm:$0xff]
        %v610 = vld [vmem:[%s484 + $0x1c0] sm:$0xff]
        %v611 = vld [vmem:[%s484 + $0x1c8] sm:$0xff]
        %v612 = vld [vmem:[%s484 + $0x1d0] sm:$0xff]
        %v613 = vld [vmem:[%s484 + $0x1d8] sm:$0xff]
        %v614 = vld [vmem:[%s484 + $0x1e0] sm:$0xff]
        %v615 = vld [vmem:[%s484 + $0x1e8] sm:$0xff]
        %v616 = vld [vmem:[%s484 + $0x1f0] sm:$0xff]
        %v617 = vld [vmem:[%s484 + $0x1f8] sm:$0xff]
        %v620 = vunpack.c.l.s4 1966171168
        %v621 = vunpack.c.0.s8 %v620
        %v622 = vlaneseq
        %v623 = vshrl.u32 %v622, 7
        %v624 = vsub.s32 %v621, %v623
        %v625 = vrot.slane %v553, %v624
        %v626 = vcombine.high %v625, %v625
        %v628 = vunpack.c.l.s4 1966171168
        %v629 = vunpack.c.0.s8 %v628
        %v630 = vlaneseq
        %v631 = vshrl.u32 %v630, 7
        %v632 = vsub.s32 %v629, %v631
        %v633 = vrot.slane %v625, %v632
        %v635 = vunpack.c.l.s4 1966171168
        %v636 = vunpack.c.0.s8 %v635
        %v637 = vlaneseq
        %v638 = vshrl.u32 %v637, 7
        %v639 = vsub.s32 %v636, %v638
        %v640 = vrot.slane %v626, %v639
        %v641 = vcombine.high %v633, %v633
        %v642 = vcombine.high %v640, %v640
        %v711 = vunpack.c.l.b16 %v554
        %v712 = vunpack.c.h.b16 %v554
        %v713 = vunpack.c.l.b16 %v555
        %v714 = vunpack.c.h.b16 %v555
        %v715 = vunpack.c.l.b16 %v556
        %v716 = vunpack.c.h.b16 %v556
        %v717 = vunpack.c.l.b16 %v557
        %v718 = vunpack.c.h.b16 %v557
        %v719 = vunpack.c.l.b16 %v558
        %v720 = vunpack.c.h.b16 %v558
        %v721 = vunpack.c.l.b16 %v559
        %v722 = vunpack.c.h.b16 %v559
        %v723 = vunpack.c.l.b16 %v560
        %v724 = vunpack.c.h.b16 %v560
        %v725 = vunpack.c.l.b16 %v561
        %v726 = vunpack.c.h.b16 %v561
        %v727 = vunpack.c.l.b16 %v562
        %v728 = vunpack.c.h.b16 %v562
        %v729 = vunpack.c.l.b16 %v563
        %v730 = vunpack.c.h.b16 %v563
        %v731 = vunpack.c.l.b16 %v564
        %v732 = vunpack.c.h.b16 %v564
        %v733 = vunpack.c.l.b16 %v565
        %v734 = vunpack.c.h.b16 %v565
        %v735 = vunpack.c.l.b16 %v566
        %v736 = vunpack.c.h.b16 %v566
        %v737 = vunpack.c.l.b16 %v567
        %v738 = vunpack.c.h.b16 %v567
        %v739 = vunpack.c.l.b16 %v568
        %v740 = vunpack.c.h.b16 %v568
        %v741 = vunpack.c.l.b16 %v569
        %v742 = vunpack.c.h.b16 %v569
        %v743 = vunpack.c.l.b16 %v570
        %v744 = vunpack.c.h.b16 %v570
        %v745 = vunpack.c.l.b16 %v571
        %v746 = vunpack.c.h.b16 %v571
        %v747 = vunpack.c.l.b16 %v572
        %v748 = vunpack.c.h.b16 %v572
        %v749 = vunpack.c.l.b16 %v573
        %v750 = vunpack.c.h.b16 %v573
        %v751 = vunpack.c.l.b16 %v574
        %v752 = vunpack.c.h.b16 %v574
        %v753 = vunpack.c.l.b16 %v575
        %v754 = vunpack.c.h.b16 %v575
        %v755 = vunpack.c.l.b16 %v576
        %v756 = vunpack.c.h.b16 %v576
        %v757 = vunpack.c.l.b16 %v577
        %v758 = vunpack.c.h.b16 %v577
        %v759 = vunpack.c.l.b16 %v578
        %v760 = vunpack.c.h.b16 %v578
        %v761 = vunpack.c.l.b16 %v579
        %v762 = vunpack.c.h.b16 %v579
        %v763 = vunpack.c.l.b16 %v580
        %v764 = vunpack.c.h.b16 %v580
        %v765 = vunpack.c.l.b16 %v581
        %v766 = vunpack.c.h.b16 %v581
        %v767 = vunpack.c.l.b16 %v582
        %v768 = vunpack.c.h.b16 %v582
        %v769 = vunpack.c.l.b16 %v583
        %v770 = vunpack.c.h.b16 %v583
        %v771 = vunpack.c.l.b16 %v584
        %v772 = vunpack.c.h.b16 %v584
        %v773 = vunpack.c.l.b16 %v585
        %v774 = vunpack.c.h.b16 %v585
        %v775 = vunpack.c.l.b16 %v586
        %v776 = vunpack.c.h.b16 %v586
        %v777 = vunpack.c.l.b16 %v587
        %v778 = vunpack.c.h.b16 %v587
        %v779 = vunpack.c.l.b16 %v588
        %v780 = vunpack.c.h.b16 %v588
        %v781 = vunpack.c.l.b16 %v589
        %v782 = vunpack.c.h.b16 %v589
        %v783 = vunpack.c.l.b16 %v590
        %v784 = vunpack.c.h.b16 %v590
        %v785 = vunpack.c.l.b16 %v591
        %v786 = vunpack.c.h.b16 %v591
        %v787 = vunpack.c.l.b16 %v592
        %v788 = vunpack.c.h.b16 %v592
        %v789 = vunpack.c.l.b16 %v593
        %v790 = vunpack.c.h.b16 %v593
        %v791 = vunpack.c.l.b16 %v594
        %v792 = vunpack.c.h.b16 %v594
        %v793 = vunpack.c.l.b16 %v595
        %v794 = vunpack.c.h.b16 %v595
        %v795 = vunpack.c.l.b16 %v596
        %v796 = vunpack.c.h.b16 %v596
        %v797 = vunpack.c.l.b16 %v597
        %v798 = vunpack.c.h.b16 %v597
        %v799 = vunpack.c.l.b16 %v598
        %v800 = vunpack.c.h.b16 %v598
        %v801 = vunpack.c.l.b16 %v599
        %v802 = vunpack.c.h.b16 %v599
        %v803 = vunpack.c.l.b16 %v600
        %v804 = vunpack.c.h.b16 %v600
        %v805 = vunpack.c.l.b16 %v601
        %v806 = vunpack.c.h.b16 %v601
        %v807 = vunpack.c.l.b16 %v602
        %v808 = vunpack.c.h.b16 %v602
        %v809 = vunpack.c.l.b16 %v603
        %v810 = vunpack.c.h.b16 %v603
        %v811 = vunpack.c.l.b16 %v604
        %v812 = vunpack.c.h.b16 %v604
        %v813 = vunpack.c.l.b16 %v605
        %v814 = vunpack.c.h.b16 %v605
        %v815 = vunpack.c.l.b16 %v606
        %v816 = vunpack.c.h.b16 %v606
        %v817 = vunpack.c.l.b16 %v607
        %v818 = vunpack.c.h.b16 %v607
        %v819 = vunpack.c.l.b16 %v608
        %v820 = vunpack.c.h.b16 %v608
        %v821 = vunpack.c.l.b16 %v609
        %v822 = vunpack.c.h.b16 %v609
        %v823 = vunpack.c.l.b16 %v610
        %v824 = vunpack.c.h.b16 %v610
        %v825 = vunpack.c.l.b16 %v611
        %v826 = vunpack.c.h.b16 %v611
        %v827 = vunpack.c.l.b16 %v612
        %v828 = vunpack.c.h.b16 %v612
        %v829 = vunpack.c.l.b16 %v613
        %v830 = vunpack.c.h.b16 %v613
        %v831 = vunpack.c.l.b16 %v614
        %v832 = vunpack.c.h.b16 %v614
        %v833 = vunpack.c.l.b16 %v615
        %v834 = vunpack.c.h.b16 %v615
        %v835 = vunpack.c.l.b16 %v616
        %v836 = vunpack.c.h.b16 %v616
        %v837 = vunpack.c.l.b16 %v617
        %v838 = vunpack.c.h.b16 %v617
        %v839 = vpack.c.b16 %v713, %v711
        %v840 = vpack.c.b16 %v714, %v712
        %v841 = vpack.c.b16 %v717, %v715
        %v842 = vpack.c.b16 %v718, %v716
        %v843 = vpack.c.b16 %v721, %v719
        %v844 = vpack.c.b16 %v722, %v720
        %v845 = vpack.c.b16 %v725, %v723
        %v846 = vpack.c.b16 %v726, %v724
        %v847 = vpack.c.b16 %v729, %v727
        %v848 = vpack.c.b16 %v730, %v728
        %v849 = vpack.c.b16 %v733, %v731
        %v850 = vpack.c.b16 %v734, %v732
        %v851 = vpack.c.b16 %v737, %v735
        %v852 = vpack.c.b16 %v738, %v736
        %v853 = vpack.c.b16 %v741, %v739
        %v854 = vpack.c.b16 %v742, %v740
        %v855 = vpack.c.b16 %v745, %v743
        %v856 = vpack.c.b16 %v746, %v744
        %v857 = vpack.c.b16 %v749, %v747
        %v858 = vpack.c.b16 %v750, %v748
        %v859 = vpack.c.b16 %v753, %v751
        %v860 = vpack.c.b16 %v754, %v752
        %v861 = vpack.c.b16 %v757, %v755
        %v862 = vpack.c.b16 %v758, %v756
        %v863 = vpack.c.b16 %v761, %v759
        %v864 = vpack.c.b16 %v762, %v760
        %v865 = vpack.c.b16 %v765, %v763
        %v866 = vpack.c.b16 %v766, %v764
        %v867 = vpack.c.b16 %v769, %v767
        %v868 = vpack.c.b16 %v770, %v768
        %v869 = vpack.c.b16 %v773, %v771
        %v870 = vpack.c.b16 %v774, %v772
        %v871 = vpack.c.b16 %v777, %v775
        %v872 = vpack.c.b16 %v778, %v776
        %v873 = vpack.c.b16 %v781, %v779
        %v874 = vpack.c.b16 %v782, %v780
        %v875 = vpack.c.b16 %v785, %v783
        %v876 = vpack.c.b16 %v786, %v784
        %v877 = vpack.c.b16 %v789, %v787
        %v878 = vpack.c.b16 %v790, %v788
        %v879 = vpack.c.b16 %v793, %v791
        %v880 = vpack.c.b16 %v794, %v792
        %v881 = vpack.c.b16 %v797, %v795
        %v882 = vpack.c.b16 %v798, %v796
        %v883 = vpack.c.b16 %v801, %v799
        %v884 = vpack.c.b16 %v802, %v800
        %v885 = vpack.c.b16 %v805, %v803
        %v886 = vpack.c.b16 %v806, %v804
        %v887 = vpack.c.b16 %v809, %v807
        %v888 = vpack.c.b16 %v810, %v808
        %v889 = vpack.c.b16 %v813, %v811
        %v890 = vpack.c.b16 %v814, %v812
        %v891 = vpack.c.b16 %v817, %v815
        %v892 = vpack.c.b16 %v818, %v816
        %v893 = vpack.c.b16 %v821, %v819
        %v894 = vpack.c.b16 %v822, %v820
        %v895 = vpack.c.b16 %v825, %v823
        %v896 = vpack.c.b16 %v826, %v824
        %v897 = vpack.c.b16 %v829, %v827
        %v898 = vpack.c.b16 %v830, %v828
        %v899 = vpack.c.b16 %v833, %v831
        %v900 = vpack.c.b16 %v834, %v832
        %v901 = vpack.c.b16 %v837, %v835
        %v902 = vpack.c.b16 %v838, %v836
        %967 = vmatprep.subr.bf16.mxu0 %v840
        %968 = vmatpush1.bf16.msra.mxu0 %v839
        %969 = vmatprep.subr.bf16.mxu0 %v842
        %970 = vmatpush1.bf16.msra.mxu0 %v841
        %971 = vmatprep.subr.bf16.mxu0 %v844
        %972 = vmatpush1.bf16.msra.mxu0 %v843
        %973 = vmatprep.subr.bf16.mxu0 %v846
        %974 = vmatpush1.bf16.msra.mxu0 %v845
        %975 = vmatprep.subr.bf16.mxu0 %v848
        %976 = vmatpush1.bf16.msra.mxu0 %v847
        %977 = vmatprep.subr.bf16.mxu0 %v850
        %978 = vmatpush1.bf16.msra.mxu0 %v849
        %979 = vmatprep.subr.bf16.mxu0 %v852
        %980 = vmatpush1.bf16.msra.mxu0 %v851
        %981 = vmatprep.subr.bf16.mxu0 %v854
        %982 = vmatpush1.bf16.msra.mxu0 %v853
        %983 = vmatprep.subr.bf16.mxu0 %v856
        %984 = vmatpush1.bf16.msra.mxu0 %v855
        %985 = vmatprep.subr.bf16.mxu0 %v858
        %986 = vmatpush1.bf16.msra.mxu0 %v857
        %987 = vmatprep.subr.bf16.mxu0 %v860
        %988 = vmatpush1.bf16.msra.mxu0 %v859
        %989 = vmatprep.subr.bf16.mxu0 %v862
        %990 = vmatpush1.bf16.msra.mxu0 %v861
        %991 = vmatprep.subr.bf16.mxu0 %v864
        %992 = vmatpush1.bf16.msra.mxu0 %v863
        %993 = vmatprep.subr.bf16.mxu0 %v866
        %994 = vmatpush1.bf16.msra.mxu0 %v865
        %995 = vmatprep.subr.bf16.mxu0 %v868
        %996 = vmatpush1.bf16.msra.mxu0 %v867
        %997 = vmatprep.subr.bf16.mxu0 %v870
        %998 = vmatpush1.bf16.msra.mxu0 %v869
        %999 = vmatprep.mubr.bf16.mxu0 %v640
        %1000 = vmatmul.mubr.bf16.gmra.mrb[0].mxu0 %v633
        %v1001 = vpop.f32.mrb[0].mxu0
        %v1002 = vadd.f32 0.0, %v1001
        %v1003 = vpop.f32.mrb[0].mxu0
        %v1004 = vadd.f32 0.0, %v1003
        %v1005 = vpop.f32.mrb[0].mxu0
        %v1006 = vpop.f32.mrb[0].mxu0
        %1007 = vdwg.mxu0
        %1008 = vmatprep.subr.bf16.mxu0 %v872
        %1009 = vmatpush1.bf16.msra.mxu0 %v871
        %1010 = vmatprep.subr.bf16.mxu0 %v874
        %1011 = vmatpush1.bf16.msra.mxu0 %v873
        %1012 = vmatprep.subr.bf16.mxu0 %v876
        %1013 = vmatpush1.bf16.msra.mxu0 %v875
        %1014 = vmatprep.subr.bf16.mxu0 %v878
        %1015 = vmatpush1.bf16.msra.mxu0 %v877
        %1016 = vmatprep.subr.bf16.mxu0 %v880
        %1017 = vmatpush1.bf16.msra.mxu0 %v879
        %1018 = vmatprep.subr.bf16.mxu0 %v882
        %1019 = vmatpush1.bf16.msra.mxu0 %v881
        %1020 = vmatprep.subr.bf16.mxu0 %v884
        %1021 = vmatpush1.bf16.msra.mxu0 %v883
        %1022 = vmatprep.subr.bf16.mxu0 %v886
        %1023 = vmatpush1.bf16.msra.mxu0 %v885
        %1024 = vmatprep.subr.bf16.mxu0 %v888
        %1025 = vmatpush1.bf16.msra.mxu0 %v887
        %1026 = vmatprep.subr.bf16.mxu0 %v890
        %1027 = vmatpush1.bf16.msra.mxu0 %v889
        %1028 = vmatprep.subr.bf16.mxu0 %v892
        %1029 = vmatpush1.bf16.msra.mxu0 %v891
        %1030 = vmatprep.subr.bf16.mxu0 %v894
        %1031 = vmatpush1.bf16.msra.mxu0 %v893
        %1032 = vmatprep.subr.bf16.mxu0 %v896
        %1033 = vmatpush1.bf16.msra.mxu0 %v895
        %1034 = vmatprep.subr.bf16.mxu0 %v898
        %1035 = vmatpush1.bf16.msra.mxu0 %v897
        %1036 = vmatprep.subr.bf16.mxu0 %v900
        %1037 = vmatpush1.bf16.msra.mxu0 %v899
        %1038 = vmatprep.subr.bf16.mxu0 %v902
        %1039 = vmatpush1.bf16.msra.mxu0 %v901
        %1040 = vmatprep.mubr.bf16.mxu0 %v642
        %1041 = vmatmul.mubr.bf16.gmra.mrb[0].mxu0 %v641
        %v1042 = vpop.f32.mrb[0].mxu0
        %v1043 = vadd.f32 %v1002, %v1042
        %v1044 = vpop.f32.mrb[0].mxu0
        %v1045 = vadd.f32 %v1004, %v1044
        %v1046 = vpop.f32.mrb[0].mxu0
        %v1047 = vpop.f32.mrb[0].mxu0
        %1048 = vdwg.mxu0
        %v1051 = vcombine.low %v1043, %v1045
        %v1053 = vunpack.c.l.s4 1983009808
        %v1054 = vunpack.c.0.s8 %v1053
        %v1055 = vlaneseq
        %v1056 = vshrl.u32 %v1055, 7
        %v1057 = vsub.s32 %v1054, %v1056
        %v1058 = vrot.slane %v1051, %v1057
        %v1060 = vadd.f32 %v552, %v1058
        %1061 = vst [vmem:[%s545] sm:$0xf] %v1060
        %p1062 = scmp.eq.s32.totalorder %s21, 7
        // Predicated region
        $region75: #{simple_cnn_forward.4} parent=65 // pred_check
          %p1063 = pneg %p1062
        $region76: #{simple_cnn_forward.4} parent=65 // pred_check_branch
          %1065 = sbr.rel (%p1063) target = $region78
        $region77: #{simple_cnn_forward.4} parent=65 // pred_region
          %v1066 = vld [vmem:[%s545] sm:$0xf]
          %v1067 = vld [vmem:[%s535] sm:$0x3]
          %v1069 = vlaneseq
          %v1070 = vshrl.u32 %v1069, 7
          %v1071 = vsub.s32 0, %v1070
          %v1072 = vrot.slane %v1067, %v1071
          %v1073 = vlaneseq
          %v1074 = vshrl.u32 %v1073, 7
          %v1075 = vsub.s32 1, %v1074
          %v1076 = vrot.slane %v1067, %v1075
          %v1077 = vcombine.low %v1072, %v1076
          %v1079 = vunpack.c.l.s4 1983009808
          %v1080 = vunpack.c.0.s8 %v1079
          %v1081 = vlaneseq
          %v1082 = vshrl.u32 %v1081, 7
          %v1083 = vsub.s32 %v1080, %v1082
          %v1084 = vrot.slane %v1077, %v1083
          %v1086 = vadd.f32 %v1066, %v1084
          %v1087 = vmax.f32 %v1086, 0.0
          %1088 = vst [vmem:[%s545] sm:$0xf] %v1087
        $region78: #{simple_cnn_forward.4} parent=65 // pred_fallthru
          _
        %s1089 = smul.u32 2, %s20
        %p1090 = scmp.lt.s32.totalorder %s19, 0
        %s1091 = scalar_select %p1090, %s19, 0
        %p1092 = scmp.lt.s32.totalorder %s1089, 3
        %s1093 = scalar_select %p1092, %s1089, 3
        %s1094 = smul.addr %s1091, 4
        %s1095 = sadd.s32 %s1093, %s1094
        %s1096 = smul.addr %s1095, 2
        %s1097 = scalar_lea.vmem %s3, %s1096
        // Predicated region
        $region79: #{simple_cnn_forward.4} parent=65 // pred_check
          %p1098 = pneg %p135
        $region80: #{simple_cnn_forward.4} parent=65 // pred_check_branch
          %1100 = sbr.rel (%p1098) target = $region82
        $region81: #{simple_cnn_forward.4} parent=65 // pred_region
          %s1101 = smul.u32 2, %s20
        $region82: #{simple_cnn_forward.4} parent=65 // pred_fallthru
          _
      $region66: #{simple_cnn_forward.4} parent=5 // pred_fallthru
        _
      %p1102 = scmp.le.s32.totalorder 2, %s9
      // Predicated region
      $region83: #{simple_cnn_forward.4} parent=5 // pred_check
        %p1103 = pneg %p1102
      $region84: #{simple_cnn_forward.4} parent=5 // pred_check_branch
        %1105 = sbr.rel (%p1103) target = $region86
      $region85: #{simple_cnn_forward.4} parent=5 // pred_region
        %s1106 = ssub.s32 %s9, 2
        // Predicated region
        $region87: #{simple_cnn_forward.4} parent=85 // pred_check
          %p1107 = pneg %p141
        $region88: #{simple_cnn_forward.4} parent=85 // pred_check_branch
          %1109 = sbr.rel (%p1107) target = $region90
        $region89: #{simple_cnn_forward.4} parent=85 // pred_region
          %s1110 = smul.u32 2, %s23
          %p1111 = scmp.lt.s32.totalorder %s22, 0
          %s1112 = scalar_select %p1111, %s22, 0
          %p1113 = scmp.lt.s32.totalorder %s1110, 3
          %s1114 = scalar_select %p1113, %s1110, 3
          %s1115 = smul.addr %s1112, 4
          %s1116 = sadd.s32 %s1114, %s1115
          %s1117 = smul.addr %s1116, 2
          %s1118 = scalar_lea.vmem %s3, %s1117
        $region90: #{simple_cnn_forward.4} parent=85 // pred_fallthru
          _
      $region86: #{simple_cnn_forward.4} parent=5 // pred_fallthru
        _
    $region6: #{simple_cnn_forward.4} parent=1 // loop_footer
      %s13 = sadd.s32 1, %s9
    $region7: #{simple_cnn_forward.4} parent=1 // loop_footer_branch
      %8 = sbr.rel target = $region3
    $region8: #{simple_cnn_forward.4} parent=1 // loop_exit
      _

// kernel: simple_cnn_forward.3
$region0: #{simple_cnn_forward.3}
  #allocation0 [shape = 'u32[]', space=smem, size = 0x4, offset = 0x4, fixed_abs, tag = 'smem constant byte address 0x4 - core index']
  #allocation1 [shape = 'u32[144,128]{1,0:T(1,128)}', space=vmem, size = 0x12000, scoped, tag = 'internal scratch']
  #allocation2 [shape = 'bf16[2,25,512]{2,1,0:T(8,128)(2,1)}', space=vmem, size = 0x10000, scoped, tag = 'scratch operand']
  %s0 = inlined_call_operand.vmem [shape: bf16[2,34,128], index: 0, kind: input, shape index: {}]
  %s1 = inlined_call_operand.hbm [shape: bf16[3,128,1024], index: 1, kind: input, shape index: {}]
  %s2 = inlined_call_operand.hbm [shape: f32[1,1024], index: 2, kind: input, shape index: {}]
  %s3 = inlined_call_operand.hbm [shape: bf16[3,512,1024], index: 3, kind: input, shape index: {}]
  %s4 = inlined_call_operand.hbm [shape: f32[1,1024], index: 4, kind: input, shape index: {}]
  %s5 = inlined_call_operand.vmem [shape: bf16[2,8,512], index: 5, kind: output, shape index: {}]
  %s6 = sld [smem:[#allocation0]]
  $region46: #{simple_cnn_forward.3} parent=0
    _
  %s8 = ssub.s32 1, %s6
  %s9 = scalar_select 0, %s8, %s6
  $region1: #{simple_cnn_forward.3} parent=0
    #allocation3 [shape = 'u8[786432]{0}', space=vmem, size = 0xc0000, scoped, tag = 'input window, operand 1, single buffered']
    #allocation4 [shape = 's32[1]{0}', space=sflag, size = 0x4, scoped, tag = 'scoped memory for simple_cnn_forward.3']
    #allocation5 [shape = 'u8[4096]{0}', space=vmem, size = 0x1000, scoped, tag = 'input window, operand 2, single buffered']
    #allocation6 [shape = 's32[1]{0}', space=sflag, size = 0x4, scoped, tag = 'scoped memory for simple_cnn_forward.3']
    #allocation7 [shape = 'u8[3145728]{0}', space=vmem, size = 0x300000, scoped, tag = 'input window, operand 3, single buffered']
    #allocation8 [shape = 'u8[4096]{0}', space=vmem, size = 0x1000, scoped, tag = 'input window, operand 4, single buffered']
    #allocation9 [shape = 's32[1]{0}', space=sflag, size = 0x4, scoped, tag = 'scoped memory for simple_cnn_forward.3']
    %10 = vsyncpa [#allocation4], 0
    %11 = vsyncpa [#allocation6], 0
    %12 = vsyncpa [#allocation9], 0
    // Predicated region
    $region2: #{simple_cnn_forward.3} parent=1 // pred_check
      _
    $region3: #{simple_cnn_forward.3} parent=1 // pred_check_branch
      %14 = sbr.rel (0) target = $region5
    $region4: #{simple_cnn_forward.3} parent=1 // pred_region
      _
    $region5: #{simple_cnn_forward.3} parent=1 // pred_fallthru
      _
    // Predicated region
    $region6: #{simple_cnn_forward.3} parent=1 // pred_check
      _
    $region7: #{simple_cnn_forward.3} parent=1 // pred_check_branch
      %16 = sbr.rel (0) target = $region9
    $region8: #{simple_cnn_forward.3} parent=1 // pred_region
      %s18 = ssub.s32 24576, 24576
      %19 = vsyncadd [#allocation4], %s18
      %s20 = sshll.u32 [#allocation3], 4
      %s21 = int_to_ptr.vmem [resolvable:$true] %s20
      %26 = dma.hbm_to_vmem [thread:$0]  %s1, 24576, %s21, [#allocation4], 512, 512, 32
    $region9: #{simple_cnn_forward.3} parent=1 // pred_fallthru
      _
    // Predicated region
    $region10: #{simple_cnn_forward.3} parent=1 // pred_check
      _
    $region11: #{simple_cnn_forward.3} parent=1 // pred_check_branch
      %28 = sbr.rel (0) target = $region13
    $region12: #{simple_cnn_forward.3} parent=1 // pred_region
      %s30 = ssub.s32 128, 128
      %31 = vsyncadd [#allocation6], %s30
      %s33 = sshll.u32 [#allocation5], 4
      %s34 = int_to_ptr.vmem [resolvable:$true] %s33
      %36 = dma.hbm_to_vmem [thread:$0]  %s2, 128, %s34, [#allocation6]
    $region13: #{simple_cnn_forward.3} parent=1 // pred_fallthru
      _
    // Predicated region
    $region14: #{simple_cnn_forward.3} parent=1 // pred_check
      _
    $region15: #{simple_cnn_forward.3} parent=1 // pred_check_branch
      %38 = sbr.rel (0) target = $region17
    $region16: #{simple_cnn_forward.3} parent=1 // pred_region
      %s40 = ssub.s32 98304, 98304
      %41 = vsyncadd [#allocation6], %s40
      %s42 = sshll.u32 [#allocation7], 4
      %s43 = int_to_ptr.vmem [resolvable:$true] %s42
      %48 = dma.hbm_to_vmem [thread:$0]  %s3, 98304, %s43, [#allocation6], 512, 512, 32
    $region17: #{simple_cnn_forward.3} parent=1 // pred_fallthru
      _
    // Predicated region
    $region18: #{simple_cnn_forward.3} parent=1 // pred_check
      _
    $region19: #{simple_cnn_forward.3} parent=1 // pred_check_branch
      %50 = sbr.rel (0) target = $region21
    $region20: #{simple_cnn_forward.3} parent=1 // pred_region
      %s52 = ssub.s32 128, 128
      %53 = vsyncadd [#allocation9], %s52
      %s55 = sshll.u32 [#allocation8], 4
      %s56 = int_to_ptr.vmem [resolvable:$true] %s55
      %58 = dma.hbm_to_vmem [thread:$0]  %s4, 128, %s56, [#allocation9]
    $region21: #{simple_cnn_forward.3} parent=1 // pred_fallthru
      _
    // Predicated region
    $region22: #{simple_cnn_forward.3} parent=1 // pred_check
      _
    $region23: #{simple_cnn_forward.3} parent=1 // pred_check_branch
      %60 = sbr.rel (0) target = $region25
    $region24: #{simple_cnn_forward.3} parent=1 // pred_region
      %61 = dma.done [#allocation4], 24576
    $region25: #{simple_cnn_forward.3} parent=1 // pred_fallthru
      _
    // Predicated region
    $region26: #{simple_cnn_forward.3} parent=1 // pred_check
      _
    $region27: #{simple_cnn_forward.3} parent=1 // pred_check_branch
      %63 = sbr.rel (0) target = $region29
    $region28: #{simple_cnn_forward.3} parent=1 // pred_region
      %64 = dma.done [#allocation6], 128
    $region29: #{simple_cnn_forward.3} parent=1 // pred_fallthru
      _
    // Predicated region
    $region30: #{simple_cnn_forward.3} parent=1 // pred_check
      _
    $region31: #{simple_cnn_forward.3} parent=1 // pred_check_branch
      %66 = sbr.rel (0) target = $region33
    $region32: #{simple_cnn_forward.3} parent=1 // pred_region
      %67 = dma.done [#allocation6], 98304
    $region33: #{simple_cnn_forward.3} parent=1 // pred_fallthru
      _
    // Predicated region
    $region34: #{simple_cnn_forward.3} parent=1 // pred_check
      _
    $region35: #{simple_cnn_forward.3} parent=1 // pred_check_branch
      %69 = sbr.rel (0) target = $region37
    $region36: #{simple_cnn_forward.3} parent=1 // pred_region
      %70 = dma.done [#allocation9], 128
    $region37: #{simple_cnn_forward.3} parent=1 // pred_fallthru
      _
    %v72 = vld [vmem:[#allocation5] sm:$0xff]
    %v73 = vld [vmem:[%s0] sm:$0xf]
    %v74 = vld [vmem:[%s0 + $0x4] sm:$0xf]
    %v75 = vld [vmem:[%s0 + $0x8] sm:$0xf]
    %v76 = vld [vmem:[%s0 + $0xc] sm:$0xf]
    %v77 = vld [vmem:[%s0 + $0x14] sm:$0xf]
    %v78 = vld [vmem:[%s0 + $0x18] sm:$0xf]
    %v79 = vld [vmem:[%s0 + $0x1c] sm:$0xf]
    %v80 = vld [vmem:[%s0 + $0x20] sm:$0xf]
    %v81 = vld [vmem:[#allocation3] sm:$0xff]
    %v82 = vld [vmem:[#allocation3 + $0x8] sm:$0xff]
    %v83 = vld [vmem:[#allocation3 + $0x10] sm:$0xff]
    %v84 = vld [vmem:[#allocation3 + $0x18] sm:$0xff]
    %v85 = vld [vmem:[#allocation3 + $0x20] sm:$0xff]
    %v86 = vld [vmem:[#allocation3 + $0x28] sm:$0xff]
    %v87 = vld [vmem:[#allocation3 + $0x30] sm:$0xff]
    %v88 = vld [vmem:[#allocation3 + $0x38] sm:$0xff]
    %v89 = vld [vmem:[#allocation3 + $0x40] sm:$0xff]
    %v90 = vld [vmem:[#allocation3 + $0x48] sm:$0xff]
    %v91 = vld [vmem:[#allocation3 + $0x50] sm:$0xff]
    %v92 = vld [vmem:[#allocation3 + $0x58] sm:$0xff]
    %v93 = vld [vmem:[#allocation3 + $0x60] sm:$0xff]
    %v94 = vld [vmem:[#allocation3 + $0x68] sm:$0xff]
    %v95 = vld [vmem:[#allocation3 + $0x70] sm:$0xff]
    %v96 = vld [vmem:[#allocation3 + $0x78] sm:$0xff]
    %v97 = vld [vmem:[#allocation3 + $0x80] sm:$0xff]
    %v98 = vld [vmem:[#allocation3 + $0x88] sm:$0xff]
    %v99 = vld [vmem:[#allocation3 + $0x90] sm:$0xff]
    %v100 = vld [vmem:[#allocation3 + $0x98] sm:$0xff]
    %v101 = vld [vmem:[#allocation3 + $0xa0] sm:$0xff]
    %v102 = vld [vmem:[#allocation3 + $0xa8] sm:$0xff]
    %v103 = vld [vmem:[#allocation3 + $0xb0] sm:$0xff]
    %v104 = vld [vmem:[#allocation3 + $0xb8] sm:$0xff]
    %v105 = vld [vmem:[#allocation3 + $0xc0] sm:$0xff]
    %v106 = vld [vmem:[#allocation3 + $0xc8] sm:$0xff]
    %v107 = vld [vmem:[#allocation3 + $0xd0] sm:$0xff]
    %v108 = vld [vmem:[#allocation3 + $0xd8] sm:$0xff]
    %v109 = vld [vmem:[#allocation3 + $0xe0] sm:$0xff]
    %v110 = vld [vmem:[#allocation3 + $0xe8] sm:$0xff]
    %v111 = vld [vmem:[#allocation3 + $0xf0] sm:$0xff]
    %v112 = vld [vmem:[#allocation3 + $0xf8] sm:$0xff]
    %v113 = vld [vmem:[#allocation3 + $0x100] sm:$0xff]
    %v114 = vld [vmem:[#allocation3 + $0x108] sm:$0xff]
    %v115 = vld [vmem:[#allocation3 + $0x110] sm:$0xff]
    %v116 = vld [vmem:[#allocation3 + $0x118] sm:$0xff]
    %v117 = vld [vmem:[#allocation3 + $0x120] sm:$0xff]
    %v118 = vld [vmem:[#allocation3 + $0x128] sm:$0xff]
    %v119 = vld [vmem:[#allocation3 + $0x130] sm:$0xff]
    %v120 = vld [vmem:[#allocation3 + $0x138] sm:$0xff]
    %v121 = vld [vmem:[#allocation3 + $0x140] sm:$0xff]
    %v122 = vld [vmem:[#allocation3 + $0x148] sm:$0xff]
    %v123 = vld [vmem:[#allocation3 + $0x150] sm:$0xff]
    %v124 = vld [vmem:[#allocation3 + $0x158] sm:$0xff]
    %v125 = vld [vmem:[#allocation3 + $0x160] sm:$0xff]
    %v126 = vld [vmem:[#allocation3 + $0x168] sm:$0xff]
    %v127 = vld [vmem:[#allocation3 + $0x170] sm:$0xff]
    %v128 = vld [vmem:[#allocation3 + $0x178] sm:$0xff]
    %v129 = vld [vmem:[#allocation3 + $0x180] sm:$0xff]
    %v130 = vld [vmem:[#allocation3 + $0x188] sm:$0xff]
    %v131 = vld [vmem:[#allocation3 + $0x190] sm:$0xff]
    %v132 = vld [vmem:[#allocation3 + $0x198] sm:$0xff]
    %v133 = vld [vmem:[#allocation3 + $0x1a0] sm:$0xff]
    %v134 = vld [vmem:[#allocation3 + $0x1a8] sm:$0xff]
    %v135 = vld [vmem:[#allocation3 + $0x1b0] sm:$0xff]
    %v136 = vld [vmem:[#allocation3 + $0x1b8] sm:$0xff]
    %v137 = vld [vmem:[#allocation3 + $0x1c0] sm:$0xff]
    %v138 = vld [vmem:[#allocation3 + $0x1c8] sm:$0xff]
    %v139 = vld [vmem:[#allocation3 + $0x1d0] sm:$0xff]
    %v140 = vld [vmem:[#allocation3 + $0x1d8] sm:$0xff]
    %v141 = vld [vmem:[#allocation3 + $0x1e0] sm:$0xff]
    %v142 = vld [vmem:[#allocation3 + $0x1e8] sm:$0xff]
    %v143 = vld [vmem:[#allocation3 + $0x1f0] sm:$0xff]
    %v144 = vld [vmem:[#allocation3 + $0x1f8] sm:$0xff]
    %v145 = vld [vmem:[%s0 + $0x10] sm:$0x1]
    %v146 = vld [vmem:[%s0 + $0x24] sm:$0x1]
    %vm147 = vsmask.f32 3328
    %vm148 = vsmask.f32 7440
    %vm149 = vmor %vm147, %vm148
    %v151 = vshrl.u32 %v73, 16
    %v153 = vrot.slane %v151, 4
    %v154 = vshll.u32 %v73, 16
    %v156 = vrot.slane %v154, 5
    %v157 = vor.u32 %v153, %v156
    %v158 = vrot.slane %v157, 4
    %v160 = vshll.u32 %v74, 16
    %v162 = vrot.slane %v160, 5
    %v163 = vsel %vm149, %v158, %v162
    %v164 = vshrl.u32 %v74, 16
    %v166 = vrot.slane %v164, 4
    %v167 = vor.u32 %v166, %v162
    %v168 = vrot.slane %v167, 4
    %v170 = vshll.u32 %v75, 16
    %v172 = vrot.slane %v170, 5
    %v173 = vsel %vm149, %v168, %v172
    %v174 = vshrl.u32 %v75, 16
    %v176 = vrot.slane %v174, 4
    %v177 = vor.u32 %v176, %v172
    %v178 = vrot.slane %v177, 4
    %v180 = vshll.u32 %v76, 16
    %v182 = vrot.slane %v180, 5
    %v183 = vsel %vm149, %v178, %v182
    %v184 = vshrl.u32 %v76, 16
    %v186 = vrot.slane %v184, 4
    %v187 = vor.u32 %v186, %v182
    %v188 = vrot.slane %v187, 4
    %v190 = vshll.u32 %v145, 16
    %v192 = vrot.slane %v190, 5
    %v193 = vsel %vm149, %v188, %v192
    %v195 = vshrl.u32 %v77, 16
    %v197 = vrot.slane %v195, 4
    %v198 = vshll.u32 %v77, 16
    %v200 = vrot.slane %v198, 5
    %v201 = vor.u32 %v197, %v200
    %v202 = vrot.slane %v201, 4
    %v204 = vshll.u32 %v78, 16
    %v206 = vrot.slane %v204, 5
    %v207 = vsel %vm149, %v202, %v206
    %v208 = vshrl.u32 %v78, 16
    %v210 = vrot.slane %v208, 4
    %v211 = vor.u32 %v210, %v206
    %v212 = vrot.slane %v211, 4
    %v214 = vshll.u32 %v79, 16
    %v216 = vrot.slane %v214, 5
    %v217 = vsel %vm149, %v212, %v216
    %v218 = vshrl.u32 %v79, 16
    %v220 = vrot.slane %v218, 4
    %v221 = vor.u32 %v220, %v216
    %v222 = vrot.slane %v221, 4
    %v224 = vshll.u32 %v80, 16
    %v226 = vrot.slane %v224, 5
    %v227 = vsel %vm149, %v222, %v226
    %v228 = vshrl.u32 %v80, 16
    %v230 = vrot.slane %v228, 4
    %v231 = vor.u32 %v230, %v226
    %v232 = vrot.slane %v231, 4
    %v234 = vshll.u32 %v146, 16
    %v236 = vrot.slane %v234, 5
    %v237 = vsel %vm149, %v232, %v236
    %s238 = scalar_lea.vmem [#allocation3], 512
    %v239 = vld [vmem:[%s238] sm:$0xff]
    %v240 = vld [vmem:[%s238 + $0x8] sm:$0xff]
    %v241 = vld [vmem:[%s238 + $0x10] sm:$0xff]
    %v242 = vld [vmem:[%s238 + $0x18] sm:$0xff]
    %v243 = vld [vmem:[%s238 + $0x20] sm:$0xff]
    %v244 = vld [vmem:[%s238 + $0x28] sm:$0xff]
    %v245 = vld [vmem:[%s238 + $0x30] sm:$0xff]
    %v246 = vld [vmem:[%s238 + $0x38] sm:$0xff]
    %v247 = vld [vmem:[%s238 + $0x40] sm:$0xff]
    %v248 = vld [vmem:[%s238 + $0x48] sm:$0xff]
    %v249 = vld [vmem:[%s238 + $0x50] sm:$0xff]
    %v250 = vld [vmem:[%s238 + $0x58] sm:$0xff]
    %v251 = vld [vmem:[%s238 + $0x60] sm:$0xff]
    %v252 = vld [vmem:[%s238 + $0x68] sm:$0xff]
    %v253 = vld [vmem:[%s238 + $0x70] sm:$0xff]
    %v254 = vld [vmem:[%s238 + $0x78] sm:$0xff]
    %v255 = vld [vmem:[%s238 + $0x80] sm:$0xff]
    %v256 = vld [vmem:[%s238 + $0x88] sm:$0xff]
    %v257 = vld [vmem:[%s238 + $0x90] sm:$0xff]
    %v258 = vld [vmem:[%s238 + $0x98] sm:$0xff]
    %v259 = vld [vmem:[%s238 + $0xa0] sm:$0xff]
    %v260 = vld [vmem:[%s238 + $0xa8] sm:$0xff]
    %v261 = vld [vmem:[%s238 + $0xb0] sm:$0xff]
    %v262 = vld [vmem:[%s238 + $0xb8] sm:$0xff]
    %v263 = vld [vmem:[%s238 + $0xc0] sm:$0xff]
    %v264 = vld [vmem:[%s238 + $0xc8] sm:$0xff]
    %v265 = vld [vmem:[%s238 + $0xd0] sm:$0xff]
    %v266 = vld [vmem:[%s238 + $0xd8] sm:$0xff]
    %v267 = vld [vmem:[%s238 + $0xe0] sm:$0xff]
    %v268 = vld [vmem:[%s238 + $0xe8] sm:$0xff]
    %v269 = vld [vmem:[%s238 + $0xf0] sm:$0xff]
    %v270 = vld [vmem:[%s238 + $0xf8] sm:$0xff]
    %v271 = vld [vmem:[%s238 + $0x100] sm:$0xff]
    %v272 = vld [vmem:[%s238 + $0x108] sm:$0xff]
    %v273 = vld [vmem:[%s238 + $0x110] sm:$0xff]
    %v274 = vld [vmem:[%s238 + $0x118] sm:$0xff]
    %v275 = vld [vmem:[%s238 + $0x120] sm:$0xff]
    %v276 = vld [vmem:[%s238 + $0x128] sm:$0xff]
    %v277 = vld [vmem:[%s238 + $0x130] sm:$0xff]
    %v278 = vld [vmem:[%s238 + $0x138] sm:$0xff]
    %v279 = vld [vmem:[%s238 + $0x140] sm:$0xff]
    %v280 = vld [vmem:[%s238 + $0x148] sm:$0xff]
    %v281 = vld [vmem:[%s238 + $0x150] sm:$0xff]
    %v282 = vld [vmem:[%s238 + $0x158] sm:$0xff]
    %v283 = vld [vmem:[%s238 + $0x160] sm:$0xff]
    %v284 = vld [vmem:[%s238 + $0x168] sm:$0xff]
    %v285 = vld [vmem:[%s238 + $0x170] sm:$0xff]
    %v286 = vld [vmem:[%s238 + $0x178] sm:$0xff]
    %v287 = vld [vmem:[%s238 + $0x180] sm:$0xff]
    %v288 = vld [vmem:[%s238 + $0x188] sm:$0xff]
    %v289 = vld [vmem:[%s238 + $0x190] sm:$0xff]
    %v290 = vld [vmem:[%s238 + $0x198] sm:$0xff]
    %v291 = vld [vmem:[%s238 + $0x1a0] sm:$0xff]
    %v292 = vld [vmem:[%s238 + $0x1a8] sm:$0xff]
    %v293 = vld [vmem:[%s238 + $0x1b0] sm:$0xff]
    %v294 = vld [vmem:[%s238 + $0x1b8] sm:$0xff]
    %v295 = vld [vmem:[%s238 + $0x1c0] sm:$0xff]
    %v296 = vld [vmem:[%s238 + $0x1c8] sm:$0xff]
    %v297 = vld [vmem:[%s238 + $0x1d0] sm:$0xff]
    %v298 = vld [vmem:[%s238 + $0x1d8] sm:$0xff]
    %v299 = vld [vmem:[%s238 + $0x1e0] sm:$0xff]
    %v300 = vld [vmem:[%s238 + $0x1e8] sm:$0xff]
    %v301 = vld [vmem:[%s238 + $0x1f0] sm:$0xff]
    %v302 = vld [vmem:[%s238 + $0x1f8] sm:$0xff]
    %v303 = vunpack.c.l.b16 %v163
    %v304 = vunpack.c.l.b16 %v173
    %v305 = vunpack.c.l.b16 %v183
    %v306 = vunpack.c.l.b16 %v193
    %v307 = vunpack.c.l.b16 %v207
    %v308 = vunpack.c.l.b16 %v217
    %v309 = vunpack.c.l.b16 %v227
    %v310 = vunpack.c.l.b16 %v237
    %v311 = vpack.c.b16 %v304, %v303
    %v312 = vpack.c.b16 %v306, %v305
    %v313 = vpack.c.b16 %v308, %v307
    %v314 = vpack.c.b16 %v310, %v309
    %v383 = vunpack.c.l.b16 %v239
    %v384 = vunpack.c.h.b16 %v239
    %v385 = vunpack.c.l.b16 %v240
    %v386 = vunpack.c.h.b16 %v240
    %v387 = vunpack.c.l.b16 %v241
    %v388 = vunpack.c.h.b16 %v241
    %v389 = vunpack.c.l.b16 %v242
    %v390 = vunpack.c.h.b16 %v242
    %v391 = vunpack.c.l.b16 %v243
    %v392 = vunpack.c.h.b16 %v243
    %v393 = vunpack.c.l.b16 %v244
    %v394 = vunpack.c.h.b16 %v244
    %v395 = vunpack.c.l.b16 %v245
    %v396 = vunpack.c.h.b16 %v245
    %v397 = vunpack.c.l.b16 %v246
    %v398 = vunpack.c.h.b16 %v246
    %v399 = vunpack.c.l.b16 %v247
    %v400 = vunpack.c.h.b16 %v247
    %v401 = vunpack.c.l.b16 %v248
    %v402 = vunpack.c.h.b16 %v248
    %v403 = vunpack.c.l.b16 %v249
    %v404 = vunpack.c.h.b16 %v249
    %v405 = vunpack.c.l.b16 %v250
    %v406 = vunpack.c.h.b16 %v250
    %v407 = vunpack.c.l.b16 %v251
    %v408 = vunpack.c.h.b16 %v251
    %v409 = vunpack.c.l.b16 %v252
    %v410 = vunpack.c.h.b16 %v252
    %v411 = vunpack.c.l.b16 %v253
    %v412 = vunpack.c.h.b16 %v253
    %v413 = vunpack.c.l.b16 %v254
    %v414 = vunpack.c.h.b16 %v254
    %v415 = vunpack.c.l.b16 %v255
    %v416 = vunpack.c.h.b16 %v255
    %v417 = vunpack.c.l.b16 %v256
    %v418 = vunpack.c.h.b16 %v256
    %v419 = vunpack.c.l.b16 %v257
    %v420 = vunpack.c.h.b16 %v257
    %v421 = vunpack.c.l.b16 %v258
    %v422 = vunpack.c.h.b16 %v258
    %v423 = vunpack.c.l.b16 %v259
    %v424 = vunpack.c.h.b16 %v259
    %v425 = vunpack.c.l.b16 %v260
    %v426 = vunpack.c.h.b16 %v260
    %v427 = vunpack.c.l.b16 %v261
    %v428 = vunpack.c.h.b16 %v261
    %v429 = vunpack.c.l.b16 %v262
    %v430 = vunpack.c.h.b16 %v262
    %v431 = vunpack.c.l.b16 %v263
    %v432 = vunpack.c.h.b16 %v263
    %v433 = vunpack.c.l.b16 %v264
    %v434 = vunpack.c.h.b16 %v264
    %v435 = vunpack.c.l.b16 %v265
    %v436 = vunpack.c.h.b16 %v265
    %v437 = vunpack.c.l.b16 %v266
    %v438 = vunpack.c.h.b16 %v266
    %v439 = vunpack.c.l.b16 %v267
    %v440 = vunpack.c.h.b16 %v267
    %v441 = vunpack.c.l.b16 %v268
    %v442 = vunpack.c.h.b16 %v268
    %v443 = vunpack.c.l.b16 %v269
    %v444 = vunpack.c.h.b16 %v269
    %v445 = vunpack.c.l.b16 %v270
    %v446 = vunpack.c.h.b16 %v270
    %v447 = vunpack.c.l.b16 %v271
    %v448 = vunpack.c.h.b16 %v271
    %v449 = vunpack.c.l.b16 %v272
    %v450 = vunpack.c.h.b16 %v272
    %v451 = vunpack.c.l.b16 %v273
    %v452 = vunpack.c.h.b16 %v273
    %v453 = vunpack.c.l.b16 %v274
    %v454 = vunpack.c.h.b16 %v274
    %v455 = vunpack.c.l.b16 %v275
    %v456 = vunpack.c.h.b16 %v275
    %v457 = vunpack.c.l.b16 %v276
    %v458 = vunpack.c.h.b16 %v276
    %v459 = vunpack.c.l.b16 %v277
    %v460 = vunpack.c.h.b16 %v277
    %v461 = vunpack.c.l.b16 %v278
    %v462 = vunpack.c.h.b16 %v278
    %v463 = vunpack.c.l.b16 %v279
    %v464 = vunpack.c.h.b16 %v279
    %v465 = vunpack.c.l.b16 %v280
    %v466 = vunpack.c.h.b16 %v280
    %v467 = vunpack.c.l.b16 %v281
    %v468 = vunpack.c.h.b16 %v281
    %v469 = vunpack.c.l.b16 %v282
    %v470 = vunpack.c.h.b16 %v282
    %v471 = vunpack.c.l.b16 %v283
    %v472 = vunpack.c.h.b16 %v283
    %v473 = vunpack.c.l.b16 %v284
    %v474 = vunpack.c.h.b16 %v284
    %v475 = vunpack.c.l.b16 %v285
    %v476 = vunpack.c.h.b16 %v285
    %v477 = vunpack.c.l.b16 %v286
    %v478 = vunpack.c.h.b16 %v286
    %v479 = vunpack.c.l.b16 %v287
    %v480 = vunpack.c.h.b16 %v287
    %v481 = vunpack.c.l.b16 %v288
    %v482 = vunpack.c.h.b16 %v288
    %v483 = vunpack.c.l.b16 %v289
    %v484 = vunpack.c.h.b16 %v289
    %v485 = vunpack.c.l.b16 %v290
    %v486 = vunpack.c.h.b16 %v290
    %v487 = vunpack.c.l.b16 %v291
    %v488 = vunpack.c.h.b16 %v291
    %v489 = vunpack.c.l.b16 %v292
    %v490 = vunpack.c.h.b16 %v292
    %v491 = vunpack.c.l.b16 %v293
    %v492 = vunpack.c.h.b16 %v293
    %v493 = vunpack.c.l.b16 %v294
    %v494 = vunpack.c.h.b16 %v294
    %v495 = vunpack.c.l.b16 %v295
    %v496 = vunpack.c.h.b16 %v295
    %v497 = vunpack.c.l.b16 %v296
    %v498 = vunpack.c.h.b16 %v296
    %v499 = vunpack.c.l.b16 %v297
    %v500 = vunpack.c.h.b16 %v297
    %v501 = vunpack.c.l.b16 %v298
    %v502 = vunpack.c.h.b16 %v298
    %v503 = vunpack.c.l.b16 %v299
    %v504 = vunpack.c.h.b16 %v299
    %v505 = vunpack.c.l.b16 %v300
    %v506 = vunpack.c.h.b16 %v300
    %v507 = vunpack.c.l.b16 %v301
    %v508 = vunpack.c.h.b16 %v301
    %v509 = vunpack.c.l.b16 %v302
    %v510 = vunpack.c.h.b16 %v302
    %v511 = vpack.c.b16 %v391, %v383
    %v512 = vpack.c.b16 %v392, %v384
    %v513 = vpack.c.b16 %v393, %v385
    %v514 = vpack.c.b16 %v394, %v386
    %v515 = vpack.c.b16 %v395, %v387
    %v516 = vpack.c.b16 %v396, %v388
    %v517 = vpack.c.b16 %v397, %v389
    %v518 = vpack.c.b16 %v398, %v390
    %v519 = vpack.c.b16 %v407, %v399
    %v520 = vpack.c.b16 %v408, %v400
    %v521 = vpack.c.b16 %v409, %v401
    %v522 = vpack.c.b16 %v410, %v402
    %v523 = vpack.c.b16 %v411, %v403
    %v524 = vpack.c.b16 %v412, %v404
    %v525 = vpack.c.b16 %v413, %v405
    %v526 = vpack.c.b16 %v414, %v406
    %v527 = vpack.c.b16 %v423, %v415
    %v528 = vpack.c.b16 %v424, %v416
    %v529 = vpack.c.b16 %v425, %v417
    %v530 = vpack.c.b16 %v426, %v418
    %v531 = vpack.c.b16 %v427, %v419
    %v532 = vpack.c.b16 %v428, %v420
    %v533 = vpack.c.b16 %v429, %v421
    %v534 = vpack.c.b16 %v430, %v422
    %v535 = vpack.c.b16 %v439, %v431
    %v536 = vpack.c.b16 %v440, %v432
    %v537 = vpack.c.b16 %v441, %v433
    %v538 = vpack.c.b16 %v442, %v434
    %v539 = vpack.c.b16 %v443, %v435
    %v540 = vpack.c.b16 %v444, %v436
    %v541 = vpack.c.b16 %v445, %v437
    %v542 = vpack.c.b16 %v446, %v438
    %v543 = vpack.c.b16 %v455, %v447
    %v544 = vpack.c.b16 %v456, %v448
    %v545 = vpack.c.b16 %v457, %v449
    %v546 = vpack.c.b16 %v458, %v450
    %v547 = vpack.c.b16 %v459, %v451
    %v548 = vpack.c.b16 %v460, %v452
    %v549 = vpack.c.b16 %v461, %v453
    %v550 = vpack.c.b16 %v462, %v454
    %v551 = vpack.c.b16 %v471, %v463
    %v552 = vpack.c.b16 %v472, %v464
    %v553 = vpack.c.b16 %v473, %v465
    %v554 = vpack.c.b16 %v474, %v466
    %v555 = vpack.c.b16 %v475, %v467
    %v556 = vpack.c.b16 %v476, %v468
    %v557 = vpack.c.b16 %v477, %v469
    %v558 = vpack.c.b16 %v478, %v470
    %v559 = vpack.c.b16 %v487, %v479
    %v560 = vpack.c.b16 %v488, %v480
    %v561 = vpack.c.b16 %v489, %v481
    %v562 = vpack.c.b16 %v490, %v482
    %v563 = vpack.c.b16 %v491, %v483
    %v564 = vpack.c.b16 %v492, %v484
    %v565 = vpack.c.b16 %v493, %v485
    %v566 = vpack.c.b16 %v494, %v486
    %v567 = vpack.c.b16 %v503, %v495
    %v568 = vpack.c.b16 %v504, %v496
    %v569 = vpack.c.b16 %v505, %v497
    %v570 = vpack.c.b16 %v506, %v498
    %v571 = vpack.c.b16 %v507, %v499
    %v572 = vpack.c.b16 %v508, %v500
    %v573 = vpack.c.b16 %v509, %v501
    %v574 = vpack.c.b16 %v510, %v502
    %639 = vmatprep.subr.bf16.mxu0 %v512
    %640 = vmatpush1.bf16.msra.mxu0 %v511
    %641 = vmatprep.subr.bf16.mxu0 %v520
    %642 = vmatpush1.bf16.msra.mxu0 %v519
    %643 = vmatprep.subr.bf16.mxu0 %v528
    %644 = vmatpush1.bf16.msra.mxu0 %v527
    %645 = vmatprep.subr.bf16.mxu0 %v536
    %646 = vmatpush1.bf16.msra.mxu0 %v535
    %647 = vmatprep.subr.bf16.mxu0 %v544
    %648 = vmatpush1.bf16.msra.mxu0 %v543
    %649 = vmatprep.subr.bf16.mxu0 %v552
    %650 = vmatpush1.bf16.msra.mxu0 %v551
    %651 = vmatprep.subr.bf16.mxu0 %v560
    %652 = vmatpush1.bf16.msra.mxu0 %v559
    %653 = vmatprep.subr.bf16.mxu0 %v568
    %654 = vmatpush1.bf16.msra.mxu0 %v567
    %655 = vmatprep.subr.bf16.mxu0 0
    %656 = vmatpush1.bf16.msra.mxu0 0
    %657 = vmatprep.subr.bf16.mxu0 0
    %658 = vmatpush1.bf16.msra.mxu0 0
    %659 = vmatprep.subr.bf16.mxu0 0
    %660 = vmatpush1.bf16.msra.mxu0 0
    %661 = vmatprep.subr.bf16.mxu0 0
    %662 = vmatpush1.bf16.msra.mxu0 0
    %663 = vmatprep.subr.bf16.mxu0 0
    %664 = vmatpush1.bf16.msra.mxu0 0
    %665 = vmatprep.subr.bf16.mxu0 0
    %666 = vmatpush1.bf16.msra.mxu0 0
    %667 = vmatprep.subr.bf16.mxu0 0
    %668 = vmatpush1.bf16.msra.mxu0 0
    %669 = vmatprep.subr.bf16.mxu0 0
    %670 = vmatpush1.bf16.msra.mxu0 0
    %671 = vmatprep.mubr.bf16.mxu0 0
    %672 = vmatmul.mubr.bf16.gmra.mrb[0].mxu0 %v311
    %v673 = vpop.f32.mrb[0].mxu0
    %v674 = vadd.f32 0.0, %v673
    %v675 = vpop.f32.mrb[0].mxu0
    %v676 = vadd.f32 0.0, %v675
    %v677 = vpop.f32.mrb[0].mxu0
    %v678 = vadd.f32 0.0, %v677
    %v679 = vpop.f32.mrb[0].mxu0
    %v680 = vadd.f32 0.0, %v679
    %681 = vmatprep.mubr.bf16.mxu0 0
    %682 = vmatmul.mubr.bf16.gmra.mrb[0].mxu0 %v312
    %v683 = vpop.f32.mrb[0].mxu0
    %v684 = vadd.f32 0.0, %v683
    %v685 = vpop.f32.mrb[0].mxu0
    %v686 = vadd.f32 0.0, %v685
    %v687 = vpop.f32.mrb[0].mxu0
    %v688 = vadd.f32 0.0, %v687
    %v689 = vpop.f32.mrb[0].mxu0
    %v690 = vadd.f32 0.0, %v689
    %691 = vmatprep.mubr.bf16.mxu0 0
    %692 = vmatmul.mubr.bf16.gmra.mrb[0].mxu0 %v313
    %v693 = vpop.f32.mrb[0].mxu0
    %v694 = vadd.f32 0.0, %v693
    %v695 = vpop.f32.mrb[0].mxu0
    %v696 = vadd.f32 0.0, %v695
    %v697 = vpop.f32.mrb[0].mxu0
    %v698 = vadd.f32 0.0, %v697
    %v699 = vpop.f32.mrb[0].mxu0
    %v700 = vadd.f32 0.0, %v699
    %701 = vmatprep.mubr.bf16.mxu0 0
    %702 = vmatmul.mubr.bf16.gmra.mrb[0].mxu0 %v314
    %v703 = vpop.f32.mrb[0].mxu0
    %v704 = vadd.f32 0.0, %v703
    %v705 = vpop.f32.mrb[0].mxu0
    %v706 = vadd.f32 0.0, %v705
    %v707 = vpop.f32.mrb[0].mxu0
    %v708 = vadd.f32 0.0, %v707
    %v709 = vpop.f32.mrb[0].mxu0
    %v710 = vadd.f32 0.0, %v709
    %711 = vdwg.mxu0
    %712 = vmatprep.subr.bf16.mxu0 %v514
    %713 = vmatpush1.bf16.msra.mxu0 %v513
    %714 = vmatprep.subr.bf16.mxu0 %v522
    %715 = vmatpush1.bf16.msra.mxu0 %v521
    %716 = vmatprep.subr.bf16.mxu0 %v530
    %717 = vmatpush1.bf16.msra.mxu0 %v529
    %718 = vmatprep.subr.bf16.mxu0 %v538
    %719 = vmatpush1.bf16.msra.mxu0 %v537
    %720 = vmatprep.subr.bf16.mxu0 %v546
    %721 = vmatpush1.bf16.msra.mxu0 %v545
    %722 = vmatprep.subr.bf16.mxu0 %v554
    %723 = vmatpush1.bf16.msra.mxu0 %v553
    %724 = vmatprep.subr.bf16.mxu0 %v562
    %725 = vmatpush1.bf16.msra.mxu0 %v561
    %726 = vmatprep.subr.bf16.mxu0 %v570
    %727 = vmatpush1.bf16.msra.mxu0 %v569
    %728 = vmatprep.subr.bf16.mxu0 0
    %729 = vmatpush1.bf16.msra.mxu0 0
    %730 = vmatprep.subr.bf16.mxu0 0
    %731 = vmatpush1.bf16.msra.mxu0 0
    %732 = vmatprep.subr.bf16.mxu0 0
    %733 = vmatpush1.bf16.msra.mxu0 0
    %734 = vmatprep.subr.bf16.mxu0 0
    %735 = vmatpush1.bf16.msra.mxu0 0
    %736 = vmatprep.subr.bf16.mxu0 0
    %737 = vmatpush1.bf16.msra.mxu0 0
    %738 = vmatprep.subr.bf16.mxu0 0
    %739 = vmatpush1.bf16.msra.mxu0 0
    %740 = vmatprep.subr.bf16.mxu0 0
    %741 = vmatpush1.bf16.msra.mxu0 0
    %742 = vmatprep.subr.bf16.mxu0 0
    %743 = vmatpush1.bf16.msra.mxu0 0
    %744 = vmatprep.mubr.bf16.mxu0 0
    %745 = vmatmul.mubr.bf16.gmra.mrb[0].mxu0 %v311
    %v746 = vpop.f32.mrb[0].mxu0
    %v747 = vadd.f32 0.0, %v746
    %v748 = vpop.f32.mrb[0].mxu0
    %v749 = vadd.f32 0.0, %v748
    %v750 = vpop.f32.mrb[0].mxu0
    %v751 = vadd.f32 0.0, %v750
    %v752 = vpop.f32.mrb[0].mxu0
    %v753 = vadd.f32 0.0, %v752
    %754 = vmatprep.mubr.bf16.mxu0 0
    %755 = vmatmul.mubr.bf16.gmra.mrb[0].mxu0 %v312
    %v756 = vpop.f32.mrb[0].mxu0
    %v757 = vadd.f32 0.0, %v756
    %v758 = vpop.f32.mrb[0].mxu0
    %v759 = vadd.f32 0.0, %v758
    %v760 = vpop.f32.mrb[0].mxu0
    %v761 = vadd.f32 0.0, %v760
    %v762 = vpop.f32.mrb[0].mxu0
    %v763 = vadd.f32 0.0, %v762
    %764 = vmatprep.mubr.bf16.mxu0 0
    %765 = vmatmul.mubr.bf16.gmra.mrb[0].mxu0 %v313
    %v766 = vpop.f32.mrb[0].mxu0
    %v767 = vadd.f32 0.0, %v766
    %v768 = vpop.f32.mrb[0].mxu0
    %v769 = vadd.f32 0.0, %v768
    %v770 = vpop.f32.mrb[0].mxu0
    %v771 = vadd.f32 0.0, %v770
    %v772 = vpop.f32.mrb[0].mxu0
    %v773 = vadd.f32 0.0, %v772
    %774 = vmatprep.mubr.bf16.mxu0 0
    %775 = vmatmul.mubr.bf16.gmra.mrb[0].mxu0 %v314
    %v776 = vpop.f32.mrb[0].mxu0
    %v777 = vadd.f32 0.0, %v776
    %v778 = vpop.f32.mrb[0].mxu0
    %v779 = vadd.f32 0.0, %v778
    %v780 = vpop.f32.mrb[0].mxu0
    %v781 = vadd.f32 0.0, %v780
    %v782 = vpop.f32.mrb[0].mxu0
    %v783 = vadd.f32 0.0, %v782
    %784 = vdwg.mxu0
    %785 = vmatprep.subr.bf16.mxu0 %v516
    %786 = vmatpush1.bf16.msra.mxu0 %v515
    %787 = vmatprep.subr.bf16.mxu0 %v524
    %788 = vmatpush1.bf16.msra.mxu0 %v523
    %789 = vmatprep.subr.bf16.mxu0 %v532
    %790 = vmatpush1.bf16.msra.mxu0 %v531
    %791 = vmatprep.subr.bf16.mxu0 %v540
    %792 = vmatpush1.bf16.msra.mxu0 %v539
    %793 = vmatprep.subr.bf16.mxu0 %v548
    %794 = vmatpush1.bf16.msra.mxu0 %v547
    %795 = vmatprep.subr.bf16.mxu0 %v556
    %796 = vmatpush1.bf16.msra.mxu0 %v555
    %797 = vmatprep.subr.bf16.mxu0 %v564
    %798 = vmatpush1.bf16.msra.mxu0 %v563
    %799 = vmatprep.subr.bf16.mxu0 %v572
    %800 = vmatpush1.bf16.msra.mxu0 %v571
    %801 = vmatprep.subr.bf16.mxu0 0
    %802 = vmatpush1.bf16.msra.mxu0 0
    %803 = vmatprep.subr.bf16.mxu0 0
    %804 = vmatpush1.bf16.msra.mxu0 0
    %805 = vmatprep.subr.bf16.mxu0 0
    %806 = vmatpush1.bf16.msra.mxu0 0
    %807 = vmatprep.subr.bf16.mxu0 0
    %808 = vmatpush1.bf16.msra.mxu0 0
    %809 = vmatprep.subr.bf16.mxu0 0
    %810 = vmatpush1.bf16.msra.mxu0 0
    %811 = vmatprep.subr.bf16.mxu0 0
    %812 = vmatpush1.bf16.msra.mxu0 0
    %813 = vmatprep.subr.bf16.mxu0 0
    %814 = vmatpush1.bf16.msra.mxu0 0
    %815 = vmatprep.subr.bf16.mxu0 0
    %816 = vmatpush1.bf16.msra.mxu0 0
    %817 = vmatprep.mubr.bf16.mxu0 0
    %818 = vmatmul.mubr.bf16.gmra.mrb[0].mxu0 %v311
    %v819 = vpop.f32.mrb[0].mxu0
    %v820 = vadd.f32 0.0, %v819
    %v821 = vpop.f32.mrb[0].mxu0
    %v822 = vadd.f32 0.0, %v821
    %v823 = vpop.f32.mrb[0].mxu0
    %v824 = vadd.f32 0.0, %v823
    %v825 = vpop.f32.mrb[0].mxu0
    %v826 = vadd.f32 0.0, %v825
    %827 = vmatprep.mubr.bf16.mxu0 0
    %828 = vmatmul.mubr.bf16.gmra.mrb[0].mxu0 %v312
    %v829 = vpop.f32.mrb[0].mxu0
    %v830 = vadd.f32 0.0, %v829
    %v831 = vpop.f32.mrb[0].mxu0
    %v832 = vadd.f32 0.0, %v831
    %v833 = vpop.f32.mrb[0].mxu0
    %v834 = vadd.f32 0.0, %v833
    %v835 = vpop.f32.mrb[0].mxu0
    %v836 = vadd.f32 0.0, %v835
    %837 = vmatprep.mubr.bf16.mxu0 0
    %838 = vmatmul.mubr.bf16.gmra.mrb[0].mxu0 %v313
    %v839 = vpop.f32.mrb[0].mxu0
    %v840 = vadd.f32 0.0, %v839
    %v841 = vpop.f32.mrb[0].mxu0
    %v842 = vadd.f32 0.0, %v841
    %v843 = vpop.f32.mrb[0].mxu0
    %v844 = vadd.f32 0.0, %v843
    %v845 = vpop.f32.mrb[0].mxu0
    %v846 = vadd.f32 0.0, %v845
    %847 = vmatprep.mubr.bf16.mxu0 0
    %848 = vmatmul.mubr.bf16.gmra.mrb[0].mxu0 %v314
    %v849 = vpop.f32.mrb[0].mxu0
    %v850 = vadd.f32 0.0, %v849
    %v851 = vpop.f32.mrb[0].mxu0
    %v852 = vadd.f32 0.0, %v851
    %v853 = vpop.f32.mrb[0].mxu0
    %v854 = vadd.f32 0.0, %v853
    %v855 = vpop.f32.mrb[0].mxu0
    %v856 = vadd.f32 0.0, %v855
    %857 = vdwg.mxu0
    %858 = vmatprep.subr.bf16.mxu0 %v518
    %859 = vmatpush1.bf16.msra.mxu0 %v517
    %860 = vmatprep.subr.bf16.mxu0 %v526
    %861 = vmatpush1.bf16.msra.mxu0 %v525
    %862 = vmatprep.subr.bf16.mxu0 %v534
    %863 = vmatpush1.bf16.msra.mxu0 %v533
    %864 = vmatprep.subr.bf16.mxu0 %v542
    %865 = vmatpush1.bf16.msra.mxu0 %v541
    %866 = vmatprep.subr.bf16.mxu0 %v550
    %867 = vmatpush1.bf16.msra.mxu0 %v549
    %868 = vmatprep.subr.bf16.mxu0 %v558
    %869 = vmatpush1.bf16.msra.mxu0 %v557
    %870 = vmatprep.subr.bf16.mxu0 %v566
    %871 = vmatpush1.bf16.msra.mxu0 %v565
    %872 = vmatprep.subr.bf16.mxu0 %v574
    %873 = vmatpush1.bf16.msra.mxu0 %v573
    %874 = vmatprep.subr.bf16.mxu0 0
    %875 = vmatpush1.bf16.msra.mxu0 0
    %876 = vmatprep.subr.bf16.mxu0 0
    %877 = vmatpush1.bf16.msra.mxu0 0
    %878 = vmatprep.subr.bf16.mxu0 0
    %879 = vmatpush1.bf16.msra.mxu0 0
    %880 = vmatprep.subr.bf16.mxu0 0
    %881 = vmatpush1.bf16.msra.mxu0 0
    %882 = vmatprep.subr.bf16.mxu0 0
    %883 = vmatpush1.bf16.msra.mxu0 0
    %884 = vmatprep.subr.bf16.mxu0 0
    %885 = vmatpush1.bf16.msra.mxu0 0
    %886 = vmatprep.subr.bf16.mxu0 0
    %887 = vmatpush1.bf16.msra.mxu0 0
    %888 = vmatprep.subr.bf16.mxu0 0
    %889 = vmatpush1.bf16.msra.mxu0 0
    %890 = vmatprep.mubr.bf16.mxu0 0
    %891 = vmatmul.mubr.bf16.gmra.mrb[0].mxu0 %v311
    %v892 = vpop.f32.mrb[0].mxu0
    %v893 = vadd.f32 0.0, %v892
    %v894 = vpop.f32.mrb[0].mxu0
    %v895 = vadd.f32 0.0, %v894
    %v896 = vpop.f32.mrb[0].mxu0
    %v897 = vadd.f32 0.0, %v896
    %v898 = vpop.f32.mrb[0].mxu0
    %v899 = vadd.f32 0.0, %v898
    %900 = vmatprep.mubr.bf16.mxu0 0
    %901 = vmatmul.mubr.bf16.gmra.mrb[0].mxu0 %v312
    %v902 = vpop.f32.mrb[0].mxu0
    %v903 = vadd.f32 0.0, %v902
    %v904 = vpop.f32.mrb[0].mxu0
    %v905 = vadd.f32 0.0, %v904
    %v906 = vpop.f32.mrb[0].mxu0
    %v907 = vadd.f32 0.0, %v906
    %v908 = vpop.f32.mrb[0].mxu0
    %v909 = vadd.f32 0.0, %v908
    %910 = vmatprep.mubr.bf16.mxu0 0
    %911 = vmatmul.mubr.bf16.gmra.mrb[0].mxu0 %v313
    %v912 = vpop.f32.mrb[0].mxu0
    %v913 = vadd.f32 0.0, %v912
    %v914 = vpop.f32.mrb[0].mxu0
    %v915 = vadd.f32 0.0, %v914
    %v916 = vpop.f32.mrb[0].mxu0
    %v917 = vadd.f32 0.0, %v916
    %v918 = vpop.f32.mrb[0].mxu0
    %v919 = vadd.f32 0.0, %v918
    %920 = vmatprep.mubr.bf16.mxu0 0
    %921 = vmatmul.mubr.bf16.gmra.mrb[0].mxu0 %v314
    %v922 = vpop.f32.mrb[0].mxu0
    %v923 = vadd.f32 0.0, %v922
    %v924 = vpop.f32.mrb[0].mxu0
    %v925 = vadd.f32 0.0, %v924
    %v926 = vpop.f32.mrb[0].mxu0
    %v927 = vadd.f32 0.0, %v926
    %v928 = vpop.f32.mrb[0].mxu0
    %v929 = vadd.f32 0.0, %v928
    %930 = vdwg.mxu0
    %v939 = vunpack.c.l.b16 %v73
    %v940 = vunpack.c.l.b16 %v74
    %v941 = vunpack.c.l.b16 %v75
    %v942 = vunpack.c.l.b16 %v76
    %v943 = vunpack.c.l.b16 %v77
    %v944 = vunpack.c.l.b16 %v78
    %v945 = vunpack.c.l.b16 %v79
    %v946 = vunpack.c.l.b16 %v80
    %v947 = vpack.c.b16 %v940, %v939
    %v948 = vpack.c.b16 %v942, %v941
    %v949 = vpack.c.b16 %v944, %v943
    %v950 = vpack.c.b16 %v946, %v945
    %v1019 = vunpack.c.l.b16 %v81
    %v1020 = vunpack.c.h.b16 %v81
    %v1021 = vunpack.c.l.b16 %v82
    %v1022 = vunpack.c.h.b16 %v82
    %v1023 = vunpack.c.l.b16 %v83
    %v1024 = vunpack.c.h.b16 %v83
    %v1025 = vunpack.c.l.b16 %v84
    %v1026 = vunpack.c.h.b16 %v84
    %v1027 = vunpack.c.l.b16 %v85
    %v1028 = vunpack.c.h.b16 %v85
    %v1029 = vunpack.c.l.b16 %v86
    %v1030 = vunpack.c.h.b16 %v86
    %v1031 = vunpack.c.l.b16 %v87
    %v1032 = vunpack.c.h.b16 %v87
    %v1033 = vunpack.c.l.b16 %v88
    %v1034 = vunpack.c.h.b16 %v88
    %v1035 = vunpack.c.l.b16 %v89
    %v1036 = vunpack.c.h.b16 %v89
    %v1037 = vunpack.c.l.b16 %v90
    %v1038 = vunpack.c.h.b16 %v90
    %v1039 = vunpack.c.l.b16 %v91
    %v1040 = vunpack.c.h.b16 %v91
    %v1041 = vunpack.c.l.b16 %v92
    %v1042 = vunpack.c.h.b16 %v92
    %v1043 = vunpack.c.l.b16 %v93
    %v1044 = vunpack.c.h.b16 %v93
    %v1045 = vunpack.c.l.b16 %v94
    %v1046 = vunpack.c.h.b16 %v94
    %v1047 = vunpack.c.l.b16 %v95
    %v1048 = vunpack.c.h.b16 %v95
    %v1049 = vunpack.c.l.b16 %v96
    %v1050 = vunpack.c.h.b16 %v96
    %v1051 = vunpack.c.l.b16 %v97
    %v1052 = vunpack.c.h.b16 %v97
    %v1053 = vunpack.c.l.b16 %v98
    %v1054 = vunpack.c.h.b16 %v98
    %v1055 = vunpack.c.l.b16 %v99
    %v1056 = vunpack.c.h.b16 %v99
    %v1057 = vunpack.c.l.b16 %v100
    %v1058 = vunpack.c.h.b16 %v100
    %v1059 = vunpack.c.l.b16 %v101
    %v1060 = vunpack.c.h.b16 %v101
    %v1061 = vunpack.c.l.b16 %v102
    %v1062 = vunpack.c.h.b16 %v102
    %v1063 = vunpack.c.l.b16 %v103
    %v1064 = vunpack.c.h.b16 %v103
    %v1065 = vunpack.c.l.b16 %v104
    %v1066 = vunpack.c.h.b16 %v104
    %v1067 = vunpack.c.l.b16 %v105
    %v1068 = vunpack.c.h.b16 %v105
    %v1069 = vunpack.c.l.b16 %v106
    %v1070 = vunpack.c.h.b16 %v106
    %v1071 = vunpack.c.l.b16 %v107
    %v1072 = vunpack.c.h.b16 %v107
    %v1073 = vunpack.c.l.b16 %v108
    %v1074 = vunpack.c.h.b16 %v108
    %v1075 = vunpack.c.l.b16 %v109
    %v1076 = vunpack.c.h.b16 %v109
    %v1077 = vunpack.c.l.b16 %v110
    %v1078 = vunpack.c.h.b16 %v110
    %v1079 = vunpack.c.l.b16 %v111
    %v1080 = vunpack.c.h.b16 %v111
    %v1081 = vunpack.c.l.b16 %v112
    %v1082 = vunpack.c.h.b16 %v112
    %v1083 = vunpack.c.l.b16 %v113
    %v1084 = vunpack.c.h.b16 %v113
    %v1085 = vunpack.c.l.b16 %v114
    %v1086 = vunpack.c.h.b16 %v114
    %v1087 = vunpack.c.l.b16 %v115
    %v1088 = vunpack.c.h.b16 %v115
    %v1089 = vunpack.c.l.b16 %v116
    %v1090 = vunpack.c.h.b16 %v116
    %v1091 = vunpack.c.l.b16 %v117
    %v1092 = vunpack.c.h.b16 %v117
    %v1093 = vunpack.c.l.b16 %v118
    %v1094 = vunpack.c.h.b16 %v118
    %v1095 = vunpack.c.l.b16 %v119
    %v1096 = vunpack.c.h.b16 %v119
    %v1097 = vunpack.c.l.b16 %v120
    %v1098 = vunpack.c.h.b16 %v120
    %v1099 = vunpack.c.l.b16 %v121
    %v1100 = vunpack.c.h.b16 %v121
    %v1101 = vunpack.c.l.b16 %v122
    %v1102 = vunpack.c.h.b16 %v122
    %v1103 = vunpack.c.l.b16 %v123
    %v1104 = vunpack.c.h.b16 %v123
    %v1105 = vunpack.c.l.b16 %v124
    %v1106 = vunpack.c.h.b16 %v124
    %v1107 = vunpack.c.l.b16 %v125
    %v1108 = vunpack.c.h.b16 %v125
    %v1109 = vunpack.c.l.b16 %v126
    %v1110 = vunpack.c.h.b16 %v126
    %v1111 = vunpack.c.l.b16 %v127
    %v1112 = vunpack.c.h.b16 %v127
    %v1113 = vunpack.c.l.b16 %v128
    %v1114 = vunpack.c.h.b16 %v128
    %v1115 = vunpack.c.l.b16 %v129
    %v1116 = vunpack.c.h.b16 %v129
    %v1117 = vunpack.c.l.b16 %v130
    %v1118 = vunpack.c.h.b16 %v130
    %v1119 = vunpack.c.l.b16 %v131
    %v1120 = vunpack.c.h.b16 %v131
    %v1121 = vunpack.c.l.b16 %v132
    %v1122 = vunpack.c.h.b16 %v132
    %v1123 = vunpack.c.l.b16 %v133
    %v1124 = vunpack.c.h.b16 %v133
    %v1125 = vunpack.c.l.b16 %v134
    %v1126 = vunpack.c.h.b16 %v134
    %v1127 = vunpack.c.l.b16 %v135
    %v1128 = vunpack.c.h.b16 %v135
    %v1129 = vunpack.c.l.b16 %v136
    %v1130 = vunpack.c.h.b16 %v136
    %v1131 = vunpack.c.l.b16 %v137
    %v1132 = vunpack.c.h.b16 %v137
    %v1133 = vunpack.c.l.b16 %v138
    %v1134 = vunpack.c.h.b16 %v138
    %v1135 = vunpack.c.l.b16 %v139
    %v1136 = vunpack.c.h.b16 %v139
    %v1137 = vunpack.c.l.b16 %v140
    %v1138 = vunpack.c.h.b16 %v140
    %v1139 = vunpack.c.l.b16 %v141
    %v1140 = vunpack.c.h.b16 %v141
    %v1141 = vunpack.c.l.b16 %v142
    %v1142 = vunpack.c.h.b16 %v142
    %v1143 = vunpack.c.l.b16 %v143
    %v1144 = vunpack.c.h.b16 %v143
    %v1145 = vunpack.c.l.b16 %v144
    %v1146 = vunpack.c.h.b16 %v144
    %v1147 = vpack.c.b16 %v1027, %v1019
    %v1148 = vpack.c.b16 %v1028, %v1020
    %v1149 = vpack.c.b16 %v1029, %v1021
    %v1150 = vpack.c.b16 %v1030, %v1022
    %v1151 = vpack.c.b16 %v1031, %v1023
    %v1152 = vpack.c.b16 %v1032, %v1024
    %v1153 = vpack.c.b16 %v1033, %v1025
    %v1154 = vpack.c.b16 %v1034, %v1026
    %v1155 = vpack.c.b16 %v1043, %v1035
    %v1156 = vpack.c.b16 %v1044, %v1036
    %v1157 = vpack.c.b16 %v1045, %v1037
    %v1158 = vpack.c.b16 %v1046, %v1038
    %v1159 = vpack.c.b16 %v1047, %v1039
    %v1160 = vpack.c.b16 %v1048, %v1040
    %v1161 = vpack.c.b16 %v1049, %v1041
    %v1162 = vpack.c.b16 %v1050, %v1042
    %v1163 = vpack.c.b16 %v1059, %v1051
    %v1164 = vpack.c.b16 %v1060, %v1052
    %v1165 = vpack.c.b16 %v1061, %v1053
    %v1166 = vpack.c.b16 %v1062, %v1054
    %v1167 = vpack.c.b16 %v1063, %v1055
    %v1168 = vpack.c.b16 %v1064, %v1056
    %v1169 = vpack.c.b16 %v1065, %v1057
    %v1170 = vpack.c.b16 %v1066, %v1058
    %v1171 = vpack.c.b16 %v1075, %v1067
    %v1172 = vpack.c.b16 %v1076, %v1068
    %v1173 = vpack.c.b16 %v1077, %v1069
    %v1174 = vpack.c.b16 %v1078, %v1070
    %v1175 = vpack.c.b16 %v1079, %v1071
    %v1176 = vpack.c.b16 %v1080, %v1072
    %v1177 = vpack.c.b16 %v1081, %v1073
    %v1178 = vpack.c.b16 %v1082, %v1074
    %v1179 = vpack.c.b16 %v1091, %v1083
    %v1180 = vpack.c.b16 %v1092, %v1084
    %v1181 = vpack.c.b16 %v1093, %v1085
    %v1182 = vpack.c.b16 %v1094, %v1086
    %v1183 = vpack.c.b16 %v1095, %v1087
    %v1184 = vpack.c.b16 %v1096, %v1088
    %v1185 = vpack.c.b16 %v1097, %v1089
    %v1186 = vpack.c.b16 %v1098, %v1090
    %v1187 = vpack.c.b16 %v1107, %v1099
    %v1188 = vpack.c.b16 %v1108, %v1100
    %v1189 = vpack.c.b16 %v1109, %v1101
    %v1190 = vpack.c.b16 %v1110, %v1102
    %v1191 = vpack.c.b16 %v1111, %v1103
    %v1192 = vpack.c.b16 %v1112, %v1104
    %v1193 = vpack.c.b16 %v1113, %v1105
    %v1194 = vpack.c.b16 %v1114, %v1106
    %v1195 = vpack.c.b16 %v1123, %v1115
    %v1196 = vpack.c.b16 %v1124, %v1116
    %v1197 = vpack.c.b16 %v1125, %v1117
    %v1198 = vpack.c.b16 %v1126, %v1118
    %v1199 = vpack.c.b16 %v1127, %v1119
    %v1200 = vpack.c.b16 %v1128, %v1120
    %v1201 = vpack.c.b16 %v1129, %v1121
    %v1202 = vpack.c.b16 %v1130, %v1122
    %v1203 = vpack.c.b16 %v1139, %v1131
    %v1204 = vpack.c.b16 %v1140, %v1132
    %v1205 = vpack.c.b16 %v1141, %v1133
    %v1206 = vpack.c.b16 %v1142, %v1134
    %v1207 = vpack.c.b16 %v1143, %v1135
    %v1208 = vpack.c.b16 %v1144, %v1136
    %v1209 = vpack.c.b16 %v1145, %v1137
    %v1210 = vpack.c.b16 %v1146, %v1138
    %1275 = vmatprep.subr.bf16.mxu0 %v1148
    %1276 = vmatpush1.bf16.msra.mxu0 %v1147
    %1277 = vmatprep.subr.bf16.mxu0 %v1156
    %1278 = vmatpush1.bf16.msra.mxu0 %v1155
    %1279 = vmatprep.subr.bf16.mxu0 %v1164
    %1280 = vmatpush1.bf16.msra.mxu0 %v1163
    %1281 = vmatprep.subr.bf16.mxu0 %v1172
    %1282 = vmatpush1.bf16.msra.mxu0 %v1171
    %1283 = vmatprep.subr.bf16.mxu0 %v1180
    %1284 = vmatpush1.bf16.msra.mxu0 %v1179
    %1285 = vmatprep.subr.bf16.mxu0 %v1188
    %1286 = vmatpush1.bf16.msra.mxu0 %v1187
    %1287 = vmatprep.subr.bf16.mxu0 %v1196
    %1288 = vmatpush1.bf16.msra.mxu0 %v1195
    %1289 = vmatprep.subr.bf16.mxu0 %v1204
    %1290 = vmatpush1.bf16.msra.mxu0 %v1203
    %1291 = vmatprep.subr.bf16.mxu0 0
    %1292 = vmatpush1.bf16.msra.mxu0 0
    %1293 = vmatprep.subr.bf16.mxu0 0
    %1294 = vmatpush1.bf16.msra.mxu0 0
    %1295 = vmatprep.subr.bf16.mxu0 0
    %1296 = vmatpush1.bf16.msra.mxu0 0
    %1297 = vmatprep.subr.bf16.mxu0 0
    %1298 = vmatpush1.bf16.msra.mxu0 0
    %1299 = vmatprep.subr.bf16.mxu0 0
    %1300 = vmatpush1.bf16.msra.mxu0 0
    %1301 = vmatprep.subr.bf16.mxu0 0
    %1302 = vmatpush1.bf16.msra.mxu0 0
    %1303 = vmatprep.subr.bf16.mxu0 0
    %1304 = vmatpush1.bf16.msra.mxu0 0
    %1305 = vmatprep.subr.bf16.mxu0 0
    %1306 = vmatpush1.bf16.msra.mxu0 0
    %1307 = vmatprep.mubr.bf16.mxu0 0
    %1308 = vmatmul.mubr.bf16.gmra.mrb[0].mxu0 %v947
    %v1309 = vpop.f32.mrb[0].mxu0
    %v1310 = vadd.f32 %v674, %v1309
    %v1311 = vpop.f32.mrb[0].mxu0
    %v1312 = vadd.f32 %v676, %v1311
    %v1313 = vpop.f32.mrb[0].mxu0
    %v1314 = vadd.f32 %v678, %v1313
    %v1315 = vpop.f32.mrb[0].mxu0
    %v1316 = vadd.f32 %v680, %v1315
    %1317 = vmatprep.mubr.bf16.mxu0 0
    %1318 = vmatmul.mubr.bf16.gmra.mrb[0].mxu0 %v948
    %v1319 = vpop.f32.mrb[0].mxu0
    %v1320 = vadd.f32 %v684, %v1319
    %v1321 = vpop.f32.mrb[0].mxu0
    %v1322 = vadd.f32 %v686, %v1321
    %v1323 = vpop.f32.mrb[0].mxu0
    %v1324 = vadd.f32 %v688, %v1323
    %v1325 = vpop.f32.mrb[0].mxu0
    %v1326 = vadd.f32 %v690, %v1325
    %1327 = vmatprep.mubr.bf16.mxu0 0
    %1328 = vmatmul.mubr.bf16.gmra.mrb[0].mxu0 %v949
    %v1329 = vpop.f32.mrb[0].mxu0
    %v1330 = vadd.f32 %v694, %v1329
    %v1331 = vpop.f32.mrb[0].mxu0
    %v1332 = vadd.f32 %v696, %v1331
    %v1333 = vpop.f32.mrb[0].mxu0
    %v1334 = vadd.f32 %v698, %v1333
    %v1335 = vpop.f32.mrb[0].mxu0
    %v1336 = vadd.f32 %v700, %v1335
    %1337 = vmatprep.mubr.bf16.mxu0 0
    %1338 = vmatmul.mubr.bf16.gmra.mrb[0].mxu0 %v950
    %v1339 = vpop.f32.mrb[0].mxu0
    %v1340 = vadd.f32 %v704, %v1339
    %v1341 = vpop.f32.mrb[0].mxu0
    %v1342 = vadd.f32 %v706, %v1341
    %v1343 = vpop.f32.mrb[0].mxu0
    %v1344 = vadd.f32 %v708, %v1343
    %v1345 = vpop.f32.mrb[0].mxu0
    %v1346 = vadd.f32 %v710, %v1345
    %1347 = vdwg.mxu0
    %1348 = vmatprep.subr.bf16.mxu0 %v1150
    %1349 = vmatpush1.bf16.msra.mxu0 %v1149
    %1350 = vmatprep.subr.bf16.mxu0 %v1158
    %1351 = vmatpush1.bf16.msra.mxu0 %v1157
    %1352 = vmatprep.subr.bf16.mxu0 %v1166
    %1353 = vmatpush1.bf16.msra.mxu0 %v1165
    %1354 = vmatprep.subr.bf16.mxu0 %v1174
    %1355 = vmatpush1.bf16.msra.mxu0 %v1173
    %1356 = vmatprep.subr.bf16.mxu0 %v1182
    %1357 = vmatpush1.bf16.msra.mxu0 %v1181
    %1358 = vmatprep.subr.bf16.mxu0 %v1190
    %1359 = vmatpush1.bf16.msra.mxu0 %v1189
    %1360 = vmatprep.subr.bf16.mxu0 %v1198
    %1361 = vmatpush1.bf16.msra.mxu0 %v1197
    %1362 = vmatprep.subr.bf16.mxu0 %v1206
    %1363 = vmatpush1.bf16.msra.mxu0 %v1205
    %1364 = vmatprep.subr.bf16.mxu0 0
    %1365 = vmatpush1.bf16.msra.mxu0 0
    %1366 = vmatprep.subr.bf16.mxu0 0
    %1367 = vmatpush1.bf16.msra.mxu0 0
    %1368 = vmatprep.subr.bf16.mxu0 0
    %1369 = vmatpush1.bf16.msra.mxu0 0
    %1370 = vmatprep.subr.bf16.mxu0 0
    %1371 = vmatpush1.bf16.msra.mxu0 0
    %1372 = vmatprep.subr.bf16.mxu0 0
    %1373 = vmatpush1.bf16.msra.mxu0 0
    %1374 = vmatprep.subr.bf16.mxu0 0
    %1375 = vmatpush1.bf16.msra.mxu0 0
    %1376 = vmatprep.subr.bf16.mxu0 0
    %1377 = vmatpush1.bf16.msra.mxu0 0
    %1378 = vmatprep.subr.bf16.mxu0 0
    %1379 = vmatpush1.bf16.msra.mxu0 0
    %1380 = vmatprep.mubr.bf16.mxu0 0
    %1381 = vmatmul.mubr.bf16.gmra.mrb[0].mxu0 %v947
    %v1382 = vpop.f32.mrb[0].mxu0
    %v1383 = vadd.f32 %v747, %v1382
    %v1384 = vpop.f32.mrb[0].mxu0
    %v1385 = vadd.f32 %v749, %v1384
    %v1386 = vpop.f32.mrb[0].mxu0
    %v1387 = vadd.f32 %v751, %v1386
    %v1388 = vpop.f32.mrb[0].mxu0
    %v1389 = vadd.f32 %v753, %v1388
    %1390 = vmatprep.mubr.bf16.mxu0 0
    %1391 = vmatmul.mubr.bf16.gmra.mrb[0].mxu0 %v948
    %v1392 = vpop.f32.mrb[0].mxu0
    %v1393 = vadd.f32 %v757, %v1392
    %v1394 = vpop.f32.mrb[0].mxu0
    %v1395 = vadd.f32 %v759, %v1394
    %v1396 = vpop.f32.mrb[0].mxu0
    %v1397 = vadd.f32 %v761, %v1396
    %v1398 = vpop.f32.mrb[0].mxu0
    %v1399 = vadd.f32 %v763, %v1398
    %1400 = vmatprep.mubr.bf16.mxu0 0
    %1401 = vmatmul.mubr.bf16.gmra.mrb[0].mxu0 %v949
    %v1402 = vpop.f32.mrb[0].mxu0
    %v1403 = vadd.f32 %v767, %v1402
    %v1404 = vpop.f32.mrb[0].mxu0
    %v1405 = vadd.f32 %v769, %v1404
    %v1406 = vpop.f32.mrb[0].mxu0
    %v1407 = vadd.f32 %v771, %v1406
    %v1408 = vpop.f32.mrb[0].mxu0
    %v1409 = vadd.f32 %v773, %v1408
    %1410 = vmatprep.mubr.bf16.mxu0 0
    %1411 = vmatmul.mubr.bf16.gmra.mrb[0].mxu0 %v950
    %v1412 = vpop.f32.mrb[0].mxu0
    %v1413 = vadd.f32 %v777, %v1412
    %v1414 = vpop.f32.mrb[0].mxu0
    %v1415 = vadd.f32 %v779, %v1414
    %v1416 = vpop.f32.mrb[0].mxu0
    %v1417 = vadd.f32 %v781, %v1416
    %v1418 = vpop.f32.mrb[0].mxu0
    %v1419 = vadd.f32 %v783, %v1418
    %1420 = vdwg.mxu0
    %1421 = vmatprep.subr.bf16.mxu0 %v1152
    %1422 = vmatpush1.bf16.msra.mxu0 %v1151
    %1423 = vmatprep.subr.bf16.mxu0 %v1160
    %1424 = vmatpush1.bf16.msra.mxu0 %v1159
    %1425 = vmatprep.subr.bf16.mxu0 %v1168
    %1426 = vmatpush1.bf16.msra.mxu0 %v1167
    %1427 = vmatprep.subr.bf16.mxu0 %v1176
    %1428 = vmatpush1.bf16.msra.mxu0 %v1175
    %1429 = vmatprep.subr.bf16.mxu0 %v1184
    %1430 = vmatpush1.bf16.msra.mxu0 %v1183
    %1431 = vmatprep.subr.bf16.mxu0 %v1192
    %1432 = vmatpush1.bf16.msra.mxu0 %v1191
    %1433 = vmatprep.subr.bf16.mxu0 %v1200
    %1434 = vmatpush1.bf16.msra.mxu0 %v1199
    %1435 = vmatprep.subr.bf16.mxu0 %v1208
    %1436 = vmatpush1.bf16.msra.mxu0 %v1207
    %1437 = vmatprep.subr.bf16.mxu0 0
    %1438 = vmatpush1.bf16.msra.mxu0 0
    %1439 = vmatprep.subr.bf16.mxu0 0
    %1440 = vmatpush1.bf16.msra.mxu0 0
    %1441 = vmatprep.subr.bf16.mxu0 0
    %1442 = vmatpush1.bf16.msra.mxu0 0
    %1443 = vmatprep.subr.bf16.mxu0 0
    %1444 = vmatpush1.bf16.msra.mxu0 0
    %1445 = vmatprep.subr.bf16.mxu0 0
    %1446 = vmatpush1.bf16.msra.mxu0 0
    %1447 = vmatprep.subr.bf16.mxu0 0
    %1448 = vmatpush1.bf16.msra.mxu0 0
    %1449 = vmatprep.subr.bf16.mxu0 0
    %1450 = vmatpush1.bf16.msra.mxu0 0
    %1451 = vmatprep.subr.bf16.mxu0 0
    %1452 = vmatpush1.bf16.msra.mxu0 0
    %1453 = vmatprep.mubr.bf16.mxu0 0
    %1454 = vmatmul.mubr.bf16.gmra.mrb[0].mxu0 %v947
    %v1455 = vpop.f32.mrb[0].mxu0
    %v1456 = vadd.f32 %v820, %v1455
    %v1457 = vpop.f32.mrb[0].mxu0
    %v1458 = vadd.f32 %v822, %v1457
    %v1459 = vpop.f32.mrb[0].mxu0
    %v1460 = vadd.f32 %v824, %v1459
    %v1461 = vpop.f32.mrb[0].mxu0
    %v1462 = vadd.f32 %v826, %v1461
    %1463 = vmatprep.mubr.bf16.mxu0 0
    %1464 = vmatmul.mubr.bf16.gmra.mrb[0].mxu0 %v948
    %v1465 = vpop.f32.mrb[0].mxu0
    %v1466 = vadd.f32 %v830, %v1465
    %v1467 = vpop.f32.mrb[0].mxu0
    %v1468 = vadd.f32 %v832, %v1467
    %v1469 = vpop.f32.mrb[0].mxu0
    %v1470 = vadd.f32 %v834, %v1469
    %v1471 = vpop.f32.mrb[0].mxu0
    %v1472 = vadd.f32 %v836, %v1471
    %1473 = vmatprep.mubr.bf16.mxu0 0
    %1474 = vmatmul.mubr.bf16.gmra.mrb[0].mxu0 %v949
    %v1475 = vpop.f32.mrb[0].mxu0
    %v1476 = vadd.f32 %v840, %v1475
    %v1477 = vpop.f32.mrb[0].mxu0
    %v1478 = vadd.f32 %v842, %v1477
    %v1479 = vpop.f32.mrb[0].mxu0
    %v1480 = vadd.f32 %v844, %v1479
    %v1481 = vpop.f32.mrb[0].mxu0
    %v1482 = vadd.f32 %v846, %v1481
    %1483 = vmatprep.mubr.bf16.mxu0 0
    %1484 = vmatmul.mubr.bf16.gmra.mrb[0].mxu0 %v950
    %v1485 = vpop.f32.mrb[0].mxu0
    %v1486 = vadd.f32 %v850, %v1485
    %v1487 = vpop.f32.mrb[0].mxu0
    %v1488 = vadd.f32 %v852, %v1487
    %v1489 = vpop.f32.mrb[0].mxu0
    %v1490 = vadd.f32 %v854, %v1489
    %v1491 = vpop.f32.mrb[0].mxu0
    %v1492 = vadd.f32 %v856, %v1491
    %1493 = vdwg.mxu0
    %1494 = vmatprep.subr.bf16.mxu0 %v1154
    %1495 = vmatpush1.bf16.msra.mxu0 %v1153
    %1496 = vmatprep.subr.bf16.mxu0 %v1162
    %1497 = vmatpush1.bf16.msra.mxu0 %v1161
    %1498 = vmatprep.subr.bf16.mxu0 %v1170
    %1499 = vmatpush1.bf16.msra.mxu0 %v1169
    %1500 = vmatprep.subr.bf16.mxu0 %v1178
    %1501 = vmatpush1.bf16.msra.mxu0 %v1177
    %1502 = vmatprep.subr.bf16.mxu0 %v1186
    %1503 = vmatpush1.bf16.msra.mxu0 %v1185
    %1504 = vmatprep.subr.bf16.mxu0 %v1194
    %1505 = vmatpush1.bf16.msra.mxu0 %v1193
    %1506 = vmatprep.subr.bf16.mxu0 %v1202
    %1507 = vmatpush1.bf16.msra.mxu0 %v1201
    %1508 = vmatprep.subr.bf16.mxu0 %v1210
    %1509 = vmatpush1.bf16.msra.mxu0 %v1209
    %1510 = vmatprep.subr.bf16.mxu0 0
    %1511 = vmatpush1.bf16.msra.mxu0 0
    %1512 = vmatprep.subr.bf16.mxu0 0
    %1513 = vmatpush1.bf16.msra.mxu0 0
    %1514 = vmatprep.subr.bf16.mxu0 0
    %1515 = vmatpush1.bf16.msra.mxu0 0
    %1516 = vmatprep.subr.bf16.mxu0 0
    %1517 = vmatpush1.bf16.msra.mxu0 0
    %1518 = vmatprep.subr.bf16.mxu0 0
    %1519 = vmatpush1.bf16.msra.mxu0 0
    %1520 = vmatprep.subr.bf16.mxu0 0
    %1521 = vmatpush1.bf16.msra.mxu0 0
    %1522 = vmatprep.subr.bf16.mxu0 0
    %1523 = vmatpush1.bf16.msra.mxu0 0
    %1524 = vmatprep.subr.bf16.mxu0 0
    %1525 = vmatpush1.bf16.msra.mxu0 0
    %1526 = vmatprep.mubr.bf16.mxu0 0
    %1527 = vmatmul.mubr.bf16.gmra.mrb[0].mxu0 %v947
    %v1528 = vpop.f32.mrb[0].mxu0
    %v1529 = vadd.f32 %v893, %v1528
    %v1530 = vpop.f32.mrb[0].mxu0
    %v1531 = vadd.f32 %v895, %v1530
    %v1532 = vpop.f32.mrb[0].mxu0
    %v1533 = vadd.f32 %v897, %v1532
    %v1534 = vpop.f32.mrb[0].mxu0
    %v1535 = vadd.f32 %v899, %v1534
    %1536 = vmatprep.mubr.bf16.mxu0 0
    %1537 = vmatmul.mubr.bf16.gmra.mrb[0].mxu0 %v948
    %v1538 = vpop.f32.mrb[0].mxu0
    %v1539 = vadd.f32 %v903, %v1538
    %v1540 = vpop.f32.mrb[0].mxu0
    %v1541 = vadd.f32 %v905, %v1540
    %v1542 = vpop.f32.mrb[0].mxu0
    %v1543 = vadd.f32 %v907, %v1542
    %v1544 = vpop.f32.mrb[0].mxu0
    %v1545 = vadd.f32 %v909, %v1544
    %1546 = vmatprep.mubr.bf16.mxu0 0
    %1547 = vmatmul.mubr.bf16.gmra.mrb[0].mxu0 %v949
    %v1548 = vpop.f32.mrb[0].mxu0
    %v1549 = vadd.f32 %v913, %v1548
    %v1550 = vpop.f32.mrb[0].mxu0
    %v1551 = vadd.f32 %v915, %v1550
    %v1552 = vpop.f32.mrb[0].mxu0
    %v1553 = vadd.f32 %v917, %v1552
    %v1554 = vpop.f32.mrb[0].mxu0
    %v1555 = vadd.f32 %v919, %v1554
    %1556 = vmatprep.mubr.bf16.mxu0 0
    %1557 = vmatmul.mubr.bf16.gmra.mrb[0].mxu0 %v950
    %v1558 = vpop.f32.mrb[0].mxu0
    %v1559 = vadd.f32 %v923, %v1558
    %v1560 = vpop.f32.mrb[0].mxu0
    %v1561 = vadd.f32 %v925, %v1560
    %v1562 = vpop.f32.mrb[0].mxu0
    %v1563 = vadd.f32 %v927, %v1562
    %v1564 = vpop.f32.mrb[0].mxu0
    %v1565 = vadd.f32 %v929, %v1564
    %1566 = vdwg.mxu0
    %v1567 = vld [vmem:[%s0] sm:$0xe]
    %v1568 = vld [vmem:[%s0 + $0x14] sm:$0xe]
    %vm1573 = vcmask 1042432
    %vm1574 = vcmask 1046532
    %vm1575 = vmor %vm1573, %vm1574
    %v1576 = vrot.slane %v1567, 5
    %v1577 = vrot.slane %v1576, 4
    %v1578 = vrot.slane %v74, 5
    %v1579 = vsel %vm1575, %v1577, %v1578
    %v1580 = vrot.slane %v1578, 4
    %v1581 = vrot.slane %v75, 5
    %v1582 = vsel %vm1575, %v1580, %v1581
    %v1583 = vrot.slane %v1581, 4
    %v1584 = vrot.slane %v76, 5
    %v1585 = vsel %vm1575, %v1583, %v1584
    %v1586 = vrot.slane %v1584, 4
    %v1587 = vrot.slane %v145, 5
    %v1588 = vsel %vm1575, %v1586, %v1587
    %v1589 = vrot.slane %v1568, 5
    %v1590 = vrot.slane %v1589, 4
    %v1591 = vrot.slane %v78, 5
    %v1592 = vsel %vm1575, %v1590, %v1591
    %v1593 = vrot.slane %v1591, 4
    %v1594 = vrot.slane %v79, 5
    %v1595 = vsel %vm1575, %v1593, %v1594
    %v1596 = vrot.slane %v1594, 4
    %v1597 = vrot.slane %v80, 5
    %v1598 = vsel %vm1575, %v1596, %v1597
    %v1599 = vrot.slane %v1597, 4
    %v1600 = vrot.slane %v146, 5
    %v1601 = vsel %vm1575, %v1599, %v1600
    %s1602 = scalar_lea.vmem [#allocation3], 1024
    %v1603 = vld [vmem:[%s1602] sm:$0xff]
    %v1604 = vld [vmem:[%s1602 + $0x8] sm:$0xff]
    %v1605 = vld [vmem:[%s1602 + $0x10] sm:$0xff]
    %v1606 = vld [vmem:[%s1602 + $0x18] sm:$0xff]
    %v1607 = vld [vmem:[%s1602 + $0x20] sm:$0xff]
    %v1608 = vld [vmem:[%s1602 + $0x28] sm:$0xff]
    %v1609 = vld [vmem:[%s1602 + $0x30] sm:$0xff]
    %v1610 = vld [vmem:[%s1602 + $0x38] sm:$0xff]
    %v1611 = vld [vmem:[%s1602 + $0x40] sm:$0xff]
    %v1612 = vld [vmem:[%s1602 + $0x48] sm:$0xff]
    %v1613 = vld [vmem:[%s1602 + $0x50] sm:$0xff]
    %v1614 = vld [vmem:[%s1602 + $0x58] sm:$0xff]
    %v1615 = vld [vmem:[%s1602 + $0x60] sm:$0xff]
    %v1616 = vld [vmem:[%s1602 + $0x68] sm:$0xff]
    %v1617 = vld [vmem:[%s1602 + $0x70] sm:$0xff]
    %v1618 = vld [vmem:[%s1602 + $0x78] sm:$0xff]
    %v1619 = vld [vmem:[%s1602 + $0x80] sm:$0xff]
    %v1620 = vld [vmem:[%s1602 + $0x88] sm:$0xff]
    %v1621 = vld [vmem:[%s1602 + $0x90] sm:$0xff]
    %v1622 = vld [vmem:[%s1602 + $0x98] sm:$0xff]
    %v1623 = vld [vmem:[%s1602 + $0xa0] sm:$0xff]
    %v1624 = vld [vmem:[%s1602 + $0xa8] sm:$0xff]
    %v1625 = vld [vmem:[%s1602 + $0xb0] sm:$0xff]
    %v1626 = vld [vmem:[%s1602 + $0xb8] sm:$0xff]
    %v1627 = vld [vmem:[%s1602 + $0xc0] sm:$0xff]
    %v1628 = vld [vmem:[%s1602 + $0xc8] sm:$0xff]
    %v1629 = vld [vmem:[%s1602 + $0xd0] sm:$0xff]
    %v1630 = vld [vmem:[%s1602 + $0xd8] sm:$0xff]
    %v1631 = vld [vmem:[%s1602 + $0xe0] sm:$0xff]
    %v1632 = vld [vmem:[%s1602 + $0xe8] sm:$0xff]
    %v1633 = vld [vmem:[%s1602 + $0xf0] sm:$0xff]
    %v1634 = vld [vmem:[%s1602 + $0xf8] sm:$0xff]
    %v1635 = vld [vmem:[%s1602 + $0x100] sm:$0xff]
    %v1636 = vld [vmem:[%s1602 + $0x108] sm:$0xff]
    %v1637 = vld [vmem:[%s1602 + $0x110] sm:$0xff]
    %v1638 = vld [vmem:[%s1602 + $0x118] sm:$0xff]
    %v1639 = vld [vmem:[%s1602 + $0x120] sm:$0xff]
    %v1640 = vld [vmem:[%s1602 + $0x128] sm:$0xff]
    %v1641 = vld [vmem:[%s1602 + $0x130] sm:$0xff]
    %v1642 = vld [vmem:[%s1602 + $0x138] sm:$0xff]
    %v1643 = vld [vmem:[%s1602 + $0x140] sm:$0xff]
    %v1644 = vld [vmem:[%s1602 + $0x148] sm:$0xff]
    %v1645 = vld [vmem:[%s1602 + $0x150] sm:$0xff]
    %v1646 = vld [vmem:[%s1602 + $0x158] sm:$0xff]
    %v1647 = vld [vmem:[%s1602 + $0x160] sm:$0xff]
    %v1648 = vld [vmem:[%s1602 + $0x168] sm:$0xff]
    %v1649 = vld [vmem:[%s1602 + $0x170] sm:$0xff]
    %v1650 = vld [vmem:[%s1602 + $0x178] sm:$0xff]
    %v1651 = vld [vmem:[%s1602 + $0x180] sm:$0xff]
    %v1652 = vld [vmem:[%s1602 + $0x188] sm:$0xff]
    %v1653 = vld [vmem:[%s1602 + $0x190] sm:$0xff]
    %v1654 = vld [vmem:[%s1602 + $0x198] sm:$0xff]
    %v1655 = vld [vmem:[%s1602 + $0x1a0] sm:$0xff]
    %v1656 = vld [vmem:[%s1602 + $0x1a8] sm:$0xff]
    %v1657 = vld [vmem:[%s1602 + $0x1b0] sm:$0xff]
    %v1658 = vld [vmem:[%s1602 + $0x1b8] sm:$0xff]
    %v1659 = vld [vmem:[%s1602 + $0x1c0] sm:$0xff]
    %v1660 = vld [vmem:[%s1602 + $0x1c8] sm:$0xff]
    %v1661 = vld [vmem:[%s1602 + $0x1d0] sm:$0xff]
    %v1662 = vld [vmem:[%s1602 + $0x1d8] sm:$0xff]
    %v1663 = vld [vmem:[%s1602 + $0x1e0] sm:$0xff]
    %v1664 = vld [vmem:[%s1602 + $0x1e8] sm:$0xff]
    %v1665 = vld [vmem:[%s1602 + $0x1f0] sm:$0xff]
    %v1666 = vld [vmem:[%s1602 + $0x1f8] sm:$0xff]
    %v1667 = vunpack.c.l.b16 %v1579
    %v1668 = vunpack.c.l.b16 %v1582
    %v1669 = vunpack.c.l.b16 %v1585
    %v1670 = vunpack.c.l.b16 %v1588
    %v1671 = vunpack.c.l.b16 %v1592
    %v1672 = vunpack.c.l.b16 %v1595
    %v1673 = vunpack.c.l.b16 %v1598
    %v1674 = vunpack.c.l.b16 %v1601
    %v1675 = vpack.c.b16 %v1668, %v1667
    %v1676 = vpack.c.b16 %v1670, %v1669
    %v1677 = vpack.c.b16 %v1672, %v1671
    %v1678 = vpack.c.b16 %v1674, %v1673
    %v1747 = vunpack.c.l.b16 %v1603
    %v1748 = vunpack.c.h.b16 %v1603
    %v1749 = vunpack.c.l.b16 %v1604
    %v1750 = vunpack.c.h.b16 %v1604
    %v1751 = vunpack.c.l.b16 %v1605
    %v1752 = vunpack.c.h.b16 %v1605
    %v1753 = vunpack.c.l.b16 %v1606
    %v1754 = vunpack.c.h.b16 %v1606
    %v1755 = vunpack.c.l.b16 %v1607
    %v1756 = vunpack.c.h.b16 %v1607
    %v1757 = vunpack.c.l.b16 %v1608
    %v1758 = vunpack.c.h.b16 %v1608
    %v1759 = vunpack.c.l.b16 %v1609
    %v1760 = vunpack.c.h.b16 %v1609
    %v1761 = vunpack.c.l.b16 %v1610
    %v1762 = vunpack.c.h.b16 %v1610
    %v1763 = vunpack.c.l.b16 %v1611
    %v1764 = vunpack.c.h.b16 %v1611
    %v1765 = vunpack.c.l.b16 %v1612
    %v1766 = vunpack.c.h.b16 %v1612
    %v1767 = vunpack.c.l.b16 %v1613
    %v1768 = vunpack.c.h.b16 %v1613
    %v1769 = vunpack.c.l.b16 %v1614
    %v1770 = vunpack.c.h.b16 %v1614
    %v1771 = vunpack.c.l.b16 %v1615
    %v1772 = vunpack.c.h.b16 %v1615
    %v1773 = vunpack.c.l.b16 %v1616
    %v1774 = vunpack.c.h.b16 %v1616
    %v1775 = vunpack.c.l.b16 %v1617
    %v1776 = vunpack.c.h.b16 %v1617
    %v1777 = vunpack.c.l.b16 %v1618
    %v1778 = vunpack.c.h.b16 %v1618
    %v1779 = vunpack.c.l.b16 %v1619
    %v1780 = vunpack.c.h.b16 %v1619
    %v1781 = vunpack.c.l.b16 %v1620
    %v1782 = vunpack.c.h.b16 %v1620
    %v1783 = vunpack.c.l.b16 %v1621
    %v1784 = vunpack.c.h.b16 %v1621
    %v1785 = vunpack.c.l.b16 %v1622
    %v1786 = vunpack.c.h.b16 %v1622
    %v1787 = vunpack.c.l.b16 %v1623
    %v1788 = vunpack.c.h.b16 %v1623
    %v1789 = vunpack.c.l.b16 %v1624
    %v1790 = vunpack.c.h.b16 %v1624
    %v1791 = vunpack.c.l.b16 %v1625
    %v1792 = vunpack.c.h.b16 %v1625
    %v1793 = vunpack.c.l.b16 %v1626
    %v1794 = vunpack.c.h.b16 %v1626
    %v1795 = vunpack.c.l.b16 %v1627
    %v1796 = vunpack.c.h.b16 %v1627
    %v1797 = vunpack.c.l.b16 %v1628
    %v1798 = vunpack.c.h.b16 %v1628
    %v1799 = vunpack.c.l.b16 %v1629
    %v1800 = vunpack.c.h.b16 %v1629
    %v1801 = vunpack.c.l.b16 %v1630
    %v1802 = vunpack.c.h.b16 %v1630
    %v1803 = vunpack.c.l.b16 %v1631
    %v1804 = vunpack.c.h.b16 %v1631
    %v1805 = vunpack.c.l.b16 %v1632
    %v1806 = vunpack.c.h.b16 %v1632
    %v1807 = vunpack.c.l.b16 %v1633
    %v1808 = vunpack.c.h.b16 %v1633
    %v1809 = vunpack.c.l.b16 %v1634
    %v1810 = vunpack.c.h.b16 %v1634
    %v1811 = vunpack.c.l.b16 %v1635
    %v1812 = vunpack.c.h.b16 %v1635
    %v1813 = vunpack.c.l.b16 %v1636
    %v1814 = vunpack.c.h.b16 %v1636
    %v1815 = vunpack.c.l.b16 %v1637
    %v1816 = vunpack.c.h.b16 %v1637
    %v1817 = vunpack.c.l.b16 %v1638
    %v1818 = vunpack.c.h.b16 %v1638
    %v1819 = vunpack.c.l.b16 %v1639
    %v1820 = vunpack.c.h.b16 %v1639
    %v1821 = vunpack.c.l.b16 %v1640
    %v1822 = vunpack.c.h.b16 %v1640
    %v1823 = vunpack.c.l.b16 %v1641
    %v1824 = vunpack.c.h.b16 %v1641
    %v1825 = vunpack.c.l.b16 %v1642
    %v1826 = vunpack.c.h.b16 %v1642
    %v1827 = vunpack.c.l.b16 %v1643
    %v1828 = vunpack.c.h.b16 %v1643
    %v1829 = vunpack.c.l.b16 %v1644
    %v1830 = vunpack.c.h.b16 %v1644
    %v1831 = vunpack.c.l.b16 %v1645
    %v1832 = vunpack.c.h.b16 %v1645
    %v1833 = vunpack.c.l.b16 %v1646
    %v1834 = vunpack.c.h.b16 %v1646
    %v1835 = vunpack.c.l.b16 %v1647
    %v1836 = vunpack.c.h.b16 %v1647
    %v1837 = vunpack.c.l.b16 %v1648
    %v1838 = vunpack.c.h.b16 %v1648
    %v1839 = vunpack.c.l.b16 %v1649
    %v1840 = vunpack.c.h.b16 %v1649
    %v1841 = vunpack.c.l.b16 %v1650
    %v1842 = vunpack.c.h.b16 %v1650
    %v1843 = vunpack.c.l.b16 %v1651
    %v1844 = vunpack.c.h.b16 %v1651
    %v1845 = vunpack.c.l.b16 %v1652
    %v1846 = vunpack.c.h.b16 %v1652
    %v1847 = vunpack.c.l.b16 %v1653
    %v1848 = vunpack.c.h.b16 %v1653
    %v1849 = vunpack.c.l.b16 %v1654
    %v1850 = vunpack.c.h.b16 %v1654
    %v1851 = vunpack.c.l.b16 %v1655
    %v1852 = vunpack.c.h.b16 %v1655
    %v1853 = vunpack.c.l.b16 %v1656
    %v1854 = vunpack.c.h.b16 %v1656
    %v1855 = vunpack.c.l.b16 %v1657
    %v1856 = vunpack.c.h.b16 %v1657
    %v1857 = vunpack.c.l.b16 %v1658
    %v1858 = vunpack.c.h.b16 %v1658
    %v1859 = vunpack.c.l.b16 %v1659
    %v1860 = vunpack.c.h.b16 %v1659
    %v1861 = vunpack.c.l.b16 %v1660
    %v1862 = vunpack.c.h.b16 %v1660
    %v1863 = vunpack.c.l.b16 %v1661
    %v1864 = vunpack.c.h.b16 %v1661
    %v1865 = vunpack.c.l.b16 %v1662
    %v1866 = vunpack.c.h.b16 %v1662
    %v1867 = vunpack.c.l.b16 %v1663
    %v1868 = vunpack.c.h.b16 %v1663
    %v1869 = vunpack.c.l.b16 %v1664
    %v1870 = vunpack.c.h.b16 %v1664
    %v1871 = vunpack.c.l.b16 %v1665
    %v1872 = vunpack.c.h.b16 %v1665
    %v1873 = vunpack.c.l.b16 %v1666
    %v1874 = vunpack.c.h.b16 %v1666
    %v1875 = vpack.c.b16 %v1755, %v1747
    %v1876 = vpack.c.b16 %v1756, %v1748
    %v1877 = vpack.c.b16 %v1757, %v1749
    %v1878 = vpack.c.b16 %v1758, %v1750
    %v1879 = vpack.c.b16 %v1759, %v1751
    %v1880 = vpack.c.b16 %v1760, %v1752
    %v1881 = vpack.c.b16 %v1761, %v1753
    %v1882 = vpack.c.b16 %v1762, %v1754
    %v1883 = vpack.c.b16 %v1771, %v1763
    %v1884 = vpack.c.b16 %v1772, %v1764
    %v1885 = vpack.c.b16 %v1773, %v1765
    %v1886 = vpack.c.b16 %v1774, %v1766
    %v1887 = vpack.c.b16 %v1775, %v1767
    %v1888 = vpack.c.b16 %v1776, %v1768
    %v1889 = vpack.c.b16 %v1777, %v1769
    %v1890 = vpack.c.b16 %v1778, %v1770
    %v1891 = vpack.c.b16 %v1787, %v1779
    %v1892 = vpack.c.b16 %v1788, %v1780
    %v1893 = vpack.c.b16 %v1789, %v1781
    %v1894 = vpack.c.b16 %v1790, %v1782
    %v1895 = vpack.c.b16 %v1791, %v1783
    %v1896 = vpack.c.b16 %v1792, %v1784
    %v1897 = vpack.c.b16 %v1793, %v1785
    %v1898 = vpack.c.b16 %v1794, %v1786
    %v1899 = vpack.c.b16 %v1803, %v1795
    %v1900 = vpack.c.b16 %v1804, %v1796
    %v1901 = vpack.c.b16 %v1805, %v1797
    %v1902 = vpack.c.b16 %v1806, %v1798
    %v1903 = vpack.c.b16 %v1807, %v1799
    %v1904 = vpack.c.b16 %v1808, %v1800
    %v1905 = vpack.c.b16 %v1809, %v1801
    %v1906 = vpack.c.b16 %v1810, %v1802
    %v1907 = vpack.c.b16 %v1819, %v1811
    %v1908 = vpack.c.b16 %v1820, %v1812
    %v1909 = vpack.c.b16 %v1821, %v1813
    %v1910 = vpack.c.b16 %v1822, %v1814
    %v1911 = vpack.c.b16 %v1823, %v1815
    %v1912 = vpack.c.b16 %v1824, %v1816
    %v1913 = vpack.c.b16 %v1825, %v1817
    %v1914 = vpack.c.b16 %v1826, %v1818
    %v1915 = vpack.c.b16 %v1835, %v1827
    %v1916 = vpack.c.b16 %v1836, %v1828
    %v1917 = vpack.c.b16 %v1837, %v1829
    %v1918 = vpack.c.b16 %v1838, %v1830
    %v1919 = vpack.c.b16 %v1839, %v1831
    %v1920 = vpack.c.b16 %v1840, %v1832
    %v1921 = vpack.c.b16 %v1841, %v1833
    %v1922 = vpack.c.b16 %v1842, %v1834
    %v1923 = vpack.c.b16 %v1851, %v1843
    %v1924 = vpack.c.b16 %v1852, %v1844
    %v1925 = vpack.c.b16 %v1853, %v1845
    %v1926 = vpack.c.b16 %v1854, %v1846
    %v1927 = vpack.c.b16 %v1855, %v1847
    %v1928 = vpack.c.b16 %v1856, %v1848
    %v1929 = vpack.c.b16 %v1857, %v1849
    %v1930 = vpack.c.b16 %v1858, %v1850
    %v1931 = vpack.c.b16 %v1867, %v1859
    %v1932 = vpack.c.b16 %v1868, %v1860
    %v1933 = vpack.c.b16 %v1869, %v1861
    %v1934 = vpack.c.b16 %v1870, %v1862
    %v1935 = vpack.c.b16 %v1871, %v1863
    %v1936 = vpack.c.b16 %v1872, %v1864
    %v1937 = vpack.c.b16 %v1873, %v1865
    %v1938 = vpack.c.b16 %v1874, %v1866
    %2003 = vmatprep.subr.bf16.mxu0 %v1876
    %2004 = vmatpush1.bf16.msra.mxu0 %v1875
    %2005 = vmatprep.subr.bf16.mxu0 %v1884
    %2006 = vmatpush1.bf16.msra.mxu0 %v1883
    %2007 = vmatprep.subr.bf16.mxu0 %v1892
    %2008 = vmatpush1.bf16.msra.mxu0 %v1891
    %2009 = vmatprep.subr.bf16.mxu0 %v1900
    %2010 = vmatpush1.bf16.msra.mxu0 %v1899
    %2011 = vmatprep.subr.bf16.mxu0 %v1908
    %2012 = vmatpush1.bf16.msra.mxu0 %v1907
    %2013 = vmatprep.subr.bf16.mxu0 %v1916
    %2014 = vmatpush1.bf16.msra.mxu0 %v1915
    %2015 = vmatprep.subr.bf16.mxu0 %v1924
    %2016 = vmatpush1.bf16.msra.mxu0 %v1923
    %2017 = vmatprep.subr.bf16.mxu0 %v1932
    %2018 = vmatpush1.bf16.msra.mxu0 %v1931
    %2019 = vmatprep.subr.bf16.mxu0 0
    %2020 = vmatpush1.bf16.msra.mxu0 0
    %2021 = vmatprep.subr.bf16.mxu0 0
    %2022 = vmatpush1.bf16.msra.mxu0 0
    %2023 = vmatprep.subr.bf16.mxu0 0
    %2024 = vmatpush1.bf16.msra.mxu0 0
    %2025 = vmatprep.subr.bf16.mxu0 0
    %2026 = vmatpush1.bf16.msra.mxu0 0
    %2027 = vmatprep.subr.bf16.mxu0 0
    %2028 = vmatpush1.bf16.msra.mxu0 0
    %2029 = vmatprep.subr.bf16.mxu0 0
    %2030 = vmatpush1.bf16.msra.mxu0 0
    %2031 = vmatprep.subr.bf16.mxu0 0
    %2032 = vmatpush1.bf16.msra.mxu0 0
    %2033 = vmatprep.subr.bf16.mxu0 0
    %2034 = vmatpush1.bf16.msra.mxu0 0
    %2035 = vmatprep.mubr.bf16.mxu0 0
    %2036 = vmatmul.mubr.bf16.gmra.mrb[0].mxu0 %v1675
    %v2037 = vpop.f32.mrb[0].mxu0
    %v2038 = vadd.f32 0.0, %v2037
    %v2039 = vpop.f32.mrb[0].mxu0
    %v2040 = vadd.f32 0.0, %v2039
    %v2041 = vpop.f32.mrb[0].mxu0
    %v2042 = vadd.f32 0.0, %v2041
    %v2043 = vpop.f32.mrb[0].mxu0
    %v2044 = vadd.f32 0.0, %v2043
    %2045 = vmatprep.mubr.bf16.mxu0 0
    %2046 = vmatmul.mubr.bf16.gmra.mrb[0].mxu0 %v1676
    %v2047 = vpop.f32.mrb[0].mxu0
    %v2048 = vadd.f32 0.0, %v2047
    %v2049 = vpop.f32.mrb[0].mxu0
    %v2050 = vadd.f32 0.0, %v2049
    %v2051 = vpop.f32.mrb[0].mxu0
    %v2052 = vadd.f32 0.0, %v2051
    %v2053 = vpop.f32.mrb[0].mxu0
    %v2054 = vadd.f32 0.0, %v2053
    %2055 = vmatprep.mubr.bf16.mxu0 0
    %2056 = vmatmul.mubr.bf16.gmra.mrb[0].mxu0 %v1677
    %v2057 = vpop.f32.mrb[0].mxu0
    %v2058 = vadd.f32 0.0, %v2057
    %v2059 = vpop.f32.mrb[0].mxu0
    %v2060 = vadd.f32 0.0, %v2059
    %v2061 = vpop.f32.mrb[0].mxu0
    %v2062 = vadd.f32 0.0, %v2061
    %v2063 = vpop.f32.mrb[0].mxu0
    %v2064 = vadd.f32 0.0, %v2063
    %2065 = vmatprep.mubr.bf16.mxu0 0
    %2066 = vmatmul.mubr.bf16.gmra.mrb[0].mxu0 %v1678
    %v2067 = vpop.f32.mrb[0].mxu0
    %v2068 = vadd.f32 0.0, %v2067
    %v2069 = vpop.f32.mrb[0].mxu0
    %v2070 = vadd.f32 0.0, %v2069
    %v2071 = vpop.f32.mrb[0].mxu0
    %v2072 = vadd.f32 0.0, %v2071
    %v2073 = vpop.f32.mrb[0].mxu0
    %v2074 = vadd.f32 0.0, %v2073
    %2075 = vdwg.mxu0
    %2076 = vmatprep.subr.bf16.mxu0 %v1878
    %2077 = vmatpush1.bf16.msra.mxu0 %v1877
    %2078 = vmatprep.subr.bf16.mxu0 %v1886
    %2079 = vmatpush1.bf16.msra.mxu0 %v1885
    %2080 = vmatprep.subr.bf16.mxu0 %v1894
    %2081 = vmatpush1.bf16.msra.mxu0 %v1893
    %2082 = vmatprep.subr.bf16.mxu0 %v1902
    %2083 = vmatpush1.bf16.msra.mxu0 %v1901
    %2084 = vmatprep.subr.bf16.mxu0 %v1910
    %2085 = vmatpush1.bf16.msra.mxu0 %v1909
    %2086 = vmatprep.subr.bf16.mxu0 %v1918
    %2087 = vmatpush1.bf16.msra.mxu0 %v1917
    %2088 = vmatprep.subr.bf16.mxu0 %v1926
    %2089 = vmatpush1.bf16.msra.mxu0 %v1925
    %2090 = vmatprep.subr.bf16.mxu0 %v1934
    %2091 = vmatpush1.bf16.msra.mxu0 %v1933
    %2092 = vmatprep.subr.bf16.mxu0 0
    %2093 = vmatpush1.bf16.msra.mxu0 0
    %2094 = vmatprep.subr.bf16.mxu0 0
    %2095 = vmatpush1.bf16.msra.mxu0 0
    %2096 = vmatprep.subr.bf16.mxu0 0
    %2097 = vmatpush1.bf16.msra.mxu0 0
    %2098 = vmatprep.subr.bf16.mxu0 0
    %2099 = vmatpush1.bf16.msra.mxu0 0
    %2100 = vmatprep.subr.bf16.mxu0 0
    %2101 = vmatpush1.bf16.msra.mxu0 0
    %2102 = vmatprep.subr.bf16.mxu0 0
    %2103 = vmatpush1.bf16.msra.mxu0 0
    %2104 = vmatprep.subr.bf16.mxu0 0
    %2105 = vmatpush1.bf16.msra.mxu0 0
    %2106 = vmatprep.subr.bf16.mxu0 0
    %2107 = vmatpush1.bf16.msra.mxu0 0
    %2108 = vmatprep.mubr.bf16.mxu0 0
    %2109 = vmatmul.mubr.bf16.gmra.mrb[0].mxu0 %v1675
    %v2110 = vpop.f32.mrb[0].mxu0
    %v2111 = vadd.f32 0.0, %v2110
    %v2112 = vpop.f32.mrb[0].mxu0
    %v2113 = vadd.f32 0.0, %v2112
    %v2114 = vpop.f32.mrb[0].mxu0
    %v2115 = vadd.f32 0.0, %v2114
    %v2116 = vpop.f32.mrb[0].mxu0
    %v2117 = vadd.f32 0.0, %v2116
    %2118 = vmatprep.mubr.bf16.mxu0 0
    %2119 = vmatmul.mubr.bf16.gmra.mrb[0].mxu0 %v1676
    %v2120 = vpop.f32.mrb[0].mxu0
    %v2121 = vadd.f32 0.0, %v2120
    %v2122 = vpop.f32.mrb[0].mxu0
    %v2123 = vadd.f32 0.0, %v2122
    %v2124 = vpop.f32.mrb[0].mxu0
    %v2125 = vadd.f32 0.0, %v2124
    %v2126 = vpop.f32.mrb[0].mxu0
    %v2127 = vadd.f32 0.0, %v2126
    %2128 = vmatprep.mubr.bf16.mxu0 0
    %2129 = vmatmul.mubr.bf16.gmra.mrb[0].mxu0 %v1677
    %v2130 = vpop.f32.mrb[0].mxu0
    %v2131 = vadd.f32 0.0, %v2130
    %v2132 = vpop.f32.mrb[0].mxu0
    %v2133 = vadd.f32 0.0, %v2132
    %v2134 = vpop.f32.mrb[0].mxu0
    %v2135 = vadd.f32 0.0, %v2134
    %v2136 = vpop.f32.mrb[0].mxu0
    %v2137 = vadd.f32 0.0, %v2136
    %2138 = vmatprep.mubr.bf16.mxu0 0
    %2139 = vmatmul.mubr.bf16.gmra.mrb[0].mxu0 %v1678
    %v2140 = vpop.f32.mrb[0].mxu0
    %v2141 = vadd.f32 0.0, %v2140
    %v2142 = vpop.f32.mrb[0].mxu0
    %v2143 = vadd.f32 0.0, %v2142
    %v2144 = vpop.f32.mrb[0].mxu0
    %v2145 = vadd.f32 0.0, %v2144
    %v2146 = vpop.f32.mrb[0].mxu0
    %v2147 = vadd.f32 0.0, %v2146
    %2148 = vdwg.mxu0
    %2149 = vmatprep.subr.bf16.mxu0 %v1880
    %2150 = vmatpush1.bf16.msra.mxu0 %v1879
    %2151 = vmatprep.subr.bf16.mxu0 %v1888
    %2152 = vmatpush1.bf16.msra.mxu0 %v1887
    %2153 = vmatprep.subr.bf16.mxu0 %v1896
    %2154 = vmatpush1.bf16.msra.mxu0 %v1895
    %2155 = vmatprep.subr.bf16.mxu0 %v1904
    %2156 = vmatpush1.bf16.msra.mxu0 %v1903
    %2157 = vmatprep.subr.bf16.mxu0 %v1912
    %2158 = vmatpush1.bf16.msra.mxu0 %v1911
    %2159 = vmatprep.subr.bf16.mxu0 %v1920
    %2160 = vmatpush1.bf16.msra.mxu0 %v1919
    %2161 = vmatprep.subr.bf16.mxu0 %v1928
    %2162 = vmatpush1.bf16.msra.mxu0 %v1927
    %2163 = vmatprep.subr.bf16.mxu0 %v1936
    %2164 = vmatpush1.bf16.msra.mxu0 %v1935
    %2165 = vmatprep.subr.bf16.mxu0 0
    %2166 = vmatpush1.bf16.msra.mxu0 0
    %2167 = vmatprep.subr.bf16.mxu0 0
    %2168 = vmatpush1.bf16.msra.mxu0 0
    %2169 = vmatprep.subr.bf16.mxu0 0
    %2170 = vmatpush1.bf16.msra.mxu0 0
    %2171 = vmatprep.subr.bf16.mxu0 0
    %2172 = vmatpush1.bf16.msra.mxu0 0
    %2173 = vmatprep.subr.bf16.mxu0 0
    %2174 = vmatpush1.bf16.msra.mxu0 0
    %2175 = vmatprep.subr.bf16.mxu0 0
    %2176 = vmatpush1.bf16.msra.mxu0 0
    %2177 = vmatprep.subr.bf16.mxu0 0
    %2178 = vmatpush1.bf16.msra.mxu0 0
    %2179 = vmatprep.subr.bf16.mxu0 0
    %2180 = vmatpush1.bf16.msra.mxu0 0
    %2181 = vmatprep.mubr.bf16.mxu0 0
    %2182 = vmatmul.mubr.bf16.gmra.mrb[0].mxu0 %v1675
    %v2183 = vpop.f32.mrb[0].mxu0
    %v2184 = vadd.f32 0.0, %v2183
    %v2185 = vpop.f32.mrb[0].mxu0
    %v2186 = vadd.f32 0.0, %v2185
    %v2187 = vpop.f32.mrb[0].mxu0
    %v2188 = vadd.f32 0.0, %v2187
    %v2189 = vpop.f32.mrb[0].mxu0
    %v2190 = vadd.f32 0.0, %v2189
    %2191 = vmatprep.mubr.bf16.mxu0 0
    %2192 = vmatmul.mubr.bf16.gmra.mrb[0].mxu0 %v1676
    %v2193 = vpop.f32.mrb[0].mxu0
    %v2194 = vadd.f32 0.0, %v2193
    %v2195 = vpop.f32.mrb[0].mxu0
    %v2196 = vadd.f32 0.0, %v2195
    %v2197 = vpop.f32.mrb[0].mxu0
    %v2198 = vadd.f32 0.0, %v2197
    %v2199 = vpop.f32.mrb[0].mxu0
    %v2200 = vadd.f32 0.0, %v2199
    %2201 = vmatprep.mubr.bf16.mxu0 0
    %2202 = vmatmul.mubr.bf16.gmra.mrb[0].mxu0 %v1677
    %v2203 = vpop.f32.mrb[0].mxu0
    %v2204 = vadd.f32 0.0, %v2203
    %v2205 = vpop.f32.mrb[0].mxu0
    %v2206 = vadd.f32 0.0, %v2205
    %v2207 = vpop.f32.mrb[0].mxu0
    %v2208 = vadd.f32 0.0, %v2207
    %v2209 = vpop.f32.mrb[0].mxu0
    %v2210 = vadd.f32 0.0, %v2209
    %2211 = vmatprep.mubr.bf16.mxu0 0
    %2212 = vmatmul.mubr.bf16.gmra.mrb[0].mxu0 %v1678
    %v2213 = vpop.f32.mrb[0].mxu0
    %v2214 = vadd.f32 0.0, %v2213
    %v2215 = vpop.f32.mrb[0].mxu0
    %v2216 = vadd.f32 0.0, %v2215
    %v2217 = vpop.f32.mrb[0].mxu0
    %v2218 = vadd.f32 0.0, %v2217
    %v2219 = vpop.f32.mrb[0].mxu0
    %v2220 = vadd.f32 0.0, %v2219
    %2221 = vdwg.mxu0
    %2222 = vmatprep.subr.bf16.mxu0 %v1882
    %2223 = vmatpush1.bf16.msra.mxu0 %v1881
    %2224 = vmatprep.subr.bf16.mxu0 %v1890
    %2225 = vmatpush1.bf16.msra.mxu0 %v1889
    %2226 = vmatprep.subr.bf16.mxu0 %v1898
    %2227 = vmatpush1.bf16.msra.mxu0 %v1897
    %2228 = vmatprep.subr.bf16.mxu0 %v1906
    %2229 = vmatpush1.bf16.msra.mxu0 %v1905
    %2230 = vmatprep.subr.bf16.mxu0 %v1914
    %2231 = vmatpush1.bf16.msra.mxu0 %v1913
    %2232 = vmatprep.subr.bf16.mxu0 %v1922
    %2233 = vmatpush1.bf16.msra.mxu0 %v1921
    %2234 = vmatprep.subr.bf16.mxu0 %v1930
    %2235 = vmatpush1.bf16.msra.mxu0 %v1929
    %2236 = vmatprep.subr.bf16.mxu0 %v1938
    %2237 = vmatpush1.bf16.msra.mxu0 %v1937
    %2238 = vmatprep.subr.bf16.mxu0 0
    %2239 = vmatpush1.bf16.msra.mxu0 0
    %2240 = vmatprep.subr.bf16.mxu0 0
    %2241 = vmatpush1.bf16.msra.mxu0 0
    %2242 = vmatprep.subr.bf16.mxu0 0
    %2243 = vmatpush1.bf16.msra.mxu0 0
    %2244 = vmatprep.subr.bf16.mxu0 0
    %2245 = vmatpush1.bf16.msra.mxu0 0
    %2246 = vmatprep.subr.bf16.mxu0 0
    %2247 = vmatpush1.bf16.msra.mxu0 0
    %2248 = vmatprep.subr.bf16.mxu0 0
    %2249 = vmatpush1.bf16.msra.mxu0 0
    %2250 = vmatprep.subr.bf16.mxu0 0
    %2251 = vmatpush1.bf16.msra.mxu0 0
    %2252 = vmatprep.subr.bf16.mxu0 0
    %2253 = vmatpush1.bf16.msra.mxu0 0
    %2254 = vmatprep.mubr.bf16.mxu0 0
    %2255 = vmatmul.mubr.bf16.gmra.mrb[0].mxu0 %v1675
    %v2256 = vpop.f32.mrb[0].mxu0
    %v2257 = vadd.f32 0.0, %v2256
    %v2258 = vpop.f32.mrb[0].mxu0
    %v2259 = vadd.f32 0.0, %v2258
    %v2260 = vpop.f32.mrb[0].mxu0
    %v2261 = vadd.f32 0.0, %v2260
    %v2262 = vpop.f32.mrb[0].mxu0
    %v2263 = vadd.f32 0.0, %v2262
    %2264 = vmatprep.mubr.bf16.mxu0 0
    %2265 = vmatmul.mubr.bf16.gmra.mrb[0].mxu0 %v1676
    %v2266 = vpop.f32.mrb[0].mxu0
    %v2267 = vadd.f32 0.0, %v2266
    %v2268 = vpop.f32.mrb[0].mxu0
    %v2269 = vadd.f32 0.0, %v2268
    %v2270 = vpop.f32.mrb[0].mxu0
    %v2271 = vadd.f32 0.0, %v2270
    %v2272 = vpop.f32.mrb[0].mxu0
    %v2273 = vadd.f32 0.0, %v2272
    %2274 = vmatprep.mubr.bf16.mxu0 0
    %2275 = vmatmul.mubr.bf16.gmra.mrb[0].mxu0 %v1677
    %v2276 = vpop.f32.mrb[0].mxu0
    %v2277 = vadd.f32 0.0, %v2276
    %v2278 = vpop.f32.mrb[0].mxu0
    %v2279 = vadd.f32 0.0, %v2278
    %v2280 = vpop.f32.mrb[0].mxu0
    %v2281 = vadd.f32 0.0, %v2280
    %v2282 = vpop.f32.mrb[0].mxu0
    %v2283 = vadd.f32 0.0, %v2282
    %2284 = vmatprep.mubr.bf16.mxu0 0
    %2285 = vmatmul.mubr.bf16.gmra.mrb[0].mxu0 %v1678
    %v2286 = vpop.f32.mrb[0].mxu0
    %v2287 = vadd.f32 0.0, %v2286
    %v2288 = vpop.f32.mrb[0].mxu0
    %v2289 = vadd.f32 0.0, %v2288
    %v2290 = vpop.f32.mrb[0].mxu0
    %v2291 = vadd.f32 0.0, %v2290
    %v2292 = vpop.f32.mrb[0].mxu0
    %v2293 = vadd.f32 0.0, %v2292
    %2294 = vdwg.mxu0
    %v2295 = vadd.f32 %v1310, %v2038
    %v2296 = vadd.f32 %v1312, %v2040
    %v2297 = vadd.f32 %v1383, %v2111
    %v2298 = vadd.f32 %v1385, %v2113
    %v2299 = vadd.f32 %v1456, %v2184
    %v2300 = vadd.f32 %v1458, %v2186
    %v2301 = vadd.f32 %v1529, %v2257
    %v2302 = vadd.f32 %v1531, %v2259
    %v2303 = vadd.f32 %v1314, %v2042
    %v2304 = vadd.f32 %v1316, %v2044
    %v2305 = vadd.f32 %v1387, %v2115
    %v2306 = vadd.f32 %v1389, %v2117
    %v2307 = vadd.f32 %v1460, %v2188
    %v2308 = vadd.f32 %v1462, %v2190
    %v2309 = vadd.f32 %v1533, %v2261
    %v2310 = vadd.f32 %v1535, %v2263
    %v2311 = vadd.f32 %v1320, %v2048
    %v2312 = vadd.f32 %v1322, %v2050
    %v2313 = vadd.f32 %v1393, %v2121
    %v2314 = vadd.f32 %v1395, %v2123
    %v2315 = vadd.f32 %v1466, %v2194
    %v2316 = vadd.f32 %v1468, %v2196
    %v2317 = vadd.f32 %v1539, %v2267
    %v2318 = vadd.f32 %v1541, %v2269
    %v2319 = vadd.f32 %v1324, %v2052
    %v2320 = vadd.f32 %v1326, %v2054
    %v2321 = vadd.f32 %v1397, %v2125
    %v2322 = vadd.f32 %v1399, %v2127
    %v2323 = vadd.f32 %v1470, %v2198
    %v2324 = vadd.f32 %v1472, %v2200
    %v2325 = vadd.f32 %v1543, %v2271
    %v2326 = vadd.f32 %v1545, %v2273
    %v2327 = vadd.f32 %v1330, %v2058
    %v2328 = vadd.f32 %v1332, %v2060
    %v2329 = vadd.f32 %v1403, %v2131
    %v2330 = vadd.f32 %v1405, %v2133
    %v2331 = vadd.f32 %v1476, %v2204
    %v2332 = vadd.f32 %v1478, %v2206
    %v2333 = vadd.f32 %v1549, %v2277
    %v2334 = vadd.f32 %v1551, %v2279
    %v2335 = vadd.f32 %v1334, %v2062
    %v2336 = vadd.f32 %v1336, %v2064
    %v2337 = vadd.f32 %v1407, %v2135
    %v2338 = vadd.f32 %v1409, %v2137
    %v2339 = vadd.f32 %v1480, %v2208
    %v2340 = vadd.f32 %v1482, %v2210
    %v2341 = vadd.f32 %v1553, %v2281
    %v2342 = vadd.f32 %v1555, %v2283
    %v2343 = vadd.f32 %v1340, %v2068
    %v2344 = vadd.f32 %v1342, %v2070
    %v2345 = vadd.f32 %v1413, %v2141
    %v2346 = vadd.f32 %v1415, %v2143
    %v2347 = vadd.f32 %v1486, %v2214
    %v2348 = vadd.f32 %v1488, %v2216
    %v2349 = vadd.f32 %v1559, %v2287
    %v2350 = vadd.f32 %v1561, %v2289
    %v2351 = vadd.f32 %v1344, %v2072
    %v2352 = vadd.f32 %v1346, %v2074
    %v2353 = vadd.f32 %v1417, %v2145
    %v2354 = vadd.f32 %v1419, %v2147
    %v2355 = vadd.f32 %v1490, %v2218
    %v2356 = vadd.f32 %v1492, %v2220
    %v2357 = vadd.f32 %v1563, %v2291
    %v2358 = vadd.f32 %v1565, %v2293
    %v2360 = vlaneseq
    %v2361 = vshrl.u32 %v2360, 7
    %v2362 = vsub.s32 0, %v2361
    %v2363 = vrot.slane %v72, %v2362
    %v2364 = vlaneseq
    %v2365 = vshrl.u32 %v2364, 7
    %v2366 = vsub.s32 1, %v2365
    %v2367 = vrot.slane %v72, %v2366
    %v2368 = vlaneseq
    %v2369 = vshrl.u32 %v2368, 7
    %v2370 = vsub.s32 2, %v2369
    %v2371 = vrot.slane %v72, %v2370
    %v2372 = vlaneseq
    %v2373 = vshrl.u32 %v2372, 7
    %v2374 = vsub.s32 3, %v2373
    %v2375 = vrot.slane %v72, %v2374
    %v2376 = vlaneseq
    %v2377 = vshrl.u32 %v2376, 7
    %v2378 = vsub.s32 4, %v2377
    %v2379 = vrot.slane %v72, %v2378
    %v2380 = vlaneseq
    %v2381 = vshrl.u32 %v2380, 7
    %v2382 = vsub.s32 5, %v2381
    %v2383 = vrot.slane %v72, %v2382
    %v2384 = vlaneseq
    %v2385 = vshrl.u32 %v2384, 7
    %v2386 = vsub.s32 6, %v2385
    %v2387 = vrot.slane %v72, %v2386
    %v2388 = vlaneseq
    %v2389 = vshrl.u32 %v2388, 7
    %v2390 = vsub.s32 7, %v2389
    %v2391 = vrot.slane %v72, %v2390
    %v2400 = vadd.f32 %v2295, %v2363
    %v2401 = vadd.f32 %v2296, %v2367
    %v2402 = vadd.f32 %v2297, %v2371
    %v2403 = vadd.f32 %v2298, %v2375
    %v2404 = vadd.f32 %v2299, %v2379
    %v2405 = vadd.f32 %v2300, %v2383
    %v2406 = vadd.f32 %v2301, %v2387
    %v2407 = vadd.f32 %v2302, %v2391
    %v2408 = vadd.f32 %v2303, %v2363
    %v2409 = vadd.f32 %v2304, %v2367
    %v2410 = vadd.f32 %v2305, %v2371
    %v2411 = vadd.f32 %v2306, %v2375
    %v2412 = vadd.f32 %v2307, %v2379
    %v2413 = vadd.f32 %v2308, %v2383
    %v2414 = vadd.f32 %v2309, %v2387
    %v2415 = vadd.f32 %v2310, %v2391
    %v2416 = vadd.f32 %v2311, %v2363
    %v2417 = vadd.f32 %v2312, %v2367
    %v2418 = vadd.f32 %v2313, %v2371
    %v2419 = vadd.f32 %v2314, %v2375
    %v2420 = vadd.f32 %v2315, %v2379
    %v2421 = vadd.f32 %v2316, %v2383
    %v2422 = vadd.f32 %v2317, %v2387
    %v2423 = vadd.f32 %v2318, %v2391
    %v2424 = vadd.f32 %v2319, %v2363
    %v2425 = vadd.f32 %v2320, %v2367
    %v2426 = vadd.f32 %v2321, %v2371
    %v2427 = vadd.f32 %v2322, %v2375
    %v2428 = vadd.f32 %v2323, %v2379
    %v2429 = vadd.f32 %v2324, %v2383
    %v2430 = vadd.f32 %v2325, %v2387
    %v2431 = vadd.f32 %v2326, %v2391
    %v2432 = vadd.f32 %v2327, %v2363
    %v2433 = vadd.f32 %v2328, %v2367
    %v2434 = vadd.f32 %v2329, %v2371
    %v2435 = vadd.f32 %v2330, %v2375
    %v2436 = vadd.f32 %v2331, %v2379
    %v2437 = vadd.f32 %v2332, %v2383
    %v2438 = vadd.f32 %v2333, %v2387
    %v2439 = vadd.f32 %v2334, %v2391
    %v2440 = vadd.f32 %v2335, %v2363
    %v2441 = vadd.f32 %v2336, %v2367
    %v2442 = vadd.f32 %v2337, %v2371
    %v2443 = vadd.f32 %v2338, %v2375
    %v2444 = vadd.f32 %v2339, %v2379
    %v2445 = vadd.f32 %v2340, %v2383
    %v2446 = vadd.f32 %v2341, %v2387
    %v2447 = vadd.f32 %v2342, %v2391
    %v2448 = vadd.f32 %v2343, %v2363
    %v2449 = vadd.f32 %v2344, %v2367
    %v2450 = vadd.f32 %v2345, %v2371
    %v2451 = vadd.f32 %v2346, %v2375
    %v2452 = vadd.f32 %v2347, %v2379
    %v2453 = vadd.f32 %v2348, %v2383
    %v2454 = vadd.f32 %v2349, %v2387
    %v2455 = vadd.f32 %v2350, %v2391
    %v2456 = vadd.f32 %v2351, %v2363
    %v2457 = vadd.f32 %v2352, %v2367
    %v2458 = vadd.f32 %v2353, %v2371
    %v2459 = vadd.f32 %v2354, %v2375
    %v2460 = vadd.f32 %v2355, %v2379
    %v2461 = vadd.f32 %v2356, %v2383
    %v2462 = vadd.f32 %v2357, %v2387
    %v2463 = vadd.f32 %v2358, %v2391
    %v2464 = vmax.f32 %v2400, 0.0
    %v2465 = vmax.f32 %v2401, 0.0
    %v2466 = vmax.f32 %v2402, 0.0
    %v2467 = vmax.f32 %v2403, 0.0
    %v2468 = vmax.f32 %v2404, 0.0
    %v2469 = vmax.f32 %v2405, 0.0
    %v2470 = vmax.f32 %v2406, 0.0
    %v2471 = vmax.f32 %v2407, 0.0
    %v2472 = vmax.f32 %v2408, 0.0
    %v2473 = vmax.f32 %v2409, 0.0
    %v2474 = vmax.f32 %v2410, 0.0
    %v2475 = vmax.f32 %v2411, 0.0
    %v2476 = vmax.f32 %v2412, 0.0
    %v2477 = vmax.f32 %v2413, 0.0
    %v2478 = vmax.f32 %v2414, 0.0
    %v2479 = vmax.f32 %v2415, 0.0
    %v2480 = vmax.f32 %v2416, 0.0
    %v2481 = vmax.f32 %v2417, 0.0
    %v2482 = vmax.f32 %v2418, 0.0
    %v2483 = vmax.f32 %v2419, 0.0
    %v2484 = vmax.f32 %v2420, 0.0
    %v2485 = vmax.f32 %v2421, 0.0
    %v2486 = vmax.f32 %v2422, 0.0
    %v2487 = vmax.f32 %v2423, 0.0
    %v2488 = vmax.f32 %v2424, 0.0
    %v2489 = vmax.f32 %v2425, 0.0
    %v2490 = vmax.f32 %v2426, 0.0
    %v2491 = vmax.f32 %v2427, 0.0
    %v2492 = vmax.f32 %v2428, 0.0
    %v2493 = vmax.f32 %v2429, 0.0
    %v2494 = vmax.f32 %v2430, 0.0
    %v2495 = vmax.f32 %v2431, 0.0
    %v2496 = vmax.f32 %v2432, 0.0
    %v2497 = vmax.f32 %v2433, 0.0
    %v2498 = vmax.f32 %v2434, 0.0
    %v2499 = vmax.f32 %v2435, 0.0
    %v2500 = vmax.f32 %v2436, 0.0
    %v2501 = vmax.f32 %v2437, 0.0
    %v2502 = vmax.f32 %v2438, 0.0
    %v2503 = vmax.f32 %v2439, 0.0
    %v2504 = vmax.f32 %v2440, 0.0
    %v2505 = vmax.f32 %v2441, 0.0
    %v2506 = vmax.f32 %v2442, 0.0
    %v2507 = vmax.f32 %v2443, 0.0
    %v2508 = vmax.f32 %v2444, 0.0
    %v2509 = vmax.f32 %v2445, 0.0
    %v2510 = vmax.f32 %v2446, 0.0
    %v2511 = vmax.f32 %v2447, 0.0
    %v2512 = vmax.f32 %v2448, 0.0
    %v2513 = vmax.f32 %v2449, 0.0
    %v2514 = vmax.f32 %v2450, 0.0
    %v2515 = vmax.f32 %v2451, 0.0
    %v2516 = vmax.f32 %v2452, 0.0
    %v2517 = vmax.f32 %v2453, 0.0
    %v2518 = vmax.f32 %v2454, 0.0
    %v2519 = vmax.f32 %v2455, 0.0
    %v2520 = vmax.f32 %v2456, 0.0
    %v2521 = vmax.f32 %v2457, 0.0
    %v2522 = vmax.f32 %v2458, 0.0
    %v2523 = vmax.f32 %v2459, 0.0
    %v2524 = vmax.f32 %v2460, 0.0
    %v2525 = vmax.f32 %v2461, 0.0
    %v2526 = vmax.f32 %v2462, 0.0
    %v2527 = vmax.f32 %v2463, 0.0
    %v2528 = vmax.f32 %v2464, %v2468
    %v2529 = vmax.f32 %v2465, %v2469
    %v2530 = vmax.f32 %v2466, %v2470
    %v2531 = vmax.f32 %v2467, %v2471
    %v2532 = vmax.f32 %v2472, %v2476
    %v2533 = vmax.f32 %v2473, %v2477
    %v2534 = vmax.f32 %v2474, %v2478
    %v2535 = vmax.f32 %v2475, %v2479
    %v2536 = vmax.f32 %v2480, %v2484
    %v2537 = vmax.f32 %v2481, %v2485
    %v2538 = vmax.f32 %v2482, %v2486
    %v2539 = vmax.f32 %v2483, %v2487
    %v2540 = vmax.f32 %v2488, %v2492
    %v2541 = vmax.f32 %v2489, %v2493
    %v2542 = vmax.f32 %v2490, %v2494
    %v2543 = vmax.f32 %v2491, %v2495
    %v2544 = vmax.f32 %v2496, %v2500
    %v2545 = vmax.f32 %v2497, %v2501
    %v2546 = vmax.f32 %v2498, %v2502
    %v2547 = vmax.f32 %v2499, %v2503
    %v2548 = vmax.f32 %v2504, %v2508
    %v2549 = vmax.f32 %v2505, %v2509
    %v2550 = vmax.f32 %v2506, %v2510
    %v2551 = vmax.f32 %v2507, %v2511
    %v2552 = vmax.f32 %v2512, %v2516
    %v2553 = vmax.f32 %v2513, %v2517
    %v2554 = vmax.f32 %v2514, %v2518
    %v2555 = vmax.f32 %v2515, %v2519
    %v2556 = vmax.f32 %v2520, %v2524
    %v2557 = vmax.f32 %v2521, %v2525
    %v2558 = vmax.f32 %v2522, %v2526
    %v2559 = vmax.f32 %v2523, %v2527
    %v2592 = vcombine.low %v2528, %v2529
    %v2593 = vcombine.high %v2528, %v2529
    %v2594 = vcombine.low %v2530, %v2531
    %v2595 = vcombine.high %v2530, %v2531
    %v2597 = vunpack.c.l.s4 1983009808
    %v2598 = vunpack.c.0.s8 %v2597
    %v2599 = vlaneseq
    %v2600 = vshrl.u32 %v2599, 7
    %v2601 = vsub.s32 %v2598, %v2600
    %v2602 = vrot.slane %v2592, %v2601
    %v2604 = vunpack.c.l.s4 1983009808
    %v2605 = vunpack.c.0.s8 %v2604
    %v2606 = vlaneseq
    %v2607 = vshrl.u32 %v2606, 7
    %v2608 = vsub.s32 %v2605, %v2607
    %v2609 = vrot.slane %v2593, %v2608
    %v2611 = vunpack.c.l.s4 1983009808
    %v2612 = vunpack.c.0.s8 %v2611
    %v2613 = vlaneseq
    %v2614 = vshrl.u32 %v2613, 7
    %v2615 = vsub.s32 %v2612, %v2614
    %v2616 = vrot.slane %v2594, %v2615
    %v2618 = vunpack.c.l.s4 1983009808
    %v2619 = vunpack.c.0.s8 %v2618
    %v2620 = vlaneseq
    %v2621 = vshrl.u32 %v2620, 7
    %v2622 = vsub.s32 %v2619, %v2621
    %v2623 = vrot.slane %v2595, %v2622
    %v2624 = vcombine.low %v2602, %v2616
    %v2625 = vcombine.high %v2602, %v2616
    %v2626 = vcombine.low %v2609, %v2623
    %v2627 = vcombine.high %v2609, %v2623
    %v2628 = vcombine.low %v2532, %v2533
    %v2629 = vcombine.high %v2532, %v2533
    %v2630 = vcombine.low %v2534, %v2535
    %v2631 = vcombine.high %v2534, %v2535
    %v2633 = vunpack.c.l.s4 1983009808
    %v2634 = vunpack.c.0.s8 %v2633
    %v2635 = vlaneseq
    %v2636 = vshrl.u32 %v2635, 7
    %v2637 = vsub.s32 %v2634, %v2636
    %v2638 = vrot.slane %v2628, %v2637
    %v2640 = vunpack.c.l.s4 1983009808
    %v2641 = vunpack.c.0.s8 %v2640
    %v2642 = vlaneseq
    %v2643 = vshrl.u32 %v2642, 7
    %v2644 = vsub.s32 %v2641, %v2643
    %v2645 = vrot.slane %v2629, %v2644
    %v2647 = vunpack.c.l.s4 1983009808
    %v2648 = vunpack.c.0.s8 %v2647
    %v2649 = vlaneseq
    %v2650 = vshrl.u32 %v2649, 7
    %v2651 = vsub.s32 %v2648, %v2650
    %v2652 = vrot.slane %v2630, %v2651
    %v2654 = vunpack.c.l.s4 1983009808
    %v2655 = vunpack.c.0.s8 %v2654
    %v2656 = vlaneseq
    %v2657 = vshrl.u32 %v2656, 7
    %v2658 = vsub.s32 %v2655, %v2657
    %v2659 = vrot.slane %v2631, %v2658
    %v2660 = vcombine.low %v2638, %v2652
    %v2661 = vcombine.high %v2638, %v2652
    %v2662 = vcombine.low %v2645, %v2659
    %v2663 = vcombine.high %v2645, %v2659
    %v2664 = vcombine.low %v2536, %v2537
    %v2665 = vcombine.high %v2536, %v2537
    %v2666 = vcombine.low %v2538, %v2539
    %v2667 = vcombine.high %v2538, %v2539
    %v2669 = vunpack.c.l.s4 1983009808
    %v2670 = vunpack.c.0.s8 %v2669
    %v2671 = vlaneseq
    %v2672 = vshrl.u32 %v2671, 7
    %v2673 = vsub.s32 %v2670, %v2672
    %v2674 = vrot.slane %v2664, %v2673
    %v2676 = vunpack.c.l.s4 1983009808
    %v2677 = vunpack.c.0.s8 %v2676
    %v2678 = vlaneseq
    %v2679 = vshrl.u32 %v2678, 7
    %v2680 = vsub.s32 %v2677, %v2679
    %v2681 = vrot.slane %v2665, %v2680
    %v2683 = vunpack.c.l.s4 1983009808
    %v2684 = vunpack.c.0.s8 %v2683
    %v2685 = vlaneseq
    %v2686 = vshrl.u32 %v2685, 7
    %v2687 = vsub.s32 %v2684, %v2686
    %v2688 = vrot.slane %v2666, %v2687
    %v2690 = vunpack.c.l.s4 1983009808
    %v2691 = vunpack.c.0.s8 %v2690
    %v2692 = vlaneseq
    %v2693 = vshrl.u32 %v2692, 7
    %v2694 = vsub.s32 %v2691, %v2693
    %v2695 = vrot.slane %v2667, %v2694
    %v2696 = vcombine.low %v2674, %v2688
    %v2697 = vcombine.high %v2674, %v2688
    %v2698 = vcombine.low %v2681, %v2695
    %v2699 = vcombine.high %v2681, %v2695
    %v2700 = vcombine.low %v2540, %v2541
    %v2701 = vcombine.high %v2540, %v2541
    %v2702 = vcombine.low %v2542, %v2543
    %v2703 = vcombine.high %v2542, %v2543
    %v2705 = vunpack.c.l.s4 1983009808
    %v2706 = vunpack.c.0.s8 %v2705
    %v2707 = vlaneseq
    %v2708 = vshrl.u32 %v2707, 7
    %v2709 = vsub.s32 %v2706, %v2708
    %v2710 = vrot.slane %v2700, %v2709
    %v2712 = vunpack.c.l.s4 1983009808
    %v2713 = vunpack.c.0.s8 %v2712
    %v2714 = vlaneseq
    %v2715 = vshrl.u32 %v2714, 7
    %v2716 = vsub.s32 %v2713, %v2715
    %v2717 = vrot.slane %v2701, %v2716
    %v2719 = vunpack.c.l.s4 1983009808
    %v2720 = vunpack.c.0.s8 %v2719
    %v2721 = vlaneseq
    %v2722 = vshrl.u32 %v2721, 7
    %v2723 = vsub.s32 %v2720, %v2722
    %v2724 = vrot.slane %v2702, %v2723
    %v2726 = vunpack.c.l.s4 1983009808
    %v2727 = vunpack.c.0.s8 %v2726
    %v2728 = vlaneseq
    %v2729 = vshrl.u32 %v2728, 7
    %v2730 = vsub.s32 %v2727, %v2729
    %v2731 = vrot.slane %v2703, %v2730
    %v2732 = vcombine.low %v2710, %v2724
    %v2733 = vcombine.high %v2710, %v2724
    %v2734 = vcombine.low %v2717, %v2731
    %v2735 = vcombine.high %v2717, %v2731
    %v2736 = vcombine.low %v2544, %v2545
    %v2737 = vcombine.high %v2544, %v2545
    %v2738 = vcombine.low %v2546, %v2547
    %v2739 = vcombine.high %v2546, %v2547
    %v2741 = vunpack.c.l.s4 1983009808
    %v2742 = vunpack.c.0.s8 %v2741
    %v2743 = vlaneseq
    %v2744 = vshrl.u32 %v2743, 7
    %v2745 = vsub.s32 %v2742, %v2744
    %v2746 = vrot.slane %v2736, %v2745
    %v2748 = vunpack.c.l.s4 1983009808
    %v2749 = vunpack.c.0.s8 %v2748
    %v2750 = vlaneseq
    %v2751 = vshrl.u32 %v2750, 7
    %v2752 = vsub.s32 %v2749, %v2751
    %v2753 = vrot.slane %v2737, %v2752
    %v2755 = vunpack.c.l.s4 1983009808
    %v2756 = vunpack.c.0.s8 %v2755
    %v2757 = vlaneseq
    %v2758 = vshrl.u32 %v2757, 7
    %v2759 = vsub.s32 %v2756, %v2758
    %v2760 = vrot.slane %v2738, %v2759
    %v2762 = vunpack.c.l.s4 1983009808
    %v2763 = vunpack.c.0.s8 %v2762
    %v2764 = vlaneseq
    %v2765 = vshrl.u32 %v2764, 7
    %v2766 = vsub.s32 %v2763, %v2765
    %v2767 = vrot.slane %v2739, %v2766
    %v2768 = vcombine.low %v2746, %v2760
    %v2769 = vcombine.high %v2746, %v2760
    %v2770 = vcombine.low %v2753, %v2767
    %v2771 = vcombine.high %v2753, %v2767
    %v2772 = vcombine.low %v2548, %v2549
    %v2773 = vcombine.high %v2548, %v2549
    %v2774 = vcombine.low %v2550, %v2551
    %v2775 = vcombine.high %v2550, %v2551
    %v2777 = vunpack.c.l.s4 1983009808
    %v2778 = vunpack.c.0.s8 %v2777
    %v2779 = vlaneseq
    %v2780 = vshrl.u32 %v2779, 7
    %v2781 = vsub.s32 %v2778, %v2780
    %v2782 = vrot.slane %v2772, %v2781
    %v2784 = vunpack.c.l.s4 1983009808
    %v2785 = vunpack.c.0.s8 %v2784
    %v2786 = vlaneseq
    %v2787 = vshrl.u32 %v2786, 7
    %v2788 = vsub.s32 %v2785, %v2787
    %v2789 = vrot.slane %v2773, %v2788
    %v2791 = vunpack.c.l.s4 1983009808
    %v2792 = vunpack.c.0.s8 %v2791
    %v2793 = vlaneseq
    %v2794 = vshrl.u32 %v2793, 7
    %v2795 = vsub.s32 %v2792, %v2794
    %v2796 = vrot.slane %v2774, %v2795
    %v2798 = vunpack.c.l.s4 1983009808
    %v2799 = vunpack.c.0.s8 %v2798
    %v2800 = vlaneseq
    %v2801 = vshrl.u32 %v2800, 7
    %v2802 = vsub.s32 %v2799, %v2801
    %v2803 = vrot.slane %v2775, %v2802
    %v2804 = vcombine.low %v2782, %v2796
    %v2805 = vcombine.high %v2782, %v2796
    %v2806 = vcombine.low %v2789, %v2803
    %v2807 = vcombine.high %v2789, %v2803
    %v2808 = vcombine.low %v2552, %v2553
    %v2809 = vcombine.high %v2552, %v2553
    %v2810 = vcombine.low %v2554, %v2555
    %v2811 = vcombine.high %v2554, %v2555
    %v2813 = vunpack.c.l.s4 1983009808
    %v2814 = vunpack.c.0.s8 %v2813
    %v2815 = vlaneseq
    %v2816 = vshrl.u32 %v2815, 7
    %v2817 = vsub.s32 %v2814, %v2816
    %v2818 = vrot.slane %v2808, %v2817
    %v2820 = vunpack.c.l.s4 1983009808
    %v2821 = vunpack.c.0.s8 %v2820
    %v2822 = vlaneseq
    %v2823 = vshrl.u32 %v2822, 7
    %v2824 = vsub.s32 %v2821, %v2823
    %v2825 = vrot.slane %v2809, %v2824
    %v2827 = vunpack.c.l.s4 1983009808
    %v2828 = vunpack.c.0.s8 %v2827
    %v2829 = vlaneseq
    %v2830 = vshrl.u32 %v2829, 7
    %v2831 = vsub.s32 %v2828, %v2830
    %v2832 = vrot.slane %v2810, %v2831
    %v2834 = vunpack.c.l.s4 1983009808
    %v2835 = vunpack.c.0.s8 %v2834
    %v2836 = vlaneseq
    %v2837 = vshrl.u32 %v2836, 7
    %v2838 = vsub.s32 %v2835, %v2837
    %v2839 = vrot.slane %v2811, %v2838
    %v2840 = vcombine.low %v2818, %v2832
    %v2841 = vcombine.high %v2818, %v2832
    %v2842 = vcombine.low %v2825, %v2839
    %v2843 = vcombine.high %v2825, %v2839
    %v2844 = vcombine.low %v2556, %v2557
    %v2845 = vcombine.high %v2556, %v2557
    %v2846 = vcombine.low %v2558, %v2559
    %v2847 = vcombine.high %v2558, %v2559
    %v2849 = vunpack.c.l.s4 1983009808
    %v2850 = vunpack.c.0.s8 %v2849
    %v2851 = vlaneseq
    %v2852 = vshrl.u32 %v2851, 7
    %v2853 = vsub.s32 %v2850, %v2852
    %v2854 = vrot.slane %v2844, %v2853
    %v2856 = vunpack.c.l.s4 1983009808
    %v2857 = vunpack.c.0.s8 %v2856
    %v2858 = vlaneseq
    %v2859 = vshrl.u32 %v2858, 7
    %v2860 = vsub.s32 %v2857, %v2859
    %v2861 = vrot.slane %v2845, %v2860
    %v2863 = vunpack.c.l.s4 1983009808
    %v2864 = vunpack.c.0.s8 %v2863
    %v2865 = vlaneseq
    %v2866 = vshrl.u32 %v2865, 7
    %v2867 = vsub.s32 %v2864, %v2866
    %v2868 = vrot.slane %v2846, %v2867
    %v2870 = vunpack.c.l.s4 1983009808
    %v2871 = vunpack.c.0.s8 %v2870
    %v2872 = vlaneseq
    %v2873 = vshrl.u32 %v2872, 7
    %v2874 = vsub.s32 %v2871, %v2873
    %v2875 = vrot.slane %v2847, %v2874
    %v2876 = vcombine.low %v2854, %v2868
    %v2877 = vcombine.high %v2854, %v2868
    %v2878 = vcombine.low %v2861, %v2875
    %v2879 = vcombine.high %v2861, %v2875
    %v2912 = vrot.slane %v2624, 7
    %v2913 = vrot.slane %v2912, 2
    %v2914 = vrot.slane %v2625, 7
    %v2915 = vrot.slane %v2914, 2
    %v2916 = vrot.slane %v2626, 7
    %v2917 = vrot.slane %v2916, 2
    %v2918 = vrot.slane %v2627, 7
    %v2919 = vrot.slane %v2918, 2
    %v2920 = vrot.slane %v2660, 7
    %v2921 = vrot.slane %v2920, 2
    %v2922 = vrot.slane %v2661, 7
    %v2923 = vrot.slane %v2922, 2
    %v2924 = vrot.slane %v2662, 7
    %v2925 = vrot.slane %v2924, 2
    %v2926 = vrot.slane %v2663, 7
    %v2927 = vrot.slane %v2926, 2
    %v2928 = vrot.slane %v2696, 7
    %v2929 = vrot.slane %v2928, 2
    %v2930 = vrot.slane %v2697, 7
    %v2931 = vrot.slane %v2930, 2
    %v2932 = vrot.slane %v2698, 7
    %v2933 = vrot.slane %v2932, 2
    %v2934 = vrot.slane %v2699, 7
    %v2935 = vrot.slane %v2934, 2
    %v2936 = vrot.slane %v2732, 7
    %v2937 = vrot.slane %v2936, 2
    %v2938 = vrot.slane %v2733, 7
    %v2939 = vrot.slane %v2938, 2
    %v2940 = vrot.slane %v2734, 7
    %v2941 = vrot.slane %v2940, 2
    %v2942 = vrot.slane %v2735, 7
    %v2943 = vrot.slane %v2942, 2
    %v2944 = vrot.slane %v2768, 7
    %v2945 = vrot.slane %v2944, 2
    %v2946 = vrot.slane %v2769, 7
    %v2947 = vrot.slane %v2946, 2
    %v2948 = vrot.slane %v2770, 7
    %v2949 = vrot.slane %v2948, 2
    %v2950 = vrot.slane %v2771, 7
    %v2951 = vrot.slane %v2950, 2
    %v2952 = vrot.slane %v2804, 7
    %v2953 = vrot.slane %v2952, 2
    %v2954 = vrot.slane %v2805, 7
    %v2955 = vrot.slane %v2954, 2
    %v2956 = vrot.slane %v2806, 7
    %v2957 = vrot.slane %v2956, 2
    %v2958 = vrot.slane %v2807, 7
    %v2959 = vrot.slane %v2958, 2
    %v2960 = vrot.slane %v2840, 7
    %v2961 = vrot.slane %v2960, 2
    %v2962 = vrot.slane %v2841, 7
    %v2963 = vrot.slane %v2962, 2
    %v2964 = vrot.slane %v2842, 7
    %v2965 = vrot.slane %v2964, 2
    %v2966 = vrot.slane %v2843, 7
    %v2967 = vrot.slane %v2966, 2
    %v2968 = vrot.slane %v2876, 7
    %v2969 = vrot.slane %v2968, 2
    %v2970 = vrot.slane %v2877, 7
    %v2971 = vrot.slane %v2970, 2
    %v2972 = vrot.slane %v2878, 7
    %v2973 = vrot.slane %v2972, 2
    %v2974 = vrot.slane %v2879, 7
    %v2975 = vrot.slane %v2974, 2
    %v3008 = vmax.f32 %v2624, %v2913
    %v3009 = vmax.f32 %v2625, %v2915
    %v3010 = vmax.f32 %v2626, %v2917
    %v3011 = vmax.f32 %v2627, %v2919
    %v3012 = vmax.f32 %v2660, %v2921
    %v3013 = vmax.f32 %v2661, %v2923
    %v3014 = vmax.f32 %v2662, %v2925
    %v3015 = vmax.f32 %v2663, %v2927
    %v3016 = vmax.f32 %v2696, %v2929
    %v3017 = vmax.f32 %v2697, %v2931
    %v3018 = vmax.f32 %v2698, %v2933
    %v3019 = vmax.f32 %v2699, %v2935
    %v3020 = vmax.f32 %v2732, %v2937
    %v3021 = vmax.f32 %v2733, %v2939
    %v3022 = vmax.f32 %v2734, %v2941
    %v3023 = vmax.f32 %v2735, %v2943
    %v3024 = vmax.f32 %v2768, %v2945
    %v3025 = vmax.f32 %v2769, %v2947
    %v3026 = vmax.f32 %v2770, %v2949
    %v3027 = vmax.f32 %v2771, %v2951
    %v3028 = vmax.f32 %v2804, %v2953
    %v3029 = vmax.f32 %v2805, %v2955
    %v3030 = vmax.f32 %v2806, %v2957
    %v3031 = vmax.f32 %v2807, %v2959
    %v3032 = vmax.f32 %v2840, %v2961
    %v3033 = vmax.f32 %v2841, %v2963
    %v3034 = vmax.f32 %v2842, %v2965
    %v3035 = vmax.f32 %v2843, %v2967
    %v3036 = vmax.f32 %v2876, %v2969
    %v3037 = vmax.f32 %v2877, %v2971
    %v3038 = vmax.f32 %v2878, %v2973
    %v3039 = vmax.f32 %v2879, %v2975
    %3040 = vst [vmem:[#allocation2] sm:$0xff] 0
    %3041 = vst [vmem:[#allocation2 + $0x8] sm:$0xff] 0
    %3042 = vst [vmem:[#allocation2 + $0x10] sm:$0xff] 0
    %3043 = vst [vmem:[#allocation2 + $0x18] sm:$0xff] 0
    %3044 = vst [vmem:[#allocation2 + $0x20] sm:$0xff] 0
    %3045 = vst [vmem:[#allocation2 + $0x28] sm:$0xff] 0
    %vm3046 = vcmask 1040384
    %vm3047 = vsmask.f32 256
    %vm3048 = vmand %vm3046, %vm3047
    %vm3049 = vcmask 1044484
    %vm3050 = vsmask.f32 4352
    %vm3051 = vmand %vm3049, %vm3050
    %vm3052 = vmor %vm3051, %vm3048
    %v3053 = vld [vmem:[#allocation2 + $0x30] sm:$0x11]
    %v3054 = vsel %vm3052, 0, %v3053
    %3055 = vst [vmem:[#allocation2 + $0x30] sm:$0x11] %v3054
    %v3056 = vld [vmem:[#allocation2 + $0x38] sm:$0x11]
    %v3057 = vsel %vm3052, 0, %v3056
    %3058 = vst [vmem:[#allocation2 + $0x38] sm:$0x11] %v3057
    %3059 = vst [vmem:[#allocation2 + $0x40] sm:$0xff] 0
    %3060 = vst [vmem:[#allocation2 + $0x48] sm:$0xff] 0
    %3061 = vst [vmem:[#allocation2 + $0x50] sm:$0xff] 0
    %3062 = vst [vmem:[#allocation2 + $0x58] sm:$0xff] 0
    %3063 = vst [vmem:[#allocation2 + $0x60] sm:$0xff] 0
    %3064 = vst [vmem:[#allocation2 + $0x68] sm:$0xff] 0
    %v3065 = vld [vmem:[#allocation2 + $0x70] sm:$0x11]
    %v3066 = vsel %vm3052, 0, %v3065
    %3067 = vst [vmem:[#allocation2 + $0x70] sm:$0x11] %v3066
    %v3068 = vld [vmem:[#allocation2 + $0x78] sm:$0x11]
    %v3069 = vsel %vm3052, 0, %v3068
    %3070 = vst [vmem:[#allocation2 + $0x78] sm:$0x11] %v3069
    %v3103 = vlaneseq
    %v3104 = vshrl.u32 %v3103, 7
    %v3105 = vsub.s32 0, %v3104
    %v3106 = vrot.slane %v3008, %v3105
    %v3107 = vlaneseq
    %v3108 = vshrl.u32 %v3107, 7
    %v3109 = vsub.s32 2, %v3108
    %v3110 = vrot.slane %v3008, %v3109
    %v3111 = vlaneseq
    %v3112 = vshrl.u32 %v3111, 7
    %v3113 = vsub.s32 4, %v3112
    %v3114 = vrot.slane %v3008, %v3113
    %v3115 = vlaneseq
    %v3116 = vshrl.u32 %v3115, 7
    %v3117 = vsub.s32 6, %v3116
    %v3118 = vrot.slane %v3008, %v3117
    %v3119 = vlaneseq
    %v3120 = vshrl.u32 %v3119, 7
    %v3121 = vsub.s32 0, %v3120
    %v3122 = vrot.slane %v3009, %v3121
    %v3123 = vlaneseq
    %v3124 = vshrl.u32 %v3123, 7
    %v3125 = vsub.s32 2, %v3124
    %v3126 = vrot.slane %v3009, %v3125
    %v3127 = vlaneseq
    %v3128 = vshrl.u32 %v3127, 7
    %v3129 = vsub.s32 4, %v3128
    %v3130 = vrot.slane %v3009, %v3129
    %v3131 = vlaneseq
    %v3132 = vshrl.u32 %v3131, 7
    %v3133 = vsub.s32 6, %v3132
    %v3134 = vrot.slane %v3009, %v3133
    %v3135 = vlaneseq
    %v3136 = vshrl.u32 %v3135, 7
    %v3137 = vsub.s32 0, %v3136
    %v3138 = vrot.slane %v3010, %v3137
    %v3139 = vlaneseq
    %v3140 = vshrl.u32 %v3139, 7
    %v3141 = vsub.s32 2, %v3140
    %v3142 = vrot.slane %v3010, %v3141
    %v3143 = vlaneseq
    %v3144 = vshrl.u32 %v3143, 7
    %v3145 = vsub.s32 4, %v3144
    %v3146 = vrot.slane %v3010, %v3145
    %v3147 = vlaneseq
    %v3148 = vshrl.u32 %v3147, 7
    %v3149 = vsub.s32 6, %v3148
    %v3150 = vrot.slane %v3010, %v3149
    %v3151 = vlaneseq
    %v3152 = vshrl.u32 %v3151, 7
    %v3153 = vsub.s32 0, %v3152
    %v3154 = vrot.slane %v3011, %v3153
    %v3155 = vlaneseq
    %v3156 = vshrl.u32 %v3155, 7
    %v3157 = vsub.s32 2, %v3156
    %v3158 = vrot.slane %v3011, %v3157
    %v3159 = vlaneseq
    %v3160 = vshrl.u32 %v3159, 7
    %v3161 = vsub.s32 4, %v3160
    %v3162 = vrot.slane %v3011, %v3161
    %v3163 = vlaneseq
    %v3164 = vshrl.u32 %v3163, 7
    %v3165 = vsub.s32 6, %v3164
    %v3166 = vrot.slane %v3011, %v3165
    %v3167 = vlaneseq
    %v3168 = vshrl.u32 %v3167, 7
    %v3169 = vsub.s32 0, %v3168
    %v3170 = vrot.slane %v3012, %v3169
    %v3171 = vlaneseq
    %v3172 = vshrl.u32 %v3171, 7
    %v3173 = vsub.s32 2, %v3172
    %v3174 = vrot.slane %v3012, %v3173
    %v3175 = vlaneseq
    %v3176 = vshrl.u32 %v3175, 7
    %v3177 = vsub.s32 4, %v3176
    %v3178 = vrot.slane %v3012, %v3177
    %v3179 = vlaneseq
    %v3180 = vshrl.u32 %v3179, 7
    %v3181 = vsub.s32 6, %v3180
    %v3182 = vrot.slane %v3012, %v3181
    %v3183 = vlaneseq
    %v3184 = vshrl.u32 %v3183, 7
    %v3185 = vsub.s32 0, %v3184
    %v3186 = vrot.slane %v3013, %v3185
    %v3187 = vlaneseq
    %v3188 = vshrl.u32 %v3187, 7
    %v3189 = vsub.s32 2, %v3188
    %v3190 = vrot.slane %v3013, %v3189
    %v3191 = vlaneseq
    %v3192 = vshrl.u32 %v3191, 7
    %v3193 = vsub.s32 4, %v3192
    %v3194 = vrot.slane %v3013, %v3193
    %v3195 = vlaneseq
    %v3196 = vshrl.u32 %v3195, 7
    %v3197 = vsub.s32 6, %v3196
    %v3198 = vrot.slane %v3013, %v3197
    %v3199 = vlaneseq
    %v3200 = vshrl.u32 %v3199, 7
    %v3201 = vsub.s32 0, %v3200
    %v3202 = vrot.slane %v3014, %v3201
    %v3203 = vlaneseq
    %v3204 = vshrl.u32 %v3203, 7
    %v3205 = vsub.s32 2, %v3204
    %v3206 = vrot.slane %v3014, %v3205
    %v3207 = vlaneseq
    %v3208 = vshrl.u32 %v3207, 7
    %v3209 = vsub.s32 4, %v3208
    %v3210 = vrot.slane %v3014, %v3209
    %v3211 = vlaneseq
    %v3212 = vshrl.u32 %v3211, 7
    %v3213 = vsub.s32 6, %v3212
    %v3214 = vrot.slane %v3014, %v3213
    %v3215 = vlaneseq
    %v3216 = vshrl.u32 %v3215, 7
    %v3217 = vsub.s32 0, %v3216
    %v3218 = vrot.slane %v3015, %v3217
    %v3219 = vlaneseq
    %v3220 = vshrl.u32 %v3219, 7
    %v3221 = vsub.s32 2, %v3220
    %v3222 = vrot.slane %v3015, %v3221
    %v3223 = vlaneseq
    %v3224 = vshrl.u32 %v3223, 7
    %v3225 = vsub.s32 4, %v3224
    %v3226 = vrot.slane %v3015, %v3225
    %v3227 = vlaneseq
    %v3228 = vshrl.u32 %v3227, 7
    %v3229 = vsub.s32 6, %v3228
    %v3230 = vrot.slane %v3015, %v3229
    %v3231 = vlaneseq
    %v3232 = vshrl.u32 %v3231, 7
    %v3233 = vsub.s32 0, %v3232
    %v3234 = vrot.slane %v3016, %v3233
    %v3235 = vlaneseq
    %v3236 = vshrl.u32 %v3235, 7
    %v3237 = vsub.s32 2, %v3236
    %v3238 = vrot.slane %v3016, %v3237
    %v3239 = vlaneseq
    %v3240 = vshrl.u32 %v3239, 7
    %v3241 = vsub.s32 4, %v3240
    %v3242 = vrot.slane %v3016, %v3241
    %v3243 = vlaneseq
    %v3244 = vshrl.u32 %v3243, 7
    %v3245 = vsub.s32 6, %v3244
    %v3246 = vrot.slane %v3016, %v3245
    %v3247 = vlaneseq
    %v3248 = vshrl.u32 %v3247, 7
    %v3249 = vsub.s32 0, %v3248
    %v3250 = vrot.slane %v3017, %v3249
    %v3251 = vlaneseq
    %v3252 = vshrl.u32 %v3251, 7
    %v3253 = vsub.s32 2, %v3252
    %v3254 = vrot.slane %v3017, %v3253
    %v3255 = vlaneseq
    %v3256 = vshrl.u32 %v3255, 7
    %v3257 = vsub.s32 4, %v3256
    %v3258 = vrot.slane %v3017, %v3257
    %v3259 = vlaneseq
    %v3260 = vshrl.u32 %v3259, 7
    %v3261 = vsub.s32 6, %v3260
    %v3262 = vrot.slane %v3017, %v3261
    %v3263 = vlaneseq
    %v3264 = vshrl.u32 %v3263, 7
    %v3265 = vsub.s32 0, %v3264
    %v3266 = vrot.slane %v3018, %v3265
    %v3267 = vlaneseq
    %v3268 = vshrl.u32 %v3267, 7
    %v3269 = vsub.s32 2, %v3268
    %v3270 = vrot.slane %v3018, %v3269
    %v3271 = vlaneseq
    %v3272 = vshrl.u32 %v3271, 7
    %v3273 = vsub.s32 4, %v3272
    %v3274 = vrot.slane %v3018, %v3273
    %v3275 = vlaneseq
    %v3276 = vshrl.u32 %v3275, 7
    %v3277 = vsub.s32 6, %v3276
    %v3278 = vrot.slane %v3018, %v3277
    %v3279 = vlaneseq
    %v3280 = vshrl.u32 %v3279, 7
    %v3281 = vsub.s32 0, %v3280
    %v3282 = vrot.slane %v3019, %v3281
    %v3283 = vlaneseq
    %v3284 = vshrl.u32 %v3283, 7
    %v3285 = vsub.s32 2, %v3284
    %v3286 = vrot.slane %v3019, %v3285
    %v3287 = vlaneseq
    %v3288 = vshrl.u32 %v3287, 7
    %v3289 = vsub.s32 4, %v3288
    %v3290 = vrot.slane %v3019, %v3289
    %v3291 = vlaneseq
    %v3292 = vshrl.u32 %v3291, 7
    %v3293 = vsub.s32 6, %v3292
    %v3294 = vrot.slane %v3019, %v3293
    %v3295 = vlaneseq
    %v3296 = vshrl.u32 %v3295, 7
    %v3297 = vsub.s32 0, %v3296
    %v3298 = vrot.slane %v3020, %v3297
    %v3299 = vlaneseq
    %v3300 = vshrl.u32 %v3299, 7
    %v3301 = vsub.s32 2, %v3300
    %v3302 = vrot.slane %v3020, %v3301
    %v3303 = vlaneseq
    %v3304 = vshrl.u32 %v3303, 7
    %v3305 = vsub.s32 4, %v3304
    %v3306 = vrot.slane %v3020, %v3305
    %v3307 = vlaneseq
    %v3308 = vshrl.u32 %v3307, 7
    %v3309 = vsub.s32 6, %v3308
    %v3310 = vrot.slane %v3020, %v3309
    %v3311 = vlaneseq
    %v3312 = vshrl.u32 %v3311, 7
    %v3313 = vsub.s32 0, %v3312
    %v3314 = vrot.slane %v3021, %v3313
    %v3315 = vlaneseq
    %v3316 = vshrl.u32 %v3315, 7
    %v3317 = vsub.s32 2, %v3316
    %v3318 = vrot.slane %v3021, %v3317
    %v3319 = vlaneseq
    %v3320 = vshrl.u32 %v3319, 7
    %v3321 = vsub.s32 4, %v3320
    %v3322 = vrot.slane %v3021, %v3321
    %v3323 = vlaneseq
    %v3324 = vshrl.u32 %v3323, 7
    %v3325 = vsub.s32 6, %v3324
    %v3326 = vrot.slane %v3021, %v3325
    %v3327 = vlaneseq
    %v3328 = vshrl.u32 %v3327, 7
    %v3329 = vsub.s32 0, %v3328
    %v3330 = vrot.slane %v3022, %v3329
    %v3331 = vlaneseq
    %v3332 = vshrl.u32 %v3331, 7
    %v3333 = vsub.s32 2, %v3332
    %v3334 = vrot.slane %v3022, %v3333
    %v3335 = vlaneseq
    %v3336 = vshrl.u32 %v3335, 7
    %v3337 = vsub.s32 4, %v3336
    %v3338 = vrot.slane %v3022, %v3337
    %v3339 = vlaneseq
    %v3340 = vshrl.u32 %v3339, 7
    %v3341 = vsub.s32 6, %v3340
    %v3342 = vrot.slane %v3022, %v3341
    %v3343 = vlaneseq
    %v3344 = vshrl.u32 %v3343, 7
    %v3345 = vsub.s32 0, %v3344
    %v3346 = vrot.slane %v3023, %v3345
    %v3347 = vlaneseq
    %v3348 = vshrl.u32 %v3347, 7
    %v3349 = vsub.s32 2, %v3348
    %v3350 = vrot.slane %v3023, %v3349
    %v3351 = vlaneseq
    %v3352 = vshrl.u32 %v3351, 7
    %v3353 = vsub.s32 4, %v3352
    %v3354 = vrot.slane %v3023, %v3353
    %v3355 = vlaneseq
    %v3356 = vshrl.u32 %v3355, 7
    %v3357 = vsub.s32 6, %v3356
    %v3358 = vrot.slane %v3023, %v3357
    %v3359 = vlaneseq
    %v3360 = vshrl.u32 %v3359, 7
    %v3361 = vsub.s32 0, %v3360
    %v3362 = vrot.slane %v3024, %v3361
    %v3363 = vlaneseq
    %v3364 = vshrl.u32 %v3363, 7
    %v3365 = vsub.s32 2, %v3364
    %v3366 = vrot.slane %v3024, %v3365
    %v3367 = vlaneseq
    %v3368 = vshrl.u32 %v3367, 7
    %v3369 = vsub.s32 4, %v3368
    %v3370 = vrot.slane %v3024, %v3369
    %v3371 = vlaneseq
    %v3372 = vshrl.u32 %v3371, 7
    %v3373 = vsub.s32 6, %v3372
    %v3374 = vrot.slane %v3024, %v3373
    %v3375 = vlaneseq
    %v3376 = vshrl.u32 %v3375, 7
    %v3377 = vsub.s32 0, %v3376
    %v3378 = vrot.slane %v3025, %v3377
    %v3379 = vlaneseq
    %v3380 = vshrl.u32 %v3379, 7
    %v3381 = vsub.s32 2, %v3380
    %v3382 = vrot.slane %v3025, %v3381
    %v3383 = vlaneseq
    %v3384 = vshrl.u32 %v3383, 7
    %v3385 = vsub.s32 4, %v3384
    %v3386 = vrot.slane %v3025, %v3385
    %v3387 = vlaneseq
    %v3388 = vshrl.u32 %v3387, 7
    %v3389 = vsub.s32 6, %v3388
    %v3390 = vrot.slane %v3025, %v3389
    %v3391 = vlaneseq
    %v3392 = vshrl.u32 %v3391, 7
    %v3393 = vsub.s32 0, %v3392
    %v3394 = vrot.slane %v3026, %v3393
    %v3395 = vlaneseq
    %v3396 = vshrl.u32 %v3395, 7
    %v3397 = vsub.s32 2, %v3396
    %v3398 = vrot.slane %v3026, %v3397
    %v3399 = vlaneseq
    %v3400 = vshrl.u32 %v3399, 7
    %v3401 = vsub.s32 4, %v3400
    %v3402 = vrot.slane %v3026, %v3401
    %v3403 = vlaneseq
    %v3404 = vshrl.u32 %v3403, 7
    %v3405 = vsub.s32 6, %v3404
    %v3406 = vrot.slane %v3026, %v3405
    %v3407 = vlaneseq
    %v3408 = vshrl.u32 %v3407, 7
    %v3409 = vsub.s32 0, %v3408
    %v3410 = vrot.slane %v3027, %v3409
    %v3411 = vlaneseq
    %v3412 = vshrl.u32 %v3411, 7
    %v3413 = vsub.s32 2, %v3412
    %v3414 = vrot.slane %v3027, %v3413
    %v3415 = vlaneseq
    %v3416 = vshrl.u32 %v3415, 7
    %v3417 = vsub.s32 4, %v3416
    %v3418 = vrot.slane %v3027, %v3417
    %v3419 = vlaneseq
    %v3420 = vshrl.u32 %v3419, 7
    %v3421 = vsub.s32 6, %v3420
    %v3422 = vrot.slane %v3027, %v3421
    %v3423 = vlaneseq
    %v3424 = vshrl.u32 %v3423, 7
    %v3425 = vsub.s32 0, %v3424
    %v3426 = vrot.slane %v3028, %v3425
    %v3427 = vlaneseq
    %v3428 = vshrl.u32 %v3427, 7
    %v3429 = vsub.s32 2, %v3428
    %v3430 = vrot.slane %v3028, %v3429
    %v3431 = vlaneseq
    %v3432 = vshrl.u32 %v3431, 7
    %v3433 = vsub.s32 4, %v3432
    %v3434 = vrot.slane %v3028, %v3433
    %v3435 = vlaneseq
    %v3436 = vshrl.u32 %v3435, 7
    %v3437 = vsub.s32 6, %v3436
    %v3438 = vrot.slane %v3028, %v3437
    %v3439 = vlaneseq
    %v3440 = vshrl.u32 %v3439, 7
    %v3441 = vsub.s32 0, %v3440
    %v3442 = vrot.slane %v3029, %v3441
    %v3443 = vlaneseq
    %v3444 = vshrl.u32 %v3443, 7
    %v3445 = vsub.s32 2, %v3444
    %v3446 = vrot.slane %v3029, %v3445
    %v3447 = vlaneseq
    %v3448 = vshrl.u32 %v3447, 7
    %v3449 = vsub.s32 4, %v3448
    %v3450 = vrot.slane %v3029, %v3449
    %v3451 = vlaneseq
    %v3452 = vshrl.u32 %v3451, 7
    %v3453 = vsub.s32 6, %v3452
    %v3454 = vrot.slane %v3029, %v3453
    %v3455 = vlaneseq
    %v3456 = vshrl.u32 %v3455, 7
    %v3457 = vsub.s32 0, %v3456
    %v3458 = vrot.slane %v3030, %v3457
    %v3459 = vlaneseq
    %v3460 = vshrl.u32 %v3459, 7
    %v3461 = vsub.s32 2, %v3460
    %v3462 = vrot.slane %v3030, %v3461
    %v3463 = vlaneseq
    %v3464 = vshrl.u32 %v3463, 7
    %v3465 = vsub.s32 4, %v3464
    %v3466 = vrot.slane %v3030, %v3465
    %v3467 = vlaneseq
    %v3468 = vshrl.u32 %v3467, 7
    %v3469 = vsub.s32 6, %v3468
    %v3470 = vrot.slane %v3030, %v3469
    %v3471 = vlaneseq
    %v3472 = vshrl.u32 %v3471, 7
    %v3473 = vsub.s32 0, %v3472
    %v3474 = vrot.slane %v3031, %v3473
    %v3475 = vlaneseq
    %v3476 = vshrl.u32 %v3475, 7
    %v3477 = vsub.s32 2, %v3476
    %v3478 = vrot.slane %v3031, %v3477
    %v3479 = vlaneseq
    %v3480 = vshrl.u32 %v3479, 7
    %v3481 = vsub.s32 4, %v3480
    %v3482 = vrot.slane %v3031, %v3481
    %v3483 = vlaneseq
    %v3484 = vshrl.u32 %v3483, 7
    %v3485 = vsub.s32 6, %v3484
    %v3486 = vrot.slane %v3031, %v3485
    %v3487 = vlaneseq
    %v3488 = vshrl.u32 %v3487, 7
    %v3489 = vsub.s32 0, %v3488
    %v3490 = vrot.slane %v3032, %v3489
    %v3491 = vlaneseq
    %v3492 = vshrl.u32 %v3491, 7
    %v3493 = vsub.s32 2, %v3492
    %v3494 = vrot.slane %v3032, %v3493
    %v3495 = vlaneseq
    %v3496 = vshrl.u32 %v3495, 7
    %v3497 = vsub.s32 4, %v3496
    %v3498 = vrot.slane %v3032, %v3497
    %v3499 = vlaneseq
    %v3500 = vshrl.u32 %v3499, 7
    %v3501 = vsub.s32 6, %v3500
    %v3502 = vrot.slane %v3032, %v3501
    %v3503 = vlaneseq
    %v3504 = vshrl.u32 %v3503, 7
    %v3505 = vsub.s32 0, %v3504
    %v3506 = vrot.slane %v3033, %v3505
    %v3507 = vlaneseq
    %v3508 = vshrl.u32 %v3507, 7
    %v3509 = vsub.s32 2, %v3508
    %v3510 = vrot.slane %v3033, %v3509
    %v3511 = vlaneseq
    %v3512 = vshrl.u32 %v3511, 7
    %v3513 = vsub.s32 4, %v3512
    %v3514 = vrot.slane %v3033, %v3513
    %v3515 = vlaneseq
    %v3516 = vshrl.u32 %v3515, 7
    %v3517 = vsub.s32 6, %v3516
    %v3518 = vrot.slane %v3033, %v3517
    %v3519 = vlaneseq
    %v3520 = vshrl.u32 %v3519, 7
    %v3521 = vsub.s32 0, %v3520
    %v3522 = vrot.slane %v3034, %v3521
    %v3523 = vlaneseq
    %v3524 = vshrl.u32 %v3523, 7
    %v3525 = vsub.s32 2, %v3524
    %v3526 = vrot.slane %v3034, %v3525
    %v3527 = vlaneseq
    %v3528 = vshrl.u32 %v3527, 7
    %v3529 = vsub.s32 4, %v3528
    %v3530 = vrot.slane %v3034, %v3529
    %v3531 = vlaneseq
    %v3532 = vshrl.u32 %v3531, 7
    %v3533 = vsub.s32 6, %v3532
    %v3534 = vrot.slane %v3034, %v3533
    %v3535 = vlaneseq
    %v3536 = vshrl.u32 %v3535, 7
    %v3537 = vsub.s32 0, %v3536
    %v3538 = vrot.slane %v3035, %v3537
    %v3539 = vlaneseq
    %v3540 = vshrl.u32 %v3539, 7
    %v3541 = vsub.s32 2, %v3540
    %v3542 = vrot.slane %v3035, %v3541
    %v3543 = vlaneseq
    %v3544 = vshrl.u32 %v3543, 7
    %v3545 = vsub.s32 4, %v3544
    %v3546 = vrot.slane %v3035, %v3545
    %v3547 = vlaneseq
    %v3548 = vshrl.u32 %v3547, 7
    %v3549 = vsub.s32 6, %v3548
    %v3550 = vrot.slane %v3035, %v3549
    %v3551 = vlaneseq
    %v3552 = vshrl.u32 %v3551, 7
    %v3553 = vsub.s32 0, %v3552
    %v3554 = vrot.slane %v3036, %v3553
    %v3555 = vlaneseq
    %v3556 = vshrl.u32 %v3555, 7
    %v3557 = vsub.s32 2, %v3556
    %v3558 = vrot.slane %v3036, %v3557
    %v3559 = vlaneseq
    %v3560 = vshrl.u32 %v3559, 7
    %v3561 = vsub.s32 4, %v3560
    %v3562 = vrot.slane %v3036, %v3561
    %v3563 = vlaneseq
    %v3564 = vshrl.u32 %v3563, 7
    %v3565 = vsub.s32 6, %v3564
    %v3566 = vrot.slane %v3036, %v3565
    %v3567 = vlaneseq
    %v3568 = vshrl.u32 %v3567, 7
    %v3569 = vsub.s32 0, %v3568
    %v3570 = vrot.slane %v3037, %v3569
    %v3571 = vlaneseq
    %v3572 = vshrl.u32 %v3571, 7
    %v3573 = vsub.s32 2, %v3572
    %v3574 = vrot.slane %v3037, %v3573
    %v3575 = vlaneseq
    %v3576 = vshrl.u32 %v3575, 7
    %v3577 = vsub.s32 4, %v3576
    %v3578 = vrot.slane %v3037, %v3577
    %v3579 = vlaneseq
    %v3580 = vshrl.u32 %v3579, 7
    %v3581 = vsub.s32 6, %v3580
    %v3582 = vrot.slane %v3037, %v3581
    %v3583 = vlaneseq
    %v3584 = vshrl.u32 %v3583, 7
    %v3585 = vsub.s32 0, %v3584
    %v3586 = vrot.slane %v3038, %v3585
    %v3587 = vlaneseq
    %v3588 = vshrl.u32 %v3587, 7
    %v3589 = vsub.s32 2, %v3588
    %v3590 = vrot.slane %v3038, %v3589
    %v3591 = vlaneseq
    %v3592 = vshrl.u32 %v3591, 7
    %v3593 = vsub.s32 4, %v3592
    %v3594 = vrot.slane %v3038, %v3593
    %v3595 = vlaneseq
    %v3596 = vshrl.u32 %v3595, 7
    %v3597 = vsub.s32 6, %v3596
    %v3598 = vrot.slane %v3038, %v3597
    %v3599 = vlaneseq
    %v3600 = vshrl.u32 %v3599, 7
    %v3601 = vsub.s32 0, %v3600
    %v3602 = vrot.slane %v3039, %v3601
    %v3603 = vlaneseq
    %v3604 = vshrl.u32 %v3603, 7
    %v3605 = vsub.s32 2, %v3604
    %v3606 = vrot.slane %v3039, %v3605
    %v3607 = vlaneseq
    %v3608 = vshrl.u32 %v3607, 7
    %v3609 = vsub.s32 4, %v3608
    %v3610 = vrot.slane %v3039, %v3609
    %v3611 = vlaneseq
    %v3612 = vshrl.u32 %v3611, 7
    %v3613 = vsub.s32 6, %v3612
    %v3614 = vrot.slane %v3039, %v3613
    %v3743 = vpack.c.bf16 %v3106, %v3106
    %v3744 = vpack.c.bf16 %v3110, %v3110
    %v3745 = vpack.c.bf16 %v3114, %v3114
    %v3746 = vpack.c.bf16 %v3118, %v3118
    %v3747 = vpack.c.bf16 %v3122, %v3122
    %v3748 = vpack.c.bf16 %v3126, %v3126
    %v3749 = vpack.c.bf16 %v3130, %v3130
    %v3750 = vpack.c.bf16 %v3134, %v3134
    %v3751 = vpack.c.bf16 %v3138, %v3138
    %v3752 = vpack.c.bf16 %v3142, %v3142
    %v3753 = vpack.c.bf16 %v3146, %v3146
    %v3754 = vpack.c.bf16 %v3150, %v3150
    %v3755 = vpack.c.bf16 %v3154, %v3154
    %v3756 = vpack.c.bf16 %v3158, %v3158
    %v3757 = vpack.c.bf16 %v3162, %v3162
    %v3758 = vpack.c.bf16 %v3166, %v3166
    %v3759 = vpack.c.bf16 %v3170, %v3170
    %v3760 = vpack.c.bf16 %v3174, %v3174
    %v3761 = vpack.c.bf16 %v3178, %v3178
    %v3762 = vpack.c.bf16 %v3182, %v3182
    %v3763 = vpack.c.bf16 %v3186, %v3186
    %v3764 = vpack.c.bf16 %v3190, %v3190
    %v3765 = vpack.c.bf16 %v3194, %v3194
    %v3766 = vpack.c.bf16 %v3198, %v3198
    %v3767 = vpack.c.bf16 %v3202, %v3202
    %v3768 = vpack.c.bf16 %v3206, %v3206
    %v3769 = vpack.c.bf16 %v3210, %v3210
    %v3770 = vpack.c.bf16 %v3214, %v3214
    %v3771 = vpack.c.bf16 %v3218, %v3218
    %v3772 = vpack.c.bf16 %v3222, %v3222
    %v3773 = vpack.c.bf16 %v3226, %v3226
    %v3774 = vpack.c.bf16 %v3230, %v3230
    %v3775 = vpack.c.bf16 %v3234, %v3234
    %v3776 = vpack.c.bf16 %v3238, %v3238
    %v3777 = vpack.c.bf16 %v3242, %v3242
    %v3778 = vpack.c.bf16 %v3246, %v3246
    %v3779 = vpack.c.bf16 %v3250, %v3250
    %v3780 = vpack.c.bf16 %v3254, %v3254
    %v3781 = vpack.c.bf16 %v3258, %v3258
    %v3782 = vpack.c.bf16 %v3262, %v3262
    %v3783 = vpack.c.bf16 %v3266, %v3266
    %v3784 = vpack.c.bf16 %v3270, %v3270
    %v3785 = vpack.c.bf16 %v3274, %v3274
    %v3786 = vpack.c.bf16 %v3278, %v3278
    %v3787 = vpack.c.bf16 %v3282, %v3282
    %v3788 = vpack.c.bf16 %v3286, %v3286
    %v3789 = vpack.c.bf16 %v3290, %v3290
    %v3790 = vpack.c.bf16 %v3294, %v3294
    %v3791 = vpack.c.bf16 %v3298, %v3298
    %v3792 = vpack.c.bf16 %v3302, %v3302
    %v3793 = vpack.c.bf16 %v3306, %v3306
    %v3794 = vpack.c.bf16 %v3310, %v3310
    %v3795 = vpack.c.bf16 %v3314, %v3314
    %v3796 = vpack.c.bf16 %v3318, %v3318
    %v3797 = vpack.c.bf16 %v3322, %v3322
    %v3798 = vpack.c.bf16 %v3326, %v3326
    %v3799 = vpack.c.bf16 %v3330, %v3330
    %v3800 = vpack.c.bf16 %v3334, %v3334
    %v3801 = vpack.c.bf16 %v3338, %v3338
    %v3802 = vpack.c.bf16 %v3342, %v3342
    %v3803 = vpack.c.bf16 %v3346, %v3346
    %v3804 = vpack.c.bf16 %v3350, %v3350
    %v3805 = vpack.c.bf16 %v3354, %v3354
    %v3806 = vpack.c.bf16 %v3358, %v3358
    %v3807 = vpack.c.bf16 %v3362, %v3362
    %v3808 = vpack.c.bf16 %v3366, %v3366
    %v3809 = vpack.c.bf16 %v3370, %v3370
    %v3810 = vpack.c.bf16 %v3374, %v3374
    %v3811 = vpack.c.bf16 %v3378, %v3378
    %v3812 = vpack.c.bf16 %v3382, %v3382
    %v3813 = vpack.c.bf16 %v3386, %v3386
    %v3814 = vpack.c.bf16 %v3390, %v3390
    %v3815 = vpack.c.bf16 %v3394, %v3394
    %v3816 = vpack.c.bf16 %v3398, %v3398
    %v3817 = vpack.c.bf16 %v3402, %v3402
    %v3818 = vpack.c.bf16 %v3406, %v3406
    %v3819 = vpack.c.bf16 %v3410, %v3410
    %v3820 = vpack.c.bf16 %v3414, %v3414
    %v3821 = vpack.c.bf16 %v3418, %v3418
    %v3822 = vpack.c.bf16 %v3422, %v3422
    %v3823 = vpack.c.bf16 %v3426, %v3426
    %v3824 = vpack.c.bf16 %v3430, %v3430
    %v3825 = vpack.c.bf16 %v3434, %v3434
    %v3826 = vpack.c.bf16 %v3438, %v3438
    %v3827 = vpack.c.bf16 %v3442, %v3442
    %v3828 = vpack.c.bf16 %v3446, %v3446
    %v3829 = vpack.c.bf16 %v3450, %v3450
    %v3830 = vpack.c.bf16 %v3454, %v3454
    %v3831 = vpack.c.bf16 %v3458, %v3458
    %v3832 = vpack.c.bf16 %v3462, %v3462
    %v3833 = vpack.c.bf16 %v3466, %v3466
    %v3834 = vpack.c.bf16 %v3470, %v3470
    %v3835 = vpack.c.bf16 %v3474, %v3474
    %v3836 = vpack.c.bf16 %v3478, %v3478
    %v3837 = vpack.c.bf16 %v3482, %v3482
    %v3838 = vpack.c.bf16 %v3486, %v3486
    %v3839 = vpack.c.bf16 %v3490, %v3490
    %v3840 = vpack.c.bf16 %v3494, %v3494
    %v3841 = vpack.c.bf16 %v3498, %v3498
    %v3842 = vpack.c.bf16 %v3502, %v3502
    %v3843 = vpack.c.bf16 %v3506, %v3506
    %v3844 = vpack.c.bf16 %v3510, %v3510
    %v3845 = vpack.c.bf16 %v3514, %v3514
    %v3846 = vpack.c.bf16 %v3518, %v3518
    %v3847 = vpack.c.bf16 %v3522, %v3522
    %v3848 = vpack.c.bf16 %v3526, %v3526
    %v3849 = vpack.c.bf16 %v3530, %v3530
    %v3850 = vpack.c.bf16 %v3534, %v3534
    %v3851 = vpack.c.bf16 %v3538, %v3538
    %v3852 = vpack.c.bf16 %v3542, %v3542
    %v3853 = vpack.c.bf16 %v3546, %v3546
    %v3854 = vpack.c.bf16 %v3550, %v3550
    %v3855 = vpack.c.bf16 %v3554, %v3554
    %v3856 = vpack.c.bf16 %v3558, %v3558
    %v3857 = vpack.c.bf16 %v3562, %v3562
    %v3858 = vpack.c.bf16 %v3566, %v3566
    %v3859 = vpack.c.bf16 %v3570, %v3570
    %v3860 = vpack.c.bf16 %v3574, %v3574
    %v3861 = vpack.c.bf16 %v3578, %v3578
    %v3862 = vpack.c.bf16 %v3582, %v3582
    %v3863 = vpack.c.bf16 %v3586, %v3586
    %v3864 = vpack.c.bf16 %v3590, %v3590
    %v3865 = vpack.c.bf16 %v3594, %v3594
    %v3866 = vpack.c.bf16 %v3598, %v3598
    %v3867 = vpack.c.bf16 %v3602, %v3602
    %v3868 = vpack.c.bf16 %v3606, %v3606
    %v3869 = vpack.c.bf16 %v3610, %v3610
    %v3870 = vpack.c.bf16 %v3614, %v3614
    %v3999 = vunpack.c.l.b16 %v3743
    %v4000 = vunpack.c.l.b16 %v3744
    %v4001 = vunpack.c.l.b16 %v3745
    %v4002 = vunpack.c.l.b16 %v3746
    %v4003 = vunpack.c.l.b16 %v3747
    %v4004 = vunpack.c.l.b16 %v3748
    %v4005 = vunpack.c.l.b16 %v3749
    %v4006 = vunpack.c.l.b16 %v3750
    %v4007 = vunpack.c.l.b16 %v3751
    %v4008 = vunpack.c.l.b16 %v3752
    %v4009 = vunpack.c.l.b16 %v3753
    %v4010 = vunpack.c.l.b16 %v3754
    %v4011 = vunpack.c.l.b16 %v3755
    %v4012 = vunpack.c.l.b16 %v3756
    %v4013 = vunpack.c.l.b16 %v3757
    %v4014 = vunpack.c.l.b16 %v3758
    %v4015 = vunpack.c.l.b16 %v3759
    %v4016 = vunpack.c.l.b16 %v3760
    %v4017 = vunpack.c.l.b16 %v3761
    %v4018 = vunpack.c.l.b16 %v3762
    %v4019 = vunpack.c.l.b16 %v3763
    %v4020 = vunpack.c.l.b16 %v3764
    %v4021 = vunpack.c.l.b16 %v3765
    %v4022 = vunpack.c.l.b16 %v3766
    %v4023 = vunpack.c.l.b16 %v3767
    %v4024 = vunpack.c.l.b16 %v3768
    %v4025 = vunpack.c.l.b16 %v3769
    %v4026 = vunpack.c.l.b16 %v3770
    %v4027 = vunpack.c.l.b16 %v3771
    %v4028 = vunpack.c.l.b16 %v3772
    %v4029 = vunpack.c.l.b16 %v3773
    %v4030 = vunpack.c.l.b16 %v3774
    %v4031 = vunpack.c.l.b16 %v3775
    %v4032 = vunpack.c.l.b16 %v3776
    %v4033 = vunpack.c.l.b16 %v3777
    %v4034 = vunpack.c.l.b16 %v3778
    %v4035 = vunpack.c.l.b16 %v3779
    %v4036 = vunpack.c.l.b16 %v3780
    %v4037 = vunpack.c.l.b16 %v3781
    %v4038 = vunpack.c.l.b16 %v3782
    %v4039 = vunpack.c.l.b16 %v3783
    %v4040 = vunpack.c.l.b16 %v3784
    %v4041 = vunpack.c.l.b16 %v3785
    %v4042 = vunpack.c.l.b16 %v3786
    %v4043 = vunpack.c.l.b16 %v3787
    %v4044 = vunpack.c.l.b16 %v3788
    %v4045 = vunpack.c.l.b16 %v3789
    %v4046 = vunpack.c.l.b16 %v3790
    %v4047 = vunpack.c.l.b16 %v3791
    %v4048 = vunpack.c.l.b16 %v3792
    %v4049 = vunpack.c.l.b16 %v3793
    %v4050 = vunpack.c.l.b16 %v3794
    %v4051 = vunpack.c.l.b16 %v3795
    %v4052 = vunpack.c.l.b16 %v3796
    %v4053 = vunpack.c.l.b16 %v3797
    %v4054 = vunpack.c.l.b16 %v3798
    %v4055 = vunpack.c.l.b16 %v3799
    %v4056 = vunpack.c.l.b16 %v3800
    %v4057 = vunpack.c.l.b16 %v3801
    %v4058 = vunpack.c.l.b16 %v3802
    %v4059 = vunpack.c.l.b16 %v3803
    %v4060 = vunpack.c.l.b16 %v3804
    %v4061 = vunpack.c.l.b16 %v3805
    %v4062 = vunpack.c.l.b16 %v3806
    %v4063 = vunpack.c.l.b16 %v3807
    %v4064 = vunpack.c.l.b16 %v3808
    %v4065 = vunpack.c.l.b16 %v3809
    %v4066 = vunpack.c.l.b16 %v3810
    %v4067 = vunpack.c.l.b16 %v3811
    %v4068 = vunpack.c.l.b16 %v3812
    %v4069 = vunpack.c.l.b16 %v3813
    %v4070 = vunpack.c.l.b16 %v3814
    %v4071 = vunpack.c.l.b16 %v3815
    %v4072 = vunpack.c.l.b16 %v3816
    %v4073 = vunpack.c.l.b16 %v3817
    %v4074 = vunpack.c.l.b16 %v3818
    %v4075 = vunpack.c.l.b16 %v3819
    %v4076 = vunpack.c.l.b16 %v3820
    %v4077 = vunpack.c.l.b16 %v3821
    %v4078 = vunpack.c.l.b16 %v3822
    %v4079 = vunpack.c.l.b16 %v3823
    %v4080 = vunpack.c.l.b16 %v3824
    %v4081 = vunpack.c.l.b16 %v3825
    %v4082 = vunpack.c.l.b16 %v3826
    %v4083 = vunpack.c.l.b16 %v3827
    %v4084 = vunpack.c.l.b16 %v3828
    %v4085 = vunpack.c.l.b16 %v3829
    %v4086 = vunpack.c.l.b16 %v3830
    %v4087 = vunpack.c.l.b16 %v3831
    %v4088 = vunpack.c.l.b16 %v3832
    %v4089 = vunpack.c.l.b16 %v3833
    %v4090 = vunpack.c.l.b16 %v3834
    %v4091 = vunpack.c.l.b16 %v3835
    %v4092 = vunpack.c.l.b16 %v3836
    %v4093 = vunpack.c.l.b16 %v3837
    %v4094 = vunpack.c.l.b16 %v3838
    %v4095 = vunpack.c.l.b16 %v3839
    %v4096 = vunpack.c.l.b16 %v3840
    %v4097 = vunpack.c.l.b16 %v3841
    %v4098 = vunpack.c.l.b16 %v3842
    %v4099 = vunpack.c.l.b16 %v3843
    %v4100 = vunpack.c.l.b16 %v3844
    %v4101 = vunpack.c.l.b16 %v3845
    %v4102 = vunpack.c.l.b16 %v3846
    %v4103 = vunpack.c.l.b16 %v3847
    %v4104 = vunpack.c.l.b16 %v3848
    %v4105 = vunpack.c.l.b16 %v3849
    %v4106 = vunpack.c.l.b16 %v3850
    %v4107 = vunpack.c.l.b16 %v3851
    %v4108 = vunpack.c.l.b16 %v3852
    %v4109 = vunpack.c.l.b16 %v3853
    %v4110 = vunpack.c.l.b16 %v3854
    %v4111 = vunpack.c.l.b16 %v3855
    %v4112 = vunpack.c.l.b16 %v3856
    %v4113 = vunpack.c.l.b16 %v3857
    %v4114 = vunpack.c.l.b16 %v3858
    %v4115 = vunpack.c.l.b16 %v3859
    %v4116 = vunpack.c.l.b16 %v3860
    %v4117 = vunpack.c.l.b16 %v3861
    %v4118 = vunpack.c.l.b16 %v3862
    %v4119 = vunpack.c.l.b16 %v3863
    %v4120 = vunpack.c.l.b16 %v3864
    %v4121 = vunpack.c.l.b16 %v3865
    %v4122 = vunpack.c.l.b16 %v3866
    %v4123 = vunpack.c.l.b16 %v3867
    %v4124 = vunpack.c.l.b16 %v3868
    %v4125 = vunpack.c.l.b16 %v3869
    %v4126 = vunpack.c.l.b16 %v3870
    %v4127 = vpack.c.b16 %v4000, %v3999
    %v4128 = vpack.c.b16 %v4002, %v4001
    %v4129 = vpack.c.b16 %v4004, %v4003
    %v4130 = vpack.c.b16 %v4006, %v4005
    %v4131 = vpack.c.b16 %v4008, %v4007
    %v4132 = vpack.c.b16 %v4010, %v4009
    %v4133 = vpack.c.b16 %v4012, %v4011
    %v4134 = vpack.c.b16 %v4014, %v4013
    %v4135 = vpack.c.b16 %v4016, %v4015
    %v4136 = vpack.c.b16 %v4018, %v4017
    %v4137 = vpack.c.b16 %v4020, %v4019
    %v4138 = vpack.c.b16 %v4022, %v4021
    %v4139 = vpack.c.b16 %v4024, %v4023
    %v4140 = vpack.c.b16 %v4026, %v4025
    %v4141 = vpack.c.b16 %v4028, %v4027
    %v4142 = vpack.c.b16 %v4030, %v4029
    %v4143 = vpack.c.b16 %v4032, %v4031
    %v4144 = vpack.c.b16 %v4034, %v4033
    %v4145 = vpack.c.b16 %v4036, %v4035
    %v4146 = vpack.c.b16 %v4038, %v4037
    %v4147 = vpack.c.b16 %v4040, %v4039
    %v4148 = vpack.c.b16 %v4042, %v4041
    %v4149 = vpack.c.b16 %v4044, %v4043
    %v4150 = vpack.c.b16 %v4046, %v4045
    %v4151 = vpack.c.b16 %v4048, %v4047
    %v4152 = vpack.c.b16 %v4050, %v4049
    %v4153 = vpack.c.b16 %v4052, %v4051
    %v4154 = vpack.c.b16 %v4054, %v4053
    %v4155 = vpack.c.b16 %v4056, %v4055
    %v4156 = vpack.c.b16 %v4058, %v4057
    %v4157 = vpack.c.b16 %v4060, %v4059
    %v4158 = vpack.c.b16 %v4062, %v4061
    %v4159 = vpack.c.b16 %v4064, %v4063
    %v4160 = vpack.c.b16 %v4066, %v4065
    %v4161 = vpack.c.b16 %v4068, %v4067
    %v4162 = vpack.c.b16 %v4070, %v4069
    %v4163 = vpack.c.b16 %v4072, %v4071
    %v4164 = vpack.c.b16 %v4074, %v4073
    %v4165 = vpack.c.b16 %v4076, %v4075
    %v4166 = vpack.c.b16 %v4078, %v4077
    %v4167 = vpack.c.b16 %v4080, %v4079
    %v4168 = vpack.c.b16 %v4082, %v4081
    %v4169 = vpack.c.b16 %v4084, %v4083
    %v4170 = vpack.c.b16 %v4086, %v4085
    %v4171 = vpack.c.b16 %v4088, %v4087
    %v4172 = vpack.c.b16 %v4090, %v4089
    %v4173 = vpack.c.b16 %v4092, %v4091
    %v4174 = vpack.c.b16 %v4094, %v4093
    %v4175 = vpack.c.b16 %v4096, %v4095
    %v4176 = vpack.c.b16 %v4098, %v4097
    %v4177 = vpack.c.b16 %v4100, %v4099
    %v4178 = vpack.c.b16 %v4102, %v4101
    %v4179 = vpack.c.b16 %v4104, %v4103
    %v4180 = vpack.c.b16 %v4106, %v4105
    %v4181 = vpack.c.b16 %v4108, %v4107
    %v4182 = vpack.c.b16 %v4110, %v4109
    %v4183 = vpack.c.b16 %v4112, %v4111
    %v4184 = vpack.c.b16 %v4114, %v4113
    %v4185 = vpack.c.b16 %v4116, %v4115
    %v4186 = vpack.c.b16 %v4118, %v4117
    %v4187 = vpack.c.b16 %v4120, %v4119
    %v4188 = vpack.c.b16 %v4122, %v4121
    %v4189 = vpack.c.b16 %v4124, %v4123
    %v4190 = vpack.c.b16 %v4126, %v4125
    %v4191 = vunpack.c.l.b16 %v4127
    %v4192 = vunpack.c.h.b16 %v4127
    %v4193 = vunpack.c.l.b16 %v4128
    %v4194 = vunpack.c.h.b16 %v4128
    %v4195 = vunpack.c.l.b16 %v4129
    %v4196 = vunpack.c.h.b16 %v4129
    %v4197 = vunpack.c.l.b16 %v4130
    %v4198 = vunpack.c.h.b16 %v4130
    %v4199 = vunpack.c.l.b16 %v4131
    %v4200 = vunpack.c.h.b16 %v4131
    %v4201 = vunpack.c.l.b16 %v4132
    %v4202 = vunpack.c.h.b16 %v4132
    %v4203 = vunpack.c.l.b16 %v4133
    %v4204 = vunpack.c.h.b16 %v4133
    %v4205 = vunpack.c.l.b16 %v4134
    %v4206 = vunpack.c.h.b16 %v4134
    %v4207 = vunpack.c.l.b16 %v4135
    %v4208 = vunpack.c.h.b16 %v4135
    %v4209 = vunpack.c.l.b16 %v4136
    %v4210 = vunpack.c.h.b16 %v4136
    %v4211 = vunpack.c.l.b16 %v4137
    %v4212 = vunpack.c.h.b16 %v4137
    %v4213 = vunpack.c.l.b16 %v4138
    %v4214 = vunpack.c.h.b16 %v4138
    %v4215 = vunpack.c.l.b16 %v4139
    %v4216 = vunpack.c.h.b16 %v4139
    %v4217 = vunpack.c.l.b16 %v4140
    %v4218 = vunpack.c.h.b16 %v4140
    %v4219 = vunpack.c.l.b16 %v4141
    %v4220 = vunpack.c.h.b16 %v4141
    %v4221 = vunpack.c.l.b16 %v4142
    %v4222 = vunpack.c.h.b16 %v4142
    %v4223 = vunpack.c.l.b16 %v4143
    %v4224 = vunpack.c.h.b16 %v4143
    %v4225 = vunpack.c.l.b16 %v4144
    %v4226 = vunpack.c.h.b16 %v4144
    %v4227 = vunpack.c.l.b16 %v4145
    %v4228 = vunpack.c.h.b16 %v4145
    %v4229 = vunpack.c.l.b16 %v4146
    %v4230 = vunpack.c.h.b16 %v4146
    %v4231 = vunpack.c.l.b16 %v4147
    %v4232 = vunpack.c.h.b16 %v4147
    %v4233 = vunpack.c.l.b16 %v4148
    %v4234 = vunpack.c.h.b16 %v4148
    %v4235 = vunpack.c.l.b16 %v4149
    %v4236 = vunpack.c.h.b16 %v4149
    %v4237 = vunpack.c.l.b16 %v4150
    %v4238 = vunpack.c.h.b16 %v4150
    %v4239 = vunpack.c.l.b16 %v4151
    %v4240 = vunpack.c.h.b16 %v4151
    %v4241 = vunpack.c.l.b16 %v4152
    %v4242 = vunpack.c.h.b16 %v4152
    %v4243 = vunpack.c.l.b16 %v4153
    %v4244 = vunpack.c.h.b16 %v4153
    %v4245 = vunpack.c.l.b16 %v4154
    %v4246 = vunpack.c.h.b16 %v4154
    %v4247 = vunpack.c.l.b16 %v4155
    %v4248 = vunpack.c.h.b16 %v4155
    %v4249 = vunpack.c.l.b16 %v4156
    %v4250 = vunpack.c.h.b16 %v4156
    %v4251 = vunpack.c.l.b16 %v4157
    %v4252 = vunpack.c.h.b16 %v4157
    %v4253 = vunpack.c.l.b16 %v4158
    %v4254 = vunpack.c.h.b16 %v4158
    %v4255 = vunpack.c.l.b16 %v4159
    %v4256 = vunpack.c.h.b16 %v4159
    %v4257 = vunpack.c.l.b16 %v4160
    %v4258 = vunpack.c.h.b16 %v4160
    %v4259 = vunpack.c.l.b16 %v4161
    %v4260 = vunpack.c.h.b16 %v4161
    %v4261 = vunpack.c.l.b16 %v4162
    %v4262 = vunpack.c.h.b16 %v4162
    %v4263 = vunpack.c.l.b16 %v4163
    %v4264 = vunpack.c.h.b16 %v4163
    %v4265 = vunpack.c.l.b16 %v4164
    %v4266 = vunpack.c.h.b16 %v4164
    %v4267 = vunpack.c.l.b16 %v4165
    %v4268 = vunpack.c.h.b16 %v4165
    %v4269 = vunpack.c.l.b16 %v4166
    %v4270 = vunpack.c.h.b16 %v4166
    %v4271 = vunpack.c.l.b16 %v4167
    %v4272 = vunpack.c.h.b16 %v4167
    %v4273 = vunpack.c.l.b16 %v4168
    %v4274 = vunpack.c.h.b16 %v4168
    %v4275 = vunpack.c.l.b16 %v4169
    %v4276 = vunpack.c.h.b16 %v4169
    %v4277 = vunpack.c.l.b16 %v4170
    %v4278 = vunpack.c.h.b16 %v4170
    %v4279 = vunpack.c.l.b16 %v4171
    %v4280 = vunpack.c.h.b16 %v4171
    %v4281 = vunpack.c.l.b16 %v4172
    %v4282 = vunpack.c.h.b16 %v4172
    %v4283 = vunpack.c.l.b16 %v4173
    %v4284 = vunpack.c.h.b16 %v4173
    %v4285 = vunpack.c.l.b16 %v4174
    %v4286 = vunpack.c.h.b16 %v4174
    %v4287 = vunpack.c.l.b16 %v4175
    %v4288 = vunpack.c.h.b16 %v4175
    %v4289 = vunpack.c.l.b16 %v4176
    %v4290 = vunpack.c.h.b16 %v4176
    %v4291 = vunpack.c.l.b16 %v4177
    %v4292 = vunpack.c.h.b16 %v4177
    %v4293 = vunpack.c.l.b16 %v4178
    %v4294 = vunpack.c.h.b16 %v4178
    %v4295 = vunpack.c.l.b16 %v4179
    %v4296 = vunpack.c.h.b16 %v4179
    %v4297 = vunpack.c.l.b16 %v4180
    %v4298 = vunpack.c.h.b16 %v4180
    %v4299 = vunpack.c.l.b16 %v4181
    %v4300 = vunpack.c.h.b16 %v4181
    %v4301 = vunpack.c.l.b16 %v4182
    %v4302 = vunpack.c.h.b16 %v4182
    %v4303 = vunpack.c.l.b16 %v4183
    %v4304 = vunpack.c.h.b16 %v4183
    %v4305 = vunpack.c.l.b16 %v4184
    %v4306 = vunpack.c.h.b16 %v4184
    %v4307 = vunpack.c.l.b16 %v4185
    %v4308 = vunpack.c.h.b16 %v4185
    %v4309 = vunpack.c.l.b16 %v4186
    %v4310 = vunpack.c.h.b16 %v4186
    %v4311 = vunpack.c.l.b16 %v4187
    %v4312 = vunpack.c.h.b16 %v4187
    %v4313 = vunpack.c.l.b16 %v4188
    %v4314 = vunpack.c.h.b16 %v4188
    %v4315 = vunpack.c.l.b16 %v4189
    %v4316 = vunpack.c.h.b16 %v4189
    %v4317 = vunpack.c.l.b16 %v4190
    %v4318 = vunpack.c.h.b16 %v4190
    %v4319 = vrot.slane %v4195, 7
    %vm4320 = vcmask 1041409
    %v4321 = vsel %vm4320, %v4319, %v4191
    %v4322 = vrot.slane %v4199, 6
    %vm4323 = vcmask 1042434
    %v4324 = vsel %vm4323, %v4322, %v4321
    %v4325 = vrot.slane %v4203, 5
    %vm4326 = vcmask 1043459
    %v4327 = vsel %vm4326, %v4325, %v4324
    %v4328 = vrot.slane %v4207, 4
    %vm4329 = vcmask 1044484
    %v4330 = vsel %vm4329, %v4328, %v4327
    %v4331 = vrot.slane %v4211, 3
    %vm4332 = vcmask 1045509
    %v4333 = vsel %vm4332, %v4331, %v4330
    %v4334 = vrot.slane %v4215, 2
    %vm4335 = vcmask 1046534
    %v4336 = vsel %vm4335, %v4334, %v4333
    %v4337 = vrot.slane %v4219, 1
    %vm4338 = vcmask 1047559
    %v4339 = vsel %vm4338, %v4337, %v4336
    %v4340 = vrot.slane %v4196, 7
    %v4341 = vsel %vm4320, %v4340, %v4192
    %v4342 = vrot.slane %v4200, 6
    %v4343 = vsel %vm4323, %v4342, %v4341
    %v4344 = vrot.slane %v4204, 5
    %v4345 = vsel %vm4326, %v4344, %v4343
    %v4346 = vrot.slane %v4208, 4
    %v4347 = vsel %vm4329, %v4346, %v4345
    %v4348 = vrot.slane %v4212, 3
    %v4349 = vsel %vm4332, %v4348, %v4347
    %v4350 = vrot.slane %v4216, 2
    %v4351 = vsel %vm4335, %v4350, %v4349
    %v4352 = vrot.slane %v4220, 1
    %v4353 = vsel %vm4338, %v4352, %v4351
    %v4354 = vrot.slane %v4197, 7
    %v4355 = vsel %vm4320, %v4354, %v4193
    %v4356 = vrot.slane %v4201, 6
    %v4357 = vsel %vm4323, %v4356, %v4355
    %v4358 = vrot.slane %v4205, 5
    %v4359 = vsel %vm4326, %v4358, %v4357
    %v4360 = vrot.slane %v4209, 4
    %v4361 = vsel %vm4329, %v4360, %v4359
    %v4362 = vrot.slane %v4213, 3
    %v4363 = vsel %vm4332, %v4362, %v4361
    %v4364 = vrot.slane %v4217, 2
    %v4365 = vsel %vm4335, %v4364, %v4363
    %v4366 = vrot.slane %v4221, 1
    %v4367 = vsel %vm4338, %v4366, %v4365
    %v4368 = vrot.slane %v4198, 7
    %v4369 = vsel %vm4320, %v4368, %v4194
    %v4370 = vrot.slane %v4202, 6
    %v4371 = vsel %vm4323, %v4370, %v4369
    %v4372 = vrot.slane %v4206, 5
    %v4373 = vsel %vm4326, %v4372, %v4371
    %v4374 = vrot.slane %v4210, 4
    %v4375 = vsel %vm4329, %v4374, %v4373
    %v4376 = vrot.slane %v4214, 3
    %v4377 = vsel %vm4332, %v4376, %v4375
    %v4378 = vrot.slane %v4218, 2
    %v4379 = vsel %vm4335, %v4378, %v4377
    %v4380 = vrot.slane %v4222, 1
    %v4381 = vsel %vm4338, %v4380, %v4379
    %v4382 = vrot.slane %v4227, 7
    %v4383 = vsel %vm4320, %v4382, %v4223
    %v4384 = vrot.slane %v4231, 6
    %v4385 = vsel %vm4323, %v4384, %v4383
    %v4386 = vrot.slane %v4235, 5
    %v4387 = vsel %vm4326, %v4386, %v4385
    %v4388 = vrot.slane %v4239, 4
    %v4389 = vsel %vm4329, %v4388, %v4387
    %v4390 = vrot.slane %v4243, 3
    %v4391 = vsel %vm4332, %v4390, %v4389
    %v4392 = vrot.slane %v4247, 2
    %v4393 = vsel %vm4335, %v4392, %v4391
    %v4394 = vrot.slane %v4251, 1
    %v4395 = vsel %vm4338, %v4394, %v4393
    %v4396 = vrot.slane %v4228, 7
    %v4397 = vsel %vm4320, %v4396, %v4224
    %v4398 = vrot.slane %v4232, 6
    %v4399 = vsel %vm4323, %v4398, %v4397
    %v4400 = vrot.slane %v4236, 5
    %v4401 = vsel %vm4326, %v4400, %v4399
    %v4402 = vrot.slane %v4240, 4
    %v4403 = vsel %vm4329, %v4402, %v4401
    %v4404 = vrot.slane %v4244, 3
    %v4405 = vsel %vm4332, %v4404, %v4403
    %v4406 = vrot.slane %v4248, 2
    %v4407 = vsel %vm4335, %v4406, %v4405
    %v4408 = vrot.slane %v4252, 1
    %v4409 = vsel %vm4338, %v4408, %v4407
    %v4410 = vrot.slane %v4229, 7
    %v4411 = vsel %vm4320, %v4410, %v4225
    %v4412 = vrot.slane %v4233, 6
    %v4413 = vsel %vm4323, %v4412, %v4411
    %v4414 = vrot.slane %v4237, 5
    %v4415 = vsel %vm4326, %v4414, %v4413
    %v4416 = vrot.slane %v4241, 4
    %v4417 = vsel %vm4329, %v4416, %v4415
    %v4418 = vrot.slane %v4245, 3
    %v4419 = vsel %vm4332, %v4418, %v4417
    %v4420 = vrot.slane %v4249, 2
    %v4421 = vsel %vm4335, %v4420, %v4419
    %v4422 = vrot.slane %v4253, 1
    %v4423 = vsel %vm4338, %v4422, %v4421
    %v4424 = vrot.slane %v4230, 7
    %v4425 = vsel %vm4320, %v4424, %v4226
    %v4426 = vrot.slane %v4234, 6
    %v4427 = vsel %vm4323, %v4426, %v4425
    %v4428 = vrot.slane %v4238, 5
    %v4429 = vsel %vm4326, %v4428, %v4427
    %v4430 = vrot.slane %v4242, 4
    %v4431 = vsel %vm4329, %v4430, %v4429
    %v4432 = vrot.slane %v4246, 3
    %v4433 = vsel %vm4332, %v4432, %v4431
    %v4434 = vrot.slane %v4250, 2
    %v4435 = vsel %vm4335, %v4434, %v4433
    %v4436 = vrot.slane %v4254, 1
    %v4437 = vsel %vm4338, %v4436, %v4435
    %v4438 = vrot.slane %v4259, 7
    %v4439 = vsel %vm4320, %v4438, %v4255
    %v4440 = vrot.slane %v4263, 6
    %v4441 = vsel %vm4323, %v4440, %v4439
    %v4442 = vrot.slane %v4267, 5
    %v4443 = vsel %vm4326, %v4442, %v4441
    %v4444 = vrot.slane %v4271, 4
    %v4445 = vsel %vm4329, %v4444, %v4443
    %v4446 = vrot.slane %v4275, 3
    %v4447 = vsel %vm4332, %v4446, %v4445
    %v4448 = vrot.slane %v4279, 2
    %v4449 = vsel %vm4335, %v4448, %v4447
    %v4450 = vrot.slane %v4283, 1
    %v4451 = vsel %vm4338, %v4450, %v4449
    %v4452 = vrot.slane %v4260, 7
    %v4453 = vsel %vm4320, %v4452, %v4256
    %v4454 = vrot.slane %v4264, 6
    %v4455 = vsel %vm4323, %v4454, %v4453
    %v4456 = vrot.slane %v4268, 5
    %v4457 = vsel %vm4326, %v4456, %v4455
    %v4458 = vrot.slane %v4272, 4
    %v4459 = vsel %vm4329, %v4458, %v4457
    %v4460 = vrot.slane %v4276, 3
    %v4461 = vsel %vm4332, %v4460, %v4459
    %v4462 = vrot.slane %v4280, 2
    %v4463 = vsel %vm4335, %v4462, %v4461
    %v4464 = vrot.slane %v4284, 1
    %v4465 = vsel %vm4338, %v4464, %v4463
    %v4466 = vrot.slane %v4261, 7
    %v4467 = vsel %vm4320, %v4466, %v4257
    %v4468 = vrot.slane %v4265, 6
    %v4469 = vsel %vm4323, %v4468, %v4467
    %v4470 = vrot.slane %v4269, 5
    %v4471 = vsel %vm4326, %v4470, %v4469
    %v4472 = vrot.slane %v4273, 4
    %v4473 = vsel %vm4329, %v4472, %v4471
    %v4474 = vrot.slane %v4277, 3
    %v4475 = vsel %vm4332, %v4474, %v4473
    %v4476 = vrot.slane %v4281, 2
    %v4477 = vsel %vm4335, %v4476, %v4475
    %v4478 = vrot.slane %v4285, 1
    %v4479 = vsel %vm4338, %v4478, %v4477
    %v4480 = vrot.slane %v4262, 7
    %v4481 = vsel %vm4320, %v4480, %v4258
    %v4482 = vrot.slane %v4266, 6
    %v4483 = vsel %vm4323, %v4482, %v4481
    %v4484 = vrot.slane %v4270, 5
    %v4485 = vsel %vm4326, %v4484, %v4483
    %v4486 = vrot.slane %v4274, 4
    %v4487 = vsel %vm4329, %v4486, %v4485
    %v4488 = vrot.slane %v4278, 3
    %v4489 = vsel %vm4332, %v4488, %v4487
    %v4490 = vrot.slane %v4282, 2
    %v4491 = vsel %vm4335, %v4490, %v4489
    %v4492 = vrot.slane %v4286, 1
    %v4493 = vsel %vm4338, %v4492, %v4491
    %v4494 = vrot.slane %v4291, 7
    %v4495 = vsel %vm4320, %v4494, %v4287
    %v4496 = vrot.slane %v4295, 6
    %v4497 = vsel %vm4323, %v4496, %v4495
    %v4498 = vrot.slane %v4299, 5
    %v4499 = vsel %vm4326, %v4498, %v4497
    %v4500 = vrot.slane %v4303, 4
    %v4501 = vsel %vm4329, %v4500, %v4499
    %v4502 = vrot.slane %v4307, 3
    %v4503 = vsel %vm4332, %v4502, %v4501
    %v4504 = vrot.slane %v4311, 2
    %v4505 = vsel %vm4335, %v4504, %v4503
    %v4506 = vrot.slane %v4315, 1
    %v4507 = vsel %vm4338, %v4506, %v4505
    %v4508 = vrot.slane %v4292, 7
    %v4509 = vsel %vm4320, %v4508, %v4288
    %v4510 = vrot.slane %v4296, 6
    %v4511 = vsel %vm4323, %v4510, %v4509
    %v4512 = vrot.slane %v4300, 5
    %v4513 = vsel %vm4326, %v4512, %v4511
    %v4514 = vrot.slane %v4304, 4
    %v4515 = vsel %vm4329, %v4514, %v4513
    %v4516 = vrot.slane %v4308, 3
    %v4517 = vsel %vm4332, %v4516, %v4515
    %v4518 = vrot.slane %v4312, 2
    %v4519 = vsel %vm4335, %v4518, %v4517
    %v4520 = vrot.slane %v4316, 1
    %v4521 = vsel %vm4338, %v4520, %v4519
    %v4522 = vrot.slane %v4293, 7
    %v4523 = vsel %vm4320, %v4522, %v4289
    %v4524 = vrot.slane %v4297, 6
    %v4525 = vsel %vm4323, %v4524, %v4523
    %v4526 = vrot.slane %v4301, 5
    %v4527 = vsel %vm4326, %v4526, %v4525
    %v4528 = vrot.slane %v4305, 4
    %v4529 = vsel %vm4329, %v4528, %v4527
    %v4530 = vrot.slane %v4309, 3
    %v4531 = vsel %vm4332, %v4530, %v4529
    %v4532 = vrot.slane %v4313, 2
    %v4533 = vsel %vm4335, %v4532, %v4531
    %v4534 = vrot.slane %v4317, 1
    %v4535 = vsel %vm4338, %v4534, %v4533
    %v4536 = vrot.slane %v4294, 7
    %v4537 = vsel %vm4320, %v4536, %v4290
    %v4538 = vrot.slane %v4298, 6
    %v4539 = vsel %vm4323, %v4538, %v4537
    %v4540 = vrot.slane %v4302, 5
    %v4541 = vsel %vm4326, %v4540, %v4539
    %v4542 = vrot.slane %v4306, 4
    %v4543 = vsel %vm4329, %v4542, %v4541
    %v4544 = vrot.slane %v4310, 3
    %v4545 = vsel %vm4332, %v4544, %v4543
    %v4546 = vrot.slane %v4314, 2
    %v4547 = vsel %vm4335, %v4546, %v4545
    %v4548 = vrot.slane %v4318, 1
    %v4549 = vsel %vm4338, %v4548, %v4547
    %v4550 = vpack.c.b16 %v4353, %v4339
    %v4551 = vpack.c.b16 %v4381, %v4367
    %v4552 = vpack.c.b16 %v4409, %v4395
    %v4553 = vpack.c.b16 %v4437, %v4423
    %v4554 = vpack.c.b16 %v4465, %v4451
    %v4555 = vpack.c.b16 %v4493, %v4479
    %v4556 = vpack.c.b16 %v4521, %v4507
    %v4557 = vpack.c.b16 %v4549, %v4535
    %4566 = vst [vmem:[#allocation2 + $0x10] sm:$0xff] %v4550
    %4567 = vst [vmem:[#allocation2 + $0x18] sm:$0xff] %v4551
    %4568 = vst [vmem:[#allocation2 + $0x20] sm:$0xff] %v4552
    %4569 = vst [vmem:[#allocation2 + $0x28] sm:$0xff] %v4553
    %4570 = vst [vmem:[#allocation2 + $0x50] sm:$0xff] %v4554
    %4571 = vst [vmem:[#allocation2 + $0x58] sm:$0xff] %v4555
    %4572 = vst [vmem:[#allocation2 + $0x60] sm:$0xff] %v4556
    %4573 = vst [vmem:[#allocation2 + $0x68] sm:$0xff] %v4557
    %v4574 = vld [vmem:[#allocation8] sm:$0xff]
    %v4575 = vld [vmem:[#allocation2] sm:$0x88]
    %v4576 = vld [vmem:[#allocation2 + $0x8] sm:$0x88]
    %v4577 = vld [vmem:[#allocation2 + $0x10] sm:$0xff]
    %v4578 = vld [vmem:[#allocation2 + $0x18] sm:$0xff]
    %v4579 = vld [vmem:[#allocation2 + $0x20] sm:$0xff]
    %v4580 = vld [vmem:[#allocation2 + $0x28] sm:$0xff]
    %v4581 = vld [vmem:[#allocation2 + $0x40] sm:$0x88]
    %v4582 = vld [vmem:[#allocation2 + $0x48] sm:$0x88]
    %v4583 = vld [vmem:[#allocation2 + $0x50] sm:$0xff]
    %v4584 = vld [vmem:[#allocation2 + $0x58] sm:$0xff]
    %v4585 = vld [vmem:[#allocation2 + $0x60] sm:$0xff]
    %v4586 = vld [vmem:[#allocation2 + $0x68] sm:$0xff]
    %vm4587 = vsmask.f32 4368
    %vm4588 = vmor %vm3047, %vm4587
    %v4590 = vshrl.u32 %v4575, 16
    %v4592 = vrot.slane %v4590, 7
    %v4593 = vrot.slane %v4592, 4
    %v4595 = vshrl.u32 %v4577, 16
    %v4597 = vrot.slane %v4595, 7
    %v4598 = vshll.u32 %v4577, 16
    %v4600 = vor.u32 %v4597, %v4598
    %v4601 = vsel %vm4588, %v4593, %v4600
    %v4603 = vshrl.u32 %v4576, 16
    %v4605 = vrot.slane %v4603, 7
    %v4606 = vrot.slane %v4605, 4
    %v4608 = vshrl.u32 %v4578, 16
    %v4610 = vrot.slane %v4608, 7
    %v4611 = vshll.u32 %v4578, 16
    %v4613 = vor.u32 %v4610, %v4611
    %v4614 = vsel %vm4588, %v4606, %v4613
    %v4615 = vrot.slane %v4597, 4
    %v4617 = vshrl.u32 %v4579, 16
    %v4619 = vrot.slane %v4617, 7
    %v4620 = vshll.u32 %v4579, 16
    %v4622 = vor.u32 %v4619, %v4620
    %v4623 = vsel %vm4588, %v4615, %v4622
    %v4624 = vrot.slane %v4610, 4
    %v4626 = vshrl.u32 %v4580, 16
    %v4628 = vrot.slane %v4626, 7
    %v4629 = vshll.u32 %v4580, 16
    %v4631 = vor.u32 %v4628, %v4629
    %v4632 = vsel %vm4588, %v4624, %v4631
    %v4634 = vshrl.u32 %v4581, 16
    %v4636 = vrot.slane %v4634, 7
    %v4637 = vrot.slane %v4636, 4
    %v4639 = vshrl.u32 %v4583, 16
    %v4641 = vrot.slane %v4639, 7
    %v4642 = vshll.u32 %v4583, 16
    %v4644 = vor.u32 %v4641, %v4642
    %v4645 = vsel %vm4588, %v4637, %v4644
    %v4647 = vshrl.u32 %v4582, 16
    %v4649 = vrot.slane %v4647, 7
    %v4650 = vrot.slane %v4649, 4
    %v4652 = vshrl.u32 %v4584, 16
    %v4654 = vrot.slane %v4652, 7
    %v4655 = vshll.u32 %v4584, 16
    %v4657 = vor.u32 %v4654, %v4655
    %v4658 = vsel %vm4588, %v4650, %v4657
    %v4659 = vrot.slane %v4641, 4
    %v4661 = vshrl.u32 %v4585, 16
    %v4663 = vrot.slane %v4661, 7
    %v4664 = vshll.u32 %v4585, 16
    %v4666 = vor.u32 %v4663, %v4664
    %v4667 = vsel %vm4588, %v4659, %v4666
    %v4668 = vrot.slane %v4654, 4
    %v4670 = vshrl.u32 %v4586, 16
    %v4672 = vrot.slane %v4670, 7
    %v4673 = vshll.u32 %v4586, 16
    %v4675 = vor.u32 %v4672, %v4673
    %v4676 = vsel %vm4588, %v4668, %v4675
    %v4677 = vld [vmem:[#allocation7] sm:$0xff]
    %v4678 = vld [vmem:[#allocation7 + $0x8] sm:$0xff]
    %v4679 = vld [vmem:[#allocation7 + $0x10] sm:$0xff]
    %v4680 = vld [vmem:[#allocation7 + $0x18] sm:$0xff]
    %v4681 = vld [vmem:[#allocation7 + $0x20] sm:$0xff]
    %v4682 = vld [vmem:[#allocation7 + $0x28] sm:$0xff]
    %v4683 = vld [vmem:[#allocation7 + $0x30] sm:$0xff]
    %v4684 = vld [vmem:[#allocation7 + $0x38] sm:$0xff]
    %v4685 = vld [vmem:[#allocation7 + $0x40] sm:$0xff]
    %v4686 = vld [vmem:[#allocation7 + $0x48] sm:$0xff]
    %v4687 = vld [vmem:[#allocation7 + $0x50] sm:$0xff]
    %v4688 = vld [vmem:[#allocation7 + $0x58] sm:$0xff]
    %v4689 = vld [vmem:[#allocation7 + $0x60] sm:$0xff]
    %v4690 = vld [vmem:[#allocation7 + $0x68] sm:$0xff]
    %v4691 = vld [vmem:[#allocation7 + $0x70] sm:$0xff]
    %v4692 = vld [vmem:[#allocation7 + $0x78] sm:$0xff]
    %v4693 = vld [vmem:[#allocation7 + $0x80] sm:$0xff]
    %v4694 = vld [vmem:[#allocation7 + $0x88] sm:$0xff]
    %v4695 = vld [vmem:[#allocation7 + $0x90] sm:$0xff]
    %v4696 = vld [vmem:[#allocation7 + $0x98] sm:$0xff]
    %v4697 = vld [vmem:[#allocation7 + $0xa0] sm:$0xff]
    %v4698 = vld [vmem:[#allocation7 + $0xa8] sm:$0xff]
    %v4699 = vld [vmem:[#allocation7 + $0xb0] sm:$0xff]
    %v4700 = vld [vmem:[#allocation7 + $0xb8] sm:$0xff]
    %v4701 = vld [vmem:[#allocation7 + $0xc0] sm:$0xff]
    %v4702 = vld [vmem:[#allocation7 + $0xc8] sm:$0xff]
    %v4703 = vld [vmem:[#allocation7 + $0xd0] sm:$0xff]
    %v4704 = vld [vmem:[#allocation7 + $0xd8] sm:$0xff]
    %v4705 = vld [vmem:[#allocation7 + $0xe0] sm:$0xff]
    %v4706 = vld [vmem:[#allocation7 + $0xe8] sm:$0xff]
    %v4707 = vld [vmem:[#allocation7 + $0xf0] sm:$0xff]
    %v4708 = vld [vmem:[#allocation7 + $0xf8] sm:$0xff]
    %v4709 = vld [vmem:[#allocation7 + $0x100] sm:$0xff]
    %v4710 = vld [vmem:[#allocation7 + $0x108] sm:$0xff]
    %v4711 = vld [vmem:[#allocation7 + $0x110] sm:$0xff]
    %v4712 = vld [vmem:[#allocation7 + $0x118] sm:$0xff]
    %v4713 = vld [vmem:[#allocation7 + $0x120] sm:$0xff]
    %v4714 = vld [vmem:[#allocation7 + $0x128] sm:$0xff]
    %v4715 = vld [vmem:[#allocation7 + $0x130] sm:$0xff]
    %v4716 = vld [vmem:[#allocation7 + $0x138] sm:$0xff]
    %v4717 = vld [vmem:[#allocation7 + $0x140] sm:$0xff]
    %v4718 = vld [vmem:[#allocation7 + $0x148] sm:$0xff]
    %v4719 = vld [vmem:[#allocation7 + $0x150] sm:$0xff]
    %v4720 = vld [vmem:[#allocation7 + $0x158] sm:$0xff]
    %v4721 = vld [vmem:[#allocation7 + $0x160] sm:$0xff]
    %v4722 = vld [vmem:[#allocation7 + $0x168] sm:$0xff]
    %v4723 = vld [vmem:[#allocation7 + $0x170] sm:$0xff]
    %v4724 = vld [vmem:[#allocation7 + $0x178] sm:$0xff]
    %v4725 = vld [vmem:[#allocation7 + $0x180] sm:$0xff]
    %v4726 = vld [vmem:[#allocation7 + $0x188] sm:$0xff]
    %v4727 = vld [vmem:[#allocation7 + $0x190] sm:$0xff]
    %v4728 = vld [vmem:[#allocation7 + $0x198] sm:$0xff]
    %v4729 = vld [vmem:[#allocation7 + $0x1a0] sm:$0xff]
    %v4730 = vld [vmem:[#allocation7 + $0x1a8] sm:$0xff]
    %v4731 = vld [vmem:[#allocation7 + $0x1b0] sm:$0xff]
    %v4732 = vld [vmem:[#allocation7 + $0x1b8] sm:$0xff]
    %v4733 = vld [vmem:[#allocation7 + $0x1c0] sm:$0xff]
    %v4734 = vld [vmem:[#allocation7 + $0x1c8] sm:$0xff]
    %v4735 = vld [vmem:[#allocation7 + $0x1d0] sm:$0xff]
    %v4736 = vld [vmem:[#allocation7 + $0x1d8] sm:$0xff]
    %v4737 = vld [vmem:[#allocation7 + $0x1e0] sm:$0xff]
    %v4738 = vld [vmem:[#allocation7 + $0x1e8] sm:$0xff]
    %v4739 = vld [vmem:[#allocation7 + $0x1f0] sm:$0xff]
    %v4740 = vld [vmem:[#allocation7 + $0x1f8] sm:$0xff]
    %v4741 = vld [vmem:[#allocation7 + $0x200] sm:$0xff]
    %v4742 = vld [vmem:[#allocation7 + $0x208] sm:$0xff]
    %v4743 = vld [vmem:[#allocation7 + $0x210] sm:$0xff]
    %v4744 = vld [vmem:[#allocation7 + $0x218] sm:$0xff]
    %v4745 = vld [vmem:[#allocation7 + $0x220] sm:$0xff]
    %v4746 = vld [vmem:[#allocation7 + $0x228] sm:$0xff]
    %v4747 = vld [vmem:[#allocation7 + $0x230] sm:$0xff]
    %v4748 = vld [vmem:[#allocation7 + $0x238] sm:$0xff]
    %v4749 = vld [vmem:[#allocation7 + $0x240] sm:$0xff]
    %v4750 = vld [vmem:[#allocation7 + $0x248] sm:$0xff]
    %v4751 = vld [vmem:[#allocation7 + $0x250] sm:$0xff]
    %v4752 = vld [vmem:[#allocation7 + $0x258] sm:$0xff]
    %v4753 = vld [vmem:[#allocation7 + $0x260] sm:$0xff]
    %v4754 = vld [vmem:[#allocation7 + $0x268] sm:$0xff]
    %v4755 = vld [vmem:[#allocation7 + $0x270] sm:$0xff]
    %v4756 = vld [vmem:[#allocation7 + $0x278] sm:$0xff]
    %v4757 = vld [vmem:[#allocation7 + $0x280] sm:$0xff]
    %v4758 = vld [vmem:[#allocation7 + $0x288] sm:$0xff]
    %v4759 = vld [vmem:[#allocation7 + $0x290] sm:$0xff]
    %v4760 = vld [vmem:[#allocation7 + $0x298] sm:$0xff]
    %v4761 = vld [vmem:[#allocation7 + $0x2a0] sm:$0xff]
    %v4762 = vld [vmem:[#allocation7 + $0x2a8] sm:$0xff]
    %v4763 = vld [vmem:[#allocation7 + $0x2b0] sm:$0xff]
    %v4764 = vld [vmem:[#allocation7 + $0x2b8] sm:$0xff]
    %v4765 = vld [vmem:[#allocation7 + $0x2c0] sm:$0xff]
    %v4766 = vld [vmem:[#allocation7 + $0x2c8] sm:$0xff]
    %v4767 = vld [vmem:[#allocation7 + $0x2d0] sm:$0xff]
    %v4768 = vld [vmem:[#allocation7 + $0x2d8] sm:$0xff]
    %v4769 = vld [vmem:[#allocation7 + $0x2e0] sm:$0xff]
    %v4770 = vld [vmem:[#allocation7 + $0x2e8] sm:$0xff]
    %v4771 = vld [vmem:[#allocation7 + $0x2f0] sm:$0xff]
    %v4772 = vld [vmem:[#allocation7 + $0x2f8] sm:$0xff]
    %v4773 = vld [vmem:[#allocation7 + $0x300] sm:$0xff]
    %v4774 = vld [vmem:[#allocation7 + $0x308] sm:$0xff]
    %v4775 = vld [vmem:[#allocation7 + $0x310] sm:$0xff]
    %v4776 = vld [vmem:[#allocation7 + $0x318] sm:$0xff]
    %v4777 = vld [vmem:[#allocation7 + $0x320] sm:$0xff]
    %v4778 = vld [vmem:[#allocation7 + $0x328] sm:$0xff]
    %v4779 = vld [vmem:[#allocation7 + $0x330] sm:$0xff]
    %v4780 = vld [vmem:[#allocation7 + $0x338] sm:$0xff]
    %v4781 = vld [vmem:[#allocation7 + $0x340] sm:$0xff]
    %v4782 = vld [vmem:[#allocation7 + $0x348] sm:$0xff]
    %v4783 = vld [vmem:[#allocation7 + $0x350] sm:$0xff]
    %v4784 = vld [vmem:[#allocation7 + $0x358] sm:$0xff]
    %v4785 = vld [vmem:[#allocation7 + $0x360] sm:$0xff]
    %v4786 = vld [vmem:[#allocation7 + $0x368] sm:$0xff]
    %v4787 = vld [vmem:[#allocation7 + $0x370] sm:$0xff]
    %v4788 = vld [vmem:[#allocation7 + $0x378] sm:$0xff]
    %v4789 = vld [vmem:[#allocation7 + $0x380] sm:$0xff]
    %v4790 = vld [vmem:[#allocation7 + $0x388] sm:$0xff]
    %v4791 = vld [vmem:[#allocation7 + $0x390] sm:$0xff]
    %v4792 = vld [vmem:[#allocation7 + $0x398] sm:$0xff]
    %v4793 = vld [vmem:[#allocation7 + $0x3a0] sm:$0xff]
    %v4794 = vld [vmem:[#allocation7 + $0x3a8] sm:$0xff]
    %v4795 = vld [vmem:[#allocation7 + $0x3b0] sm:$0xff]
    %v4796 = vld [vmem:[#allocation7 + $0x3b8] sm:$0xff]
    %v4797 = vld [vmem:[#allocation7 + $0x3c0] sm:$0xff]
    %v4798 = vld [vmem:[#allocation7 + $0x3c8] sm:$0xff]
    %v4799 = vld [vmem:[#allocation7 + $0x3d0] sm:$0xff]
    %v4800 = vld [vmem:[#allocation7 + $0x3d8] sm:$0xff]
    %v4801 = vld [vmem:[#allocation7 + $0x3e0] sm:$0xff]
    %v4802 = vld [vmem:[#allocation7 + $0x3e8] sm:$0xff]
    %v4803 = vld [vmem:[#allocation7 + $0x3f0] sm:$0xff]
    %v4804 = vld [vmem:[#allocation7 + $0x3f8] sm:$0xff]
    %v4805 = vld [vmem:[#allocation7 + $0x400] sm:$0xff]
    %v4806 = vld [vmem:[#allocation7 + $0x408] sm:$0xff]
    %v4807 = vld [vmem:[#allocation7 + $0x410] sm:$0xff]
    %v4808 = vld [vmem:[#allocation7 + $0x418] sm:$0xff]
    %v4809 = vld [vmem:[#allocation7 + $0x420] sm:$0xff]
    %v4810 = vld [vmem:[#allocation7 + $0x428] sm:$0xff]
    %v4811 = vld [vmem:[#allocation7 + $0x430] sm:$0xff]
    %v4812 = vld [vmem:[#allocation7 + $0x438] sm:$0xff]
    %v4813 = vld [vmem:[#allocation7 + $0x440] sm:$0xff]
    %v4814 = vld [vmem:[#allocation7 + $0x448] sm:$0xff]
    %v4815 = vld [vmem:[#allocation7 + $0x450] sm:$0xff]
    %v4816 = vld [vmem:[#allocation7 + $0x458] sm:$0xff]
    %v4817 = vld [vmem:[#allocation7 + $0x460] sm:$0xff]
    %v4818 = vld [vmem:[#allocation7 + $0x468] sm:$0xff]
    %v4819 = vld [vmem:[#allocation7 + $0x470] sm:$0xff]
    %v4820 = vld [vmem:[#allocation7 + $0x478] sm:$0xff]
    %v4821 = vld [vmem:[#allocation7 + $0x480] sm:$0xff]
    %v4822 = vld [vmem:[#allocation7 + $0x488] sm:$0xff]
    %v4823 = vld [vmem:[#allocation7 + $0x490] sm:$0xff]
    %v4824 = vld [vmem:[#allocation7 + $0x498] sm:$0xff]
    %v4825 = vld [vmem:[#allocation7 + $0x4a0] sm:$0xff]
    %v4826 = vld [vmem:[#allocation7 + $0x4a8] sm:$0xff]
    %v4827 = vld [vmem:[#allocation7 + $0x4b0] sm:$0xff]
    %v4828 = vld [vmem:[#allocation7 + $0x4b8] sm:$0xff]
    %v4829 = vld [vmem:[#allocation7 + $0x4c0] sm:$0xff]
    %v4830 = vld [vmem:[#allocation7 + $0x4c8] sm:$0xff]
    %v4831 = vld [vmem:[#allocation7 + $0x4d0] sm:$0xff]
    %v4832 = vld [vmem:[#allocation7 + $0x4d8] sm:$0xff]
    %v4833 = vld [vmem:[#allocation7 + $0x4e0] sm:$0xff]
    %v4834 = vld [vmem:[#allocation7 + $0x4e8] sm:$0xff]
    %v4835 = vld [vmem:[#allocation7 + $0x4f0] sm:$0xff]
    %v4836 = vld [vmem:[#allocation7 + $0x4f8] sm:$0xff]
    %v4837 = vld [vmem:[#allocation7 + $0x500] sm:$0xff]
    %v4838 = vld [vmem:[#allocation7 + $0x508] sm:$0xff]
    %v4839 = vld [vmem:[#allocation7 + $0x510] sm:$0xff]
    %v4840 = vld [vmem:[#allocation7 + $0x518] sm:$0xff]
    %v4841 = vld [vmem:[#allocation7 + $0x520] sm:$0xff]
    %v4842 = vld [vmem:[#allocation7 + $0x528] sm:$0xff]
    %v4843 = vld [vmem:[#allocation7 + $0x530] sm:$0xff]
    %v4844 = vld [vmem:[#allocation7 + $0x538] sm:$0xff]
    %v4845 = vld [vmem:[#allocation7 + $0x540] sm:$0xff]
    %v4846 = vld [vmem:[#allocation7 + $0x548] sm:$0xff]
    %v4847 = vld [vmem:[#allocation7 + $0x550] sm:$0xff]
    %v4848 = vld [vmem:[#allocation7 + $0x558] sm:$0xff]
    %v4849 = vld [vmem:[#allocation7 + $0x560] sm:$0xff]
    %v4850 = vld [vmem:[#allocation7 + $0x568] sm:$0xff]
    %v4851 = vld [vmem:[#allocation7 + $0x570] sm:$0xff]
    %v4852 = vld [vmem:[#allocation7 + $0x578] sm:$0xff]
    %v4853 = vld [vmem:[#allocation7 + $0x580] sm:$0xff]
    %v4854 = vld [vmem:[#allocation7 + $0x588] sm:$0xff]
    %v4855 = vld [vmem:[#allocation7 + $0x590] sm:$0xff]
    %v4856 = vld [vmem:[#allocation7 + $0x598] sm:$0xff]
    %v4857 = vld [vmem:[#allocation7 + $0x5a0] sm:$0xff]
    %v4858 = vld [vmem:[#allocation7 + $0x5a8] sm:$0xff]
    %v4859 = vld [vmem:[#allocation7 + $0x5b0] sm:$0xff]
    %v4860 = vld [vmem:[#allocation7 + $0x5b8] sm:$0xff]
    %v4861 = vld [vmem:[#allocation7 + $0x5c0] sm:$0xff]
    %v4862 = vld [vmem:[#allocation7 + $0x5c8] sm:$0xff]
    %v4863 = vld [vmem:[#allocation7 + $0x5d0] sm:$0xff]
    %v4864 = vld [vmem:[#allocation7 + $0x5d8] sm:$0xff]
    %v4865 = vld [vmem:[#allocation7 + $0x5e0] sm:$0xff]
    %v4866 = vld [vmem:[#allocation7 + $0x5e8] sm:$0xff]
    %v4867 = vld [vmem:[#allocation7 + $0x5f0] sm:$0xff]
    %v4868 = vld [vmem:[#allocation7 + $0x5f8] sm:$0xff]
    %v4869 = vld [vmem:[#allocation7 + $0x600] sm:$0xff]
    %v4870 = vld [vmem:[#allocation7 + $0x608] sm:$0xff]
    %v4871 = vld [vmem:[#allocation7 + $0x610] sm:$0xff]
    %v4872 = vld [vmem:[#allocation7 + $0x618] sm:$0xff]
    %v4873 = vld [vmem:[#allocation7 + $0x620] sm:$0xff]
    %v4874 = vld [vmem:[#allocation7 + $0x628] sm:$0xff]
    %v4875 = vld [vmem:[#allocation7 + $0x630] sm:$0xff]
    %v4876 = vld [vmem:[#allocation7 + $0x638] sm:$0xff]
    %v4877 = vld [vmem:[#allocation7 + $0x640] sm:$0xff]
    %v4878 = vld [vmem:[#allocation7 + $0x648] sm:$0xff]
    %v4879 = vld [vmem:[#allocation7 + $0x650] sm:$0xff]
    %v4880 = vld [vmem:[#allocation7 + $0x658] sm:$0xff]
    %v4881 = vld [vmem:[#allocation7 + $0x660] sm:$0xff]
    %v4882 = vld [vmem:[#allocation7 + $0x668] sm:$0xff]
    %v4883 = vld [vmem:[#allocation7 + $0x670] sm:$0xff]
    %v4884 = vld [vmem:[#allocation7 + $0x678] sm:$0xff]
    %v4885 = vld [vmem:[#allocation7 + $0x680] sm:$0xff]
    %v4886 = vld [vmem:[#allocation7 + $0x688] sm:$0xff]
    %v4887 = vld [vmem:[#allocation7 + $0x690] sm:$0xff]
    %v4888 = vld [vmem:[#allocation7 + $0x698] sm:$0xff]
    %v4889 = vld [vmem:[#allocation7 + $0x6a0] sm:$0xff]
    %v4890 = vld [vmem:[#allocation7 + $0x6a8] sm:$0xff]
    %v4891 = vld [vmem:[#allocation7 + $0x6b0] sm:$0xff]
    %v4892 = vld [vmem:[#allocation7 + $0x6b8] sm:$0xff]
    %v4893 = vld [vmem:[#allocation7 + $0x6c0] sm:$0xff]
    %v4894 = vld [vmem:[#allocation7 + $0x6c8] sm:$0xff]
    %v4895 = vld [vmem:[#allocation7 + $0x6d0] sm:$0xff]
    %v4896 = vld [vmem:[#allocation7 + $0x6d8] sm:$0xff]
    %v4897 = vld [vmem:[#allocation7 + $0x6e0] sm:$0xff]
    %v4898 = vld [vmem:[#allocation7 + $0x6e8] sm:$0xff]
    %v4899 = vld [vmem:[#allocation7 + $0x6f0] sm:$0xff]
    %v4900 = vld [vmem:[#allocation7 + $0x6f8] sm:$0xff]
    %v4901 = vld [vmem:[#allocation7 + $0x700] sm:$0xff]
    %v4902 = vld [vmem:[#allocation7 + $0x708] sm:$0xff]
    %v4903 = vld [vmem:[#allocation7 + $0x710] sm:$0xff]
    %v4904 = vld [vmem:[#allocation7 + $0x718] sm:$0xff]
    %v4905 = vld [vmem:[#allocation7 + $0x720] sm:$0xff]
    %v4906 = vld [vmem:[#allocation7 + $0x728] sm:$0xff]
    %v4907 = vld [vmem:[#allocation7 + $0x730] sm:$0xff]
    %v4908 = vld [vmem:[#allocation7 + $0x738] sm:$0xff]
    %v4909 = vld [vmem:[#allocation7 + $0x740] sm:$0xff]
    %v4910 = vld [vmem:[#allocation7 + $0x748] sm:$0xff]
    %v4911 = vld [vmem:[#allocation7 + $0x750] sm:$0xff]
    %v4912 = vld [vmem:[#allocation7 + $0x758] sm:$0xff]
    %v4913 = vld [vmem:[#allocation7 + $0x760] sm:$0xff]
    %v4914 = vld [vmem:[#allocation7 + $0x768] sm:$0xff]
    %v4915 = vld [vmem:[#allocation7 + $0x770] sm:$0xff]
    %v4916 = vld [vmem:[#allocation7 + $0x778] sm:$0xff]
    %v4917 = vld [vmem:[#allocation7 + $0x780] sm:$0xff]
    %v4918 = vld [vmem:[#allocation7 + $0x788] sm:$0xff]
    %v4919 = vld [vmem:[#allocation7 + $0x790] sm:$0xff]
    %v4920 = vld [vmem:[#allocation7 + $0x798] sm:$0xff]
    %v4921 = vld [vmem:[#allocation7 + $0x7a0] sm:$0xff]
    %v4922 = vld [vmem:[#allocation7 + $0x7a8] sm:$0xff]
    %v4923 = vld [vmem:[#allocation7 + $0x7b0] sm:$0xff]
    %v4924 = vld [vmem:[#allocation7 + $0x7b8] sm:$0xff]
    %v4925 = vld [vmem:[#allocation7 + $0x7c0] sm:$0xff]
    %v4926 = vld [vmem:[#allocation7 + $0x7c8] sm:$0xff]
    %v4927 = vld [vmem:[#allocation7 + $0x7d0] sm:$0xff]
    %v4928 = vld [vmem:[#allocation7 + $0x7d8] sm:$0xff]
    %v4929 = vld [vmem:[#allocation7 + $0x7e0] sm:$0xff]
    %v4930 = vld [vmem:[#allocation7 + $0x7e8] sm:$0xff]
    %v4931 = vld [vmem:[#allocation7 + $0x7f0] sm:$0xff]
    %v4932 = vld [vmem:[#allocation7 + $0x7f8] sm:$0xff]
    %s4933 = scalar_lea.vmem [#allocation7], 2048
    %v4934 = vld [vmem:[%s4933] sm:$0xff]
    %v4935 = vld [vmem:[%s4933 + $0x8] sm:$0xff]
    %v4936 = vld [vmem:[%s4933 + $0x10] sm:$0xff]
    %v4937 = vld [vmem:[%s4933 + $0x18] sm:$0xff]
    %v4938 = vld [vmem:[%s4933 + $0x20] sm:$0xff]
    %v4939 = vld [vmem:[%s4933 + $0x28] sm:$0xff]
    %v4940 = vld [vmem:[%s4933 + $0x30] sm:$0xff]
    %v4941 = vld [vmem:[%s4933 + $0x38] sm:$0xff]
    %v4942 = vld [vmem:[%s4933 + $0x40] sm:$0xff]
    %v4943 = vld [vmem:[%s4933 + $0x48] sm:$0xff]
    %v4944 = vld [vmem:[%s4933 + $0x50] sm:$0xff]
    %v4945 = vld [vmem:[%s4933 + $0x58] sm:$0xff]
    %v4946 = vld [vmem:[%s4933 + $0x60] sm:$0xff]
    %v4947 = vld [vmem:[%s4933 + $0x68] sm:$0xff]
    %v4948 = vld [vmem:[%s4933 + $0x70] sm:$0xff]
    %v4949 = vld [vmem:[%s4933 + $0x78] sm:$0xff]
    %v4950 = vld [vmem:[%s4933 + $0x80] sm:$0xff]
    %v4951 = vld [vmem:[%s4933 + $0x88] sm:$0xff]
    %v4952 = vld [vmem:[%s4933 + $0x90] sm:$0xff]
    %v4953 = vld [vmem:[%s4933 + $0x98] sm:$0xff]
    %v4954 = vld [vmem:[%s4933 + $0xa0] sm:$0xff]
    %v4955 = vld [vmem:[%s4933 + $0xa8] sm:$0xff]
    %v4956 = vld [vmem:[%s4933 + $0xb0] sm:$0xff]
    %v4957 = vld [vmem:[%s4933 + $0xb8] sm:$0xff]
    %v4958 = vld [vmem:[%s4933 + $0xc0] sm:$0xff]
    %v4959 = vld [vmem:[%s4933 + $0xc8] sm:$0xff]
    %v4960 = vld [vmem:[%s4933 + $0xd0] sm:$0xff]
    %v4961 = vld [vmem:[%s4933 + $0xd8] sm:$0xff]
    %v4962 = vld [vmem:[%s4933 + $0xe0] sm:$0xff]
    %v4963 = vld [vmem:[%s4933 + $0xe8] sm:$0xff]
    %v4964 = vld [vmem:[%s4933 + $0xf0] sm:$0xff]
    %v4965 = vld [vmem:[%s4933 + $0xf8] sm:$0xff]
    %v4966 = vld [vmem:[%s4933 + $0x100] sm:$0xff]
    %v4967 = vld [vmem:[%s4933 + $0x108] sm:$0xff]
    %v4968 = vld [vmem:[%s4933 + $0x110] sm:$0xff]
    %v4969 = vld [vmem:[%s4933 + $0x118] sm:$0xff]
    %v4970 = vld [vmem:[%s4933 + $0x120] sm:$0xff]
    %v4971 = vld [vmem:[%s4933 + $0x128] sm:$0xff]
    %v4972 = vld [vmem:[%s4933 + $0x130] sm:$0xff]
    %v4973 = vld [vmem:[%s4933 + $0x138] sm:$0xff]
    %v4974 = vld [vmem:[%s4933 + $0x140] sm:$0xff]
    %v4975 = vld [vmem:[%s4933 + $0x148] sm:$0xff]
    %v4976 = vld [vmem:[%s4933 + $0x150] sm:$0xff]
    %v4977 = vld [vmem:[%s4933 + $0x158] sm:$0xff]
    %v4978 = vld [vmem:[%s4933 + $0x160] sm:$0xff]
    %v4979 = vld [vmem:[%s4933 + $0x168] sm:$0xff]
    %v4980 = vld [vmem:[%s4933 + $0x170] sm:$0xff]
    %v4981 = vld [vmem:[%s4933 + $0x178] sm:$0xff]
    %v4982 = vld [vmem:[%s4933 + $0x180] sm:$0xff]
    %v4983 = vld [vmem:[%s4933 + $0x188] sm:$0xff]
    %v4984 = vld [vmem:[%s4933 + $0x190] sm:$0xff]
    %v4985 = vld [vmem:[%s4933 + $0x198] sm:$0xff]
    %v4986 = vld [vmem:[%s4933 + $0x1a0] sm:$0xff]
    %v4987 = vld [vmem:[%s4933 + $0x1a8] sm:$0xff]
    %v4988 = vld [vmem:[%s4933 + $0x1b0] sm:$0xff]
    %v4989 = vld [vmem:[%s4933 + $0x1b8] sm:$0xff]
    %v4990 = vld [vmem:[%s4933 + $0x1c0] sm:$0xff]
    %v4991 = vld [vmem:[%s4933 + $0x1c8] sm:$0xff]
    %v4992 = vld [vmem:[%s4933 + $0x1d0] sm:$0xff]
    %v4993 = vld [vmem:[%s4933 + $0x1d8] sm:$0xff]
    %v4994 = vld [vmem:[%s4933 + $0x1e0] sm:$0xff]
    %v4995 = vld [vmem:[%s4933 + $0x1e8] sm:$0xff]
    %v4996 = vld [vmem:[%s4933 + $0x1f0] sm:$0xff]
    %v4997 = vld [vmem:[%s4933 + $0x1f8] sm:$0xff]
    %v4998 = vld [vmem:[%s4933 + $0x200] sm:$0xff]
    %v4999 = vld [vmem:[%s4933 + $0x208] sm:$0xff]
    %v5000 = vld [vmem:[%s4933 + $0x210] sm:$0xff]
    %v5001 = vld [vmem:[%s4933 + $0x218] sm:$0xff]
    %v5002 = vld [vmem:[%s4933 + $0x220] sm:$0xff]
    %v5003 = vld [vmem:[%s4933 + $0x228] sm:$0xff]
    %v5004 = vld [vmem:[%s4933 + $0x230] sm:$0xff]
    %v5005 = vld [vmem:[%s4933 + $0x238] sm:$0xff]
    %v5006 = vld [vmem:[%s4933 + $0x240] sm:$0xff]
    %v5007 = vld [vmem:[%s4933 + $0x248] sm:$0xff]
    %v5008 = vld [vmem:[%s4933 + $0x250] sm:$0xff]
    %v5009 = vld [vmem:[%s4933 + $0x258] sm:$0xff]
    %v5010 = vld [vmem:[%s4933 + $0x260] sm:$0xff]
    %v5011 = vld [vmem:[%s4933 + $0x268] sm:$0xff]
    %v5012 = vld [vmem:[%s4933 + $0x270] sm:$0xff]
    %v5013 = vld [vmem:[%s4933 + $0x278] sm:$0xff]
    %v5014 = vld [vmem:[%s4933 + $0x280] sm:$0xff]
    %v5015 = vld [vmem:[%s4933 + $0x288] sm:$0xff]
    %v5016 = vld [vmem:[%s4933 + $0x290] sm:$0xff]
    %v5017 = vld [vmem:[%s4933 + $0x298] sm:$0xff]
    %v5018 = vld [vmem:[%s4933 + $0x2a0] sm:$0xff]
    %v5019 = vld [vmem:[%s4933 + $0x2a8] sm:$0xff]
    %v5020 = vld [vmem:[%s4933 + $0x2b0] sm:$0xff]
    %v5021 = vld [vmem:[%s4933 + $0x2b8] sm:$0xff]
    %v5022 = vld [vmem:[%s4933 + $0x2c0] sm:$0xff]
    %v5023 = vld [vmem:[%s4933 + $0x2c8] sm:$0xff]
    %v5024 = vld [vmem:[%s4933 + $0x2d0] sm:$0xff]
    %v5025 = vld [vmem:[%s4933 + $0x2d8] sm:$0xff]
    %v5026 = vld [vmem:[%s4933 + $0x2e0] sm:$0xff]
    %v5027 = vld [vmem:[%s4933 + $0x2e8] sm:$0xff]
    %v5028 = vld [vmem:[%s4933 + $0x2f0] sm:$0xff]
    %v5029 = vld [vmem:[%s4933 + $0x2f8] sm:$0xff]
    %v5030 = vld [vmem:[%s4933 + $0x300] sm:$0xff]
    %v5031 = vld [vmem:[%s4933 + $0x308] sm:$0xff]
    %v5032 = vld [vmem:[%s4933 + $0x310] sm:$0xff]
    %v5033 = vld [vmem:[%s4933 + $0x318] sm:$0xff]
    %v5034 = vld [vmem:[%s4933 + $0x320] sm:$0xff]
    %v5035 = vld [vmem:[%s4933 + $0x328] sm:$0xff]
    %v5036 = vld [vmem:[%s4933 + $0x330] sm:$0xff]
    %v5037 = vld [vmem:[%s4933 + $0x338] sm:$0xff]
    %v5038 = vld [vmem:[%s4933 + $0x340] sm:$0xff]
    %v5039 = vld [vmem:[%s4933 + $0x348] sm:$0xff]
    %v5040 = vld [vmem:[%s4933 + $0x350] sm:$0xff]
    %v5041 = vld [vmem:[%s4933 + $0x358] sm:$0xff]
    %v5042 = vld [vmem:[%s4933 + $0x360] sm:$0xff]
    %v5043 = vld [vmem:[%s4933 + $0x368] sm:$0xff]
    %v5044 = vld [vmem:[%s4933 + $0x370] sm:$0xff]
    %v5045 = vld [vmem:[%s4933 + $0x378] sm:$0xff]
    %v5046 = vld [vmem:[%s4933 + $0x380] sm:$0xff]
    %v5047 = vld [vmem:[%s4933 + $0x388] sm:$0xff]
    %v5048 = vld [vmem:[%s4933 + $0x390] sm:$0xff]
    %v5049 = vld [vmem:[%s4933 + $0x398] sm:$0xff]
    %v5050 = vld [vmem:[%s4933 + $0x3a0] sm:$0xff]
    %v5051 = vld [vmem:[%s4933 + $0x3a8] sm:$0xff]
    %v5052 = vld [vmem:[%s4933 + $0x3b0] sm:$0xff]
    %v5053 = vld [vmem:[%s4933 + $0x3b8] sm:$0xff]
    %v5054 = vld [vmem:[%s4933 + $0x3c0] sm:$0xff]
    %v5055 = vld [vmem:[%s4933 + $0x3c8] sm:$0xff]
    %v5056 = vld [vmem:[%s4933 + $0x3d0] sm:$0xff]
    %v5057 = vld [vmem:[%s4933 + $0x3d8] sm:$0xff]
    %v5058 = vld [vmem:[%s4933 + $0x3e0] sm:$0xff]
    %v5059 = vld [vmem:[%s4933 + $0x3e8] sm:$0xff]
    %v5060 = vld [vmem:[%s4933 + $0x3f0] sm:$0xff]
    %v5061 = vld [vmem:[%s4933 + $0x3f8] sm:$0xff]
    %v5062 = vld [vmem:[%s4933 + $0x400] sm:$0xff]
    %v5063 = vld [vmem:[%s4933 + $0x408] sm:$0xff]
    %v5064 = vld [vmem:[%s4933 + $0x410] sm:$0xff]
    %v5065 = vld [vmem:[%s4933 + $0x418] sm:$0xff]
    %v5066 = vld [vmem:[%s4933 + $0x420] sm:$0xff]
    %v5067 = vld [vmem:[%s4933 + $0x428] sm:$0xff]
    %v5068 = vld [vmem:[%s4933 + $0x430] sm:$0xff]
    %v5069 = vld [vmem:[%s4933 + $0x438] sm:$0xff]
    %v5070 = vld [vmem:[%s4933 + $0x440] sm:$0xff]
    %v5071 = vld [vmem:[%s4933 + $0x448] sm:$0xff]
    %v5072 = vld [vmem:[%s4933 + $0x450] sm:$0xff]
    %v5073 = vld [vmem:[%s4933 + $0x458] sm:$0xff]
    %v5074 = vld [vmem:[%s4933 + $0x460] sm:$0xff]
    %v5075 = vld [vmem:[%s4933 + $0x468] sm:$0xff]
    %v5076 = vld [vmem:[%s4933 + $0x470] sm:$0xff]
    %v5077 = vld [vmem:[%s4933 + $0x478] sm:$0xff]
    %v5078 = vld [vmem:[%s4933 + $0x480] sm:$0xff]
    %v5079 = vld [vmem:[%s4933 + $0x488] sm:$0xff]
    %v5080 = vld [vmem:[%s4933 + $0x490] sm:$0xff]
    %v5081 = vld [vmem:[%s4933 + $0x498] sm:$0xff]
    %v5082 = vld [vmem:[%s4933 + $0x4a0] sm:$0xff]
    %v5083 = vld [vmem:[%s4933 + $0x4a8] sm:$0xff]
    %v5084 = vld [vmem:[%s4933 + $0x4b0] sm:$0xff]
    %v5085 = vld [vmem:[%s4933 + $0x4b8] sm:$0xff]
    %v5086 = vld [vmem:[%s4933 + $0x4c0] sm:$0xff]
    %v5087 = vld [vmem:[%s4933 + $0x4c8] sm:$0xff]
    %v5088 = vld [vmem:[%s4933 + $0x4d0] sm:$0xff]
    %v5089 = vld [vmem:[%s4933 + $0x4d8] sm:$0xff]
    %v5090 = vld [vmem:[%s4933 + $0x4e0] sm:$0xff]
    %v5091 = vld [vmem:[%s4933 + $0x4e8] sm:$0xff]
    %v5092 = vld [vmem:[%s4933 + $0x4f0] sm:$0xff]
    %v5093 = vld [vmem:[%s4933 + $0x4f8] sm:$0xff]
    %v5094 = vld [vmem:[%s4933 + $0x500] sm:$0xff]
    %v5095 = vld [vmem:[%s4933 + $0x508] sm:$0xff]
    %v5096 = vld [vmem:[%s4933 + $0x510] sm:$0xff]
    %v5097 = vld [vmem:[%s4933 + $0x518] sm:$0xff]
    %v5098 = vld [vmem:[%s4933 + $0x520] sm:$0xff]
    %v5099 = vld [vmem:[%s4933 + $0x528] sm:$0xff]
    %v5100 = vld [vmem:[%s4933 + $0x530] sm:$0xff]
    %v5101 = vld [vmem:[%s4933 + $0x538] sm:$0xff]
    %v5102 = vld [vmem:[%s4933 + $0x540] sm:$0xff]
    %v5103 = vld [vmem:[%s4933 + $0x548] sm:$0xff]
    %v5104 = vld [vmem:[%s4933 + $0x550] sm:$0xff]
    %v5105 = vld [vmem:[%s4933 + $0x558] sm:$0xff]
    %v5106 = vld [vmem:[%s4933 + $0x560] sm:$0xff]
    %v5107 = vld [vmem:[%s4933 + $0x568] sm:$0xff]
    %v5108 = vld [vmem:[%s4933 + $0x570] sm:$0xff]
    %v5109 = vld [vmem:[%s4933 + $0x578] sm:$0xff]
    %v5110 = vld [vmem:[%s4933 + $0x580] sm:$0xff]
    %v5111 = vld [vmem:[%s4933 + $0x588] sm:$0xff]
    %v5112 = vld [vmem:[%s4933 + $0x590] sm:$0xff]
    %v5113 = vld [vmem:[%s4933 + $0x598] sm:$0xff]
    %v5114 = vld [vmem:[%s4933 + $0x5a0] sm:$0xff]
    %v5115 = vld [vmem:[%s4933 + $0x5a8] sm:$0xff]
    %v5116 = vld [vmem:[%s4933 + $0x5b0] sm:$0xff]
    %v5117 = vld [vmem:[%s4933 + $0x5b8] sm:$0xff]
    %v5118 = vld [vmem:[%s4933 + $0x5c0] sm:$0xff]
    %v5119 = vld [vmem:[%s4933 + $0x5c8] sm:$0xff]
    %v5120 = vld [vmem:[%s4933 + $0x5d0] sm:$0xff]
    %v5121 = vld [vmem:[%s4933 + $0x5d8] sm:$0xff]
    %v5122 = vld [vmem:[%s4933 + $0x5e0] sm:$0xff]
    %v5123 = vld [vmem:[%s4933 + $0x5e8] sm:$0xff]
    %v5124 = vld [vmem:[%s4933 + $0x5f0] sm:$0xff]
    %v5125 = vld [vmem:[%s4933 + $0x5f8] sm:$0xff]
    %v5126 = vld [vmem:[%s4933 + $0x600] sm:$0xff]
    %v5127 = vld [vmem:[%s4933 + $0x608] sm:$0xff]
    %v5128 = vld [vmem:[%s4933 + $0x610] sm:$0xff]
    %v5129 = vld [vmem:[%s4933 + $0x618] sm:$0xff]
    %v5130 = vld [vmem:[%s4933 + $0x620] sm:$0xff]
    %v5131 = vld [vmem:[%s4933 + $0x628] sm:$0xff]
    %v5132 = vld [vmem:[%s4933 + $0x630] sm:$0xff]
    %v5133 = vld [vmem:[%s4933 + $0x638] sm:$0xff]
    %v5134 = vld [vmem:[%s4933 + $0x640] sm:$0xff]
    %v5135 = vld [vmem:[%s4933 + $0x648] sm:$0xff]
    %v5136 = vld [vmem:[%s4933 + $0x650] sm:$0xff]
    %v5137 = vld [vmem:[%s4933 + $0x658] sm:$0xff]
    %v5138 = vld [vmem:[%s4933 + $0x660] sm:$0xff]
    %v5139 = vld [vmem:[%s4933 + $0x668] sm:$0xff]
    %v5140 = vld [vmem:[%s4933 + $0x670] sm:$0xff]
    %v5141 = vld [vmem:[%s4933 + $0x678] sm:$0xff]
    %v5142 = vld [vmem:[%s4933 + $0x680] sm:$0xff]
    %v5143 = vld [vmem:[%s4933 + $0x688] sm:$0xff]
    %v5144 = vld [vmem:[%s4933 + $0x690] sm:$0xff]
    %v5145 = vld [vmem:[%s4933 + $0x698] sm:$0xff]
    %v5146 = vld [vmem:[%s4933 + $0x6a0] sm:$0xff]
    %v5147 = vld [vmem:[%s4933 + $0x6a8] sm:$0xff]
    %v5148 = vld [vmem:[%s4933 + $0x6b0] sm:$0xff]
    %v5149 = vld [vmem:[%s4933 + $0x6b8] sm:$0xff]
    %v5150 = vld [vmem:[%s4933 + $0x6c0] sm:$0xff]
    %v5151 = vld [vmem:[%s4933 + $0x6c8] sm:$0xff]
    %v5152 = vld [vmem:[%s4933 + $0x6d0] sm:$0xff]
    %v5153 = vld [vmem:[%s4933 + $0x6d8] sm:$0xff]
    %v5154 = vld [vmem:[%s4933 + $0x6e0] sm:$0xff]
    %v5155 = vld [vmem:[%s4933 + $0x6e8] sm:$0xff]
    %v5156 = vld [vmem:[%s4933 + $0x6f0] sm:$0xff]
    %v5157 = vld [vmem:[%s4933 + $0x6f8] sm:$0xff]
    %v5158 = vld [vmem:[%s4933 + $0x700] sm:$0xff]
    %v5159 = vld [vmem:[%s4933 + $0x708] sm:$0xff]
    %v5160 = vld [vmem:[%s4933 + $0x710] sm:$0xff]
    %v5161 = vld [vmem:[%s4933 + $0x718] sm:$0xff]
    %v5162 = vld [vmem:[%s4933 + $0x720] sm:$0xff]
    %v5163 = vld [vmem:[%s4933 + $0x728] sm:$0xff]
    %v5164 = vld [vmem:[%s4933 + $0x730] sm:$0xff]
    %v5165 = vld [vmem:[%s4933 + $0x738] sm:$0xff]
    %v5166 = vld [vmem:[%s4933 + $0x740] sm:$0xff]
    %v5167 = vld [vmem:[%s4933 + $0x748] sm:$0xff]
    %v5168 = vld [vmem:[%s4933 + $0x750] sm:$0xff]
    %v5169 = vld [vmem:[%s4933 + $0x758] sm:$0xff]
    %v5170 = vld [vmem:[%s4933 + $0x760] sm:$0xff]
    %v5171 = vld [vmem:[%s4933 + $0x768] sm:$0xff]
    %v5172 = vld [vmem:[%s4933 + $0x770] sm:$0xff]
    %v5173 = vld [vmem:[%s4933 + $0x778] sm:$0xff]
    %v5174 = vld [vmem:[%s4933 + $0x780] sm:$0xff]
    %v5175 = vld [vmem:[%s4933 + $0x788] sm:$0xff]
    %v5176 = vld [vmem:[%s4933 + $0x790] sm:$0xff]
    %v5177 = vld [vmem:[%s4933 + $0x798] sm:$0xff]
    %v5178 = vld [vmem:[%s4933 + $0x7a0] sm:$0xff]
    %v5179 = vld [vmem:[%s4933 + $0x7a8] sm:$0xff]
    %v5180 = vld [vmem:[%s4933 + $0x7b0] sm:$0xff]
    %v5181 = vld [vmem:[%s4933 + $0x7b8] sm:$0xff]
    %v5182 = vld [vmem:[%s4933 + $0x7c0] sm:$0xff]
    %v5183 = vld [vmem:[%s4933 + $0x7c8] sm:$0xff]
    %v5184 = vld [vmem:[%s4933 + $0x7d0] sm:$0xff]
    %v5185 = vld [vmem:[%s4933 + $0x7d8] sm:$0xff]
    %v5186 = vld [vmem:[%s4933 + $0x7e0] sm:$0xff]
    %v5187 = vld [vmem:[%s4933 + $0x7e8] sm:$0xff]
    %v5188 = vld [vmem:[%s4933 + $0x7f0] sm:$0xff]
    %v5189 = vld [vmem:[%s4933 + $0x7f8] sm:$0xff]
    %v5198 = vunpack.c.l.b16 %v4577
    %v5199 = vunpack.c.h.b16 %v4577
    %v5200 = vunpack.c.l.b16 %v4578
    %v5201 = vunpack.c.h.b16 %v4578
    %v5202 = vunpack.c.l.b16 %v4579
    %v5203 = vunpack.c.h.b16 %v4579
    %v5204 = vunpack.c.l.b16 %v4580
    %v5205 = vunpack.c.h.b16 %v4580
    %v5206 = vunpack.c.l.b16 %v4583
    %v5207 = vunpack.c.h.b16 %v4583
    %v5208 = vunpack.c.l.b16 %v4584
    %v5209 = vunpack.c.h.b16 %v4584
    %v5210 = vunpack.c.l.b16 %v4585
    %v5211 = vunpack.c.h.b16 %v4585
    %v5212 = vunpack.c.l.b16 %v4586
    %v5213 = vunpack.c.h.b16 %v4586
    %v5214 = vpack.c.b16 %v5202, %v5198
    %v5215 = vpack.c.b16 %v5203, %v5199
    %v5216 = vpack.c.b16 %v5204, %v5200
    %v5217 = vpack.c.b16 %v5205, %v5201
    %v5218 = vpack.c.b16 %v5210, %v5206
    %v5219 = vpack.c.b16 %v5211, %v5207
    %v5220 = vpack.c.b16 %v5212, %v5208
    %v5221 = vpack.c.b16 %v5213, %v5209
    %v5486 = vunpack.c.l.b16 %v4934
    %v5487 = vunpack.c.h.b16 %v4934
    %v5488 = vunpack.c.l.b16 %v4935
    %v5489 = vunpack.c.h.b16 %v4935
    %v5490 = vunpack.c.l.b16 %v4936
    %v5491 = vunpack.c.h.b16 %v4936
    %v5492 = vunpack.c.l.b16 %v4937
    %v5493 = vunpack.c.h.b16 %v4937
    %v5494 = vunpack.c.l.b16 %v4938
    %v5495 = vunpack.c.h.b16 %v4938
    %v5496 = vunpack.c.l.b16 %v4939
    %v5497 = vunpack.c.h.b16 %v4939
    %v5498 = vunpack.c.l.b16 %v4940
    %v5499 = vunpack.c.h.b16 %v4940
    %v5500 = vunpack.c.l.b16 %v4941
    %v5501 = vunpack.c.h.b16 %v4941
    %v5502 = vunpack.c.l.b16 %v4942
    %v5503 = vunpack.c.h.b16 %v4942
    %v5504 = vunpack.c.l.b16 %v4943
    %v5505 = vunpack.c.h.b16 %v4943
    %v5506 = vunpack.c.l.b16 %v4944
    %v5507 = vunpack.c.h.b16 %v4944
    %v5508 = vunpack.c.l.b16 %v4945
    %v5509 = vunpack.c.h.b16 %v4945
    %v5510 = vunpack.c.l.b16 %v4946
    %v5511 = vunpack.c.h.b16 %v4946
    %v5512 = vunpack.c.l.b16 %v4947
    %v5513 = vunpack.c.h.b16 %v4947
    %v5514 = vunpack.c.l.b16 %v4948
    %v5515 = vunpack.c.h.b16 %v4948
    %v5516 = vunpack.c.l.b16 %v4949
    %v5517 = vunpack.c.h.b16 %v4949
    %v5518 = vunpack.c.l.b16 %v4950
    %v5519 = vunpack.c.h.b16 %v4950
    %v5520 = vunpack.c.l.b16 %v4951
    %v5521 = vunpack.c.h.b16 %v4951
    %v5522 = vunpack.c.l.b16 %v4952
    %v5523 = vunpack.c.h.b16 %v4952
    %v5524 = vunpack.c.l.b16 %v4953
    %v5525 = vunpack.c.h.b16 %v4953
    %v5526 = vunpack.c.l.b16 %v4954
    %v5527 = vunpack.c.h.b16 %v4954
    %v5528 = vunpack.c.l.b16 %v4955
    %v5529 = vunpack.c.h.b16 %v4955
    %v5530 = vunpack.c.l.b16 %v4956
    %v5531 = vunpack.c.h.b16 %v4956
    %v5532 = vunpack.c.l.b16 %v4957
    %v5533 = vunpack.c.h.b16 %v4957
    %v5534 = vunpack.c.l.b16 %v4958
    %v5535 = vunpack.c.h.b16 %v4958
    %v5536 = vunpack.c.l.b16 %v4959
    %v5537 = vunpack.c.h.b16 %v4959
    %v5538 = vunpack.c.l.b16 %v4960
    %v5539 = vunpack.c.h.b16 %v4960
    %v5540 = vunpack.c.l.b16 %v4961
    %v5541 = vunpack.c.h.b16 %v4961
    %v5542 = vunpack.c.l.b16 %v4962
    %v5543 = vunpack.c.h.b16 %v4962
    %v5544 = vunpack.c.l.b16 %v4963
    %v5545 = vunpack.c.h.b16 %v4963
    %v5546 = vunpack.c.l.b16 %v4964
    %v5547 = vunpack.c.h.b16 %v4964
    %v5548 = vunpack.c.l.b16 %v4965
    %v5549 = vunpack.c.h.b16 %v4965
    %v5550 = vunpack.c.l.b16 %v4966
    %v5551 = vunpack.c.h.b16 %v4966
    %v5552 = vunpack.c.l.b16 %v4967
    %v5553 = vunpack.c.h.b16 %v4967
    %v5554 = vunpack.c.l.b16 %v4968
    %v5555 = vunpack.c.h.b16 %v4968
    %v5556 = vunpack.c.l.b16 %v4969
    %v5557 = vunpack.c.h.b16 %v4969
    %v5558 = vunpack.c.l.b16 %v4970
    %v5559 = vunpack.c.h.b16 %v4970
    %v5560 = vunpack.c.l.b16 %v4971
    %v5561 = vunpack.c.h.b16 %v4971
    %v5562 = vunpack.c.l.b16 %v4972
    %v5563 = vunpack.c.h.b16 %v4972
    %v5564 = vunpack.c.l.b16 %v4973
    %v5565 = vunpack.c.h.b16 %v4973
    %v5566 = vunpack.c.l.b16 %v4974
    %v5567 = vunpack.c.h.b16 %v4974
    %v5568 = vunpack.c.l.b16 %v4975
    %v5569 = vunpack.c.h.b16 %v4975
    %v5570 = vunpack.c.l.b16 %v4976
    %v5571 = vunpack.c.h.b16 %v4976
    %v5572 = vunpack.c.l.b16 %v4977
    %v5573 = vunpack.c.h.b16 %v4977
    %v5574 = vunpack.c.l.b16 %v4978
    %v5575 = vunpack.c.h.b16 %v4978
    %v5576 = vunpack.c.l.b16 %v4979
    %v5577 = vunpack.c.h.b16 %v4979
    %v5578 = vunpack.c.l.b16 %v4980
    %v5579 = vunpack.c.h.b16 %v4980
    %v5580 = vunpack.c.l.b16 %v4981
    %v5581 = vunpack.c.h.b16 %v4981
    %v5582 = vunpack.c.l.b16 %v4982
    %v5583 = vunpack.c.h.b16 %v4982
    %v5584 = vunpack.c.l.b16 %v4983
    %v5585 = vunpack.c.h.b16 %v4983
    %v5586 = vunpack.c.l.b16 %v4984
    %v5587 = vunpack.c.h.b16 %v4984
    %v5588 = vunpack.c.l.b16 %v4985
    %v5589 = vunpack.c.h.b16 %v4985
    %v5590 = vunpack.c.l.b16 %v4986
    %v5591 = vunpack.c.h.b16 %v4986
    %v5592 = vunpack.c.l.b16 %v4987
    %v5593 = vunpack.c.h.b16 %v4987
    %v5594 = vunpack.c.l.b16 %v4988
    %v5595 = vunpack.c.h.b16 %v4988
    %v5596 = vunpack.c.l.b16 %v4989
    %v5597 = vunpack.c.h.b16 %v4989
    %v5598 = vunpack.c.l.b16 %v4990
    %v5599 = vunpack.c.h.b16 %v4990
    %v5600 = vunpack.c.l.b16 %v4991
    %v5601 = vunpack.c.h.b16 %v4991
    %v5602 = vunpack.c.l.b16 %v4992
    %v5603 = vunpack.c.h.b16 %v4992
    %v5604 = vunpack.c.l.b16 %v4993
    %v5605 = vunpack.c.h.b16 %v4993
    %v5606 = vunpack.c.l.b16 %v4994
    %v5607 = vunpack.c.h.b16 %v4994
    %v5608 = vunpack.c.l.b16 %v4995
    %v5609 = vunpack.c.h.b16 %v4995
    %v5610 = vunpack.c.l.b16 %v4996
    %v5611 = vunpack.c.h.b16 %v4996
    %v5612 = vunpack.c.l.b16 %v4997
    %v5613 = vunpack.c.h.b16 %v4997
    %v5614 = vunpack.c.l.b16 %v4998
    %v5615 = vunpack.c.h.b16 %v4998
    %v5616 = vunpack.c.l.b16 %v4999
    %v5617 = vunpack.c.h.b16 %v4999
    %v5618 = vunpack.c.l.b16 %v5000
    %v5619 = vunpack.c.h.b16 %v5000
    %v5620 = vunpack.c.l.b16 %v5001
    %v5621 = vunpack.c.h.b16 %v5001
    %v5622 = vunpack.c.l.b16 %v5002
    %v5623 = vunpack.c.h.b16 %v5002
    %v5624 = vunpack.c.l.b16 %v5003
    %v5625 = vunpack.c.h.b16 %v5003
    %v5626 = vunpack.c.l.b16 %v5004
    %v5627 = vunpack.c.h.b16 %v5004
    %v5628 = vunpack.c.l.b16 %v5005
    %v5629 = vunpack.c.h.b16 %v5005
    %v5630 = vunpack.c.l.b16 %v5006
    %v5631 = vunpack.c.h.b16 %v5006
    %v5632 = vunpack.c.l.b16 %v5007
    %v5633 = vunpack.c.h.b16 %v5007
    %v5634 = vunpack.c.l.b16 %v5008
    %v5635 = vunpack.c.h.b16 %v5008
    %v5636 = vunpack.c.l.b16 %v5009
    %v5637 = vunpack.c.h.b16 %v5009
    %v5638 = vunpack.c.l.b16 %v5010
    %v5639 = vunpack.c.h.b16 %v5010
    %v5640 = vunpack.c.l.b16 %v5011
    %v5641 = vunpack.c.h.b16 %v5011
    %v5642 = vunpack.c.l.b16 %v5012
    %v5643 = vunpack.c.h.b16 %v5012
    %v5644 = vunpack.c.l.b16 %v5013
    %v5645 = vunpack.c.h.b16 %v5013
    %v5646 = vunpack.c.l.b16 %v5014
    %v5647 = vunpack.c.h.b16 %v5014
    %v5648 = vunpack.c.l.b16 %v5015
    %v5649 = vunpack.c.h.b16 %v5015
    %v5650 = vunpack.c.l.b16 %v5016
    %v5651 = vunpack.c.h.b16 %v5016
    %v5652 = vunpack.c.l.b16 %v5017
    %v5653 = vunpack.c.h.b16 %v5017
    %v5654 = vunpack.c.l.b16 %v5018
    %v5655 = vunpack.c.h.b16 %v5018
    %v5656 = vunpack.c.l.b16 %v5019
    %v5657 = vunpack.c.h.b16 %v5019
    %v5658 = vunpack.c.l.b16 %v5020
    %v5659 = vunpack.c.h.b16 %v5020
    %v5660 = vunpack.c.l.b16 %v5021
    %v5661 = vunpack.c.h.b16 %v5021
    %v5662 = vunpack.c.l.b16 %v5022
    %v5663 = vunpack.c.h.b16 %v5022
    %v5664 = vunpack.c.l.b16 %v5023
    %v5665 = vunpack.c.h.b16 %v5023
    %v5666 = vunpack.c.l.b16 %v5024
    %v5667 = vunpack.c.h.b16 %v5024
    %v5668 = vunpack.c.l.b16 %v5025
    %v5669 = vunpack.c.h.b16 %v5025
    %v5670 = vunpack.c.l.b16 %v5026
    %v5671 = vunpack.c.h.b16 %v5026
    %v5672 = vunpack.c.l.b16 %v5027
    %v5673 = vunpack.c.h.b16 %v5027
    %v5674 = vunpack.c.l.b16 %v5028
    %v5675 = vunpack.c.h.b16 %v5028
    %v5676 = vunpack.c.l.b16 %v5029
    %v5677 = vunpack.c.h.b16 %v5029
    %v5678 = vunpack.c.l.b16 %v5030
    %v5679 = vunpack.c.h.b16 %v5030
    %v5680 = vunpack.c.l.b16 %v5031
    %v5681 = vunpack.c.h.b16 %v5031
    %v5682 = vunpack.c.l.b16 %v5032
    %v5683 = vunpack.c.h.b16 %v5032
    %v5684 = vunpack.c.l.b16 %v5033
    %v5685 = vunpack.c.h.b16 %v5033
    %v5686 = vunpack.c.l.b16 %v5034
    %v5687 = vunpack.c.h.b16 %v5034
    %v5688 = vunpack.c.l.b16 %v5035
    %v5689 = vunpack.c.h.b16 %v5035
    %v5690 = vunpack.c.l.b16 %v5036
    %v5691 = vunpack.c.h.b16 %v5036
    %v5692 = vunpack.c.l.b16 %v5037
    %v5693 = vunpack.c.h.b16 %v5037
    %v5694 = vunpack.c.l.b16 %v5038
    %v5695 = vunpack.c.h.b16 %v5038
    %v5696 = vunpack.c.l.b16 %v5039
    %v5697 = vunpack.c.h.b16 %v5039
    %v5698 = vunpack.c.l.b16 %v5040
    %v5699 = vunpack.c.h.b16 %v5040
    %v5700 = vunpack.c.l.b16 %v5041
    %v5701 = vunpack.c.h.b16 %v5041
    %v5702 = vunpack.c.l.b16 %v5042
    %v5703 = vunpack.c.h.b16 %v5042
    %v5704 = vunpack.c.l.b16 %v5043
    %v5705 = vunpack.c.h.b16 %v5043
    %v5706 = vunpack.c.l.b16 %v5044
    %v5707 = vunpack.c.h.b16 %v5044
    %v5708 = vunpack.c.l.b16 %v5045
    %v5709 = vunpack.c.h.b16 %v5045
    %v5710 = vunpack.c.l.b16 %v5046
    %v5711 = vunpack.c.h.b16 %v5046
    %v5712 = vunpack.c.l.b16 %v5047
    %v5713 = vunpack.c.h.b16 %v5047
    %v5714 = vunpack.c.l.b16 %v5048
    %v5715 = vunpack.c.h.b16 %v5048
    %v5716 = vunpack.c.l.b16 %v5049
    %v5717 = vunpack.c.h.b16 %v5049
    %v5718 = vunpack.c.l.b16 %v5050
    %v5719 = vunpack.c.h.b16 %v5050
    %v5720 = vunpack.c.l.b16 %v5051
    %v5721 = vunpack.c.h.b16 %v5051
    %v5722 = vunpack.c.l.b16 %v5052
    %v5723 = vunpack.c.h.b16 %v5052
    %v5724 = vunpack.c.l.b16 %v5053
    %v5725 = vunpack.c.h.b16 %v5053
    %v5726 = vunpack.c.l.b16 %v5054
    %v5727 = vunpack.c.h.b16 %v5054
    %v5728 = vunpack.c.l.b16 %v5055
    %v5729 = vunpack.c.h.b16 %v5055
    %v5730 = vunpack.c.l.b16 %v5056
    %v5731 = vunpack.c.h.b16 %v5056
    %v5732 = vunpack.c.l.b16 %v5057
    %v5733 = vunpack.c.h.b16 %v5057
    %v5734 = vunpack.c.l.b16 %v5058
    %v5735 = vunpack.c.h.b16 %v5058
    %v5736 = vunpack.c.l.b16 %v5059
    %v5737 = vunpack.c.h.b16 %v5059
    %v5738 = vunpack.c.l.b16 %v5060
    %v5739 = vunpack.c.h.b16 %v5060
    %v5740 = vunpack.c.l.b16 %v5061
    %v5741 = vunpack.c.h.b16 %v5061
    %v5742 = vunpack.c.l.b16 %v5062
    %v5743 = vunpack.c.h.b16 %v5062
    %v5744 = vunpack.c.l.b16 %v5063
    %v5745 = vunpack.c.h.b16 %v5063
    %v5746 = vunpack.c.l.b16 %v5064
    %v5747 = vunpack.c.h.b16 %v5064
    %v5748 = vunpack.c.l.b16 %v5065
    %v5749 = vunpack.c.h.b16 %v5065
    %v5750 = vunpack.c.l.b16 %v5066
    %v5751 = vunpack.c.h.b16 %v5066
    %v5752 = vunpack.c.l.b16 %v5067
    %v5753 = vunpack.c.h.b16 %v5067
    %v5754 = vunpack.c.l.b16 %v5068
    %v5755 = vunpack.c.h.b16 %v5068
    %v5756 = vunpack.c.l.b16 %v5069
    %v5757 = vunpack.c.h.b16 %v5069
    %v5758 = vunpack.c.l.b16 %v5070
    %v5759 = vunpack.c.h.b16 %v5070
    %v5760 = vunpack.c.l.b16 %v5071
    %v5761 = vunpack.c.h.b16 %v5071
    %v5762 = vunpack.c.l.b16 %v5072
    %v5763 = vunpack.c.h.b16 %v5072
    %v5764 = vunpack.c.l.b16 %v5073
    %v5765 = vunpack.c.h.b16 %v5073
    %v5766 = vunpack.c.l.b16 %v5074
    %v5767 = vunpack.c.h.b16 %v5074
    %v5768 = vunpack.c.l.b16 %v5075
    %v5769 = vunpack.c.h.b16 %v5075
    %v5770 = vunpack.c.l.b16 %v5076
    %v5771 = vunpack.c.h.b16 %v5076
    %v5772 = vunpack.c.l.b16 %v5077
    %v5773 = vunpack.c.h.b16 %v5077
    %v5774 = vunpack.c.l.b16 %v5078
    %v5775 = vunpack.c.h.b16 %v5078
    %v5776 = vunpack.c.l.b16 %v5079
    %v5777 = vunpack.c.h.b16 %v5079
    %v5778 = vunpack.c.l.b16 %v5080
    %v5779 = vunpack.c.h.b16 %v5080
    %v5780 = vunpack.c.l.b16 %v5081
    %v5781 = vunpack.c.h.b16 %v5081
    %v5782 = vunpack.c.l.b16 %v5082
    %v5783 = vunpack.c.h.b16 %v5082
    %v5784 = vunpack.c.l.b16 %v5083
    %v5785 = vunpack.c.h.b16 %v5083
    %v5786 = vunpack.c.l.b16 %v5084
    %v5787 = vunpack.c.h.b16 %v5084
    %v5788 = vunpack.c.l.b16 %v5085
    %v5789 = vunpack.c.h.b16 %v5085
    %v5790 = vunpack.c.l.b16 %v5086
    %v5791 = vunpack.c.h.b16 %v5086
    %v5792 = vunpack.c.l.b16 %v5087
    %v5793 = vunpack.c.h.b16 %v5087
    %v5794 = vunpack.c.l.b16 %v5088
    %v5795 = vunpack.c.h.b16 %v5088
    %v5796 = vunpack.c.l.b16 %v5089
    %v5797 = vunpack.c.h.b16 %v5089
    %v5798 = vunpack.c.l.b16 %v5090
    %v5799 = vunpack.c.h.b16 %v5090
    %v5800 = vunpack.c.l.b16 %v5091
    %v5801 = vunpack.c.h.b16 %v5091
    %v5802 = vunpack.c.l.b16 %v5092
    %v5803 = vunpack.c.h.b16 %v5092
    %v5804 = vunpack.c.l.b16 %v5093
    %v5805 = vunpack.c.h.b16 %v5093
    %v5806 = vunpack.c.l.b16 %v5094
    %v5807 = vunpack.c.h.b16 %v5094
    %v5808 = vunpack.c.l.b16 %v5095
    %v5809 = vunpack.c.h.b16 %v5095
    %v5810 = vunpack.c.l.b16 %v5096
    %v5811 = vunpack.c.h.b16 %v5096
    %v5812 = vunpack.c.l.b16 %v5097
    %v5813 = vunpack.c.h.b16 %v5097
    %v5814 = vunpack.c.l.b16 %v5098
    %v5815 = vunpack.c.h.b16 %v5098
    %v5816 = vunpack.c.l.b16 %v5099
    %v5817 = vunpack.c.h.b16 %v5099
    %v5818 = vunpack.c.l.b16 %v5100
    %v5819 = vunpack.c.h.b16 %v5100
    %v5820 = vunpack.c.l.b16 %v5101
    %v5821 = vunpack.c.h.b16 %v5101
    %v5822 = vunpack.c.l.b16 %v5102
    %v5823 = vunpack.c.h.b16 %v5102
    %v5824 = vunpack.c.l.b16 %v5103
    %v5825 = vunpack.c.h.b16 %v5103
    %v5826 = vunpack.c.l.b16 %v5104
    %v5827 = vunpack.c.h.b16 %v5104
    %v5828 = vunpack.c.l.b16 %v5105
    %v5829 = vunpack.c.h.b16 %v5105
    %v5830 = vunpack.c.l.b16 %v5106
    %v5831 = vunpack.c.h.b16 %v5106
    %v5832 = vunpack.c.l.b16 %v5107
    %v5833 = vunpack.c.h.b16 %v5107
    %v5834 = vunpack.c.l.b16 %v5108
    %v5835 = vunpack.c.h.b16 %v5108
    %v5836 = vunpack.c.l.b16 %v5109
    %v5837 = vunpack.c.h.b16 %v5109
    %v5838 = vunpack.c.l.b16 %v5110
    %v5839 = vunpack.c.h.b16 %v5110
    %v5840 = vunpack.c.l.b16 %v5111
    %v5841 = vunpack.c.h.b16 %v5111
    %v5842 = vunpack.c.l.b16 %v5112
    %v5843 = vunpack.c.h.b16 %v5112
    %v5844 = vunpack.c.l.b16 %v5113
    %v5845 = vunpack.c.h.b16 %v5113
    %v5846 = vunpack.c.l.b16 %v5114
    %v5847 = vunpack.c.h.b16 %v5114
    %v5848 = vunpack.c.l.b16 %v5115
    %v5849 = vunpack.c.h.b16 %v5115
    %v5850 = vunpack.c.l.b16 %v5116
    %v5851 = vunpack.c.h.b16 %v5116
    %v5852 = vunpack.c.l.b16 %v5117
    %v5853 = vunpack.c.h.b16 %v5117
    %v5854 = vunpack.c.l.b16 %v5118
    %v5855 = vunpack.c.h.b16 %v5118
    %v5856 = vunpack.c.l.b16 %v5119
    %v5857 = vunpack.c.h.b16 %v5119
    %v5858 = vunpack.c.l.b16 %v5120
    %v5859 = vunpack.c.h.b16 %v5120
    %v5860 = vunpack.c.l.b16 %v5121
    %v5861 = vunpack.c.h.b16 %v5121
    %v5862 = vunpack.c.l.b16 %v5122
    %v5863 = vunpack.c.h.b16 %v5122
    %v5864 = vunpack.c.l.b16 %v5123
    %v5865 = vunpack.c.h.b16 %v5123
    %v5866 = vunpack.c.l.b16 %v5124
    %v5867 = vunpack.c.h.b16 %v5124
    %v5868 = vunpack.c.l.b16 %v5125
    %v5869 = vunpack.c.h.b16 %v5125
    %v5870 = vunpack.c.l.b16 %v5126
    %v5871 = vunpack.c.h.b16 %v5126
    %v5872 = vunpack.c.l.b16 %v5127
    %v5873 = vunpack.c.h.b16 %v5127
    %v5874 = vunpack.c.l.b16 %v5128
    %v5875 = vunpack.c.h.b16 %v5128
    %v5876 = vunpack.c.l.b16 %v5129
    %v5877 = vunpack.c.h.b16 %v5129
    %v5878 = vunpack.c.l.b16 %v5130
    %v5879 = vunpack.c.h.b16 %v5130
    %v5880 = vunpack.c.l.b16 %v5131
    %v5881 = vunpack.c.h.b16 %v5131
    %v5882 = vunpack.c.l.b16 %v5132
    %v5883 = vunpack.c.h.b16 %v5132
    %v5884 = vunpack.c.l.b16 %v5133
    %v5885 = vunpack.c.h.b16 %v5133
    %v5886 = vunpack.c.l.b16 %v5134
    %v5887 = vunpack.c.h.b16 %v5134
    %v5888 = vunpack.c.l.b16 %v5135
    %v5889 = vunpack.c.h.b16 %v5135
    %v5890 = vunpack.c.l.b16 %v5136
    %v5891 = vunpack.c.h.b16 %v5136
    %v5892 = vunpack.c.l.b16 %v5137
    %v5893 = vunpack.c.h.b16 %v5137
    %v5894 = vunpack.c.l.b16 %v5138
    %v5895 = vunpack.c.h.b16 %v5138
    %v5896 = vunpack.c.l.b16 %v5139
    %v5897 = vunpack.c.h.b16 %v5139
    %v5898 = vunpack.c.l.b16 %v5140
    %v5899 = vunpack.c.h.b16 %v5140
    %v5900 = vunpack.c.l.b16 %v5141
    %v5901 = vunpack.c.h.b16 %v5141
    %v5902 = vunpack.c.l.b16 %v5142
    %v5903 = vunpack.c.h.b16 %v5142
    %v5904 = vunpack.c.l.b16 %v5143
    %v5905 = vunpack.c.h.b16 %v5143
    %v5906 = vunpack.c.l.b16 %v5144
    %v5907 = vunpack.c.h.b16 %v5144
    %v5908 = vunpack.c.l.b16 %v5145
    %v5909 = vunpack.c.h.b16 %v5145
    %v5910 = vunpack.c.l.b16 %v5146
    %v5911 = vunpack.c.h.b16 %v5146
    %v5912 = vunpack.c.l.b16 %v5147
    %v5913 = vunpack.c.h.b16 %v5147
    %v5914 = vunpack.c.l.b16 %v5148
    %v5915 = vunpack.c.h.b16 %v5148
    %v5916 = vunpack.c.l.b16 %v5149
    %v5917 = vunpack.c.h.b16 %v5149
    %v5918 = vunpack.c.l.b16 %v5150
    %v5919 = vunpack.c.h.b16 %v5150
    %v5920 = vunpack.c.l.b16 %v5151
    %v5921 = vunpack.c.h.b16 %v5151
    %v5922 = vunpack.c.l.b16 %v5152
    %v5923 = vunpack.c.h.b16 %v5152
    %v5924 = vunpack.c.l.b16 %v5153
    %v5925 = vunpack.c.h.b16 %v5153
    %v5926 = vunpack.c.l.b16 %v5154
    %v5927 = vunpack.c.h.b16 %v5154
    %v5928 = vunpack.c.l.b16 %v5155
    %v5929 = vunpack.c.h.b16 %v5155
    %v5930 = vunpack.c.l.b16 %v5156
    %v5931 = vunpack.c.h.b16 %v5156
    %v5932 = vunpack.c.l.b16 %v5157
    %v5933 = vunpack.c.h.b16 %v5157
    %v5934 = vunpack.c.l.b16 %v5158
    %v5935 = vunpack.c.h.b16 %v5158
    %v5936 = vunpack.c.l.b16 %v5159
    %v5937 = vunpack.c.h.b16 %v5159
    %v5938 = vunpack.c.l.b16 %v5160
    %v5939 = vunpack.c.h.b16 %v5160
    %v5940 = vunpack.c.l.b16 %v5161
    %v5941 = vunpack.c.h.b16 %v5161
    %v5942 = vunpack.c.l.b16 %v5162
    %v5943 = vunpack.c.h.b16 %v5162
    %v5944 = vunpack.c.l.b16 %v5163
    %v5945 = vunpack.c.h.b16 %v5163
    %v5946 = vunpack.c.l.b16 %v5164
    %v5947 = vunpack.c.h.b16 %v5164
    %v5948 = vunpack.c.l.b16 %v5165
    %v5949 = vunpack.c.h.b16 %v5165
    %v5950 = vunpack.c.l.b16 %v5166
    %v5951 = vunpack.c.h.b16 %v5166
    %v5952 = vunpack.c.l.b16 %v5167
    %v5953 = vunpack.c.h.b16 %v5167
    %v5954 = vunpack.c.l.b16 %v5168
    %v5955 = vunpack.c.h.b16 %v5168
    %v5956 = vunpack.c.l.b16 %v5169
    %v5957 = vunpack.c.h.b16 %v5169
    %v5958 = vunpack.c.l.b16 %v5170
    %v5959 = vunpack.c.h.b16 %v5170
    %v5960 = vunpack.c.l.b16 %v5171
    %v5961 = vunpack.c.h.b16 %v5171
    %v5962 = vunpack.c.l.b16 %v5172
    %v5963 = vunpack.c.h.b16 %v5172
    %v5964 = vunpack.c.l.b16 %v5173
    %v5965 = vunpack.c.h.b16 %v5173
    %v5966 = vunpack.c.l.b16 %v5174
    %v5967 = vunpack.c.h.b16 %v5174
    %v5968 = vunpack.c.l.b16 %v5175
    %v5969 = vunpack.c.h.b16 %v5175
    %v5970 = vunpack.c.l.b16 %v5176
    %v5971 = vunpack.c.h.b16 %v5176
    %v5972 = vunpack.c.l.b16 %v5177
    %v5973 = vunpack.c.h.b16 %v5177
    %v5974 = vunpack.c.l.b16 %v5178
    %v5975 = vunpack.c.h.b16 %v5178
    %v5976 = vunpack.c.l.b16 %v5179
    %v5977 = vunpack.c.h.b16 %v5179
    %v5978 = vunpack.c.l.b16 %v5180
    %v5979 = vunpack.c.h.b16 %v5180
    %v5980 = vunpack.c.l.b16 %v5181
    %v5981 = vunpack.c.h.b16 %v5181
    %v5982 = vunpack.c.l.b16 %v5182
    %v5983 = vunpack.c.h.b16 %v5182
    %v5984 = vunpack.c.l.b16 %v5183
    %v5985 = vunpack.c.h.b16 %v5183
    %v5986 = vunpack.c.l.b16 %v5184
    %v5987 = vunpack.c.h.b16 %v5184
    %v5988 = vunpack.c.l.b16 %v5185
    %v5989 = vunpack.c.h.b16 %v5185
    %v5990 = vunpack.c.l.b16 %v5186
    %v5991 = vunpack.c.h.b16 %v5186
    %v5992 = vunpack.c.l.b16 %v5187
    %v5993 = vunpack.c.h.b16 %v5187
    %v5994 = vunpack.c.l.b16 %v5188
    %v5995 = vunpack.c.h.b16 %v5188
    %v5996 = vunpack.c.l.b16 %v5189
    %v5997 = vunpack.c.h.b16 %v5189
    %v5998 = vpack.c.b16 %v5494, %v5486
    %v5999 = vpack.c.b16 %v5495, %v5487
    %v6000 = vpack.c.b16 %v5496, %v5488
    %v6001 = vpack.c.b16 %v5497, %v5489
    %v6002 = vpack.c.b16 %v5498, %v5490
    %v6003 = vpack.c.b16 %v5499, %v5491
    %v6004 = vpack.c.b16 %v5500, %v5492
    %v6005 = vpack.c.b16 %v5501, %v5493
    %v6006 = vpack.c.b16 %v5510, %v5502
    %v6007 = vpack.c.b16 %v5511, %v5503
    %v6008 = vpack.c.b16 %v5512, %v5504
    %v6009 = vpack.c.b16 %v5513, %v5505
    %v6010 = vpack.c.b16 %v5514, %v5506
    %v6011 = vpack.c.b16 %v5515, %v5507
    %v6012 = vpack.c.b16 %v5516, %v5508
    %v6013 = vpack.c.b16 %v5517, %v5509
    %v6014 = vpack.c.b16 %v5526, %v5518
    %v6015 = vpack.c.b16 %v5527, %v5519
    %v6016 = vpack.c.b16 %v5528, %v5520
    %v6017 = vpack.c.b16 %v5529, %v5521
    %v6018 = vpack.c.b16 %v5530, %v5522
    %v6019 = vpack.c.b16 %v5531, %v5523
    %v6020 = vpack.c.b16 %v5532, %v5524
    %v6021 = vpack.c.b16 %v5533, %v5525
    %v6022 = vpack.c.b16 %v5542, %v5534
    %v6023 = vpack.c.b16 %v5543, %v5535
    %v6024 = vpack.c.b16 %v5544, %v5536
    %v6025 = vpack.c.b16 %v5545, %v5537
    %v6026 = vpack.c.b16 %v5546, %v5538
    %v6027 = vpack.c.b16 %v5547, %v5539
    %v6028 = vpack.c.b16 %v5548, %v5540
    %v6029 = vpack.c.b16 %v5549, %v5541
    %v6030 = vpack.c.b16 %v5558, %v5550
    %v6031 = vpack.c.b16 %v5559, %v5551
    %v6032 = vpack.c.b16 %v5560, %v5552
    %v6033 = vpack.c.b16 %v5561, %v5553
    %v6034 = vpack.c.b16 %v5562, %v5554
    %v6035 = vpack.c.b16 %v5563, %v5555
    %v6036 = vpack.c.b16 %v5564, %v5556
    %v6037 = vpack.c.b16 %v5565, %v5557
    %v6038 = vpack.c.b16 %v5574, %v5566
    %v6039 = vpack.c.b16 %v5575, %v5567
    %v6040 = vpack.c.b16 %v5576, %v5568
    %v6041 = vpack.c.b16 %v5577, %v5569
    %v6042 = vpack.c.b16 %v5578, %v5570
    %v6043 = vpack.c.b16 %v5579, %v5571
    %v6044 = vpack.c.b16 %v5580, %v5572
    %v6045 = vpack.c.b16 %v5581, %v5573
    %v6046 = vpack.c.b16 %v5590, %v5582
    %v6047 = vpack.c.b16 %v5591, %v5583
    %v6048 = vpack.c.b16 %v5592, %v5584
    %v6049 = vpack.c.b16 %v5593, %v5585
    %v6050 = vpack.c.b16 %v5594, %v5586
    %v6051 = vpack.c.b16 %v5595, %v5587
    %v6052 = vpack.c.b16 %v5596, %v5588
    %v6053 = vpack.c.b16 %v5597, %v5589
    %v6054 = vpack.c.b16 %v5606, %v5598
    %v6055 = vpack.c.b16 %v5607, %v5599
    %v6056 = vpack.c.b16 %v5608, %v5600
    %v6057 = vpack.c.b16 %v5609, %v5601
    %v6058 = vpack.c.b16 %v5610, %v5602
    %v6059 = vpack.c.b16 %v5611, %v5603
    %v6060 = vpack.c.b16 %v5612, %v5604
    %v6061 = vpack.c.b16 %v5613, %v5605
    %v6062 = vpack.c.b16 %v5622, %v5614
    %v6063 = vpack.c.b16 %v5623, %v5615
    %v6064 = vpack.c.b16 %v5624, %v5616
    %v6065 = vpack.c.b16 %v5625, %v5617
    %v6066 = vpack.c.b16 %v5626, %v5618
    %v6067 = vpack.c.b16 %v5627, %v5619
    %v6068 = vpack.c.b16 %v5628, %v5620
    %v6069 = vpack.c.b16 %v5629, %v5621
    %v6070 = vpack.c.b16 %v5638, %v5630
    %v6071 = vpack.c.b16 %v5639, %v5631
    %v6072 = vpack.c.b16 %v5640, %v5632
    %v6073 = vpack.c.b16 %v5641, %v5633
    %v6074 = vpack.c.b16 %v5642, %v5634
    %v6075 = vpack.c.b16 %v5643, %v5635
    %v6076 = vpack.c.b16 %v5644, %v5636
    %v6077 = vpack.c.b16 %v5645, %v5637
    %v6078 = vpack.c.b16 %v5654, %v5646
    %v6079 = vpack.c.b16 %v5655, %v5647
    %v6080 = vpack.c.b16 %v5656, %v5648
    %v6081 = vpack.c.b16 %v5657, %v5649
    %v6082 = vpack.c.b16 %v5658, %v5650
    %v6083 = vpack.c.b16 %v5659, %v5651
    %v6084 = vpack.c.b16 %v5660, %v5652
    %v6085 = vpack.c.b16 %v5661, %v5653
    %v6086 = vpack.c.b16 %v5670, %v5662
    %v6087 = vpack.c.b16 %v5671, %v5663
    %v6088 = vpack.c.b16 %v5672, %v5664
    %v6089 = vpack.c.b16 %v5673, %v5665
    %v6090 = vpack.c.b16 %v5674, %v5666
    %v6091 = vpack.c.b16 %v5675, %v5667
    %v6092 = vpack.c.b16 %v5676, %v5668
    %v6093 = vpack.c.b16 %v5677, %v5669
    %v6094 = vpack.c.b16 %v5686, %v5678
    %v6095 = vpack.c.b16 %v5687, %v5679
    %v6096 = vpack.c.b16 %v5688, %v5680
    %v6097 = vpack.c.b16 %v5689, %v5681
    %v6098 = vpack.c.b16 %v5690, %v5682
    %v6099 = vpack.c.b16 %v5691, %v5683
    %v6100 = vpack.c.b16 %v5692, %v5684
    %v6101 = vpack.c.b16 %v5693, %v5685
    %v6102 = vpack.c.b16 %v5702, %v5694
    %v6103 = vpack.c.b16 %v5703, %v5695
    %v6104 = vpack.c.b16 %v5704, %v5696
    %v6105 = vpack.c.b16 %v5705, %v5697
    %v6106 = vpack.c.b16 %v5706, %v5698
    %v6107 = vpack.c.b16 %v5707, %v5699
    %v6108 = vpack.c.b16 %v5708, %v5700
    %v6109 = vpack.c.b16 %v5709, %v5701
    %v6110 = vpack.c.b16 %v5718, %v5710
    %v6111 = vpack.c.b16 %v5719, %v5711
    %v6112 = vpack.c.b16 %v5720, %v5712
    %v6113 = vpack.c.b16 %v5721, %v5713
    %v6114 = vpack.c.b16 %v5722, %v5714
    %v6115 = vpack.c.b16 %v5723, %v5715
    %v6116 = vpack.c.b16 %v5724, %v5716
    %v6117 = vpack.c.b16 %v5725, %v5717
    %v6118 = vpack.c.b16 %v5734, %v5726
    %v6119 = vpack.c.b16 %v5735, %v5727
    %v6120 = vpack.c.b16 %v5736, %v5728
    %v6121 = vpack.c.b16 %v5737, %v5729
    %v6122 = vpack.c.b16 %v5738, %v5730
    %v6123 = vpack.c.b16 %v5739, %v5731
    %v6124 = vpack.c.b16 %v5740, %v5732
    %v6125 = vpack.c.b16 %v5741, %v5733
    %v6126 = vpack.c.b16 %v5750, %v5742
    %v6127 = vpack.c.b16 %v5751, %v5743
    %v6128 = vpack.c.b16 %v5752, %v5744
    %v6129 = vpack.c.b16 %v5753, %v5745
    %v6130 = vpack.c.b16 %v5754, %v5746
    %v6131 = vpack.c.b16 %v5755, %v5747
    %v6132 = vpack.c.b16 %v5756, %v5748
    %v6133 = vpack.c.b16 %v5757, %v5749
    %v6134 = vpack.c.b16 %v5766, %v5758
    %v6135 = vpack.c.b16 %v5767, %v5759
    %v6136 = vpack.c.b16 %v5768, %v5760
    %v6137 = vpack.c.b16 %v5769, %v5761
    %v6138 = vpack.c.b16 %v5770, %v5762
    %v6139 = vpack.c.b16 %v5771, %v5763
    %v6140 = vpack.c.b16 %v5772, %v5764
    %v6141 = vpack.c.b16 %v5773, %v5765
    %v6142 = vpack.c.b16 %v5782, %v5774
    %v6143 = vpack.c.b16 %v5783, %v5775
    %v6144 = vpack.c.b16 %v5784, %v5776
    %v6145 = vpack.c.b16 %v5785, %v5777
    %v6146 = vpack.c.b16 %v5786, %v5778
    %v6147 = vpack.c.b16 %v5787, %v5779
    %v6148 = vpack.c.b16 %v5788, %v5780
    %v6149 = vpack.c.b16 %v5789, %v5781
    %v6150 = vpack.c.b16 %v5798, %v5790
    %v6151 = vpack.c.b16 %v5799, %v5791
    %v6152 = vpack.c.b16 %v5800, %v5792
    %v6153 = vpack.c.b16 %v5801, %v5793
    %v6154 = vpack.c.b16 %v5802, %v5794
    %v6155 = vpack.c.b16 %v5803, %v5795
    %v6156 = vpack.c.b16 %v5804, %v5796
    %v6157 = vpack.c.b16 %v5805, %v5797
    %v6158 = vpack.c.b16 %v5814, %v5806
    %v6159 = vpack.c.b16 %v5815, %v5807
    %v6160 = vpack.c.b16 %v5816, %v5808
    %v6161 = vpack.c.b16 %v5817, %v5809
    %v6162 = vpack.c.b16 %v5818, %v5810
    %v6163 = vpack.c.b16 %v5819, %v5811
    %v6164 = vpack.c.b16 %v5820, %v5812
    %v6165 = vpack.c.b16 %v5821, %v5813
    %v6166 = vpack.c.b16 %v5830, %v5822
    %v6167 = vpack.c.b16 %v5831, %v5823
    %v6168 = vpack.c.b16 %v5832, %v5824
    %v6169 = vpack.c.b16 %v5833, %v5825
    %v6170 = vpack.c.b16 %v5834, %v5826
    %v6171 = vpack.c.b16 %v5835, %v5827
    %v6172 = vpack.c.b16 %v5836, %v5828
    %v6173 = vpack.c.b16 %v5837, %v5829
    %v6174 = vpack.c.b16 %v5846, %v5838
    %v6175 = vpack.c.b16 %v5847, %v5839
    %v6176 = vpack.c.b16 %v5848, %v5840
    %v6177 = vpack.c.b16 %v5849, %v5841
    %v6178 = vpack.c.b16 %v5850, %v5842
    %v6179 = vpack.c.b16 %v5851, %v5843
    %v6180 = vpack.c.b16 %v5852, %v5844
    %v6181 = vpack.c.b16 %v5853, %v5845
    %v6182 = vpack.c.b16 %v5862, %v5854
    %v6183 = vpack.c.b16 %v5863, %v5855
    %v6184 = vpack.c.b16 %v5864, %v5856
    %v6185 = vpack.c.b16 %v5865, %v5857
    %v6186 = vpack.c.b16 %v5866, %v5858
    %v6187 = vpack.c.b16 %v5867, %v5859
    %v6188 = vpack.c.b16 %v5868, %v5860
    %v6189 = vpack.c.b16 %v5869, %v5861
    %v6190 = vpack.c.b16 %v5878, %v5870
    %v6191 = vpack.c.b16 %v5879, %v5871
    %v6192 = vpack.c.b16 %v5880, %v5872
    %v6193 = vpack.c.b16 %v5881, %v5873
    %v6194 = vpack.c.b16 %v5882, %v5874
    %v6195 = vpack.c.b16 %v5883, %v5875
    %v6196 = vpack.c.b16 %v5884, %v5876
    %v6197 = vpack.c.b16 %v5885, %v5877
    %v6198 = vpack.c.b16 %v5894, %v5886
    %v6199 = vpack.c.b16 %v5895, %v5887
    %v6200 = vpack.c.b16 %v5896, %v5888
    %v6201 = vpack.c.b16 %v5897, %v5889
    %v6202 = vpack.c.b16 %v5898, %v5890
    %v6203 = vpack.c.b16 %v5899, %v5891
    %v6204 = vpack.c.b16 %v5900, %v5892
    %v6205 = vpack.c.b16 %v5901, %v5893
    %v6206 = vpack.c.b16 %v5910, %v5902
    %v6207 = vpack.c.b16 %v5911, %v5903
    %v6208 = vpack.c.b16 %v5912, %v5904
    %v6209 = vpack.c.b16 %v5913, %v5905
    %v6210 = vpack.c.b16 %v5914, %v5906
    %v6211 = vpack.c.b16 %v5915, %v5907
    %v6212 = vpack.c.b16 %v5916, %v5908
    %v6213 = vpack.c.b16 %v5917, %v5909
    %v6214 = vpack.c.b16 %v5926, %v5918
    %v6215 = vpack.c.b16 %v5927, %v5919
    %v6216 = vpack.c.b16 %v5928, %v5920
    %v6217 = vpack.c.b16 %v5929, %v5921
    %v6218 = vpack.c.b16 %v5930, %v5922
    %v6219 = vpack.c.b16 %v5931, %v5923
    %v6220 = vpack.c.b16 %v5932, %v5924
    %v6221 = vpack.c.b16 %v5933, %v5925
    %v6222 = vpack.c.b16 %v5942, %v5934
    %v6223 = vpack.c.b16 %v5943, %v5935
    %v6224 = vpack.c.b16 %v5944, %v5936
    %v6225 = vpack.c.b16 %v5945, %v5937
    %v6226 = vpack.c.b16 %v5946, %v5938
    %v6227 = vpack.c.b16 %v5947, %v5939
    %v6228 = vpack.c.b16 %v5948, %v5940
    %v6229 = vpack.c.b16 %v5949, %v5941
    %v6230 = vpack.c.b16 %v5958, %v5950
    %v6231 = vpack.c.b16 %v5959, %v5951
    %v6232 = vpack.c.b16 %v5960, %v5952
    %v6233 = vpack.c.b16 %v5961, %v5953
    %v6234 = vpack.c.b16 %v5962, %v5954
    %v6235 = vpack.c.b16 %v5963, %v5955
    %v6236 = vpack.c.b16 %v5964, %v5956
    %v6237 = vpack.c.b16 %v5965, %v5957
    %v6238 = vpack.c.b16 %v5974, %v5966
    %v6239 = vpack.c.b16 %v5975, %v5967
    %v6240 = vpack.c.b16 %v5976, %v5968
    %v6241 = vpack.c.b16 %v5977, %v5969
    %v6242 = vpack.c.b16 %v5978, %v5970
    %v6243 = vpack.c.b16 %v5979, %v5971
    %v6244 = vpack.c.b16 %v5980, %v5972
    %v6245 = vpack.c.b16 %v5981, %v5973
    %v6246 = vpack.c.b16 %v5990, %v5982
    %v6247 = vpack.c.b16 %v5991, %v5983
    %v6248 = vpack.c.b16 %v5992, %v5984
    %v6249 = vpack.c.b16 %v5993, %v5985
    %v6250 = vpack.c.b16 %v5994, %v5986
    %v6251 = vpack.c.b16 %v5995, %v5987
    %v6252 = vpack.c.b16 %v5996, %v5988
    %v6253 = vpack.c.b16 %v5997, %v5989
    %6510 = vmatprep.subr.bf16.mxu0 %v5999
    %6511 = vmatpush1.bf16.msra.mxu0 %v5998
    %6512 = vmatprep.subr.bf16.mxu0 %v6007
    %6513 = vmatpush1.bf16.msra.mxu0 %v6006
    %6514 = vmatprep.subr.bf16.mxu0 %v6015
    %6515 = vmatpush1.bf16.msra.mxu0 %v6014
    %6516 = vmatprep.subr.bf16.mxu0 %v6023
    %6517 = vmatpush1.bf16.msra.mxu0 %v6022
    %6518 = vmatprep.subr.bf16.mxu0 %v6031
    %6519 = vmatpush1.bf16.msra.mxu0 %v6030
    %6520 = vmatprep.subr.bf16.mxu0 %v6039
    %6521 = vmatpush1.bf16.msra.mxu0 %v6038
    %6522 = vmatprep.subr.bf16.mxu0 %v6047
    %6523 = vmatpush1.bf16.msra.mxu0 %v6046
    %6524 = vmatprep.subr.bf16.mxu0 %v6055
    %6525 = vmatpush1.bf16.msra.mxu0 %v6054
    %6526 = vmatprep.subr.bf16.mxu0 %v6063
    %6527 = vmatpush1.bf16.msra.mxu0 %v6062
    %6528 = vmatprep.subr.bf16.mxu0 %v6071
    %6529 = vmatpush1.bf16.msra.mxu0 %v6070
    %6530 = vmatprep.subr.bf16.mxu0 %v6079
    %6531 = vmatpush1.bf16.msra.mxu0 %v6078
    %6532 = vmatprep.subr.bf16.mxu0 %v6087
    %6533 = vmatpush1.bf16.msra.mxu0 %v6086
    %6534 = vmatprep.subr.bf16.mxu0 %v6095
    %6535 = vmatpush1.bf16.msra.mxu0 %v6094
    %6536 = vmatprep.subr.bf16.mxu0 %v6103
    %6537 = vmatpush1.bf16.msra.mxu0 %v6102
    %6538 = vmatprep.subr.bf16.mxu0 %v6111
    %6539 = vmatpush1.bf16.msra.mxu0 %v6110
    %6540 = vmatprep.subr.bf16.mxu0 %v6119
    %6541 = vmatpush1.bf16.msra.mxu0 %v6118
    %6542 = vmatprep.mubr.bf16.mxu0 %v5215
    %6543 = vmatmul.mubr.bf16.gmra.mrb[0].mxu0 %v5214
    %v6544 = vpop.f32.mrb[0].mxu0
    %v6545 = vadd.f32 0.0, %v6544
    %v6546 = vpop.f32.mrb[0].mxu0
    %v6547 = vadd.f32 0.0, %v6546
    %v6548 = vpop.f32.mrb[0].mxu0
    %v6549 = vadd.f32 0.0, %v6548
    %v6550 = vpop.f32.mrb[0].mxu0
    %v6551 = vadd.f32 0.0, %v6550
    %6552 = vmatprep.mubr.bf16.mxu0 %v5219
    %6553 = vmatmul.mubr.bf16.gmra.mrb[0].mxu0 %v5218
    %v6554 = vpop.f32.mrb[0].mxu0
    %v6555 = vadd.f32 0.0, %v6554
    %v6556 = vpop.f32.mrb[0].mxu0
    %v6557 = vadd.f32 0.0, %v6556
    %v6558 = vpop.f32.mrb[0].mxu0
    %v6559 = vadd.f32 0.0, %v6558
    %v6560 = vpop.f32.mrb[0].mxu0
    %v6561 = vadd.f32 0.0, %v6560
    %6562 = vdwg.mxu0
    %6563 = vmatprep.subr.bf16.mxu0 %v6127
    %6564 = vmatpush1.bf16.msra.mxu0 %v6126
    %6565 = vmatprep.subr.bf16.mxu0 %v6135
    %6566 = vmatpush1.bf16.msra.mxu0 %v6134
    %6567 = vmatprep.subr.bf16.mxu0 %v6143
    %6568 = vmatpush1.bf16.msra.mxu0 %v6142
    %6569 = vmatprep.subr.bf16.mxu0 %v6151
    %6570 = vmatpush1.bf16.msra.mxu0 %v6150
    %6571 = vmatprep.subr.bf16.mxu0 %v6159
    %6572 = vmatpush1.bf16.msra.mxu0 %v6158
    %6573 = vmatprep.subr.bf16.mxu0 %v6167
    %6574 = vmatpush1.bf16.msra.mxu0 %v6166
    %6575 = vmatprep.subr.bf16.mxu0 %v6175
    %6576 = vmatpush1.bf16.msra.mxu0 %v6174
    %6577 = vmatprep.subr.bf16.mxu0 %v6183
    %6578 = vmatpush1.bf16.msra.mxu0 %v6182
    %6579 = vmatprep.subr.bf16.mxu0 %v6191
    %6580 = vmatpush1.bf16.msra.mxu0 %v6190
    %6581 = vmatprep.subr.bf16.mxu0 %v6199
    %6582 = vmatpush1.bf16.msra.mxu0 %v6198
    %6583 = vmatprep.subr.bf16.mxu0 %v6207
    %6584 = vmatpush1.bf16.msra.mxu0 %v6206
    %6585 = vmatprep.subr.bf16.mxu0 %v6215
    %6586 = vmatpush1.bf16.msra.mxu0 %v6214
    %6587 = vmatprep.subr.bf16.mxu0 %v6223
    %6588 = vmatpush1.bf16.msra.mxu0 %v6222
    %6589 = vmatprep.subr.bf16.mxu0 %v6231
    %6590 = vmatpush1.bf16.msra.mxu0 %v6230
    %6591 = vmatprep.subr.bf16.mxu0 %v6239
    %6592 = vmatpush1.bf16.msra.mxu0 %v6238
    %6593 = vmatprep.subr.bf16.mxu0 %v6247
    %6594 = vmatpush1.bf16.msra.mxu0 %v6246
    %6595 = vmatprep.mubr.bf16.mxu0 %v5217
    %6596 = vmatmul.mubr.bf16.gmra.mrb[0].mxu0 %v5216
    %v6597 = vpop.f32.mrb[0].mxu0
    %v6598 = vadd.f32 %v6545, %v6597
    %v6599 = vpop.f32.mrb[0].mxu0
    %v6600 = vadd.f32 %v6547, %v6599
    %v6601 = vpop.f32.mrb[0].mxu0
    %v6602 = vadd.f32 %v6549, %v6601
    %v6603 = vpop.f32.mrb[0].mxu0
    %v6604 = vadd.f32 %v6551, %v6603
    %6605 = vmatprep.mubr.bf16.mxu0 %v5221
    %6606 = vmatmul.mubr.bf16.gmra.mrb[0].mxu0 %v5220
    %v6607 = vpop.f32.mrb[0].mxu0
    %v6608 = vadd.f32 %v6555, %v6607
    %v6609 = vpop.f32.mrb[0].mxu0
    %v6610 = vadd.f32 %v6557, %v6609
    %v6611 = vpop.f32.mrb[0].mxu0
    %v6612 = vadd.f32 %v6559, %v6611
    %v6613 = vpop.f32.mrb[0].mxu0
    %v6614 = vadd.f32 %v6561, %v6613
    %6615 = vdwg.mxu0
    %6616 = vmatprep.subr.bf16.mxu0 %v6001
    %6617 = vmatpush1.bf16.msra.mxu0 %v6000
    %6618 = vmatprep.subr.bf16.mxu0 %v6009
    %6619 = vmatpush1.bf16.msra.mxu0 %v6008
    %6620 = vmatprep.subr.bf16.mxu0 %v6017
    %6621 = vmatpush1.bf16.msra.mxu0 %v6016
    %6622 = vmatprep.subr.bf16.mxu0 %v6025
    %6623 = vmatpush1.bf16.msra.mxu0 %v6024
    %6624 = vmatprep.subr.bf16.mxu0 %v6033
    %6625 = vmatpush1.bf16.msra.mxu0 %v6032
    %6626 = vmatprep.subr.bf16.mxu0 %v6041
    %6627 = vmatpush1.bf16.msra.mxu0 %v6040
    %6628 = vmatprep.subr.bf16.mxu0 %v6049
    %6629 = vmatpush1.bf16.msra.mxu0 %v6048
    %6630 = vmatprep.subr.bf16.mxu0 %v6057
    %6631 = vmatpush1.bf16.msra.mxu0 %v6056
    %6632 = vmatprep.subr.bf16.mxu0 %v6065
    %6633 = vmatpush1.bf16.msra.mxu0 %v6064
    %6634 = vmatprep.subr.bf16.mxu0 %v6073
    %6635 = vmatpush1.bf16.msra.mxu0 %v6072
    %6636 = vmatprep.subr.bf16.mxu0 %v6081
    %6637 = vmatpush1.bf16.msra.mxu0 %v6080
    %6638 = vmatprep.subr.bf16.mxu0 %v6089
    %6639 = vmatpush1.bf16.msra.mxu0 %v6088
    %6640 = vmatprep.subr.bf16.mxu0 %v6097
    %6641 = vmatpush1.bf16.msra.mxu0 %v6096
    %6642 = vmatprep.subr.bf16.mxu0 %v6105
    %6643 = vmatpush1.bf16.msra.mxu0 %v6104
    %6644 = vmatprep.subr.bf16.mxu0 %v6113
    %6645 = vmatpush1.bf16.msra.mxu0 %v6112
    %6646 = vmatprep.subr.bf16.mxu0 %v6121
    %6647 = vmatpush1.bf16.msra.mxu0 %v6120
    %6648 = vmatprep.mubr.bf16.mxu0 %v5215
    %6649 = vmatmul.mubr.bf16.gmra.mrb[0].mxu0 %v5214
    %v6650 = vpop.f32.mrb[0].mxu0
    %v6651 = vadd.f32 0.0, %v6650
    %v6652 = vpop.f32.mrb[0].mxu0
    %v6653 = vadd.f32 0.0, %v6652
    %v6654 = vpop.f32.mrb[0].mxu0
    %v6655 = vadd.f32 0.0, %v6654
    %v6656 = vpop.f32.mrb[0].mxu0
    %v6657 = vadd.f32 0.0, %v6656
    %6658 = vmatprep.mubr.bf16.mxu0 %v5219
    %6659 = vmatmul.mubr.bf16.gmra.mrb[0].mxu0 %v5218
    %v6660 = vpop.f32.mrb[0].mxu0
    %v6661 = vadd.f32 0.0, %v6660
    %v6662 = vpop.f32.mrb[0].mxu0
    %v6663 = vadd.f32 0.0, %v6662
    %v6664 = vpop.f32.mrb[0].mxu0
    %v6665 = vadd.f32 0.0, %v6664
    %v6666 = vpop.f32.mrb[0].mxu0
    %v6667 = vadd.f32 0.0, %v6666
    %6668 = vdwg.mxu0
    %6669 = vmatprep.subr.bf16.mxu0 %v6129
    %6670 = vmatpush1.bf16.msra.mxu0 %v6128
    %6671 = vmatprep.subr.bf16.mxu0 %v6137
    %6672 = vmatpush1.bf16.msra.mxu0 %v6136
    %6673 = vmatprep.subr.bf16.mxu0 %v6145
    %6674 = vmatpush1.bf16.msra.mxu0 %v6144
    %6675 = vmatprep.subr.bf16.mxu0 %v6153
    %6676 = vmatpush1.bf16.msra.mxu0 %v6152
    %6677 = vmatprep.subr.bf16.mxu0 %v6161
    %6678 = vmatpush1.bf16.msra.mxu0 %v6160
    %6679 = vmatprep.subr.bf16.mxu0 %v6169
    %6680 = vmatpush1.bf16.msra.mxu0 %v6168
    %6681 = vmatprep.subr.bf16.mxu0 %v6177
    %6682 = vmatpush1.bf16.msra.mxu0 %v6176
    %6683 = vmatprep.subr.bf16.mxu0 %v6185
    %6684 = vmatpush1.bf16.msra.mxu0 %v6184
    %6685 = vmatprep.subr.bf16.mxu0 %v6193
    %6686 = vmatpush1.bf16.msra.mxu0 %v6192
    %6687 = vmatprep.subr.bf16.mxu0 %v6201
    %6688 = vmatpush1.bf16.msra.mxu0 %v6200
    %6689 = vmatprep.subr.bf16.mxu0 %v6209
    %6690 = vmatpush1.bf16.msra.mxu0 %v6208
    %6691 = vmatprep.subr.bf16.mxu0 %v6217
    %6692 = vmatpush1.bf16.msra.mxu0 %v6216
    %6693 = vmatprep.subr.bf16.mxu0 %v6225
    %6694 = vmatpush1.bf16.msra.mxu0 %v6224
    %6695 = vmatprep.subr.bf16.mxu0 %v6233
    %6696 = vmatpush1.bf16.msra.mxu0 %v6232
    %6697 = vmatprep.subr.bf16.mxu0 %v6241
    %6698 = vmatpush1.bf16.msra.mxu0 %v6240
    %6699 = vmatprep.subr.bf16.mxu0 %v6249
    %6700 = vmatpush1.bf16.msra.mxu0 %v6248
    %6701 = vmatprep.mubr.bf16.mxu0 %v5217
    %6702 = vmatmul.mubr.bf16.gmra.mrb[0].mxu0 %v5216
    %v6703 = vpop.f32.mrb[0].mxu0
    %v6704 = vadd.f32 %v6651, %v6703
    %v6705 = vpop.f32.mrb[0].mxu0
    %v6706 = vadd.f32 %v6653, %v6705
    %v6707 = vpop.f32.mrb[0].mxu0
    %v6708 = vadd.f32 %v6655, %v6707
    %v6709 = vpop.f32.mrb[0].mxu0
    %v6710 = vadd.f32 %v6657, %v6709
    %6711 = vmatprep.mubr.bf16.mxu0 %v5221
    %6712 = vmatmul.mubr.bf16.gmra.mrb[0].mxu0 %v5220
    %v6713 = vpop.f32.mrb[0].mxu0
    %v6714 = vadd.f32 %v6661, %v6713
    %v6715 = vpop.f32.mrb[0].mxu0
    %v6716 = vadd.f32 %v6663, %v6715
    %v6717 = vpop.f32.mrb[0].mxu0
    %v6718 = vadd.f32 %v6665, %v6717
    %v6719 = vpop.f32.mrb[0].mxu0
    %v6720 = vadd.f32 %v6667, %v6719
    %6721 = vdwg.mxu0
    %6722 = vmatprep.subr.bf16.mxu0 %v6003
    %6723 = vmatpush1.bf16.msra.mxu0 %v6002
    %6724 = vmatprep.subr.bf16.mxu0 %v6011
    %6725 = vmatpush1.bf16.msra.mxu0 %v6010
    %6726 = vmatprep.subr.bf16.mxu0 %v6019
    %6727 = vmatpush1.bf16.msra.mxu0 %v6018
    %6728 = vmatprep.subr.bf16.mxu0 %v6027
    %6729 = vmatpush1.bf16.msra.mxu0 %v6026
    %6730 = vmatprep.subr.bf16.mxu0 %v6035
    %6731 = vmatpush1.bf16.msra.mxu0 %v6034
    %6732 = vmatprep.subr.bf16.mxu0 %v6043
    %6733 = vmatpush1.bf16.msra.mxu0 %v6042
    %6734 = vmatprep.subr.bf16.mxu0 %v6051
    %6735 = vmatpush1.bf16.msra.mxu0 %v6050
    %6736 = vmatprep.subr.bf16.mxu0 %v6059
    %6737 = vmatpush1.bf16.msra.mxu0 %v6058
    %6738 = vmatprep.subr.bf16.mxu0 %v6067
    %6739 = vmatpush1.bf16.msra.mxu0 %v6066
    %6740 = vmatprep.subr.bf16.mxu0 %v6075
    %6741 = vmatpush1.bf16.msra.mxu0 %v6074
    %6742 = vmatprep.subr.bf16.mxu0 %v6083
    %6743 = vmatpush1.bf16.msra.mxu0 %v6082
    %6744 = vmatprep.subr.bf16.mxu0 %v6091
    %6745 = vmatpush1.bf16.msra.mxu0 %v6090
    %6746 = vmatprep.subr.bf16.mxu0 %v6099
    %6747 = vmatpush1.bf16.msra.mxu0 %v6098
    %6748 = vmatprep.subr.bf16.mxu0 %v6107
    %6749 = vmatpush1.bf16.msra.mxu0 %v6106
    %6750 = vmatprep.subr.bf16.mxu0 %v6115
    %6751 = vmatpush1.bf16.msra.mxu0 %v6114
    %6752 = vmatprep.subr.bf16.mxu0 %v6123
    %6753 = vmatpush1.bf16.msra.mxu0 %v6122
    %6754 = vmatprep.mubr.bf16.mxu0 %v5215
    %6755 = vmatmul.mubr.bf16.gmra.mrb[0].mxu0 %v5214
    %v6756 = vpop.f32.mrb[0].mxu0
    %v6757 = vadd.f32 0.0, %v6756
    %v6758 = vpop.f32.mrb[0].mxu0
    %v6759 = vadd.f32 0.0, %v6758
    %v6760 = vpop.f32.mrb[0].mxu0
    %v6761 = vadd.f32 0.0, %v6760
    %v6762 = vpop.f32.mrb[0].mxu0
    %v6763 = vadd.f32 0.0, %v6762
    %6764 = vmatprep.mubr.bf16.mxu0 %v5219
    %6765 = vmatmul.mubr.bf16.gmra.mrb[0].mxu0 %v5218
    %v6766 = vpop.f32.mrb[0].mxu0
    %v6767 = vadd.f32 0.0, %v6766
    %v6768 = vpop.f32.mrb[0].mxu0
    %v6769 = vadd.f32 0.0, %v6768
    %v6770 = vpop.f32.mrb[0].mxu0
    %v6771 = vadd.f32 0.0, %v6770
    %v6772 = vpop.f32.mrb[0].mxu0
    %v6773 = vadd.f32 0.0, %v6772
    %6774 = vdwg.mxu0
    %6775 = vmatprep.subr.bf16.mxu0 %v6131
    %6776 = vmatpush1.bf16.msra.mxu0 %v6130
    %6777 = vmatprep.subr.bf16.mxu0 %v6139
    %6778 = vmatpush1.bf16.msra.mxu0 %v6138
    %6779 = vmatprep.subr.bf16.mxu0 %v6147
    %6780 = vmatpush1.bf16.msra.mxu0 %v6146
    %6781 = vmatprep.subr.bf16.mxu0 %v6155
    %6782 = vmatpush1.bf16.msra.mxu0 %v6154
    %6783 = vmatprep.subr.bf16.mxu0 %v6163
    %6784 = vmatpush1.bf16.msra.mxu0 %v6162
    %6785 = vmatprep.subr.bf16.mxu0 %v6171
    %6786 = vmatpush1.bf16.msra.mxu0 %v6170
    %6787 = vmatprep.subr.bf16.mxu0 %v6179
    %6788 = vmatpush1.bf16.msra.mxu0 %v6178
    %6789 = vmatprep.subr.bf16.mxu0 %v6187
    %6790 = vmatpush1.bf16.msra.mxu0 %v6186
    %6791 = vmatprep.subr.bf16.mxu0 %v6195
    %6792 = vmatpush1.bf16.msra.mxu0 %v6194
    %6793 = vmatprep.subr.bf16.mxu0 %v6203
    %6794 = vmatpush1.bf16.msra.mxu0 %v6202
    %6795 = vmatprep.subr.bf16.mxu0 %v6211
    %6796 = vmatpush1.bf16.msra.mxu0 %v6210
    %6797 = vmatprep.subr.bf16.mxu0 %v6219
    %6798 = vmatpush1.bf16.msra.mxu0 %v6218
    %6799 = vmatprep.subr.bf16.mxu0 %v6227
    %6800 = vmatpush1.bf16.msra.mxu0 %v6226
    %6801 = vmatprep.subr.bf16.mxu0 %v6235
    %6802 = vmatpush1.bf16.msra.mxu0 %v6234
    %6803 = vmatprep.subr.bf16.mxu0 %v6243
    %6804 = vmatpush1.bf16.msra.mxu0 %v6242
    %6805 = vmatprep.subr.bf16.mxu0 %v6251
    %6806 = vmatpush1.bf16.msra.mxu0 %v6250
    %6807 = vmatprep.mubr.bf16.mxu0 %v5217
    %6808 = vmatmul.mubr.bf16.gmra.mrb[0].mxu0 %v5216
    %v6809 = vpop.f32.mrb[0].mxu0
    %v6810 = vadd.f32 %v6757, %v6809
    %v6811 = vpop.f32.mrb[0].mxu0
    %v6812 = vadd.f32 %v6759, %v6811
    %v6813 = vpop.f32.mrb[0].mxu0
    %v6814 = vadd.f32 %v6761, %v6813
    %v6815 = vpop.f32.mrb[0].mxu0
    %v6816 = vadd.f32 %v6763, %v6815
    %6817 = vmatprep.mubr.bf16.mxu0 %v5221
    %6818 = vmatmul.mubr.bf16.gmra.mrb[0].mxu0 %v5220
    %v6819 = vpop.f32.mrb[0].mxu0
    %v6820 = vadd.f32 %v6767, %v6819
    %v6821 = vpop.f32.mrb[0].mxu0
    %v6822 = vadd.f32 %v6769, %v6821
    %v6823 = vpop.f32.mrb[0].mxu0
    %v6824 = vadd.f32 %v6771, %v6823
    %v6825 = vpop.f32.mrb[0].mxu0
    %v6826 = vadd.f32 %v6773, %v6825
    %6827 = vdwg.mxu0
    %6828 = vmatprep.subr.bf16.mxu0 %v6005
    %6829 = vmatpush1.bf16.msra.mxu0 %v6004
    %6830 = vmatprep.subr.bf16.mxu0 %v6013
    %6831 = vmatpush1.bf16.msra.mxu0 %v6012
    %6832 = vmatprep.subr.bf16.mxu0 %v6021
    %6833 = vmatpush1.bf16.msra.mxu0 %v6020
    %6834 = vmatprep.subr.bf16.mxu0 %v6029
    %6835 = vmatpush1.bf16.msra.mxu0 %v6028
    %6836 = vmatprep.subr.bf16.mxu0 %v6037
    %6837 = vmatpush1.bf16.msra.mxu0 %v6036
    %6838 = vmatprep.subr.bf16.mxu0 %v6045
    %6839 = vmatpush1.bf16.msra.mxu0 %v6044
    %6840 = vmatprep.subr.bf16.mxu0 %v6053
    %6841 = vmatpush1.bf16.msra.mxu0 %v6052
    %6842 = vmatprep.subr.bf16.mxu0 %v6061
    %6843 = vmatpush1.bf16.msra.mxu0 %v6060
    %6844 = vmatprep.subr.bf16.mxu0 %v6069
    %6845 = vmatpush1.bf16.msra.mxu0 %v6068
    %6846 = vmatprep.subr.bf16.mxu0 %v6077
    %6847 = vmatpush1.bf16.msra.mxu0 %v6076
    %6848 = vmatprep.subr.bf16.mxu0 %v6085
    %6849 = vmatpush1.bf16.msra.mxu0 %v6084
    %6850 = vmatprep.subr.bf16.mxu0 %v6093
    %6851 = vmatpush1.bf16.msra.mxu0 %v6092
    %6852 = vmatprep.subr.bf16.mxu0 %v6101
    %6853 = vmatpush1.bf16.msra.mxu0 %v6100
    %6854 = vmatprep.subr.bf16.mxu0 %v6109
    %6855 = vmatpush1.bf16.msra.mxu0 %v6108
    %6856 = vmatprep.subr.bf16.mxu0 %v6117
    %6857 = vmatpush1.bf16.msra.mxu0 %v6116
    %6858 = vmatprep.subr.bf16.mxu0 %v6125
    %6859 = vmatpush1.bf16.msra.mxu0 %v6124
    %6860 = vmatprep.mubr.bf16.mxu0 %v5215
    %6861 = vmatmul.mubr.bf16.gmra.mrb[0].mxu0 %v5214
    %v6862 = vpop.f32.mrb[0].mxu0
    %v6863 = vadd.f32 0.0, %v6862
    %v6864 = vpop.f32.mrb[0].mxu0
    %v6865 = vadd.f32 0.0, %v6864
    %v6866 = vpop.f32.mrb[0].mxu0
    %v6867 = vadd.f32 0.0, %v6866
    %v6868 = vpop.f32.mrb[0].mxu0
    %v6869 = vadd.f32 0.0, %v6868
    %6870 = vmatprep.mubr.bf16.mxu0 %v5219
    %6871 = vmatmul.mubr.bf16.gmra.mrb[0].mxu0 %v5218
    %v6872 = vpop.f32.mrb[0].mxu0
    %v6873 = vadd.f32 0.0, %v6872
    %v6874 = vpop.f32.mrb[0].mxu0
    %v6875 = vadd.f32 0.0, %v6874
    %v6876 = vpop.f32.mrb[0].mxu0
    %v6877 = vadd.f32 0.0, %v6876
    %v6878 = vpop.f32.mrb[0].mxu0
    %v6879 = vadd.f32 0.0, %v6878
    %6880 = vdwg.mxu0
    %6881 = vmatprep.subr.bf16.mxu0 %v6133
    %6882 = vmatpush1.bf16.msra.mxu0 %v6132
    %6883 = vmatprep.subr.bf16.mxu0 %v6141
    %6884 = vmatpush1.bf16.msra.mxu0 %v6140
    %6885 = vmatprep.subr.bf16.mxu0 %v6149
    %6886 = vmatpush1.bf16.msra.mxu0 %v6148
    %6887 = vmatprep.subr.bf16.mxu0 %v6157
    %6888 = vmatpush1.bf16.msra.mxu0 %v6156
    %6889 = vmatprep.subr.bf16.mxu0 %v6165
    %6890 = vmatpush1.bf16.msra.mxu0 %v6164
    %6891 = vmatprep.subr.bf16.mxu0 %v6173
    %6892 = vmatpush1.bf16.msra.mxu0 %v6172
    %6893 = vmatprep.subr.bf16.mxu0 %v6181
    %6894 = vmatpush1.bf16.msra.mxu0 %v6180
    %6895 = vmatprep.subr.bf16.mxu0 %v6189
    %6896 = vmatpush1.bf16.msra.mxu0 %v6188
    %6897 = vmatprep.subr.bf16.mxu0 %v6197
    %6898 = vmatpush1.bf16.msra.mxu0 %v6196
    %6899 = vmatprep.subr.bf16.mxu0 %v6205
    %6900 = vmatpush1.bf16.msra.mxu0 %v6204
    %6901 = vmatprep.subr.bf16.mxu0 %v6213
    %6902 = vmatpush1.bf16.msra.mxu0 %v6212
    %6903 = vmatprep.subr.bf16.mxu0 %v6221
    %6904 = vmatpush1.bf16.msra.mxu0 %v6220
    %6905 = vmatprep.subr.bf16.mxu0 %v6229
    %6906 = vmatpush1.bf16.msra.mxu0 %v6228
    %6907 = vmatprep.subr.bf16.mxu0 %v6237
    %6908 = vmatpush1.bf16.msra.mxu0 %v6236
    %6909 = vmatprep.subr.bf16.mxu0 %v6245
    %6910 = vmatpush1.bf16.msra.mxu0 %v6244
    %6911 = vmatprep.subr.bf16.mxu0 %v6253
    %6912 = vmatpush1.bf16.msra.mxu0 %v6252
    %6913 = vmatprep.mubr.bf16.mxu0 %v5217
    %6914 = vmatmul.mubr.bf16.gmra.mrb[0].mxu0 %v5216
    %v6915 = vpop.f32.mrb[0].mxu0
    %v6916 = vadd.f32 %v6863, %v6915
    %v6917 = vpop.f32.mrb[0].mxu0
    %v6918 = vadd.f32 %v6865, %v6917
    %v6919 = vpop.f32.mrb[0].mxu0
    %v6920 = vadd.f32 %v6867, %v6919
    %v6921 = vpop.f32.mrb[0].mxu0
    %v6922 = vadd.f32 %v6869, %v6921
    %6923 = vmatprep.mubr.bf16.mxu0 %v5221
    %6924 = vmatmul.mubr.bf16.gmra.mrb[0].mxu0 %v5220
    %v6925 = vpop.f32.mrb[0].mxu0
    %v6926 = vadd.f32 %v6873, %v6925
    %v6927 = vpop.f32.mrb[0].mxu0
    %v6928 = vadd.f32 %v6875, %v6927
    %v6929 = vpop.f32.mrb[0].mxu0
    %v6930 = vadd.f32 %v6877, %v6929
    %v6931 = vpop.f32.mrb[0].mxu0
    %v6932 = vadd.f32 %v6879, %v6931
    %6933 = vdwg.mxu0
    %v6934 = vunpack.c.l.b16 %v4601
    %v6935 = vunpack.c.h.b16 %v4601
    %v6936 = vunpack.c.l.b16 %v4614
    %v6937 = vunpack.c.h.b16 %v4614
    %v6938 = vunpack.c.l.b16 %v4623
    %v6939 = vunpack.c.h.b16 %v4623
    %v6940 = vunpack.c.l.b16 %v4632
    %v6941 = vunpack.c.h.b16 %v4632
    %v6942 = vunpack.c.l.b16 %v4645
    %v6943 = vunpack.c.h.b16 %v4645
    %v6944 = vunpack.c.l.b16 %v4658
    %v6945 = vunpack.c.h.b16 %v4658
    %v6946 = vunpack.c.l.b16 %v4667
    %v6947 = vunpack.c.h.b16 %v4667
    %v6948 = vunpack.c.l.b16 %v4676
    %v6949 = vunpack.c.h.b16 %v4676
    %v6950 = vpack.c.b16 %v6938, %v6934
    %v6951 = vpack.c.b16 %v6939, %v6935
    %v6952 = vpack.c.b16 %v6940, %v6936
    %v6953 = vpack.c.b16 %v6941, %v6937
    %v6954 = vpack.c.b16 %v6946, %v6942
    %v6955 = vpack.c.b16 %v6947, %v6943
    %v6956 = vpack.c.b16 %v6948, %v6944
    %v6957 = vpack.c.b16 %v6949, %v6945
    %v7222 = vunpack.c.l.b16 %v4677
    %v7223 = vunpack.c.h.b16 %v4677
    %v7224 = vunpack.c.l.b16 %v4678
    %v7225 = vunpack.c.h.b16 %v4678
    %v7226 = vunpack.c.l.b16 %v4679
    %v7227 = vunpack.c.h.b16 %v4679
    %v7228 = vunpack.c.l.b16 %v4680
    %v7229 = vunpack.c.h.b16 %v4680
    %v7230 = vunpack.c.l.b16 %v4681
    %v7231 = vunpack.c.h.b16 %v4681
    %v7232 = vunpack.c.l.b16 %v4682
    %v7233 = vunpack.c.h.b16 %v4682
    %v7234 = vunpack.c.l.b16 %v4683
    %v7235 = vunpack.c.h.b16 %v4683
    %v7236 = vunpack.c.l.b16 %v4684
    %v7237 = vunpack.c.h.b16 %v4684
    %v7238 = vunpack.c.l.b16 %v4685
    %v7239 = vunpack.c.h.b16 %v4685
    %v7240 = vunpack.c.l.b16 %v4686
    %v7241 = vunpack.c.h.b16 %v4686
    %v7242 = vunpack.c.l.b16 %v4687
    %v7243 = vunpack.c.h.b16 %v4687
    %v7244 = vunpack.c.l.b16 %v4688
    %v7245 = vunpack.c.h.b16 %v4688
    %v7246 = vunpack.c.l.b16 %v4689
    %v7247 = vunpack.c.h.b16 %v4689
    %v7248 = vunpack.c.l.b16 %v4690
    %v7249 = vunpack.c.h.b16 %v4690
    %v7250 = vunpack.c.l.b16 %v4691
    %v7251 = vunpack.c.h.b16 %v4691
    %v7252 = vunpack.c.l.b16 %v4692
    %v7253 = vunpack.c.h.b16 %v4692
    %v7254 = vunpack.c.l.b16 %v4693
    %v7255 = vunpack.c.h.b16 %v4693
    %v7256 = vunpack.c.l.b16 %v4694
    %v7257 = vunpack.c.h.b16 %v4694
    %v7258 = vunpack.c.l.b16 %v4695
    %v7259 = vunpack.c.h.b16 %v4695
    %v7260 = vunpack.c.l.b16 %v4696
    %v7261 = vunpack.c.h.b16 %v4696
    %v7262 = vunpack.c.l.b16 %v4697
    %v7263 = vunpack.c.h.b16 %v4697
    %v7264 = vunpack.c.l.b16 %v4698
    %v7265 = vunpack.c.h.b16 %v4698
    %v7266 = vunpack.c.l.b16 %v4699
    %v7267 = vunpack.c.h.b16 %v4699
    %v7268 = vunpack.c.l.b16 %v4700
    %v7269 = vunpack.c.h.b16 %v4700
    %v7270 = vunpack.c.l.b16 %v4701
    %v7271 = vunpack.c.h.b16 %v4701
    %v7272 = vunpack.c.l.b16 %v4702
    %v7273 = vunpack.c.h.b16 %v4702
    %v7274 = vunpack.c.l.b16 %v4703
    %v7275 = vunpack.c.h.b16 %v4703
    %v7276 = vunpack.c.l.b16 %v4704
    %v7277 = vunpack.c.h.b16 %v4704
    %v7278 = vunpack.c.l.b16 %v4705
    %v7279 = vunpack.c.h.b16 %v4705
    %v7280 = vunpack.c.l.b16 %v4706
    %v7281 = vunpack.c.h.b16 %v4706
    %v7282 = vunpack.c.l.b16 %v4707
    %v7283 = vunpack.c.h.b16 %v4707
    %v7284 = vunpack.c.l.b16 %v4708
    %v7285 = vunpack.c.h.b16 %v4708
    %v7286 = vunpack.c.l.b16 %v4709
    %v7287 = vunpack.c.h.b16 %v4709
    %v7288 = vunpack.c.l.b16 %v4710
    %v7289 = vunpack.c.h.b16 %v4710
    %v7290 = vunpack.c.l.b16 %v4711
    %v7291 = vunpack.c.h.b16 %v4711
    %v7292 = vunpack.c.l.b16 %v4712
    %v7293 = vunpack.c.h.b16 %v4712
    %v7294 = vunpack.c.l.b16 %v4713
    %v7295 = vunpack.c.h.b16 %v4713
    %v7296 = vunpack.c.l.b16 %v4714
    %v7297 = vunpack.c.h.b16 %v4714
    %v7298 = vunpack.c.l.b16 %v4715
    %v7299 = vunpack.c.h.b16 %v4715
    %v7300 = vunpack.c.l.b16 %v4716
    %v7301 = vunpack.c.h.b16 %v4716
    %v7302 = vunpack.c.l.b16 %v4717
    %v7303 = vunpack.c.h.b16 %v4717
    %v7304 = vunpack.c.l.b16 %v4718
    %v7305 = vunpack.c.h.b16 %v4718
    %v7306 = vunpack.c.l.b16 %v4719
    %v7307 = vunpack.c.h.b16 %v4719
    %v7308 = vunpack.c.l.b16 %v4720
    %v7309 = vunpack.c.h.b16 %v4720
    %v7310 = vunpack.c.l.b16 %v4721
    %v7311 = vunpack.c.h.b16 %v4721
    %v7312 = vunpack.c.l.b16 %v4722
    %v7313 = vunpack.c.h.b16 %v4722
    %v7314 = vunpack.c.l.b16 %v4723
    %v7315 = vunpack.c.h.b16 %v4723
    %v7316 = vunpack.c.l.b16 %v4724
    %v7317 = vunpack.c.h.b16 %v4724
    %v7318 = vunpack.c.l.b16 %v4725
    %v7319 = vunpack.c.h.b16 %v4725
    %v7320 = vunpack.c.l.b16 %v4726
    %v7321 = vunpack.c.h.b16 %v4726
    %v7322 = vunpack.c.l.b16 %v4727
    %v7323 = vunpack.c.h.b16 %v4727
    %v7324 = vunpack.c.l.b16 %v4728
    %v7325 = vunpack.c.h.b16 %v4728
    %v7326 = vunpack.c.l.b16 %v4729
    %v7327 = vunpack.c.h.b16 %v4729
    %v7328 = vunpack.c.l.b16 %v4730
    %v7329 = vunpack.c.h.b16 %v4730
    %v7330 = vunpack.c.l.b16 %v4731
    %v7331 = vunpack.c.h.b16 %v4731
    %v7332 = vunpack.c.l.b16 %v4732
    %v7333 = vunpack.c.h.b16 %v4732
    %v7334 = vunpack.c.l.b16 %v4733
    %v7335 = vunpack.c.h.b16 %v4733
    %v7336 = vunpack.c.l.b16 %v4734
    %v7337 = vunpack.c.h.b16 %v4734
    %v7338 = vunpack.c.l.b16 %v4735
    %v7339 = vunpack.c.h.b16 %v4735
    %v7340 = vunpack.c.l.b16 %v4736
    %v7341 = vunpack.c.h.b16 %v4736
    %v7342 = vunpack.c.l.b16 %v4737
    %v7343 = vunpack.c.h.b16 %v4737
    %v7344 = vunpack.c.l.b16 %v4738
    %v7345 = vunpack.c.h.b16 %v4738
    %v7346 = vunpack.c.l.b16 %v4739
    %v7347 = vunpack.c.h.b16 %v4739
    %v7348 = vunpack.c.l.b16 %v4740
    %v7349 = vunpack.c.h.b16 %v4740
    %v7350 = vunpack.c.l.b16 %v4741
    %v7351 = vunpack.c.h.b16 %v4741
    %v7352 = vunpack.c.l.b16 %v4742
    %v7353 = vunpack.c.h.b16 %v4742
    %v7354 = vunpack.c.l.b16 %v4743
    %v7355 = vunpack.c.h.b16 %v4743
    %v7356 = vunpack.c.l.b16 %v4744
    %v7357 = vunpack.c.h.b16 %v4744
    %v7358 = vunpack.c.l.b16 %v4745
    %v7359 = vunpack.c.h.b16 %v4745
    %v7360 = vunpack.c.l.b16 %v4746
    %v7361 = vunpack.c.h.b16 %v4746
    %v7362 = vunpack.c.l.b16 %v4747
    %v7363 = vunpack.c.h.b16 %v4747
    %v7364 = vunpack.c.l.b16 %v4748
    %v7365 = vunpack.c.h.b16 %v4748
    %v7366 = vunpack.c.l.b16 %v4749
    %v7367 = vunpack.c.h.b16 %v4749
    %v7368 = vunpack.c.l.b16 %v4750
    %v7369 = vunpack.c.h.b16 %v4750
    %v7370 = vunpack.c.l.b16 %v4751
    %v7371 = vunpack.c.h.b16 %v4751
    %v7372 = vunpack.c.l.b16 %v4752
    %v7373 = vunpack.c.h.b16 %v4752
    %v7374 = vunpack.c.l.b16 %v4753
    %v7375 = vunpack.c.h.b16 %v4753
    %v7376 = vunpack.c.l.b16 %v4754
    %v7377 = vunpack.c.h.b16 %v4754
    %v7378 = vunpack.c.l.b16 %v4755
    %v7379 = vunpack.c.h.b16 %v4755
    %v7380 = vunpack.c.l.b16 %v4756
    %v7381 = vunpack.c.h.b16 %v4756
    %v7382 = vunpack.c.l.b16 %v4757
    %v7383 = vunpack.c.h.b16 %v4757
    %v7384 = vunpack.c.l.b16 %v4758
    %v7385 = vunpack.c.h.b16 %v4758
    %v7386 = vunpack.c.l.b16 %v4759
    %v7387 = vunpack.c.h.b16 %v4759
    %v7388 = vunpack.c.l.b16 %v4760
    %v7389 = vunpack.c.h.b16 %v4760
    %v7390 = vunpack.c.l.b16 %v4761
    %v7391 = vunpack.c.h.b16 %v4761
    %v7392 = vunpack.c.l.b16 %v4762
    %v7393 = vunpack.c.h.b16 %v4762
    %v7394 = vunpack.c.l.b16 %v4763
    %v7395 = vunpack.c.h.b16 %v4763
    %v7396 = vunpack.c.l.b16 %v4764
    %v7397 = vunpack.c.h.b16 %v4764
    %v7398 = vunpack.c.l.b16 %v4765
    %v7399 = vunpack.c.h.b16 %v4765
    %v7400 = vunpack.c.l.b16 %v4766
    %v7401 = vunpack.c.h.b16 %v4766
    %v7402 = vunpack.c.l.b16 %v4767
    %v7403 = vunpack.c.h.b16 %v4767
    %v7404 = vunpack.c.l.b16 %v4768
    %v7405 = vunpack.c.h.b16 %v4768
    %v7406 = vunpack.c.l.b16 %v4769
    %v7407 = vunpack.c.h.b16 %v4769
    %v7408 = vunpack.c.l.b16 %v4770
    %v7409 = vunpack.c.h.b16 %v4770
    %v7410 = vunpack.c.l.b16 %v4771
    %v7411 = vunpack.c.h.b16 %v4771
    %v7412 = vunpack.c.l.b16 %v4772
    %v7413 = vunpack.c.h.b16 %v4772
    %v7414 = vunpack.c.l.b16 %v4773
    %v7415 = vunpack.c.h.b16 %v4773
    %v7416 = vunpack.c.l.b16 %v4774
    %v7417 = vunpack.c.h.b16 %v4774
    %v7418 = vunpack.c.l.b16 %v4775
    %v7419 = vunpack.c.h.b16 %v4775
    %v7420 = vunpack.c.l.b16 %v4776
    %v7421 = vunpack.c.h.b16 %v4776
    %v7422 = vunpack.c.l.b16 %v4777
    %v7423 = vunpack.c.h.b16 %v4777
    %v7424 = vunpack.c.l.b16 %v4778
    %v7425 = vunpack.c.h.b16 %v4778
    %v7426 = vunpack.c.l.b16 %v4779
    %v7427 = vunpack.c.h.b16 %v4779
    %v7428 = vunpack.c.l.b16 %v4780
    %v7429 = vunpack.c.h.b16 %v4780
    %v7430 = vunpack.c.l.b16 %v4781
    %v7431 = vunpack.c.h.b16 %v4781
    %v7432 = vunpack.c.l.b16 %v4782
    %v7433 = vunpack.c.h.b16 %v4782
    %v7434 = vunpack.c.l.b16 %v4783
    %v7435 = vunpack.c.h.b16 %v4783
    %v7436 = vunpack.c.l.b16 %v4784
    %v7437 = vunpack.c.h.b16 %v4784
    %v7438 = vunpack.c.l.b16 %v4785
    %v7439 = vunpack.c.h.b16 %v4785
    %v7440 = vunpack.c.l.b16 %v4786
    %v7441 = vunpack.c.h.b16 %v4786
    %v7442 = vunpack.c.l.b16 %v4787
    %v7443 = vunpack.c.h.b16 %v4787
    %v7444 = vunpack.c.l.b16 %v4788
    %v7445 = vunpack.c.h.b16 %v4788
    %v7446 = vunpack.c.l.b16 %v4789
    %v7447 = vunpack.c.h.b16 %v4789
    %v7448 = vunpack.c.l.b16 %v4790
    %v7449 = vunpack.c.h.b16 %v4790
    %v7450 = vunpack.c.l.b16 %v4791
    %v7451 = vunpack.c.h.b16 %v4791
    %v7452 = vunpack.c.l.b16 %v4792
    %v7453 = vunpack.c.h.b16 %v4792
    %v7454 = vunpack.c.l.b16 %v4793
    %v7455 = vunpack.c.h.b16 %v4793
    %v7456 = vunpack.c.l.b16 %v4794
    %v7457 = vunpack.c.h.b16 %v4794
    %v7458 = vunpack.c.l.b16 %v4795
    %v7459 = vunpack.c.h.b16 %v4795
    %v7460 = vunpack.c.l.b16 %v4796
    %v7461 = vunpack.c.h.b16 %v4796
    %v7462 = vunpack.c.l.b16 %v4797
    %v7463 = vunpack.c.h.b16 %v4797
    %v7464 = vunpack.c.l.b16 %v4798
    %v7465 = vunpack.c.h.b16 %v4798
    %v7466 = vunpack.c.l.b16 %v4799
    %v7467 = vunpack.c.h.b16 %v4799
    %v7468 = vunpack.c.l.b16 %v4800
    %v7469 = vunpack.c.h.b16 %v4800
    %v7470 = vunpack.c.l.b16 %v4801
    %v7471 = vunpack.c.h.b16 %v4801
    %v7472 = vunpack.c.l.b16 %v4802
    %v7473 = vunpack.c.h.b16 %v4802
    %v7474 = vunpack.c.l.b16 %v4803
    %v7475 = vunpack.c.h.b16 %v4803
    %v7476 = vunpack.c.l.b16 %v4804
    %v7477 = vunpack.c.h.b16 %v4804
    %v7478 = vunpack.c.l.b16 %v4805
    %v7479 = vunpack.c.h.b16 %v4805
    %v7480 = vunpack.c.l.b16 %v4806
    %v7481 = vunpack.c.h.b16 %v4806
    %v7482 = vunpack.c.l.b16 %v4807
    %v7483 = vunpack.c.h.b16 %v4807
    %v7484 = vunpack.c.l.b16 %v4808
    %v7485 = vunpack.c.h.b16 %v4808
    %v7486 = vunpack.c.l.b16 %v4809
    %v7487 = vunpack.c.h.b16 %v4809
    %v7488 = vunpack.c.l.b16 %v4810
    %v7489 = vunpack.c.h.b16 %v4810
    %v7490 = vunpack.c.l.b16 %v4811
    %v7491 = vunpack.c.h.b16 %v4811
    %v7492 = vunpack.c.l.b16 %v4812
    %v7493 = vunpack.c.h.b16 %v4812
    %v7494 = vunpack.c.l.b16 %v4813
    %v7495 = vunpack.c.h.b16 %v4813
    %v7496 = vunpack.c.l.b16 %v4814
    %v7497 = vunpack.c.h.b16 %v4814
    %v7498 = vunpack.c.l.b16 %v4815
    %v7499 = vunpack.c.h.b16 %v4815
    %v7500 = vunpack.c.l.b16 %v4816
    %v7501 = vunpack.c.h.b16 %v4816
    %v7502 = vunpack.c.l.b16 %v4817
    %v7503 = vunpack.c.h.b16 %v4817
    %v7504 = vunpack.c.l.b16 %v4818
    %v7505 = vunpack.c.h.b16 %v4818
    %v7506 = vunpack.c.l.b16 %v4819
    %v7507 = vunpack.c.h.b16 %v4819
    %v7508 = vunpack.c.l.b16 %v4820
    %v7509 = vunpack.c.h.b16 %v4820
    %v7510 = vunpack.c.l.b16 %v4821
    %v7511 = vunpack.c.h.b16 %v4821
    %v7512 = vunpack.c.l.b16 %v4822
    %v7513 = vunpack.c.h.b16 %v4822
    %v7514 = vunpack.c.l.b16 %v4823
    %v7515 = vunpack.c.h.b16 %v4823
    %v7516 = vunpack.c.l.b16 %v4824
    %v7517 = vunpack.c.h.b16 %v4824
    %v7518 = vunpack.c.l.b16 %v4825
    %v7519 = vunpack.c.h.b16 %v4825
    %v7520 = vunpack.c.l.b16 %v4826
    %v7521 = vunpack.c.h.b16 %v4826
    %v7522 = vunpack.c.l.b16 %v4827
    %v7523 = vunpack.c.h.b16 %v4827
    %v7524 = vunpack.c.l.b16 %v4828
    %v7525 = vunpack.c.h.b16 %v4828
    %v7526 = vunpack.c.l.b16 %v4829
    %v7527 = vunpack.c.h.b16 %v4829
    %v7528 = vunpack.c.l.b16 %v4830
    %v7529 = vunpack.c.h.b16 %v4830
    %v7530 = vunpack.c.l.b16 %v4831
    %v7531 = vunpack.c.h.b16 %v4831
    %v7532 = vunpack.c.l.b16 %v4832
    %v7533 = vunpack.c.h.b16 %v4832
    %v7534 = vunpack.c.l.b16 %v4833
    %v7535 = vunpack.c.h.b16 %v4833
    %v7536 = vunpack.c.l.b16 %v4834
    %v7537 = vunpack.c.h.b16 %v4834
    %v7538 = vunpack.c.l.b16 %v4835
    %v7539 = vunpack.c.h.b16 %v4835
    %v7540 = vunpack.c.l.b16 %v4836
    %v7541 = vunpack.c.h.b16 %v4836
    %v7542 = vunpack.c.l.b16 %v4837
    %v7543 = vunpack.c.h.b16 %v4837
    %v7544 = vunpack.c.l.b16 %v4838
    %v7545 = vunpack.c.h.b16 %v4838
    %v7546 = vunpack.c.l.b16 %v4839
    %v7547 = vunpack.c.h.b16 %v4839
    %v7548 = vunpack.c.l.b16 %v4840
    %v7549 = vunpack.c.h.b16 %v4840
    %v7550 = vunpack.c.l.b16 %v4841
    %v7551 = vunpack.c.h.b16 %v4841
    %v7552 = vunpack.c.l.b16 %v4842
    %v7553 = vunpack.c.h.b16 %v4842
    %v7554 = vunpack.c.l.b16 %v4843
    %v7555 = vunpack.c.h.b16 %v4843
    %v7556 = vunpack.c.l.b16 %v4844
    %v7557 = vunpack.c.h.b16 %v4844
    %v7558 = vunpack.c.l.b16 %v4845
    %v7559 = vunpack.c.h.b16 %v4845
    %v7560 = vunpack.c.l.b16 %v4846
    %v7561 = vunpack.c.h.b16 %v4846
    %v7562 = vunpack.c.l.b16 %v4847
    %v7563 = vunpack.c.h.b16 %v4847
    %v7564 = vunpack.c.l.b16 %v4848
    %v7565 = vunpack.c.h.b16 %v4848
    %v7566 = vunpack.c.l.b16 %v4849
    %v7567 = vunpack.c.h.b16 %v4849
    %v7568 = vunpack.c.l.b16 %v4850
    %v7569 = vunpack.c.h.b16 %v4850
    %v7570 = vunpack.c.l.b16 %v4851
    %v7571 = vunpack.c.h.b16 %v4851
    %v7572 = vunpack.c.l.b16 %v4852
    %v7573 = vunpack.c.h.b16 %v4852
    %v7574 = vunpack.c.l.b16 %v4853
    %v7575 = vunpack.c.h.b16 %v4853
    %v7576 = vunpack.c.l.b16 %v4854
    %v7577 = vunpack.c.h.b16 %v4854
    %v7578 = vunpack.c.l.b16 %v4855
    %v7579 = vunpack.c.h.b16 %v4855
    %v7580 = vunpack.c.l.b16 %v4856
    %v7581 = vunpack.c.h.b16 %v4856
    %v7582 = vunpack.c.l.b16 %v4857
    %v7583 = vunpack.c.h.b16 %v4857
    %v7584 = vunpack.c.l.b16 %v4858
    %v7585 = vunpack.c.h.b16 %v4858
    %v7586 = vunpack.c.l.b16 %v4859
    %v7587 = vunpack.c.h.b16 %v4859
    %v7588 = vunpack.c.l.b16 %v4860
    %v7589 = vunpack.c.h.b16 %v4860
    %v7590 = vunpack.c.l.b16 %v4861
    %v7591 = vunpack.c.h.b16 %v4861
    %v7592 = vunpack.c.l.b16 %v4862
    %v7593 = vunpack.c.h.b16 %v4862
    %v7594 = vunpack.c.l.b16 %v4863
    %v7595 = vunpack.c.h.b16 %v4863
    %v7596 = vunpack.c.l.b16 %v4864
    %v7597 = vunpack.c.h.b16 %v4864
    %v7598 = vunpack.c.l.b16 %v4865
    %v7599 = vunpack.c.h.b16 %v4865
    %v7600 = vunpack.c.l.b16 %v4866
    %v7601 = vunpack.c.h.b16 %v4866
    %v7602 = vunpack.c.l.b16 %v4867
    %v7603 = vunpack.c.h.b16 %v4867
    %v7604 = vunpack.c.l.b16 %v4868
    %v7605 = vunpack.c.h.b16 %v4868
    %v7606 = vunpack.c.l.b16 %v4869
    %v7607 = vunpack.c.h.b16 %v4869
    %v7608 = vunpack.c.l.b16 %v4870
    %v7609 = vunpack.c.h.b16 %v4870
    %v7610 = vunpack.c.l.b16 %v4871
    %v7611 = vunpack.c.h.b16 %v4871
    %v7612 = vunpack.c.l.b16 %v4872
    %v7613 = vunpack.c.h.b16 %v4872
    %v7614 = vunpack.c.l.b16 %v4873
    %v7615 = vunpack.c.h.b16 %v4873
    %v7616 = vunpack.c.l.b16 %v4874
    %v7617 = vunpack.c.h.b16 %v4874
    %v7618 = vunpack.c.l.b16 %v4875
    %v7619 = vunpack.c.h.b16 %v4875
    %v7620 = vunpack.c.l.b16 %v4876
    %v7621 = vunpack.c.h.b16 %v4876
    %v7622 = vunpack.c.l.b16 %v4877
    %v7623 = vunpack.c.h.b16 %v4877
    %v7624 = vunpack.c.l.b16 %v4878
    %v7625 = vunpack.c.h.b16 %v4878
    %v7626 = vunpack.c.l.b16 %v4879
    %v7627 = vunpack.c.h.b16 %v4879
    %v7628 = vunpack.c.l.b16 %v4880
    %v7629 = vunpack.c.h.b16 %v4880
    %v7630 = vunpack.c.l.b16 %v4881
    %v7631 = vunpack.c.h.b16 %v4881
    %v7632 = vunpack.c.l.b16 %v4882
    %v7633 = vunpack.c.h.b16 %v4882
    %v7634 = vunpack.c.l.b16 %v4883
    %v7635 = vunpack.c.h.b16 %v4883
    %v7636 = vunpack.c.l.b16 %v4884
    %v7637 = vunpack.c.h.b16 %v4884
    %v7638 = vunpack.c.l.b16 %v4885
    %v7639 = vunpack.c.h.b16 %v4885
    %v7640 = vunpack.c.l.b16 %v4886
    %v7641 = vunpack.c.h.b16 %v4886
    %v7642 = vunpack.c.l.b16 %v4887
    %v7643 = vunpack.c.h.b16 %v4887
    %v7644 = vunpack.c.l.b16 %v4888
    %v7645 = vunpack.c.h.b16 %v4888
    %v7646 = vunpack.c.l.b16 %v4889
    %v7647 = vunpack.c.h.b16 %v4889
    %v7648 = vunpack.c.l.b16 %v4890
    %v7649 = vunpack.c.h.b16 %v4890
    %v7650 = vunpack.c.l.b16 %v4891
    %v7651 = vunpack.c.h.b16 %v4891
    %v7652 = vunpack.c.l.b16 %v4892
    %v7653 = vunpack.c.h.b16 %v4892
    %v7654 = vunpack.c.l.b16 %v4893
    %v7655 = vunpack.c.h.b16 %v4893
    %v7656 = vunpack.c.l.b16 %v4894
    %v7657 = vunpack.c.h.b16 %v4894
    %v7658 = vunpack.c.l.b16 %v4895
    %v7659 = vunpack.c.h.b16 %v4895
    %v7660 = vunpack.c.l.b16 %v4896
    %v7661 = vunpack.c.h.b16 %v4896
    %v7662 = vunpack.c.l.b16 %v4897
    %v7663 = vunpack.c.h.b16 %v4897
    %v7664 = vunpack.c.l.b16 %v4898
    %v7665 = vunpack.c.h.b16 %v4898
    %v7666 = vunpack.c.l.b16 %v4899
    %v7667 = vunpack.c.h.b16 %v4899
    %v7668 = vunpack.c.l.b16 %v4900
    %v7669 = vunpack.c.h.b16 %v4900
    %v7670 = vunpack.c.l.b16 %v4901
    %v7671 = vunpack.c.h.b16 %v4901
    %v7672 = vunpack.c.l.b16 %v4902
    %v7673 = vunpack.c.h.b16 %v4902
    %v7674 = vunpack.c.l.b16 %v4903
    %v7675 = vunpack.c.h.b16 %v4903
    %v7676 = vunpack.c.l.b16 %v4904
    %v7677 = vunpack.c.h.b16 %v4904
    %v7678 = vunpack.c.l.b16 %v4905
    %v7679 = vunpack.c.h.b16 %v4905
    %v7680 = vunpack.c.l.b16 %v4906
    %v7681 = vunpack.c.h.b16 %v4906
    %v7682 = vunpack.c.l.b16 %v4907
    %v7683 = vunpack.c.h.b16 %v4907
    %v7684 = vunpack.c.l.b16 %v4908
    %v7685 = vunpack.c.h.b16 %v4908
    %v7686 = vunpack.c.l.b16 %v4909
    %v7687 = vunpack.c.h.b16 %v4909
    %v7688 = vunpack.c.l.b16 %v4910
    %v7689 = vunpack.c.h.b16 %v4910
    %v7690 = vunpack.c.l.b16 %v4911
    %v7691 = vunpack.c.h.b16 %v4911
    %v7692 = vunpack.c.l.b16 %v4912
    %v7693 = vunpack.c.h.b16 %v4912
    %v7694 = vunpack.c.l.b16 %v4913
    %v7695 = vunpack.c.h.b16 %v4913
    %v7696 = vunpack.c.l.b16 %v4914
    %v7697 = vunpack.c.h.b16 %v4914
    %v7698 = vunpack.c.l.b16 %v4915
    %v7699 = vunpack.c.h.b16 %v4915
    %v7700 = vunpack.c.l.b16 %v4916
    %v7701 = vunpack.c.h.b16 %v4916
    %v7702 = vunpack.c.l.b16 %v4917
    %v7703 = vunpack.c.h.b16 %v4917
    %v7704 = vunpack.c.l.b16 %v4918
    %v7705 = vunpack.c.h.b16 %v4918
    %v7706 = vunpack.c.l.b16 %v4919
    %v7707 = vunpack.c.h.b16 %v4919
    %v7708 = vunpack.c.l.b16 %v4920
    %v7709 = vunpack.c.h.b16 %v4920
    %v7710 = vunpack.c.l.b16 %v4921
    %v7711 = vunpack.c.h.b16 %v4921
    %v7712 = vunpack.c.l.b16 %v4922
    %v7713 = vunpack.c.h.b16 %v4922
    %v7714 = vunpack.c.l.b16 %v4923
    %v7715 = vunpack.c.h.b16 %v4923
    %v7716 = vunpack.c.l.b16 %v4924
    %v7717 = vunpack.c.h.b16 %v4924
    %v7718 = vunpack.c.l.b16 %v4925
    %v7719 = vunpack.c.h.b16 %v4925
    %v7720 = vunpack.c.l.b16 %v4926
    %v7721 = vunpack.c.h.b16 %v4926
    %v7722 = vunpack.c.l.b16 %v4927
    %v7723 = vunpack.c.h.b16 %v4927
    %v7724 = vunpack.c.l.b16 %v4928
    %v7725 = vunpack.c.h.b16 %v4928
    %v7726 = vunpack.c.l.b16 %v4929
    %v7727 = vunpack.c.h.b16 %v4929
    %v7728 = vunpack.c.l.b16 %v4930
    %v7729 = vunpack.c.h.b16 %v4930
    %v7730 = vunpack.c.l.b16 %v4931
    %v7731 = vunpack.c.h.b16 %v4931
    %v7732 = vunpack.c.l.b16 %v4932
    %v7733 = vunpack.c.h.b16 %v4932
    %v7734 = vpack.c.b16 %v7230, %v7222
    %v7735 = vpack.c.b16 %v7231, %v7223
    %v7736 = vpack.c.b16 %v7232, %v7224
    %v7737 = vpack.c.b16 %v7233, %v7225
    %v7738 = vpack.c.b16 %v7234, %v7226
    %v7739 = vpack.c.b16 %v7235, %v7227
    %v7740 = vpack.c.b16 %v7236, %v7228
    %v7741 = vpack.c.b16 %v7237, %v7229
    %v7742 = vpack.c.b16 %v7246, %v7238
    %v7743 = vpack.c.b16 %v7247, %v7239
    %v7744 = vpack.c.b16 %v7248, %v7240
    %v7745 = vpack.c.b16 %v7249, %v7241
    %v7746 = vpack.c.b16 %v7250, %v7242
    %v7747 = vpack.c.b16 %v7251, %v7243
    %v7748 = vpack.c.b16 %v7252, %v7244
    %v7749 = vpack.c.b16 %v7253, %v7245
    %v7750 = vpack.c.b16 %v7262, %v7254
    %v7751 = vpack.c.b16 %v7263, %v7255
    %v7752 = vpack.c.b16 %v7264, %v7256
    %v7753 = vpack.c.b16 %v7265, %v7257
    %v7754 = vpack.c.b16 %v7266, %v7258
    %v7755 = vpack.c.b16 %v7267, %v7259
    %v7756 = vpack.c.b16 %v7268, %v7260
    %v7757 = vpack.c.b16 %v7269, %v7261
    %v7758 = vpack.c.b16 %v7278, %v7270
    %v7759 = vpack.c.b16 %v7279, %v7271
    %v7760 = vpack.c.b16 %v7280, %v7272
    %v7761 = vpack.c.b16 %v7281, %v7273
    %v7762 = vpack.c.b16 %v7282, %v7274
    %v7763 = vpack.c.b16 %v7283, %v7275
    %v7764 = vpack.c.b16 %v7284, %v7276
    %v7765 = vpack.c.b16 %v7285, %v7277
    %v7766 = vpack.c.b16 %v7294, %v7286
    %v7767 = vpack.c.b16 %v7295, %v7287
    %v7768 = vpack.c.b16 %v7296, %v7288
    %v7769 = vpack.c.b16 %v7297, %v7289
    %v7770 = vpack.c.b16 %v7298, %v7290
    %v7771 = vpack.c.b16 %v7299, %v7291
    %v7772 = vpack.c.b16 %v7300, %v7292
    %v7773 = vpack.c.b16 %v7301, %v7293
    %v7774 = vpack.c.b16 %v7310, %v7302
    %v7775 = vpack.c.b16 %v7311, %v7303
    %v7776 = vpack.c.b16 %v7312, %v7304
    %v7777 = vpack.c.b16 %v7313, %v7305
    %v7778 = vpack.c.b16 %v7314, %v7306
    %v7779 = vpack.c.b16 %v7315, %v7307
    %v7780 = vpack.c.b16 %v7316, %v7308
    %v7781 = vpack.c.b16 %v7317, %v7309
    %v7782 = vpack.c.b16 %v7326, %v7318
    %v7783 = vpack.c.b16 %v7327, %v7319
    %v7784 = vpack.c.b16 %v7328, %v7320
    %v7785 = vpack.c.b16 %v7329, %v7321
    %v7786 = vpack.c.b16 %v7330, %v7322
    %v7787 = vpack.c.b16 %v7331, %v7323
    %v7788 = vpack.c.b16 %v7332, %v7324
    %v7789 = vpack.c.b16 %v7333, %v7325
    %v7790 = vpack.c.b16 %v7342, %v7334
    %v7791 = vpack.c.b16 %v7343, %v7335
    %v7792 = vpack.c.b16 %v7344, %v7336
    %v7793 = vpack.c.b16 %v7345, %v7337
    %v7794 = vpack.c.b16 %v7346, %v7338
    %v7795 = vpack.c.b16 %v7347, %v7339
    %v7796 = vpack.c.b16 %v7348, %v7340
    %v7797 = vpack.c.b16 %v7349, %v7341
    %v7798 = vpack.c.b16 %v7358, %v7350
    %v7799 = vpack.c.b16 %v7359, %v7351
    %v7800 = vpack.c.b16 %v7360, %v7352
    %v7801 = vpack.c.b16 %v7361, %v7353
    %v7802 = vpack.c.b16 %v7362, %v7354
    %v7803 = vpack.c.b16 %v7363, %v7355
    %v7804 = vpack.c.b16 %v7364, %v7356
    %v7805 = vpack.c.b16 %v7365, %v7357
    %v7806 = vpack.c.b16 %v7374, %v7366
    %v7807 = vpack.c.b16 %v7375, %v7367
    %v7808 = vpack.c.b16 %v7376, %v7368
    %v7809 = vpack.c.b16 %v7377, %v7369
    %v7810 = vpack.c.b16 %v7378, %v7370
    %v7811 = vpack.c.b16 %v7379, %v7371
    %v7812 = vpack.c.b16 %v7380, %v7372
    %v7813 = vpack.c.b16 %v7381, %v7373
    %v7814 = vpack.c.b16 %v7390, %v7382
    %v7815 = vpack.c.b16 %v7391, %v7383
    %v7816 = vpack.c.b16 %v7392, %v7384
    %v7817 = vpack.c.b16 %v7393, %v7385
    %v7818 = vpack.c.b16 %v7394, %v7386
    %v7819 = vpack.c.b16 %v7395, %v7387
    %v7820 = vpack.c.b16 %v7396, %v7388
    %v7821 = vpack.c.b16 %v7397, %v7389
    %v7822 = vpack.c.b16 %v7406, %v7398
    %v7823 = vpack.c.b16 %v7407, %v7399
    %v7824 = vpack.c.b16 %v7408, %v7400
    %v7825 = vpack.c.b16 %v7409, %v7401
    %v7826 = vpack.c.b16 %v7410, %v7402
    %v7827 = vpack.c.b16 %v7411, %v7403
    %v7828 = vpack.c.b16 %v7412, %v7404
    %v7829 = vpack.c.b16 %v7413, %v7405
    %v7830 = vpack.c.b16 %v7422, %v7414
    %v7831 = vpack.c.b16 %v7423, %v7415
    %v7832 = vpack.c.b16 %v7424, %v7416
    %v7833 = vpack.c.b16 %v7425, %v7417
    %v7834 = vpack.c.b16 %v7426, %v7418
    %v7835 = vpack.c.b16 %v7427, %v7419
    %v7836 = vpack.c.b16 %v7428, %v7420
    %v7837 = vpack.c.b16 %v7429, %v7421
    %v7838 = vpack.c.b16 %v7438, %v7430
    %v7839 = vpack.c.b16 %v7439, %v7431
    %v7840 = vpack.c.b16 %v7440, %v7432
    %v7841 = vpack.c.b16 %v7441, %v7433
    %v7842 = vpack.c.b16 %v7442, %v7434
    %v7843 = vpack.c.b16 %v7443, %v7435
    %v7844 = vpack.c.b16 %v7444, %v7436
    %v7845 = vpack.c.b16 %v7445, %v7437
    %v7846 = vpack.c.b16 %v7454, %v7446
    %v7847 = vpack.c.b16 %v7455, %v7447
    %v7848 = vpack.c.b16 %v7456, %v7448
    %v7849 = vpack.c.b16 %v7457, %v7449
    %v7850 = vpack.c.b16 %v7458, %v7450
    %v7851 = vpack.c.b16 %v7459, %v7451
    %v7852 = vpack.c.b16 %v7460, %v7452
    %v7853 = vpack.c.b16 %v7461, %v7453
    %v7854 = vpack.c.b16 %v7470, %v7462
    %v7855 = vpack.c.b16 %v7471, %v7463
    %v7856 = vpack.c.b16 %v7472, %v7464
    %v7857 = vpack.c.b16 %v7473, %v7465
    %v7858 = vpack.c.b16 %v7474, %v7466
    %v7859 = vpack.c.b16 %v7475, %v7467
    %v7860 = vpack.c.b16 %v7476, %v7468
    %v7861 = vpack.c.b16 %v7477, %v7469
    %v7862 = vpack.c.b16 %v7486, %v7478
    %v7863 = vpack.c.b16 %v7487, %v7479
    %v7864 = vpack.c.b16 %v7488, %v7480
    %v7865 = vpack.c.b16 %v7489, %v7481
    %v7866 = vpack.c.b16 %v7490, %v7482
    %v7867 = vpack.c.b16 %v7491, %v7483
    %v7868 = vpack.c.b16 %v7492, %v7484
    %v7869 = vpack.c.b16 %v7493, %v7485
    %v7870 = vpack.c.b16 %v7502, %v7494
    %v7871 = vpack.c.b16 %v7503, %v7495
    %v7872 = vpack.c.b16 %v7504, %v7496
    %v7873 = vpack.c.b16 %v7505, %v7497
    %v7874 = vpack.c.b16 %v7506, %v7498
    %v7875 = vpack.c.b16 %v7507, %v7499
    %v7876 = vpack.c.b16 %v7508, %v7500
    %v7877 = vpack.c.b16 %v7509, %v7501
    %v7878 = vpack.c.b16 %v7518, %v7510
    %v7879 = vpack.c.b16 %v7519, %v7511
    %v7880 = vpack.c.b16 %v7520, %v7512
    %v7881 = vpack.c.b16 %v7521, %v7513
    %v7882 = vpack.c.b16 %v7522, %v7514
    %v7883 = vpack.c.b16 %v7523, %v7515
    %v7884 = vpack.c.b16 %v7524, %v7516
    %v7885 = vpack.c.b16 %v7525, %v7517
    %v7886 = vpack.c.b16 %v7534, %v7526
    %v7887 = vpack.c.b16 %v7535, %v7527
    %v7888 = vpack.c.b16 %v7536, %v7528
    %v7889 = vpack.c.b16 %v7537, %v7529
    %v7890 = vpack.c.b16 %v7538, %v7530
    %v7891 = vpack.c.b16 %v7539, %v7531
    %v7892 = vpack.c.b16 %v7540, %v7532
    %v7893 = vpack.c.b16 %v7541, %v7533
    %v7894 = vpack.c.b16 %v7550, %v7542
    %v7895 = vpack.c.b16 %v7551, %v7543
    %v7896 = vpack.c.b16 %v7552, %v7544
    %v7897 = vpack.c.b16 %v7553, %v7545
    %v7898 = vpack.c.b16 %v7554, %v7546
    %v7899 = vpack.c.b16 %v7555, %v7547
    %v7900 = vpack.c.b16 %v7556, %v7548
    %v7901 = vpack.c.b16 %v7557, %v7549
    %v7902 = vpack.c.b16 %v7566, %v7558
    %v7903 = vpack.c.b16 %v7567, %v7559
    %v7904 = vpack.c.b16 %v7568, %v7560
    %v7905 = vpack.c.b16 %v7569, %v7561
    %v7906 = vpack.c.b16 %v7570, %v7562
    %v7907 = vpack.c.b16 %v7571, %v7563
    %v7908 = vpack.c.b16 %v7572, %v7564
    %v7909 = vpack.c.b16 %v7573, %v7565
    %v7910 = vpack.c.b16 %v7582, %v7574
    %v7911 = vpack.c.b16 %v7583, %v7575
    %v7912 = vpack.c.b16 %v7584, %v7576
    %v7913 = vpack.c.b16 %v7585, %v7577
    %v7914 = vpack.c.b16 %v7586, %v7578
    %v7915 = vpack.c.b16 %v7587, %v7579
    %v7916 = vpack.c.b16 %v7588, %v7580
    %v7917 = vpack.c.b16 %v7589, %v7581
    %v7918 = vpack.c.b16 %v7598, %v7590
    %v7919 = vpack.c.b16 %v7599, %v7591
    %v7920 = vpack.c.b16 %v7600, %v7592
    %v7921 = vpack.c.b16 %v7601, %v7593
    %v7922 = vpack.c.b16 %v7602, %v7594
    %v7923 = vpack.c.b16 %v7603, %v7595
    %v7924 = vpack.c.b16 %v7604, %v7596
    %v7925 = vpack.c.b16 %v7605, %v7597
    %v7926 = vpack.c.b16 %v7614, %v7606
    %v7927 = vpack.c.b16 %v7615, %v7607
    %v7928 = vpack.c.b16 %v7616, %v7608
    %v7929 = vpack.c.b16 %v7617, %v7609
    %v7930 = vpack.c.b16 %v7618, %v7610
    %v7931 = vpack.c.b16 %v7619, %v7611
    %v7932 = vpack.c.b16 %v7620, %v7612
    %v7933 = vpack.c.b16 %v7621, %v7613
    %v7934 = vpack.c.b16 %v7630, %v7622
    %v7935 = vpack.c.b16 %v7631, %v7623
    %v7936 = vpack.c.b16 %v7632, %v7624
    %v7937 = vpack.c.b16 %v7633, %v7625
    %v7938 = vpack.c.b16 %v7634, %v7626
    %v7939 = vpack.c.b16 %v7635, %v7627
    %v7940 = vpack.c.b16 %v7636, %v7628
    %v7941 = vpack.c.b16 %v7637, %v7629
    %v7942 = vpack.c.b16 %v7646, %v7638
    %v7943 = vpack.c.b16 %v7647, %v7639
    %v7944 = vpack.c.b16 %v7648, %v7640
    %v7945 = vpack.c.b16 %v7649, %v7641
    %v7946 = vpack.c.b16 %v7650, %v7642
    %v7947 = vpack.c.b16 %v7651, %v7643
    %v7948 = vpack.c.b16 %v7652, %v7644
    %v7949 = vpack.c.b16 %v7653, %v7645
    %v7950 = vpack.c.b16 %v7662, %v7654
    %v7951 = vpack.c.b16 %v7663, %v7655
    %v7952 = vpack.c.b16 %v7664, %v7656
    %v7953 = vpack.c.b16 %v7665, %v7657
    %v7954 = vpack.c.b16 %v7666, %v7658
    %v7955 = vpack.c.b16 %v7667, %v7659
    %v7956 = vpack.c.b16 %v7668, %v7660
    %v7957 = vpack.c.b16 %v7669, %v7661
    %v7958 = vpack.c.b16 %v7678, %v7670
    %v7959 = vpack.c.b16 %v7679, %v7671
    %v7960 = vpack.c.b16 %v7680, %v7672
    %v7961 = vpack.c.b16 %v7681, %v7673
    %v7962 = vpack.c.b16 %v7682, %v7674
    %v7963 = vpack.c.b16 %v7683, %v7675
    %v7964 = vpack.c.b16 %v7684, %v7676
    %v7965 = vpack.c.b16 %v7685, %v7677
    %v7966 = vpack.c.b16 %v7694, %v7686
    %v7967 = vpack.c.b16 %v7695, %v7687
    %v7968 = vpack.c.b16 %v7696, %v7688
    %v7969 = vpack.c.b16 %v7697, %v7689
    %v7970 = vpack.c.b16 %v7698, %v7690
    %v7971 = vpack.c.b16 %v7699, %v7691
    %v7972 = vpack.c.b16 %v7700, %v7692
    %v7973 = vpack.c.b16 %v7701, %v7693
    %v7974 = vpack.c.b16 %v7710, %v7702
    %v7975 = vpack.c.b16 %v7711, %v7703
    %v7976 = vpack.c.b16 %v7712, %v7704
    %v7977 = vpack.c.b16 %v7713, %v7705
    %v7978 = vpack.c.b16 %v7714, %v7706
    %v7979 = vpack.c.b16 %v7715, %v7707
    %v7980 = vpack.c.b16 %v7716, %v7708
    %v7981 = vpack.c.b16 %v7717, %v7709
    %v7982 = vpack.c.b16 %v7726, %v7718
    %v7983 = vpack.c.b16 %v7727, %v7719
    %v7984 = vpack.c.b16 %v7728, %v7720
    %v7985 = vpack.c.b16 %v7729, %v7721
    %v7986 = vpack.c.b16 %v7730, %v7722
    %v7987 = vpack.c.b16 %v7731, %v7723
    %v7988 = vpack.c.b16 %v7732, %v7724
    %v7989 = vpack.c.b16 %v7733, %v7725
    %8246 = vmatprep.subr.bf16.mxu0 %v7735
    %8247 = vmatpush1.bf16.msra.mxu0 %v7734
    %8248 = vmatprep.subr.bf16.mxu0 %v7743
    %8249 = vmatpush1.bf16.msra.mxu0 %v7742
    %8250 = vmatprep.subr.bf16.mxu0 %v7751
    %8251 = vmatpush1.bf16.msra.mxu0 %v7750
    %8252 = vmatprep.subr.bf16.mxu0 %v7759
    %8253 = vmatpush1.bf16.msra.mxu0 %v7758
    %8254 = vmatprep.subr.bf16.mxu0 %v7767
    %8255 = vmatpush1.bf16.msra.mxu0 %v7766
    %8256 = vmatprep.subr.bf16.mxu0 %v7775
    %8257 = vmatpush1.bf16.msra.mxu0 %v7774
    %8258 = vmatprep.subr.bf16.mxu0 %v7783
    %8259 = vmatpush1.bf16.msra.mxu0 %v7782
    %8260 = vmatprep.subr.bf16.mxu0 %v7791
    %8261 = vmatpush1.bf16.msra.mxu0 %v7790
    %8262 = vmatprep.subr.bf16.mxu0 %v7799
    %8263 = vmatpush1.bf16.msra.mxu0 %v7798
    %8264 = vmatprep.subr.bf16.mxu0 %v7807
    %8265 = vmatpush1.bf16.msra.mxu0 %v7806
    %8266 = vmatprep.subr.bf16.mxu0 %v7815
    %8267 = vmatpush1.bf16.msra.mxu0 %v7814
    %8268 = vmatprep.subr.bf16.mxu0 %v7823
    %8269 = vmatpush1.bf16.msra.mxu0 %v7822
    %8270 = vmatprep.subr.bf16.mxu0 %v7831
    %8271 = vmatpush1.bf16.msra.mxu0 %v7830
    %8272 = vmatprep.subr.bf16.mxu0 %v7839
    %8273 = vmatpush1.bf16.msra.mxu0 %v7838
    %8274 = vmatprep.subr.bf16.mxu0 %v7847
    %8275 = vmatpush1.bf16.msra.mxu0 %v7846
    %8276 = vmatprep.subr.bf16.mxu0 %v7855
    %8277 = vmatpush1.bf16.msra.mxu0 %v7854
    %8278 = vmatprep.mubr.bf16.mxu0 %v6951
    %8279 = vmatmul.mubr.bf16.gmra.mrb[0].mxu0 %v6950
    %v8280 = vpop.f32.mrb[0].mxu0
    %v8281 = vadd.f32 %v6598, %v8280
    %v8282 = vpop.f32.mrb[0].mxu0
    %v8283 = vadd.f32 %v6600, %v8282
    %v8284 = vpop.f32.mrb[0].mxu0
    %v8285 = vadd.f32 %v6602, %v8284
    %v8286 = vpop.f32.mrb[0].mxu0
    %v8287 = vadd.f32 %v6604, %v8286
    %8288 = vmatprep.mubr.bf16.mxu0 %v6955
    %8289 = vmatmul.mubr.bf16.gmra.mrb[0].mxu0 %v6954
    %v8290 = vpop.f32.mrb[0].mxu0
    %v8291 = vadd.f32 %v6608, %v8290
    %v8292 = vpop.f32.mrb[0].mxu0
    %v8293 = vadd.f32 %v6610, %v8292
    %v8294 = vpop.f32.mrb[0].mxu0
    %v8295 = vadd.f32 %v6612, %v8294
    %v8296 = vpop.f32.mrb[0].mxu0
    %v8297 = vadd.f32 %v6614, %v8296
    %8298 = vdwg.mxu0
    %8299 = vmatprep.subr.bf16.mxu0 %v7863
    %8300 = vmatpush1.bf16.msra.mxu0 %v7862
    %8301 = vmatprep.subr.bf16.mxu0 %v7871
    %8302 = vmatpush1.bf16.msra.mxu0 %v7870
    %8303 = vmatprep.subr.bf16.mxu0 %v7879
    %8304 = vmatpush1.bf16.msra.mxu0 %v7878
    %8305 = vmatprep.subr.bf16.mxu0 %v7887
    %8306 = vmatpush1.bf16.msra.mxu0 %v7886
    %8307 = vmatprep.subr.bf16.mxu0 %v7895
    %8308 = vmatpush1.bf16.msra.mxu0 %v7894
    %8309 = vmatprep.subr.bf16.mxu0 %v7903
    %8310 = vmatpush1.bf16.msra.mxu0 %v7902
    %8311 = vmatprep.subr.bf16.mxu0 %v7911
    %8312 = vmatpush1.bf16.msra.mxu0 %v7910
    %8313 = vmatprep.subr.bf16.mxu0 %v7919
    %8314 = vmatpush1.bf16.msra.mxu0 %v7918
    %8315 = vmatprep.subr.bf16.mxu0 %v7927
    %8316 = vmatpush1.bf16.msra.mxu0 %v7926
    %8317 = vmatprep.subr.bf16.mxu0 %v7935
    %8318 = vmatpush1.bf16.msra.mxu0 %v7934
    %8319 = vmatprep.subr.bf16.mxu0 %v7943
    %8320 = vmatpush1.bf16.msra.mxu0 %v7942
    %8321 = vmatprep.subr.bf16.mxu0 %v7951
    %8322 = vmatpush1.bf16.msra.mxu0 %v7950
    %8323 = vmatprep.subr.bf16.mxu0 %v7959
    %8324 = vmatpush1.bf16.msra.mxu0 %v7958
    %8325 = vmatprep.subr.bf16.mxu0 %v7967
    %8326 = vmatpush1.bf16.msra.mxu0 %v7966
    %8327 = vmatprep.subr.bf16.mxu0 %v7975
    %8328 = vmatpush1.bf16.msra.mxu0 %v7974
    %8329 = vmatprep.subr.bf16.mxu0 %v7983
    %8330 = vmatpush1.bf16.msra.mxu0 %v7982
    %8331 = vmatprep.mubr.bf16.mxu0 %v6953
    %8332 = vmatmul.mubr.bf16.gmra.mrb[0].mxu0 %v6952
    %v8333 = vpop.f32.mrb[0].mxu0
    %v8334 = vadd.f32 %v8281, %v8333
    %v8335 = vpop.f32.mrb[0].mxu0
    %v8336 = vadd.f32 %v8283, %v8335
    %v8337 = vpop.f32.mrb[0].mxu0
    %v8338 = vadd.f32 %v8285, %v8337
    %v8339 = vpop.f32.mrb[0].mxu0
    %v8340 = vadd.f32 %v8287, %v8339
    %8341 = vmatprep.mubr.bf16.mxu0 %v6957
    %8342 = vmatmul.mubr.bf16.gmra.mrb[0].mxu0 %v6956
    %v8343 = vpop.f32.mrb[0].mxu0
    %v8344 = vadd.f32 %v8291, %v8343
    %v8345 = vpop.f32.mrb[0].mxu0
    %v8346 = vadd.f32 %v8293, %v8345
    %v8347 = vpop.f32.mrb[0].mxu0
    %v8348 = vadd.f32 %v8295, %v8347
    %v8349 = vpop.f32.mrb[0].mxu0
    %v8350 = vadd.f32 %v8297, %v8349
    %8351 = vdwg.mxu0
    %8352 = vmatprep.subr.bf16.mxu0 %v7737
    %8353 = vmatpush1.bf16.msra.mxu0 %v7736
    %8354 = vmatprep.subr.bf16.mxu0 %v7745
    %8355 = vmatpush1.bf16.msra.mxu0 %v7744
    %8356 = vmatprep.subr.bf16.mxu0 %v7753
    %8357 = vmatpush1.bf16.msra.mxu0 %v7752
    %8358 = vmatprep.subr.bf16.mxu0 %v7761
    %8359 = vmatpush1.bf16.msra.mxu0 %v7760
    %8360 = vmatprep.subr.bf16.mxu0 %v7769
    %8361 = vmatpush1.bf16.msra.mxu0 %v7768
    %8362 = vmatprep.subr.bf16.mxu0 %v7777
    %8363 = vmatpush1.bf16.msra.mxu0 %v7776
    %8364 = vmatprep.subr.bf16.mxu0 %v7785
    %8365 = vmatpush1.bf16.msra.mxu0 %v7784
    %8366 = vmatprep.subr.bf16.mxu0 %v7793
    %8367 = vmatpush1.bf16.msra.mxu0 %v7792
    %8368 = vmatprep.subr.bf16.mxu0 %v7801
    %8369 = vmatpush1.bf16.msra.mxu0 %v7800
    %8370 = vmatprep.subr.bf16.mxu0 %v7809
    %8371 = vmatpush1.bf16.msra.mxu0 %v7808
    %8372 = vmatprep.subr.bf16.mxu0 %v7817
    %8373 = vmatpush1.bf16.msra.mxu0 %v7816
    %8374 = vmatprep.subr.bf16.mxu0 %v7825
    %8375 = vmatpush1.bf16.msra.mxu0 %v7824
    %8376 = vmatprep.subr.bf16.mxu0 %v7833
    %8377 = vmatpush1.bf16.msra.mxu0 %v7832
    %8378 = vmatprep.subr.bf16.mxu0 %v7841
    %8379 = vmatpush1.bf16.msra.mxu0 %v7840
    %8380 = vmatprep.subr.bf16.mxu0 %v7849
    %8381 = vmatpush1.bf16.msra.mxu0 %v7848
    %8382 = vmatprep.subr.bf16.mxu0 %v7857
    %8383 = vmatpush1.bf16.msra.mxu0 %v7856
    %8384 = vmatprep.mubr.bf16.mxu0 %v6951
    %8385 = vmatmul.mubr.bf16.gmra.mrb[0].mxu0 %v6950
    %v8386 = vpop.f32.mrb[0].mxu0
    %v8387 = vadd.f32 %v6704, %v8386
    %v8388 = vpop.f32.mrb[0].mxu0
    %v8389 = vadd.f32 %v6706, %v8388
    %v8390 = vpop.f32.mrb[0].mxu0
    %v8391 = vadd.f32 %v6708, %v8390
    %v8392 = vpop.f32.mrb[0].mxu0
    %v8393 = vadd.f32 %v6710, %v8392
    %8394 = vmatprep.mubr.bf16.mxu0 %v6955
    %8395 = vmatmul.mubr.bf16.gmra.mrb[0].mxu0 %v6954
    %v8396 = vpop.f32.mrb[0].mxu0
    %v8397 = vadd.f32 %v6714, %v8396
    %v8398 = vpop.f32.mrb[0].mxu0
    %v8399 = vadd.f32 %v6716, %v8398
    %v8400 = vpop.f32.mrb[0].mxu0
    %v8401 = vadd.f32 %v6718, %v8400
    %v8402 = vpop.f32.mrb[0].mxu0
    %v8403 = vadd.f32 %v6720, %v8402
    %8404 = vdwg.mxu0
    %8405 = vmatprep.subr.bf16.mxu0 %v7865
    %8406 = vmatpush1.bf16.msra.mxu0 %v7864
    %8407 = vmatprep.subr.bf16.mxu0 %v7873
    %8408 = vmatpush1.bf16.msra.mxu0 %v7872
    %8409 = vmatprep.subr.bf16.mxu0 %v7881
    %8410 = vmatpush1.bf16.msra.mxu0 %v7880
    %8411 = vmatprep.subr.bf16.mxu0 %v7889
    %8412 = vmatpush1.bf16.msra.mxu0 %v7888
    %8413 = vmatprep.subr.bf16.mxu0 %v7897
    %8414 = vmatpush1.bf16.msra.mxu0 %v7896
    %8415 = vmatprep.subr.bf16.mxu0 %v7905
    %8416 = vmatpush1.bf16.msra.mxu0 %v7904
    %8417 = vmatprep.subr.bf16.mxu0 %v7913
    %8418 = vmatpush1.bf16.msra.mxu0 %v7912
    %8419 = vmatprep.subr.bf16.mxu0 %v7921
    %8420 = vmatpush1.bf16.msra.mxu0 %v7920
    %8421 = vmatprep.subr.bf16.mxu0 %v7929
    %8422 = vmatpush1.bf16.msra.mxu0 %v7928
    %8423 = vmatprep.subr.bf16.mxu0 %v7937
    %8424 = vmatpush1.bf16.msra.mxu0 %v7936
    %8425 = vmatprep.subr.bf16.mxu0 %v7945
    %8426 = vmatpush1.bf16.msra.mxu0 %v7944
    %8427 = vmatprep.subr.bf16.mxu0 %v7953
    %8428 = vmatpush1.bf16.msra.mxu0 %v7952
    %8429 = vmatprep.subr.bf16.mxu0 %v7961
    %8430 = vmatpush1.bf16.msra.mxu0 %v7960
    %8431 = vmatprep.subr.bf16.mxu0 %v7969
    %8432 = vmatpush1.bf16.msra.mxu0 %v7968
    %8433 = vmatprep.subr.bf16.mxu0 %v7977
    %8434 = vmatpush1.bf16.msra.mxu0 %v7976
    %8435 = vmatprep.subr.bf16.mxu0 %v7985
    %8436 = vmatpush1.bf16.msra.mxu0 %v7984
    %8437 = vmatprep.mubr.bf16.mxu0 %v6953
    %8438 = vmatmul.mubr.bf16.gmra.mrb[0].mxu0 %v6952
    %v8439 = vpop.f32.mrb[0].mxu0
    %v8440 = vadd.f32 %v8387, %v8439
    %v8441 = vpop.f32.mrb[0].mxu0
    %v8442 = vadd.f32 %v8389, %v8441
    %v8443 = vpop.f32.mrb[0].mxu0
    %v8444 = vadd.f32 %v8391, %v8443
    %v8445 = vpop.f32.mrb[0].mxu0
    %v8446 = vadd.f32 %v8393, %v8445
    %8447 = vmatprep.mubr.bf16.mxu0 %v6957
    %8448 = vmatmul.mubr.bf16.gmra.mrb[0].mxu0 %v6956
    %v8449 = vpop.f32.mrb[0].mxu0
    %v8450 = vadd.f32 %v8397, %v8449
    %v8451 = vpop.f32.mrb[0].mxu0
    %v8452 = vadd.f32 %v8399, %v8451
    %v8453 = vpop.f32.mrb[0].mxu0
    %v8454 = vadd.f32 %v8401, %v8453
    %v8455 = vpop.f32.mrb[0].mxu0
    %v8456 = vadd.f32 %v8403, %v8455
    %8457 = vdwg.mxu0
    %8458 = vmatprep.subr.bf16.mxu0 %v7739
    %8459 = vmatpush1.bf16.msra.mxu0 %v7738
    %8460 = vmatprep.subr.bf16.mxu0 %v7747
    %8461 = vmatpush1.bf16.msra.mxu0 %v7746
    %8462 = vmatprep.subr.bf16.mxu0 %v7755
    %8463 = vmatpush1.bf16.msra.mxu0 %v7754
    %8464 = vmatprep.subr.bf16.mxu0 %v7763
    %8465 = vmatpush1.bf16.msra.mxu0 %v7762
    %8466 = vmatprep.subr.bf16.mxu0 %v7771
    %8467 = vmatpush1.bf16.msra.mxu0 %v7770
    %8468 = vmatprep.subr.bf16.mxu0 %v7779
    %8469 = vmatpush1.bf16.msra.mxu0 %v7778
    %8470 = vmatprep.subr.bf16.mxu0 %v7787
    %8471 = vmatpush1.bf16.msra.mxu0 %v7786
    %8472 = vmatprep.subr.bf16.mxu0 %v7795
    %8473 = vmatpush1.bf16.msra.mxu0 %v7794
    %8474 = vmatprep.subr.bf16.mxu0 %v7803
    %8475 = vmatpush1.bf16.msra.mxu0 %v7802
    %8476 = vmatprep.subr.bf16.mxu0 %v7811
    %8477 = vmatpush1.bf16.msra.mxu0 %v7810
    %8478 = vmatprep.subr.bf16.mxu0 %v7819
    %8479 = vmatpush1.bf16.msra.mxu0 %v7818
    %8480 = vmatprep.subr.bf16.mxu0 %v7827
    %8481 = vmatpush1.bf16.msra.mxu0 %v7826
    %8482 = vmatprep.subr.bf16.mxu0 %v7835
    %8483 = vmatpush1.bf16.msra.mxu0 %v7834
    %8484 = vmatprep.subr.bf16.mxu0 %v7843
    %8485 = vmatpush1.bf16.msra.mxu0 %v7842
    %8486 = vmatprep.subr.bf16.mxu0 %v7851
    %8487 = vmatpush1.bf16.msra.mxu0 %v7850
    %8488 = vmatprep.subr.bf16.mxu0 %v7859
    %8489 = vmatpush1.bf16.msra.mxu0 %v7858
    %8490 = vmatprep.mubr.bf16.mxu0 %v6951
    %8491 = vmatmul.mubr.bf16.gmra.mrb[0].mxu0 %v6950
    %v8492 = vpop.f32.mrb[0].mxu0
    %v8493 = vadd.f32 %v6810, %v8492
    %v8494 = vpop.f32.mrb[0].mxu0
    %v8495 = vadd.f32 %v6812, %v8494
    %v8496 = vpop.f32.mrb[0].mxu0
    %v8497 = vadd.f32 %v6814, %v8496
    %v8498 = vpop.f32.mrb[0].mxu0
    %v8499 = vadd.f32 %v6816, %v8498
    %8500 = vmatprep.mubr.bf16.mxu0 %v6955
    %8501 = vmatmul.mubr.bf16.gmra.mrb[0].mxu0 %v6954
    %v8502 = vpop.f32.mrb[0].mxu0
    %v8503 = vadd.f32 %v6820, %v8502
    %v8504 = vpop.f32.mrb[0].mxu0
    %v8505 = vadd.f32 %v6822, %v8504
    %v8506 = vpop.f32.mrb[0].mxu0
    %v8507 = vadd.f32 %v6824, %v8506
    %v8508 = vpop.f32.mrb[0].mxu0
    %v8509 = vadd.f32 %v6826, %v8508
    %8510 = vdwg.mxu0
    %8511 = vmatprep.subr.bf16.mxu0 %v7867
    %8512 = vmatpush1.bf16.msra.mxu0 %v7866
    %8513 = vmatprep.subr.bf16.mxu0 %v7875
    %8514 = vmatpush1.bf16.msra.mxu0 %v7874
    %8515 = vmatprep.subr.bf16.mxu0 %v7883
    %8516 = vmatpush1.bf16.msra.mxu0 %v7882
    %8517 = vmatprep.subr.bf16.mxu0 %v7891
    %8518 = vmatpush1.bf16.msra.mxu0 %v7890
    %8519 = vmatprep.subr.bf16.mxu0 %v7899
    %8520 = vmatpush1.bf16.msra.mxu0 %v7898
    %8521 = vmatprep.subr.bf16.mxu0 %v7907
    %8522 = vmatpush1.bf16.msra.mxu0 %v7906
    %8523 = vmatprep.subr.bf16.mxu0 %v7915
    %8524 = vmatpush1.bf16.msra.mxu0 %v7914
    %8525 = vmatprep.subr.bf16.mxu0 %v7923
    %8526 = vmatpush1.bf16.msra.mxu0 %v7922
    %8527 = vmatprep.subr.bf16.mxu0 %v7931
    %8528 = vmatpush1.bf16.msra.mxu0 %v7930
    %8529 = vmatprep.subr.bf16.mxu0 %v7939
    %8530 = vmatpush1.bf16.msra.mxu0 %v7938
    %8531 = vmatprep.subr.bf16.mxu0 %v7947
    %8532 = vmatpush1.bf16.msra.mxu0 %v7946
    %8533 = vmatprep.subr.bf16.mxu0 %v7955
    %8534 = vmatpush1.bf16.msra.mxu0 %v7954
    %8535 = vmatprep.subr.bf16.mxu0 %v7963
    %8536 = vmatpush1.bf16.msra.mxu0 %v7962
    %8537 = vmatprep.subr.bf16.mxu0 %v7971
    %8538 = vmatpush1.bf16.msra.mxu0 %v7970
    %8539 = vmatprep.subr.bf16.mxu0 %v7979
    %8540 = vmatpush1.bf16.msra.mxu0 %v7978
    %8541 = vmatprep.subr.bf16.mxu0 %v7987
    %8542 = vmatpush1.bf16.msra.mxu0 %v7986
    %8543 = vmatprep.mubr.bf16.mxu0 %v6953
    %8544 = vmatmul.mubr.bf16.gmra.mrb[0].mxu0 %v6952
    %v8545 = vpop.f32.mrb[0].mxu0
    %v8546 = vadd.f32 %v8493, %v8545
    %v8547 = vpop.f32.mrb[0].mxu0
    %v8548 = vadd.f32 %v8495, %v8547
    %v8549 = vpop.f32.mrb[0].mxu0
    %v8550 = vadd.f32 %v8497, %v8549
    %v8551 = vpop.f32.mrb[0].mxu0
    %v8552 = vadd.f32 %v8499, %v8551
    %8553 = vmatprep.mubr.bf16.mxu0 %v6957
    %8554 = vmatmul.mubr.bf16.gmra.mrb[0].mxu0 %v6956
    %v8555 = vpop.f32.mrb[0].mxu0
    %v8556 = vadd.f32 %v8503, %v8555
    %v8557 = vpop.f32.mrb[0].mxu0
    %v8558 = vadd.f32 %v8505, %v8557
    %v8559 = vpop.f32.mrb[0].mxu0
    %v8560 = vadd.f32 %v8507, %v8559
    %v8561 = vpop.f32.mrb[0].mxu0
    %v8562 = vadd.f32 %v8509, %v8561
    %8563 = vdwg.mxu0
    %8564 = vmatprep.subr.bf16.mxu0 %v7741
    %8565 = vmatpush1.bf16.msra.mxu0 %v7740
    %8566 = vmatprep.subr.bf16.mxu0 %v7749
    %8567 = vmatpush1.bf16.msra.mxu0 %v7748
    %8568 = vmatprep.subr.bf16.mxu0 %v7757
    %8569 = vmatpush1.bf16.msra.mxu0 %v7756
    %8570 = vmatprep.subr.bf16.mxu0 %v7765
    %8571 = vmatpush1.bf16.msra.mxu0 %v7764
    %8572 = vmatprep.subr.bf16.mxu0 %v7773
    %8573 = vmatpush1.bf16.msra.mxu0 %v7772
    %8574 = vmatprep.subr.bf16.mxu0 %v7781
    %8575 = vmatpush1.bf16.msra.mxu0 %v7780
    %8576 = vmatprep.subr.bf16.mxu0 %v7789
    %8577 = vmatpush1.bf16.msra.mxu0 %v7788
    %8578 = vmatprep.subr.bf16.mxu0 %v7797
    %8579 = vmatpush1.bf16.msra.mxu0 %v7796
    %8580 = vmatprep.subr.bf16.mxu0 %v7805
    %8581 = vmatpush1.bf16.msra.mxu0 %v7804
    %8582 = vmatprep.subr.bf16.mxu0 %v7813
    %8583 = vmatpush1.bf16.msra.mxu0 %v7812
    %8584 = vmatprep.subr.bf16.mxu0 %v7821
    %8585 = vmatpush1.bf16.msra.mxu0 %v7820
    %8586 = vmatprep.subr.bf16.mxu0 %v7829
    %8587 = vmatpush1.bf16.msra.mxu0 %v7828
    %8588 = vmatprep.subr.bf16.mxu0 %v7837
    %8589 = vmatpush1.bf16.msra.mxu0 %v7836
    %8590 = vmatprep.subr.bf16.mxu0 %v7845
    %8591 = vmatpush1.bf16.msra.mxu0 %v7844
    %8592 = vmatprep.subr.bf16.mxu0 %v7853
    %8593 = vmatpush1.bf16.msra.mxu0 %v7852
    %8594 = vmatprep.subr.bf16.mxu0 %v7861
    %8595 = vmatpush1.bf16.msra.mxu0 %v7860
    %8596 = vmatprep.mubr.bf16.mxu0 %v6951
    %8597 = vmatmul.mubr.bf16.gmra.mrb[0].mxu0 %v6950
    %v8598 = vpop.f32.mrb[0].mxu0
    %v8599 = vadd.f32 %v6916, %v8598
    %v8600 = vpop.f32.mrb[0].mxu0
    %v8601 = vadd.f32 %v6918, %v8600
    %v8602 = vpop.f32.mrb[0].mxu0
    %v8603 = vadd.f32 %v6920, %v8602
    %v8604 = vpop.f32.mrb[0].mxu0
    %v8605 = vadd.f32 %v6922, %v8604
    %8606 = vmatprep.mubr.bf16.mxu0 %v6955
    %8607 = vmatmul.mubr.bf16.gmra.mrb[0].mxu0 %v6954
    %v8608 = vpop.f32.mrb[0].mxu0
    %v8609 = vadd.f32 %v6926, %v8608
    %v8610 = vpop.f32.mrb[0].mxu0
    %v8611 = vadd.f32 %v6928, %v8610
    %v8612 = vpop.f32.mrb[0].mxu0
    %v8613 = vadd.f32 %v6930, %v8612
    %v8614 = vpop.f32.mrb[0].mxu0
    %v8615 = vadd.f32 %v6932, %v8614
    %8616 = vdwg.mxu0
    %8617 = vmatprep.subr.bf16.mxu0 %v7869
    %8618 = vmatpush1.bf16.msra.mxu0 %v7868
    %8619 = vmatprep.subr.bf16.mxu0 %v7877
    %8620 = vmatpush1.bf16.msra.mxu0 %v7876
    %8621 = vmatprep.subr.bf16.mxu0 %v7885
    %8622 = vmatpush1.bf16.msra.mxu0 %v7884
    %8623 = vmatprep.subr.bf16.mxu0 %v7893
    %8624 = vmatpush1.bf16.msra.mxu0 %v7892
    %8625 = vmatprep.subr.bf16.mxu0 %v7901
    %8626 = vmatpush1.bf16.msra.mxu0 %v7900
    %8627 = vmatprep.subr.bf16.mxu0 %v7909
    %8628 = vmatpush1.bf16.msra.mxu0 %v7908
    %8629 = vmatprep.subr.bf16.mxu0 %v7917
    %8630 = vmatpush1.bf16.msra.mxu0 %v7916
    %8631 = vmatprep.subr.bf16.mxu0 %v7925
    %8632 = vmatpush1.bf16.msra.mxu0 %v7924
    %8633 = vmatprep.subr.bf16.mxu0 %v7933
    %8634 = vmatpush1.bf16.msra.mxu0 %v7932
    %8635 = vmatprep.subr.bf16.mxu0 %v7941
    %8636 = vmatpush1.bf16.msra.mxu0 %v7940
    %8637 = vmatprep.subr.bf16.mxu0 %v7949
    %8638 = vmatpush1.bf16.msra.mxu0 %v7948
    %8639 = vmatprep.subr.bf16.mxu0 %v7957
    %8640 = vmatpush1.bf16.msra.mxu0 %v7956
    %8641 = vmatprep.subr.bf16.mxu0 %v7965
    %8642 = vmatpush1.bf16.msra.mxu0 %v7964
    %8643 = vmatprep.subr.bf16.mxu0 %v7973
    %8644 = vmatpush1.bf16.msra.mxu0 %v7972
    %8645 = vmatprep.subr.bf16.mxu0 %v7981
    %8646 = vmatpush1.bf16.msra.mxu0 %v7980
    %8647 = vmatprep.subr.bf16.mxu0 %v7989
    %8648 = vmatpush1.bf16.msra.mxu0 %v7988
    %8649 = vmatprep.mubr.bf16.mxu0 %v6953
    %8650 = vmatmul.mubr.bf16.gmra.mrb[0].mxu0 %v6952
    %v8651 = vpop.f32.mrb[0].mxu0
    %v8652 = vadd.f32 %v8599, %v8651
    %v8653 = vpop.f32.mrb[0].mxu0
    %v8654 = vadd.f32 %v8601, %v8653
    %v8655 = vpop.f32.mrb[0].mxu0
    %v8656 = vadd.f32 %v8603, %v8655
    %v8657 = vpop.f32.mrb[0].mxu0
    %v8658 = vadd.f32 %v8605, %v8657
    %8659 = vmatprep.mubr.bf16.mxu0 %v6957
    %8660 = vmatmul.mubr.bf16.gmra.mrb[0].mxu0 %v6956
    %v8661 = vpop.f32.mrb[0].mxu0
    %v8662 = vadd.f32 %v8609, %v8661
    %v8663 = vpop.f32.mrb[0].mxu0
    %v8664 = vadd.f32 %v8611, %v8663
    %v8665 = vpop.f32.mrb[0].mxu0
    %v8666 = vadd.f32 %v8613, %v8665
    %v8667 = vpop.f32.mrb[0].mxu0
    %v8668 = vadd.f32 %v8615, %v8667
    %8669 = vdwg.mxu0
    %v8670 = vld [vmem:[#allocation2 + $0x10] sm:$0xff]
    %v8671 = vld [vmem:[#allocation2 + $0x18] sm:$0xff]
    %v8672 = vld [vmem:[#allocation2 + $0x20] sm:$0xff]
    %v8673 = vld [vmem:[#allocation2 + $0x28] sm:$0xff]
    %v8674 = vld [vmem:[#allocation2 + $0x30] sm:$0x11]
    %v8675 = vld [vmem:[#allocation2 + $0x38] sm:$0x11]
    %v8676 = vld [vmem:[#allocation2 + $0x50] sm:$0xff]
    %v8677 = vld [vmem:[#allocation2 + $0x58] sm:$0xff]
    %v8678 = vld [vmem:[#allocation2 + $0x60] sm:$0xff]
    %v8679 = vld [vmem:[#allocation2 + $0x68] sm:$0xff]
    %v8680 = vld [vmem:[#allocation2 + $0x70] sm:$0x11]
    %v8681 = vld [vmem:[#allocation2 + $0x78] sm:$0x11]
    %v8683 = vshrl.u32 %v8670, 16
    %v8685 = vrot.slane %v8683, 4
    %v8686 = vshll.u32 %v8670, 16
    %v8688 = vrot.slane %v8686, 5
    %v8689 = vor.u32 %v8685, %v8688
    %v8690 = vrot.slane %v8689, 4
    %v8692 = vshll.u32 %v8672, 16
    %v8694 = vrot.slane %v8692, 5
    %v8695 = vsel %vm149, %v8690, %v8694
    %v8697 = vshrl.u32 %v8671, 16
    %v8699 = vrot.slane %v8697, 4
    %v8700 = vshll.u32 %v8671, 16
    %v8702 = vrot.slane %v8700, 5
    %v8703 = vor.u32 %v8699, %v8702
    %v8704 = vrot.slane %v8703, 4
    %v8706 = vshll.u32 %v8673, 16
    %v8708 = vrot.slane %v8706, 5
    %v8709 = vsel %vm149, %v8704, %v8708
    %v8710 = vshrl.u32 %v8672, 16
    %v8712 = vrot.slane %v8710, 4
    %v8713 = vor.u32 %v8712, %v8694
    %v8714 = vrot.slane %v8713, 4
    %v8716 = vshll.u32 %v8674, 16
    %v8718 = vrot.slane %v8716, 5
    %v8719 = vsel %vm149, %v8714, %v8718
    %v8720 = vshrl.u32 %v8673, 16
    %v8722 = vrot.slane %v8720, 4
    %v8723 = vor.u32 %v8722, %v8708
    %v8724 = vrot.slane %v8723, 4
    %v8726 = vshll.u32 %v8675, 16
    %v8728 = vrot.slane %v8726, 5
    %v8729 = vsel %vm149, %v8724, %v8728
    %v8731 = vshrl.u32 %v8676, 16
    %v8733 = vrot.slane %v8731, 4
    %v8734 = vshll.u32 %v8676, 16
    %v8736 = vrot.slane %v8734, 5
    %v8737 = vor.u32 %v8733, %v8736
    %v8738 = vrot.slane %v8737, 4
    %v8740 = vshll.u32 %v8678, 16
    %v8742 = vrot.slane %v8740, 5
    %v8743 = vsel %vm149, %v8738, %v8742
    %v8745 = vshrl.u32 %v8677, 16
    %v8747 = vrot.slane %v8745, 4
    %v8748 = vshll.u32 %v8677, 16
    %v8750 = vrot.slane %v8748, 5
    %v8751 = vor.u32 %v8747, %v8750
    %v8752 = vrot.slane %v8751, 4
    %v8754 = vshll.u32 %v8679, 16
    %v8756 = vrot.slane %v8754, 5
    %v8757 = vsel %vm149, %v8752, %v8756
    %v8758 = vshrl.u32 %v8678, 16
    %v8760 = vrot.slane %v8758, 4
    %v8761 = vor.u32 %v8760, %v8742
    %v8762 = vrot.slane %v8761, 4
    %v8764 = vshll.u32 %v8680, 16
    %v8766 = vrot.slane %v8764, 5
    %v8767 = vsel %vm149, %v8762, %v8766
    %v8768 = vshrl.u32 %v8679, 16
    %v8770 = vrot.slane %v8768, 4
    %v8771 = vor.u32 %v8770, %v8756
    %v8772 = vrot.slane %v8771, 4
    %v8774 = vshll.u32 %v8681, 16
    %v8776 = vrot.slane %v8774, 5
    %v8777 = vsel %vm149, %v8772, %v8776
    %s8778 = scalar_lea.vmem [#allocation7], 4096
    %v8779 = vld [vmem:[%s8778] sm:$0xff]
    %v8780 = vld [vmem:[%s8778 + $0x8] sm:$0xff]
    %v8781 = vld [vmem:[%s8778 + $0x10] sm:$0xff]
    %v8782 = vld [vmem:[%s8778 + $0x18] sm:$0xff]
    %v8783 = vld [vmem:[%s8778 + $0x20] sm:$0xff]
    %v8784 = vld [vmem:[%s8778 + $0x28] sm:$0xff]
    %v8785 = vld [vmem:[%s8778 + $0x30] sm:$0xff]
    %v8786 = vld [vmem:[%s8778 + $0x38] sm:$0xff]
    %v8787 = vld [vmem:[%s8778 + $0x40] sm:$0xff]
    %v8788 = vld [vmem:[%s8778 + $0x48] sm:$0xff]
    %v8789 = vld [vmem:[%s8778 + $0x50] sm:$0xff]
    %v8790 = vld [vmem:[%s8778 + $0x58] sm:$0xff]
    %v8791 = vld [vmem:[%s8778 + $0x60] sm:$0xff]
    %v8792 = vld [vmem:[%s8778 + $0x68] sm:$0xff]
    %v8793 = vld [vmem:[%s8778 + $0x70] sm:$0xff]
    %v8794 = vld [vmem:[%s8778 + $0x78] sm:$0xff]
    %v8795 = vld [vmem:[%s8778 + $0x80] sm:$0xff]
    %v8796 = vld [vmem:[%s8778 + $0x88] sm:$0xff]
    %v8797 = vld [vmem:[%s8778 + $0x90] sm:$0xff]
    %v8798 = vld [vmem:[%s8778 + $0x98] sm:$0xff]
    %v8799 = vld [vmem:[%s8778 + $0xa0] sm:$0xff]
    %v8800 = vld [vmem:[%s8778 + $0xa8] sm:$0xff]
    %v8801 = vld [vmem:[%s8778 + $0xb0] sm:$0xff]
    %v8802 = vld [vmem:[%s8778 + $0xb8] sm:$0xff]
    %v8803 = vld [vmem:[%s8778 + $0xc0] sm:$0xff]
    %v8804 = vld [vmem:[%s8778 + $0xc8] sm:$0xff]
    %v8805 = vld [vmem:[%s8778 + $0xd0] sm:$0xff]
    %v8806 = vld [vmem:[%s8778 + $0xd8] sm:$0xff]
    %v8807 = vld [vmem:[%s8778 + $0xe0] sm:$0xff]
    %v8808 = vld [vmem:[%s8778 + $0xe8] sm:$0xff]
    %v8809 = vld [vmem:[%s8778 + $0xf0] sm:$0xff]
    %v8810 = vld [vmem:[%s8778 + $0xf8] sm:$0xff]
    %v8811 = vld [vmem:[%s8778 + $0x100] sm:$0xff]
    %v8812 = vld [vmem:[%s8778 + $0x108] sm:$0xff]
    %v8813 = vld [vmem:[%s8778 + $0x110] sm:$0xff]
    %v8814 = vld [vmem:[%s8778 + $0x118] sm:$0xff]
    %v8815 = vld [vmem:[%s8778 + $0x120] sm:$0xff]
    %v8816 = vld [vmem:[%s8778 + $0x128] sm:$0xff]
    %v8817 = vld [vmem:[%s8778 + $0x130] sm:$0xff]
    %v8818 = vld [vmem:[%s8778 + $0x138] sm:$0xff]
    %v8819 = vld [vmem:[%s8778 + $0x140] sm:$0xff]
    %v8820 = vld [vmem:[%s8778 + $0x148] sm:$0xff]
    %v8821 = vld [vmem:[%s8778 + $0x150] sm:$0xff]
    %v8822 = vld [vmem:[%s8778 + $0x158] sm:$0xff]
    %v8823 = vld [vmem:[%s8778 + $0x160] sm:$0xff]
    %v8824 = vld [vmem:[%s8778 + $0x168] sm:$0xff]
    %v8825 = vld [vmem:[%s8778 + $0x170] sm:$0xff]
    %v8826 = vld [vmem:[%s8778 + $0x178] sm:$0xff]
    %v8827 = vld [vmem:[%s8778 + $0x180] sm:$0xff]
    %v8828 = vld [vmem:[%s8778 + $0x188] sm:$0xff]
    %v8829 = vld [vmem:[%s8778 + $0x190] sm:$0xff]
    %v8830 = vld [vmem:[%s8778 + $0x198] sm:$0xff]
    %v8831 = vld [vmem:[%s8778 + $0x1a0] sm:$0xff]
    %v8832 = vld [vmem:[%s8778 + $0x1a8] sm:$0xff]
    %v8833 = vld [vmem:[%s8778 + $0x1b0] sm:$0xff]
    %v8834 = vld [vmem:[%s8778 + $0x1b8] sm:$0xff]
    %v8835 = vld [vmem:[%s8778 + $0x1c0] sm:$0xff]
    %v8836 = vld [vmem:[%s8778 + $0x1c8] sm:$0xff]
    %v8837 = vld [vmem:[%s8778 + $0x1d0] sm:$0xff]
    %v8838 = vld [vmem:[%s8778 + $0x1d8] sm:$0xff]
    %v8839 = vld [vmem:[%s8778 + $0x1e0] sm:$0xff]
    %v8840 = vld [vmem:[%s8778 + $0x1e8] sm:$0xff]
    %v8841 = vld [vmem:[%s8778 + $0x1f0] sm:$0xff]
    %v8842 = vld [vmem:[%s8778 + $0x1f8] sm:$0xff]
    %v8843 = vld [vmem:[%s8778 + $0x200] sm:$0xff]
    %v8844 = vld [vmem:[%s8778 + $0x208] sm:$0xff]
    %v8845 = vld [vmem:[%s8778 + $0x210] sm:$0xff]
    %v8846 = vld [vmem:[%s8778 + $0x218] sm:$0xff]
    %v8847 = vld [vmem:[%s8778 + $0x220] sm:$0xff]
    %v8848 = vld [vmem:[%s8778 + $0x228] sm:$0xff]
    %v8849 = vld [vmem:[%s8778 + $0x230] sm:$0xff]
    %v8850 = vld [vmem:[%s8778 + $0x238] sm:$0xff]
    %v8851 = vld [vmem:[%s8778 + $0x240] sm:$0xff]
    %v8852 = vld [vmem:[%s8778 + $0x248] sm:$0xff]
    %v8853 = vld [vmem:[%s8778 + $0x250] sm:$0xff]
    %v8854 = vld [vmem:[%s8778 + $0x258] sm:$0xff]
    %v8855 = vld [vmem:[%s8778 + $0x260] sm:$0xff]
    %v8856 = vld [vmem:[%s8778 + $0x268] sm:$0xff]
    %v8857 = vld [vmem:[%s8778 + $0x270] sm:$0xff]
    %v8858 = vld [vmem:[%s8778 + $0x278] sm:$0xff]
    %v8859 = vld [vmem:[%s8778 + $0x280] sm:$0xff]
    %v8860 = vld [vmem:[%s8778 + $0x288] sm:$0xff]
    %v8861 = vld [vmem:[%s8778 + $0x290] sm:$0xff]
    %v8862 = vld [vmem:[%s8778 + $0x298] sm:$0xff]
    %v8863 = vld [vmem:[%s8778 + $0x2a0] sm:$0xff]
    %v8864 = vld [vmem:[%s8778 + $0x2a8] sm:$0xff]
    %v8865 = vld [vmem:[%s8778 + $0x2b0] sm:$0xff]
    %v8866 = vld [vmem:[%s8778 + $0x2b8] sm:$0xff]
    %v8867 = vld [vmem:[%s8778 + $0x2c0] sm:$0xff]
    %v8868 = vld [vmem:[%s8778 + $0x2c8] sm:$0xff]
    %v8869 = vld [vmem:[%s8778 + $0x2d0] sm:$0xff]
    %v8870 = vld [vmem:[%s8778 + $0x2d8] sm:$0xff]
    %v8871 = vld [vmem:[%s8778 + $0x2e0] sm:$0xff]
    %v8872 = vld [vmem:[%s8778 + $0x2e8] sm:$0xff]
    %v8873 = vld [vmem:[%s8778 + $0x2f0] sm:$0xff]
    %v8874 = vld [vmem:[%s8778 + $0x2f8] sm:$0xff]
    %v8875 = vld [vmem:[%s8778 + $0x300] sm:$0xff]
    %v8876 = vld [vmem:[%s8778 + $0x308] sm:$0xff]
    %v8877 = vld [vmem:[%s8778 + $0x310] sm:$0xff]
    %v8878 = vld [vmem:[%s8778 + $0x318] sm:$0xff]
    %v8879 = vld [vmem:[%s8778 + $0x320] sm:$0xff]
    %v8880 = vld [vmem:[%s8778 + $0x328] sm:$0xff]
    %v8881 = vld [vmem:[%s8778 + $0x330] sm:$0xff]
    %v8882 = vld [vmem:[%s8778 + $0x338] sm:$0xff]
    %v8883 = vld [vmem:[%s8778 + $0x340] sm:$0xff]
    %v8884 = vld [vmem:[%s8778 + $0x348] sm:$0xff]
    %v8885 = vld [vmem:[%s8778 + $0x350] sm:$0xff]
    %v8886 = vld [vmem:[%s8778 + $0x358] sm:$0xff]
    %v8887 = vld [vmem:[%s8778 + $0x360] sm:$0xff]
    %v8888 = vld [vmem:[%s8778 + $0x368] sm:$0xff]
    %v8889 = vld [vmem:[%s8778 + $0x370] sm:$0xff]
    %v8890 = vld [vmem:[%s8778 + $0x378] sm:$0xff]
    %v8891 = vld [vmem:[%s8778 + $0x380] sm:$0xff]
    %v8892 = vld [vmem:[%s8778 + $0x388] sm:$0xff]
    %v8893 = vld [vmem:[%s8778 + $0x390] sm:$0xff]
    %v8894 = vld [vmem:[%s8778 + $0x398] sm:$0xff]
    %v8895 = vld [vmem:[%s8778 + $0x3a0] sm:$0xff]
    %v8896 = vld [vmem:[%s8778 + $0x3a8] sm:$0xff]
    %v8897 = vld [vmem:[%s8778 + $0x3b0] sm:$0xff]
    %v8898 = vld [vmem:[%s8778 + $0x3b8] sm:$0xff]
    %v8899 = vld [vmem:[%s8778 + $0x3c0] sm:$0xff]
    %v8900 = vld [vmem:[%s8778 + $0x3c8] sm:$0xff]
    %v8901 = vld [vmem:[%s8778 + $0x3d0] sm:$0xff]
    %v8902 = vld [vmem:[%s8778 + $0x3d8] sm:$0xff]
    %v8903 = vld [vmem:[%s8778 + $0x3e0] sm:$0xff]
    %v8904 = vld [vmem:[%s8778 + $0x3e8] sm:$0xff]
    %v8905 = vld [vmem:[%s8778 + $0x3f0] sm:$0xff]
    %v8906 = vld [vmem:[%s8778 + $0x3f8] sm:$0xff]
    %v8907 = vld [vmem:[%s8778 + $0x400] sm:$0xff]
    %v8908 = vld [vmem:[%s8778 + $0x408] sm:$0xff]
    %v8909 = vld [vmem:[%s8778 + $0x410] sm:$0xff]
    %v8910 = vld [vmem:[%s8778 + $0x418] sm:$0xff]
    %v8911 = vld [vmem:[%s8778 + $0x420] sm:$0xff]
    %v8912 = vld [vmem:[%s8778 + $0x428] sm:$0xff]
    %v8913 = vld [vmem:[%s8778 + $0x430] sm:$0xff]
    %v8914 = vld [vmem:[%s8778 + $0x438] sm:$0xff]
    %v8915 = vld [vmem:[%s8778 + $0x440] sm:$0xff]
    %v8916 = vld [vmem:[%s8778 + $0x448] sm:$0xff]
    %v8917 = vld [vmem:[%s8778 + $0x450] sm:$0xff]
    %v8918 = vld [vmem:[%s8778 + $0x458] sm:$0xff]
    %v8919 = vld [vmem:[%s8778 + $0x460] sm:$0xff]
    %v8920 = vld [vmem:[%s8778 + $0x468] sm:$0xff]
    %v8921 = vld [vmem:[%s8778 + $0x470] sm:$0xff]
    %v8922 = vld [vmem:[%s8778 + $0x478] sm:$0xff]
    %v8923 = vld [vmem:[%s8778 + $0x480] sm:$0xff]
    %v8924 = vld [vmem:[%s8778 + $0x488] sm:$0xff]
    %v8925 = vld [vmem:[%s8778 + $0x490] sm:$0xff]
    %v8926 = vld [vmem:[%s8778 + $0x498] sm:$0xff]
    %v8927 = vld [vmem:[%s8778 + $0x4a0] sm:$0xff]
    %v8928 = vld [vmem:[%s8778 + $0x4a8] sm:$0xff]
    %v8929 = vld [vmem:[%s8778 + $0x4b0] sm:$0xff]
    %v8930 = vld [vmem:[%s8778 + $0x4b8] sm:$0xff]
    %v8931 = vld [vmem:[%s8778 + $0x4c0] sm:$0xff]
    %v8932 = vld [vmem:[%s8778 + $0x4c8] sm:$0xff]
    %v8933 = vld [vmem:[%s8778 + $0x4d0] sm:$0xff]
    %v8934 = vld [vmem:[%s8778 + $0x4d8] sm:$0xff]
    %v8935 = vld [vmem:[%s8778 + $0x4e0] sm:$0xff]
    %v8936 = vld [vmem:[%s8778 + $0x4e8] sm:$0xff]
    %v8937 = vld [vmem:[%s8778 + $0x4f0] sm:$0xff]
    %v8938 = vld [vmem:[%s8778 + $0x4f8] sm:$0xff]
    %v8939 = vld [vmem:[%s8778 + $0x500] sm:$0xff]
    %v8940 = vld [vmem:[%s8778 + $0x508] sm:$0xff]
    %v8941 = vld [vmem:[%s8778 + $0x510] sm:$0xff]
    %v8942 = vld [vmem:[%s8778 + $0x518] sm:$0xff]
    %v8943 = vld [vmem:[%s8778 + $0x520] sm:$0xff]
    %v8944 = vld [vmem:[%s8778 + $0x528] sm:$0xff]
    %v8945 = vld [vmem:[%s8778 + $0x530] sm:$0xff]
    %v8946 = vld [vmem:[%s8778 + $0x538] sm:$0xff]
    %v8947 = vld [vmem:[%s8778 + $0x540] sm:$0xff]
    %v8948 = vld [vmem:[%s8778 + $0x548] sm:$0xff]
    %v8949 = vld [vmem:[%s8778 + $0x550] sm:$0xff]
    %v8950 = vld [vmem:[%s8778 + $0x558] sm:$0xff]
    %v8951 = vld [vmem:[%s8778 + $0x560] sm:$0xff]
    %v8952 = vld [vmem:[%s8778 + $0x568] sm:$0xff]
    %v8953 = vld [vmem:[%s8778 + $0x570] sm:$0xff]
    %v8954 = vld [vmem:[%s8778 + $0x578] sm:$0xff]
    %v8955 = vld [vmem:[%s8778 + $0x580] sm:$0xff]
    %v8956 = vld [vmem:[%s8778 + $0x588] sm:$0xff]
    %v8957 = vld [vmem:[%s8778 + $0x590] sm:$0xff]
    %v8958 = vld [vmem:[%s8778 + $0x598] sm:$0xff]
    %v8959 = vld [vmem:[%s8778 + $0x5a0] sm:$0xff]
    %v8960 = vld [vmem:[%s8778 + $0x5a8] sm:$0xff]
    %v8961 = vld [vmem:[%s8778 + $0x5b0] sm:$0xff]
    %v8962 = vld [vmem:[%s8778 + $0x5b8] sm:$0xff]
    %v8963 = vld [vmem:[%s8778 + $0x5c0] sm:$0xff]
    %v8964 = vld [vmem:[%s8778 + $0x5c8] sm:$0xff]
    %v8965 = vld [vmem:[%s8778 + $0x5d0] sm:$0xff]
    %v8966 = vld [vmem:[%s8778 + $0x5d8] sm:$0xff]
    %v8967 = vld [vmem:[%s8778 + $0x5e0] sm:$0xff]
    %v8968 = vld [vmem:[%s8778 + $0x5e8] sm:$0xff]
    %v8969 = vld [vmem:[%s8778 + $0x5f0] sm:$0xff]
    %v8970 = vld [vmem:[%s8778 + $0x5f8] sm:$0xff]
    %v8971 = vld [vmem:[%s8778 + $0x600] sm:$0xff]
    %v8972 = vld [vmem:[%s8778 + $0x608] sm:$0xff]
    %v8973 = vld [vmem:[%s8778 + $0x610] sm:$0xff]
    %v8974 = vld [vmem:[%s8778 + $0x618] sm:$0xff]
    %v8975 = vld [vmem:[%s8778 + $0x620] sm:$0xff]
    %v8976 = vld [vmem:[%s8778 + $0x628] sm:$0xff]
    %v8977 = vld [vmem:[%s8778 + $0x630] sm:$0xff]
    %v8978 = vld [vmem:[%s8778 + $0x638] sm:$0xff]
    %v8979 = vld [vmem:[%s8778 + $0x640] sm:$0xff]
    %v8980 = vld [vmem:[%s8778 + $0x648] sm:$0xff]
    %v8981 = vld [vmem:[%s8778 + $0x650] sm:$0xff]
    %v8982 = vld [vmem:[%s8778 + $0x658] sm:$0xff]
    %v8983 = vld [vmem:[%s8778 + $0x660] sm:$0xff]
    %v8984 = vld [vmem:[%s8778 + $0x668] sm:$0xff]
    %v8985 = vld [vmem:[%s8778 + $0x670] sm:$0xff]
    %v8986 = vld [vmem:[%s8778 + $0x678] sm:$0xff]
    %v8987 = vld [vmem:[%s8778 + $0x680] sm:$0xff]
    %v8988 = vld [vmem:[%s8778 + $0x688] sm:$0xff]
    %v8989 = vld [vmem:[%s8778 + $0x690] sm:$0xff]
    %v8990 = vld [vmem:[%s8778 + $0x698] sm:$0xff]
    %v8991 = vld [vmem:[%s8778 + $0x6a0] sm:$0xff]
    %v8992 = vld [vmem:[%s8778 + $0x6a8] sm:$0xff]
    %v8993 = vld [vmem:[%s8778 + $0x6b0] sm:$0xff]
    %v8994 = vld [vmem:[%s8778 + $0x6b8] sm:$0xff]
    %v8995 = vld [vmem:[%s8778 + $0x6c0] sm:$0xff]
    %v8996 = vld [vmem:[%s8778 + $0x6c8] sm:$0xff]
    %v8997 = vld [vmem:[%s8778 + $0x6d0] sm:$0xff]
    %v8998 = vld [vmem:[%s8778 + $0x6d8] sm:$0xff]
    %v8999 = vld [vmem:[%s8778 + $0x6e0] sm:$0xff]
    %v9000 = vld [vmem:[%s8778 + $0x6e8] sm:$0xff]
    %v9001 = vld [vmem:[%s8778 + $0x6f0] sm:$0xff]
    %v9002 = vld [vmem:[%s8778 + $0x6f8] sm:$0xff]
    %v9003 = vld [vmem:[%s8778 + $0x700] sm:$0xff]
    %v9004 = vld [vmem:[%s8778 + $0x708] sm:$0xff]
    %v9005 = vld [vmem:[%s8778 + $0x710] sm:$0xff]
    %v9006 = vld [vmem:[%s8778 + $0x718] sm:$0xff]
    %v9007 = vld [vmem:[%s8778 + $0x720] sm:$0xff]
    %v9008 = vld [vmem:[%s8778 + $0x728] sm:$0xff]
    %v9009 = vld [vmem:[%s8778 + $0x730] sm:$0xff]
    %v9010 = vld [vmem:[%s8778 + $0x738] sm:$0xff]
    %v9011 = vld [vmem:[%s8778 + $0x740] sm:$0xff]
    %v9012 = vld [vmem:[%s8778 + $0x748] sm:$0xff]
    %v9013 = vld [vmem:[%s8778 + $0x750] sm:$0xff]
    %v9014 = vld [vmem:[%s8778 + $0x758] sm:$0xff]
    %v9015 = vld [vmem:[%s8778 + $0x760] sm:$0xff]
    %v9016 = vld [vmem:[%s8778 + $0x768] sm:$0xff]
    %v9017 = vld [vmem:[%s8778 + $0x770] sm:$0xff]
    %v9018 = vld [vmem:[%s8778 + $0x778] sm:$0xff]
    %v9019 = vld [vmem:[%s8778 + $0x780] sm:$0xff]
    %v9020 = vld [vmem:[%s8778 + $0x788] sm:$0xff]
    %v9021 = vld [vmem:[%s8778 + $0x790] sm:$0xff]
    %v9022 = vld [vmem:[%s8778 + $0x798] sm:$0xff]
    %v9023 = vld [vmem:[%s8778 + $0x7a0] sm:$0xff]
    %v9024 = vld [vmem:[%s8778 + $0x7a8] sm:$0xff]
    %v9025 = vld [vmem:[%s8778 + $0x7b0] sm:$0xff]
    %v9026 = vld [vmem:[%s8778 + $0x7b8] sm:$0xff]
    %v9027 = vld [vmem:[%s8778 + $0x7c0] sm:$0xff]
    %v9028 = vld [vmem:[%s8778 + $0x7c8] sm:$0xff]
    %v9029 = vld [vmem:[%s8778 + $0x7d0] sm:$0xff]
    %v9030 = vld [vmem:[%s8778 + $0x7d8] sm:$0xff]
    %v9031 = vld [vmem:[%s8778 + $0x7e0] sm:$0xff]
    %v9032 = vld [vmem:[%s8778 + $0x7e8] sm:$0xff]
    %v9033 = vld [vmem:[%s8778 + $0x7f0] sm:$0xff]
    %v9034 = vld [vmem:[%s8778 + $0x7f8] sm:$0xff]
    %v9035 = vunpack.c.l.b16 %v8695
    %v9036 = vunpack.c.h.b16 %v8695
    %v9037 = vunpack.c.l.b16 %v8709
    %v9038 = vunpack.c.h.b16 %v8709
    %v9039 = vunpack.c.l.b16 %v8719
    %v9040 = vunpack.c.h.b16 %v8719
    %v9041 = vunpack.c.l.b16 %v8729
    %v9042 = vunpack.c.h.b16 %v8729
    %v9043 = vunpack.c.l.b16 %v8743
    %v9044 = vunpack.c.h.b16 %v8743
    %v9045 = vunpack.c.l.b16 %v8757
    %v9046 = vunpack.c.h.b16 %v8757
    %v9047 = vunpack.c.l.b16 %v8767
    %v9048 = vunpack.c.h.b16 %v8767
    %v9049 = vunpack.c.l.b16 %v8777
    %v9050 = vunpack.c.h.b16 %v8777
    %v9051 = vpack.c.b16 %v9039, %v9035
    %v9052 = vpack.c.b16 %v9040, %v9036
    %v9053 = vpack.c.b16 %v9041, %v9037
    %v9054 = vpack.c.b16 %v9042, %v9038
    %v9055 = vpack.c.b16 %v9047, %v9043
    %v9056 = vpack.c.b16 %v9048, %v9044
    %v9057 = vpack.c.b16 %v9049, %v9045
    %v9058 = vpack.c.b16 %v9050, %v9046
    %v9323 = vunpack.c.l.b16 %v8779
    %v9324 = vunpack.c.h.b16 %v8779
    %v9325 = vunpack.c.l.b16 %v8780
    %v9326 = vunpack.c.h.b16 %v8780
    %v9327 = vunpack.c.l.b16 %v8781
    %v9328 = vunpack.c.h.b16 %v8781
    %v9329 = vunpack.c.l.b16 %v8782
    %v9330 = vunpack.c.h.b16 %v8782
    %v9331 = vunpack.c.l.b16 %v8783
    %v9332 = vunpack.c.h.b16 %v8783
    %v9333 = vunpack.c.l.b16 %v8784
    %v9334 = vunpack.c.h.b16 %v8784
    %v9335 = vunpack.c.l.b16 %v8785
    %v9336 = vunpack.c.h.b16 %v8785
    %v9337 = vunpack.c.l.b16 %v8786
    %v9338 = vunpack.c.h.b16 %v8786
    %v9339 = vunpack.c.l.b16 %v8787
    %v9340 = vunpack.c.h.b16 %v8787
    %v9341 = vunpack.c.l.b16 %v8788
    %v9342 = vunpack.c.h.b16 %v8788
    %v9343 = vunpack.c.l.b16 %v8789
    %v9344 = vunpack.c.h.b16 %v8789
    %v9345 = vunpack.c.l.b16 %v8790
    %v9346 = vunpack.c.h.b16 %v8790
    %v9347 = vunpack.c.l.b16 %v8791
    %v9348 = vunpack.c.h.b16 %v8791
    %v9349 = vunpack.c.l.b16 %v8792
    %v9350 = vunpack.c.h.b16 %v8792
    %v9351 = vunpack.c.l.b16 %v8793
    %v9352 = vunpack.c.h.b16 %v8793
    %v9353 = vunpack.c.l.b16 %v8794
    %v9354 = vunpack.c.h.b16 %v8794
    %v9355 = vunpack.c.l.b16 %v8795
    %v9356 = vunpack.c.h.b16 %v8795
    %v9357 = vunpack.c.l.b16 %v8796
    %v9358 = vunpack.c.h.b16 %v8796
    %v9359 = vunpack.c.l.b16 %v8797
    %v9360 = vunpack.c.h.b16 %v8797
    %v9361 = vunpack.c.l.b16 %v8798
    %v9362 = vunpack.c.h.b16 %v8798
    %v9363 = vunpack.c.l.b16 %v8799
    %v9364 = vunpack.c.h.b16 %v8799
    %v9365 = vunpack.c.l.b16 %v8800
    %v9366 = vunpack.c.h.b16 %v8800
    %v9367 = vunpack.c.l.b16 %v8801
    %v9368 = vunpack.c.h.b16 %v8801
    %v9369 = vunpack.c.l.b16 %v8802
    %v9370 = vunpack.c.h.b16 %v8802
    %v9371 = vunpack.c.l.b16 %v8803
    %v9372 = vunpack.c.h.b16 %v8803
    %v9373 = vunpack.c.l.b16 %v8804
    %v9374 = vunpack.c.h.b16 %v8804
    %v9375 = vunpack.c.l.b16 %v8805
    %v9376 = vunpack.c.h.b16 %v8805
    %v9377 = vunpack.c.l.b16 %v8806
    %v9378 = vunpack.c.h.b16 %v8806
    %v9379 = vunpack.c.l.b16 %v8807
    %v9380 = vunpack.c.h.b16 %v8807
    %v9381 = vunpack.c.l.b16 %v8808
    %v9382 = vunpack.c.h.b16 %v8808
    %v9383 = vunpack.c.l.b16 %v8809
    %v9384 = vunpack.c.h.b16 %v8809
    %v9385 = vunpack.c.l.b16 %v8810
    %v9386 = vunpack.c.h.b16 %v8810
    %v9387 = vunpack.c.l.b16 %v8811
    %v9388 = vunpack.c.h.b16 %v8811
    %v9389 = vunpack.c.l.b16 %v8812
    %v9390 = vunpack.c.h.b16 %v8812
    %v9391 = vunpack.c.l.b16 %v8813
    %v9392 = vunpack.c.h.b16 %v8813
    %v9393 = vunpack.c.l.b16 %v8814
    %v9394 = vunpack.c.h.b16 %v8814
    %v9395 = vunpack.c.l.b16 %v8815
    %v9396 = vunpack.c.h.b16 %v8815
    %v9397 = vunpack.c.l.b16 %v8816
    %v9398 = vunpack.c.h.b16 %v8816
    %v9399 = vunpack.c.l.b16 %v8817
    %v9400 = vunpack.c.h.b16 %v8817
    %v9401 = vunpack.c.l.b16 %v8818
    %v9402 = vunpack.c.h.b16 %v8818
    %v9403 = vunpack.c.l.b16 %v8819
    %v9404 = vunpack.c.h.b16 %v8819
    %v9405 = vunpack.c.l.b16 %v8820
    %v9406 = vunpack.c.h.b16 %v8820
    %v9407 = vunpack.c.l.b16 %v8821
    %v9408 = vunpack.c.h.b16 %v8821
    %v9409 = vunpack.c.l.b16 %v8822
    %v9410 = vunpack.c.h.b16 %v8822
    %v9411 = vunpack.c.l.b16 %v8823
    %v9412 = vunpack.c.h.b16 %v8823
    %v9413 = vunpack.c.l.b16 %v8824
    %v9414 = vunpack.c.h.b16 %v8824
    %v9415 = vunpack.c.l.b16 %v8825
    %v9416 = vunpack.c.h.b16 %v8825
    %v9417 = vunpack.c.l.b16 %v8826
    %v9418 = vunpack.c.h.b16 %v8826
    %v9419 = vunpack.c.l.b16 %v8827
    %v9420 = vunpack.c.h.b16 %v8827
    %v9421 = vunpack.c.l.b16 %v8828
    %v9422 = vunpack.c.h.b16 %v8828
    %v9423 = vunpack.c.l.b16 %v8829
    %v9424 = vunpack.c.h.b16 %v8829
    %v9425 = vunpack.c.l.b16 %v8830
    %v9426 = vunpack.c.h.b16 %v8830
    %v9427 = vunpack.c.l.b16 %v8831
    %v9428 = vunpack.c.h.b16 %v8831
    %v9429 = vunpack.c.l.b16 %v8832
    %v9430 = vunpack.c.h.b16 %v8832
    %v9431 = vunpack.c.l.b16 %v8833
    %v9432 = vunpack.c.h.b16 %v8833
    %v9433 = vunpack.c.l.b16 %v8834
    %v9434 = vunpack.c.h.b16 %v8834
    %v9435 = vunpack.c.l.b16 %v8835
    %v9436 = vunpack.c.h.b16 %v8835
    %v9437 = vunpack.c.l.b16 %v8836
    %v9438 = vunpack.c.h.b16 %v8836
    %v9439 = vunpack.c.l.b16 %v8837
    %v9440 = vunpack.c.h.b16 %v8837
    %v9441 = vunpack.c.l.b16 %v8838
    %v9442 = vunpack.c.h.b16 %v8838
    %v9443 = vunpack.c.l.b16 %v8839
    %v9444 = vunpack.c.h.b16 %v8839
    %v9445 = vunpack.c.l.b16 %v8840
    %v9446 = vunpack.c.h.b16 %v8840
    %v9447 = vunpack.c.l.b16 %v8841
    %v9448 = vunpack.c.h.b16 %v8841
    %v9449 = vunpack.c.l.b16 %v8842
    %v9450 = vunpack.c.h.b16 %v8842
    %v9451 = vunpack.c.l.b16 %v8843
    %v9452 = vunpack.c.h.b16 %v8843
    %v9453 = vunpack.c.l.b16 %v8844
    %v9454 = vunpack.c.h.b16 %v8844
    %v9455 = vunpack.c.l.b16 %v8845
    %v9456 = vunpack.c.h.b16 %v8845
    %v9457 = vunpack.c.l.b16 %v8846
    %v9458 = vunpack.c.h.b16 %v8846
    %v9459 = vunpack.c.l.b16 %v8847
    %v9460 = vunpack.c.h.b16 %v8847
    %v9461 = vunpack.c.l.b16 %v8848
    %v9462 = vunpack.c.h.b16 %v8848
    %v9463 = vunpack.c.l.b16 %v8849
    %v9464 = vunpack.c.h.b16 %v8849
    %v9465 = vunpack.c.l.b16 %v8850
    %v9466 = vunpack.c.h.b16 %v8850
    %v9467 = vunpack.c.l.b16 %v8851
    %v9468 = vunpack.c.h.b16 %v8851
    %v9469 = vunpack.c.l.b16 %v8852
    %v9470 = vunpack.c.h.b16 %v8852
    %v9471 = vunpack.c.l.b16 %v8853
    %v9472 = vunpack.c.h.b16 %v8853
    %v9473 = vunpack.c.l.b16 %v8854
    %v9474 = vunpack.c.h.b16 %v8854
    %v9475 = vunpack.c.l.b16 %v8855
    %v9476 = vunpack.c.h.b16 %v8855
    %v9477 = vunpack.c.l.b16 %v8856
    %v9478 = vunpack.c.h.b16 %v8856
    %v9479 = vunpack.c.l.b16 %v8857
    %v9480 = vunpack.c.h.b16 %v8857
    %v9481 = vunpack.c.l.b16 %v8858
    %v9482 = vunpack.c.h.b16 %v8858
    %v9483 = vunpack.c.l.b16 %v8859
    %v9484 = vunpack.c.h.b16 %v8859
    %v9485 = vunpack.c.l.b16 %v8860
    %v9486 = vunpack.c.h.b16 %v8860
    %v9487 = vunpack.c.l.b16 %v8861
    %v9488 = vunpack.c.h.b16 %v8861
    %v9489 = vunpack.c.l.b16 %v8862
    %v9490 = vunpack.c.h.b16 %v8862
    %v9491 = vunpack.c.l.b16 %v8863
    %v9492 = vunpack.c.h.b16 %v8863
    %v9493 = vunpack.c.l.b16 %v8864
    %v9494 = vunpack.c.h.b16 %v8864
    %v9495 = vunpack.c.l.b16 %v8865
    %v9496 = vunpack.c.h.b16 %v8865
    %v9497 = vunpack.c.l.b16 %v8866
    %v9498 = vunpack.c.h.b16 %v8866
    %v9499 = vunpack.c.l.b16 %v8867
    %v9500 = vunpack.c.h.b16 %v8867
    %v9501 = vunpack.c.l.b16 %v8868
    %v9502 = vunpack.c.h.b16 %v8868
    %v9503 = vunpack.c.l.b16 %v8869
    %v9504 = vunpack.c.h.b16 %v8869
    %v9505 = vunpack.c.l.b16 %v8870
    %v9506 = vunpack.c.h.b16 %v8870
    %v9507 = vunpack.c.l.b16 %v8871
    %v9508 = vunpack.c.h.b16 %v8871
    %v9509 = vunpack.c.l.b16 %v8872
    %v9510 = vunpack.c.h.b16 %v8872
    %v9511 = vunpack.c.l.b16 %v8873
    %v9512 = vunpack.c.h.b16 %v8873
    %v9513 = vunpack.c.l.b16 %v8874
    %v9514 = vunpack.c.h.b16 %v8874
    %v9515 = vunpack.c.l.b16 %v8875
    %v9516 = vunpack.c.h.b16 %v8875
    %v9517 = vunpack.c.l.b16 %v8876
    %v9518 = vunpack.c.h.b16 %v8876
    %v9519 = vunpack.c.l.b16 %v8877
    %v9520 = vunpack.c.h.b16 %v8877
    %v9521 = vunpack.c.l.b16 %v8878
    %v9522 = vunpack.c.h.b16 %v8878
    %v9523 = vunpack.c.l.b16 %v8879
    %v9524 = vunpack.c.h.b16 %v8879
    %v9525 = vunpack.c.l.b16 %v8880
    %v9526 = vunpack.c.h.b16 %v8880
    %v9527 = vunpack.c.l.b16 %v8881
    %v9528 = vunpack.c.h.b16 %v8881
    %v9529 = vunpack.c.l.b16 %v8882
    %v9530 = vunpack.c.h.b16 %v8882
    %v9531 = vunpack.c.l.b16 %v8883
    %v9532 = vunpack.c.h.b16 %v8883
    %v9533 = vunpack.c.l.b16 %v8884
    %v9534 = vunpack.c.h.b16 %v8884
    %v9535 = vunpack.c.l.b16 %v8885
    %v9536 = vunpack.c.h.b16 %v8885
    %v9537 = vunpack.c.l.b16 %v8886
    %v9538 = vunpack.c.h.b16 %v8886
    %v9539 = vunpack.c.l.b16 %v8887
    %v9540 = vunpack.c.h.b16 %v8887
    %v9541 = vunpack.c.l.b16 %v8888
    %v9542 = vunpack.c.h.b16 %v8888
    %v9543 = vunpack.c.l.b16 %v8889
    %v9544 = vunpack.c.h.b16 %v8889
    %v9545 = vunpack.c.l.b16 %v8890
    %v9546 = vunpack.c.h.b16 %v8890
    %v9547 = vunpack.c.l.b16 %v8891
    %v9548 = vunpack.c.h.b16 %v8891
    %v9549 = vunpack.c.l.b16 %v8892
    %v9550 = vunpack.c.h.b16 %v8892
    %v9551 = vunpack.c.l.b16 %v8893
    %v9552 = vunpack.c.h.b16 %v8893
    %v9553 = vunpack.c.l.b16 %v8894
    %v9554 = vunpack.c.h.b16 %v8894
    %v9555 = vunpack.c.l.b16 %v8895
    %v9556 = vunpack.c.h.b16 %v8895
    %v9557 = vunpack.c.l.b16 %v8896
    %v9558 = vunpack.c.h.b16 %v8896
    %v9559 = vunpack.c.l.b16 %v8897
    %v9560 = vunpack.c.h.b16 %v8897
    %v9561 = vunpack.c.l.b16 %v8898
    %v9562 = vunpack.c.h.b16 %v8898
    %v9563 = vunpack.c.l.b16 %v8899
    %v9564 = vunpack.c.h.b16 %v8899
    %v9565 = vunpack.c.l.b16 %v8900
    %v9566 = vunpack.c.h.b16 %v8900
    %v9567 = vunpack.c.l.b16 %v8901
    %v9568 = vunpack.c.h.b16 %v8901
    %v9569 = vunpack.c.l.b16 %v8902
    %v9570 = vunpack.c.h.b16 %v8902
    %v9571 = vunpack.c.l.b16 %v8903
    %v9572 = vunpack.c.h.b16 %v8903
    %v9573 = vunpack.c.l.b16 %v8904
    %v9574 = vunpack.c.h.b16 %v8904
    %v9575 = vunpack.c.l.b16 %v8905
    %v9576 = vunpack.c.h.b16 %v8905
    %v9577 = vunpack.c.l.b16 %v8906
    %v9578 = vunpack.c.h.b16 %v8906
    %v9579 = vunpack.c.l.b16 %v8907
    %v9580 = vunpack.c.h.b16 %v8907
    %v9581 = vunpack.c.l.b16 %v8908
    %v9582 = vunpack.c.h.b16 %v8908
    %v9583 = vunpack.c.l.b16 %v8909
    %v9584 = vunpack.c.h.b16 %v8909
    %v9585 = vunpack.c.l.b16 %v8910
    %v9586 = vunpack.c.h.b16 %v8910
    %v9587 = vunpack.c.l.b16 %v8911
    %v9588 = vunpack.c.h.b16 %v8911
    %v9589 = vunpack.c.l.b16 %v8912
    %v9590 = vunpack.c.h.b16 %v8912
    %v9591 = vunpack.c.l.b16 %v8913
    %v9592 = vunpack.c.h.b16 %v8913
    %v9593 = vunpack.c.l.b16 %v8914
    %v9594 = vunpack.c.h.b16 %v8914
    %v9595 = vunpack.c.l.b16 %v8915
    %v9596 = vunpack.c.h.b16 %v8915
    %v9597 = vunpack.c.l.b16 %v8916
    %v9598 = vunpack.c.h.b16 %v8916
    %v9599 = vunpack.c.l.b16 %v8917
    %v9600 = vunpack.c.h.b16 %v8917
    %v9601 = vunpack.c.l.b16 %v8918
    %v9602 = vunpack.c.h.b16 %v8918
    %v9603 = vunpack.c.l.b16 %v8919
    %v9604 = vunpack.c.h.b16 %v8919
    %v9605 = vunpack.c.l.b16 %v8920
    %v9606 = vunpack.c.h.b16 %v8920
    %v9607 = vunpack.c.l.b16 %v8921
    %v9608 = vunpack.c.h.b16 %v8921
    %v9609 = vunpack.c.l.b16 %v8922
    %v9610 = vunpack.c.h.b16 %v8922
    %v9611 = vunpack.c.l.b16 %v8923
    %v9612 = vunpack.c.h.b16 %v8923
    %v9613 = vunpack.c.l.b16 %v8924
    %v9614 = vunpack.c.h.b16 %v8924
    %v9615 = vunpack.c.l.b16 %v8925
    %v9616 = vunpack.c.h.b16 %v8925
    %v9617 = vunpack.c.l.b16 %v8926
    %v9618 = vunpack.c.h.b16 %v8926
    %v9619 = vunpack.c.l.b16 %v8927
    %v9620 = vunpack.c.h.b16 %v8927
    %v9621 = vunpack.c.l.b16 %v8928
    %v9622 = vunpack.c.h.b16 %v8928
    %v9623 = vunpack.c.l.b16 %v8929
    %v9624 = vunpack.c.h.b16 %v8929
    %v9625 = vunpack.c.l.b16 %v8930
    %v9626 = vunpack.c.h.b16 %v8930
    %v9627 = vunpack.c.l.b16 %v8931
    %v9628 = vunpack.c.h.b16 %v8931
    %v9629 = vunpack.c.l.b16 %v8932
    %v9630 = vunpack.c.h.b16 %v8932
    %v9631 = vunpack.c.l.b16 %v8933
    %v9632 = vunpack.c.h.b16 %v8933
    %v9633 = vunpack.c.l.b16 %v8934
    %v9634 = vunpack.c.h.b16 %v8934
    %v9635 = vunpack.c.l.b16 %v8935
    %v9636 = vunpack.c.h.b16 %v8935
    %v9637 = vunpack.c.l.b16 %v8936
    %v9638 = vunpack.c.h.b16 %v8936
    %v9639 = vunpack.c.l.b16 %v8937
    %v9640 = vunpack.c.h.b16 %v8937
    %v9641 = vunpack.c.l.b16 %v8938
    %v9642 = vunpack.c.h.b16 %v8938
    %v9643 = vunpack.c.l.b16 %v8939
    %v9644 = vunpack.c.h.b16 %v8939
    %v9645 = vunpack.c.l.b16 %v8940
    %v9646 = vunpack.c.h.b16 %v8940
    %v9647 = vunpack.c.l.b16 %v8941
    %v9648 = vunpack.c.h.b16 %v8941
    %v9649 = vunpack.c.l.b16 %v8942
    %v9650 = vunpack.c.h.b16 %v8942
    %v9651 = vunpack.c.l.b16 %v8943
    %v9652 = vunpack.c.h.b16 %v8943
    %v9653 = vunpack.c.l.b16 %v8944
    %v9654 = vunpack.c.h.b16 %v8944
    %v9655 = vunpack.c.l.b16 %v8945
    %v9656 = vunpack.c.h.b16 %v8945
    %v9657 = vunpack.c.l.b16 %v8946
    %v9658 = vunpack.c.h.b16 %v8946
    %v9659 = vunpack.c.l.b16 %v8947
    %v9660 = vunpack.c.h.b16 %v8947
    %v9661 = vunpack.c.l.b16 %v8948
    %v9662 = vunpack.c.h.b16 %v8948
    %v9663 = vunpack.c.l.b16 %v8949
    %v9664 = vunpack.c.h.b16 %v8949
    %v9665 = vunpack.c.l.b16 %v8950
    %v9666 = vunpack.c.h.b16 %v8950
    %v9667 = vunpack.c.l.b16 %v8951
    %v9668 = vunpack.c.h.b16 %v8951
    %v9669 = vunpack.c.l.b16 %v8952
    %v9670 = vunpack.c.h.b16 %v8952
    %v9671 = vunpack.c.l.b16 %v8953
    %v9672 = vunpack.c.h.b16 %v8953
    %v9673 = vunpack.c.l.b16 %v8954
    %v9674 = vunpack.c.h.b16 %v8954
    %v9675 = vunpack.c.l.b16 %v8955
    %v9676 = vunpack.c.h.b16 %v8955
    %v9677 = vunpack.c.l.b16 %v8956
    %v9678 = vunpack.c.h.b16 %v8956
    %v9679 = vunpack.c.l.b16 %v8957
    %v9680 = vunpack.c.h.b16 %v8957
    %v9681 = vunpack.c.l.b16 %v8958
    %v9682 = vunpack.c.h.b16 %v8958
    %v9683 = vunpack.c.l.b16 %v8959
    %v9684 = vunpack.c.h.b16 %v8959
    %v9685 = vunpack.c.l.b16 %v8960
    %v9686 = vunpack.c.h.b16 %v8960
    %v9687 = vunpack.c.l.b16 %v8961
    %v9688 = vunpack.c.h.b16 %v8961
    %v9689 = vunpack.c.l.b16 %v8962
    %v9690 = vunpack.c.h.b16 %v8962
    %v9691 = vunpack.c.l.b16 %v8963
    %v9692 = vunpack.c.h.b16 %v8963
    %v9693 = vunpack.c.l.b16 %v8964
    %v9694 = vunpack.c.h.b16 %v8964
    %v9695 = vunpack.c.l.b16 %v8965
    %v9696 = vunpack.c.h.b16 %v8965
    %v9697 = vunpack.c.l.b16 %v8966
    %v9698 = vunpack.c.h.b16 %v8966
    %v9699 = vunpack.c.l.b16 %v8967
    %v9700 = vunpack.c.h.b16 %v8967
    %v9701 = vunpack.c.l.b16 %v8968
    %v9702 = vunpack.c.h.b16 %v8968
    %v9703 = vunpack.c.l.b16 %v8969
    %v9704 = vunpack.c.h.b16 %v8969
    %v9705 = vunpack.c.l.b16 %v8970
    %v9706 = vunpack.c.h.b16 %v8970
    %v9707 = vunpack.c.l.b16 %v8971
    %v9708 = vunpack.c.h.b16 %v8971
    %v9709 = vunpack.c.l.b16 %v8972
    %v9710 = vunpack.c.h.b16 %v8972
    %v9711 = vunpack.c.l.b16 %v8973
    %v9712 = vunpack.c.h.b16 %v8973
    %v9713 = vunpack.c.l.b16 %v8974
    %v9714 = vunpack.c.h.b16 %v8974
    %v9715 = vunpack.c.l.b16 %v8975
    %v9716 = vunpack.c.h.b16 %v8975
    %v9717 = vunpack.c.l.b16 %v8976
    %v9718 = vunpack.c.h.b16 %v8976
    %v9719 = vunpack.c.l.b16 %v8977
    %v9720 = vunpack.c.h.b16 %v8977
    %v9721 = vunpack.c.l.b16 %v8978
    %v9722 = vunpack.c.h.b16 %v8978
    %v9723 = vunpack.c.l.b16 %v8979
    %v9724 = vunpack.c.h.b16 %v8979
    %v9725 = vunpack.c.l.b16 %v8980
    %v9726 = vunpack.c.h.b16 %v8980
    %v9727 = vunpack.c.l.b16 %v8981
    %v9728 = vunpack.c.h.b16 %v8981
    %v9729 = vunpack.c.l.b16 %v8982
    %v9730 = vunpack.c.h.b16 %v8982
    %v9731 = vunpack.c.l.b16 %v8983
    %v9732 = vunpack.c.h.b16 %v8983
    %v9733 = vunpack.c.l.b16 %v8984
    %v9734 = vunpack.c.h.b16 %v8984
    %v9735 = vunpack.c.l.b16 %v8985
    %v9736 = vunpack.c.h.b16 %v8985
    %v9737 = vunpack.c.l.b16 %v8986
    %v9738 = vunpack.c.h.b16 %v8986
    %v9739 = vunpack.c.l.b16 %v8987
    %v9740 = vunpack.c.h.b16 %v8987
    %v9741 = vunpack.c.l.b16 %v8988
    %v9742 = vunpack.c.h.b16 %v8988
    %v9743 = vunpack.c.l.b16 %v8989
    %v9744 = vunpack.c.h.b16 %v8989
    %v9745 = vunpack.c.l.b16 %v8990
    %v9746 = vunpack.c.h.b16 %v8990
    %v9747 = vunpack.c.l.b16 %v8991
    %v9748 = vunpack.c.h.b16 %v8991
    %v9749 = vunpack.c.l.b16 %v8992
    %v9750 = vunpack.c.h.b16 %v8992
    %v9751 = vunpack.c.l.b16 %v8993
    %v9752 = vunpack.c.h.b16 %v8993
    %v9753 = vunpack.c.l.b16 %v8994
    %v9754 = vunpack.c.h.b16 %v8994
    %v9755 = vunpack.c.l.b16 %v8995
    %v9756 = vunpack.c.h.b16 %v8995
    %v9757 = vunpack.c.l.b16 %v8996
    %v9758 = vunpack.c.h.b16 %v8996
    %v9759 = vunpack.c.l.b16 %v8997
    %v9760 = vunpack.c.h.b16 %v8997
    %v9761 = vunpack.c.l.b16 %v8998
    %v9762 = vunpack.c.h.b16 %v8998
    %v9763 = vunpack.c.l.b16 %v8999
    %v9764 = vunpack.c.h.b16 %v8999
    %v9765 = vunpack.c.l.b16 %v9000
    %v9766 = vunpack.c.h.b16 %v9000
    %v9767 = vunpack.c.l.b16 %v9001
    %v9768 = vunpack.c.h.b16 %v9001
    %v9769 = vunpack.c.l.b16 %v9002
    %v9770 = vunpack.c.h.b16 %v9002
    %v9771 = vunpack.c.l.b16 %v9003
    %v9772 = vunpack.c.h.b16 %v9003
    %v9773 = vunpack.c.l.b16 %v9004
    %v9774 = vunpack.c.h.b16 %v9004
    %v9775 = vunpack.c.l.b16 %v9005
    %v9776 = vunpack.c.h.b16 %v9005
    %v9777 = vunpack.c.l.b16 %v9006
    %v9778 = vunpack.c.h.b16 %v9006
    %v9779 = vunpack.c.l.b16 %v9007
    %v9780 = vunpack.c.h.b16 %v9007
    %v9781 = vunpack.c.l.b16 %v9008
    %v9782 = vunpack.c.h.b16 %v9008
    %v9783 = vunpack.c.l.b16 %v9009
    %v9784 = vunpack.c.h.b16 %v9009
    %v9785 = vunpack.c.l.b16 %v9010
    %v9786 = vunpack.c.h.b16 %v9010
    %v9787 = vunpack.c.l.b16 %v9011
    %v9788 = vunpack.c.h.b16 %v9011
    %v9789 = vunpack.c.l.b16 %v9012
    %v9790 = vunpack.c.h.b16 %v9012
    %v9791 = vunpack.c.l.b16 %v9013
    %v9792 = vunpack.c.h.b16 %v9013
    %v9793 = vunpack.c.l.b16 %v9014
    %v9794 = vunpack.c.h.b16 %v9014
    %v9795 = vunpack.c.l.b16 %v9015
    %v9796 = vunpack.c.h.b16 %v9015
    %v9797 = vunpack.c.l.b16 %v9016
    %v9798 = vunpack.c.h.b16 %v9016
    %v9799 = vunpack.c.l.b16 %v9017
    %v9800 = vunpack.c.h.b16 %v9017
    %v9801 = vunpack.c.l.b16 %v9018
    %v9802 = vunpack.c.h.b16 %v9018
    %v9803 = vunpack.c.l.b16 %v9019
    %v9804 = vunpack.c.h.b16 %v9019
    %v9805 = vunpack.c.l.b16 %v9020
    %v9806 = vunpack.c.h.b16 %v9020
    %v9807 = vunpack.c.l.b16 %v9021
    %v9808 = vunpack.c.h.b16 %v9021
    %v9809 = vunpack.c.l.b16 %v9022
    %v9810 = vunpack.c.h.b16 %v9022
    %v9811 = vunpack.c.l.b16 %v9023
    %v9812 = vunpack.c.h.b16 %v9023
    %v9813 = vunpack.c.l.b16 %v9024
    %v9814 = vunpack.c.h.b16 %v9024
    %v9815 = vunpack.c.l.b16 %v9025
    %v9816 = vunpack.c.h.b16 %v9025
    %v9817 = vunpack.c.l.b16 %v9026
    %v9818 = vunpack.c.h.b16 %v9026
    %v9819 = vunpack.c.l.b16 %v9027
    %v9820 = vunpack.c.h.b16 %v9027
    %v9821 = vunpack.c.l.b16 %v9028
    %v9822 = vunpack.c.h.b16 %v9028
    %v9823 = vunpack.c.l.b16 %v9029
    %v9824 = vunpack.c.h.b16 %v9029
    %v9825 = vunpack.c.l.b16 %v9030
    %v9826 = vunpack.c.h.b16 %v9030
    %v9827 = vunpack.c.l.b16 %v9031
    %v9828 = vunpack.c.h.b16 %v9031
    %v9829 = vunpack.c.l.b16 %v9032
    %v9830 = vunpack.c.h.b16 %v9032
    %v9831 = vunpack.c.l.b16 %v9033
    %v9832 = vunpack.c.h.b16 %v9033
    %v9833 = vunpack.c.l.b16 %v9034
    %v9834 = vunpack.c.h.b16 %v9034
    %v9835 = vpack.c.b16 %v9331, %v9323
    %v9836 = vpack.c.b16 %v9332, %v9324
    %v9837 = vpack.c.b16 %v9333, %v9325
    %v9838 = vpack.c.b16 %v9334, %v9326
    %v9839 = vpack.c.b16 %v9335, %v9327
    %v9840 = vpack.c.b16 %v9336, %v9328
    %v9841 = vpack.c.b16 %v9337, %v9329
    %v9842 = vpack.c.b16 %v9338, %v9330
    %v9843 = vpack.c.b16 %v9347, %v9339
    %v9844 = vpack.c.b16 %v9348, %v9340
    %v9845 = vpack.c.b16 %v9349, %v9341
    %v9846 = vpack.c.b16 %v9350, %v9342
    %v9847 = vpack.c.b16 %v9351, %v9343
    %v9848 = vpack.c.b16 %v9352, %v9344
    %v9849 = vpack.c.b16 %v9353, %v9345
    %v9850 = vpack.c.b16 %v9354, %v9346
    %v9851 = vpack.c.b16 %v9363, %v9355
    %v9852 = vpack.c.b16 %v9364, %v9356
    %v9853 = vpack.c.b16 %v9365, %v9357
    %v9854 = vpack.c.b16 %v9366, %v9358
    %v9855 = vpack.c.b16 %v9367, %v9359
    %v9856 = vpack.c.b16 %v9368, %v9360
    %v9857 = vpack.c.b16 %v9369, %v9361
    %v9858 = vpack.c.b16 %v9370, %v9362
    %v9859 = vpack.c.b16 %v9379, %v9371
    %v9860 = vpack.c.b16 %v9380, %v9372
    %v9861 = vpack.c.b16 %v9381, %v9373
    %v9862 = vpack.c.b16 %v9382, %v9374
    %v9863 = vpack.c.b16 %v9383, %v9375
    %v9864 = vpack.c.b16 %v9384, %v9376
    %v9865 = vpack.c.b16 %v9385, %v9377
    %v9866 = vpack.c.b16 %v9386, %v9378
    %v9867 = vpack.c.b16 %v9395, %v9387
    %v9868 = vpack.c.b16 %v9396, %v9388
    %v9869 = vpack.c.b16 %v9397, %v9389
    %v9870 = vpack.c.b16 %v9398, %v9390
    %v9871 = vpack.c.b16 %v9399, %v9391
    %v9872 = vpack.c.b16 %v9400, %v9392
    %v9873 = vpack.c.b16 %v9401, %v9393
    %v9874 = vpack.c.b16 %v9402, %v9394
    %v9875 = vpack.c.b16 %v9411, %v9403
    %v9876 = vpack.c.b16 %v9412, %v9404
    %v9877 = vpack.c.b16 %v9413, %v9405
    %v9878 = vpack.c.b16 %v9414, %v9406
    %v9879 = vpack.c.b16 %v9415, %v9407
    %v9880 = vpack.c.b16 %v9416, %v9408
    %v9881 = vpack.c.b16 %v9417, %v9409
    %v9882 = vpack.c.b16 %v9418, %v9410
    %v9883 = vpack.c.b16 %v9427, %v9419
    %v9884 = vpack.c.b16 %v9428, %v9420
    %v9885 = vpack.c.b16 %v9429, %v9421
    %v9886 = vpack.c.b16 %v9430, %v9422
    %v9887 = vpack.c.b16 %v9431, %v9423
    %v9888 = vpack.c.b16 %v9432, %v9424
    %v9889 = vpack.c.b16 %v9433, %v9425
    %v9890 = vpack.c.b16 %v9434, %v9426
    %v9891 = vpack.c.b16 %v9443, %v9435
    %v9892 = vpack.c.b16 %v9444, %v9436
    %v9893 = vpack.c.b16 %v9445, %v9437
    %v9894 = vpack.c.b16 %v9446, %v9438
    %v9895 = vpack.c.b16 %v9447, %v9439
    %v9896 = vpack.c.b16 %v9448, %v9440
    %v9897 = vpack.c.b16 %v9449, %v9441
    %v9898 = vpack.c.b16 %v9450, %v9442
    %v9899 = vpack.c.b16 %v9459, %v9451
    %v9900 = vpack.c.b16 %v9460, %v9452
    %v9901 = vpack.c.b16 %v9461, %v9453
    %v9902 = vpack.c.b16 %v9462, %v9454
    %v9903 = vpack.c.b16 %v9463, %v9455
    %v9904 = vpack.c.b16 %v9464, %v9456
    %v9905 = vpack.c.b16 %v9465, %v9457
    %v9906 = vpack.c.b16 %v9466, %v9458
    %v9907 = vpack.c.b16 %v9475, %v9467
    %v9908 = vpack.c.b16 %v9476, %v9468
    %v9909 = vpack.c.b16 %v9477, %v9469
    %v9910 = vpack.c.b16 %v9478, %v9470
    %v9911 = vpack.c.b16 %v9479, %v9471
    %v9912 = vpack.c.b16 %v9480, %v9472
    %v9913 = vpack.c.b16 %v9481, %v9473
    %v9914 = vpack.c.b16 %v9482, %v9474
    %v9915 = vpack.c.b16 %v9491, %v9483
    %v9916 = vpack.c.b16 %v9492, %v9484
    %v9917 = vpack.c.b16 %v9493, %v9485
    %v9918 = vpack.c.b16 %v9494, %v9486
    %v9919 = vpack.c.b16 %v9495, %v9487
    %v9920 = vpack.c.b16 %v9496, %v9488
    %v9921 = vpack.c.b16 %v9497, %v9489
    %v9922 = vpack.c.b16 %v9498, %v9490
    %v9923 = vpack.c.b16 %v9507, %v9499
    %v9924 = vpack.c.b16 %v9508, %v9500
    %v9925 = vpack.c.b16 %v9509, %v9501
    %v9926 = vpack.c.b16 %v9510, %v9502
    %v9927 = vpack.c.b16 %v9511, %v9503
    %v9928 = vpack.c.b16 %v9512, %v9504
    %v9929 = vpack.c.b16 %v9513, %v9505
    %v9930 = vpack.c.b16 %v9514, %v9506
    %v9931 = vpack.c.b16 %v9523, %v9515
    %v9932 = vpack.c.b16 %v9524, %v9516
    %v9933 = vpack.c.b16 %v9525, %v9517
    %v9934 = vpack.c.b16 %v9526, %v9518
    %v9935 = vpack.c.b16 %v9527, %v9519
    %v9936 = vpack.c.b16 %v9528, %v9520
    %v9937 = vpack.c.b16 %v9529, %v9521
    %v9938 = vpack.c.b16 %v9530, %v9522
    %v9939 = vpack.c.b16 %v9539, %v9531
    %v9940 = vpack.c.b16 %v9540, %v9532
    %v9941 = vpack.c.b16 %v9541, %v9533
    %v9942 = vpack.c.b16 %v9542, %v9534
    %v9943 = vpack.c.b16 %v9543, %v9535
    %v9944 = vpack.c.b16 %v9544, %v9536
    %v9945 = vpack.c.b16 %v9545, %v9537
    %v9946 = vpack.c.b16 %v9546, %v9538
    %v9947 = vpack.c.b16 %v9555, %v9547
    %v9948 = vpack.c.b16 %v9556, %v9548
    %v9949 = vpack.c.b16 %v9557, %v9549
    %v9950 = vpack.c.b16 %v9558, %v9550
    %v9951 = vpack.c.b16 %v9559, %v9551
    %v9952 = vpack.c.b16 %v9560, %v9552
    %v9953 = vpack.c.b16 %v9561, %v9553
    %v9954 = vpack.c.b16 %v9562, %v9554
    %v9955 = vpack.c.b16 %v9571, %v9563
    %v9956 = vpack.c.b16 %v9572, %v9564
    %v9957 = vpack.c.b16 %v9573, %v9565
    %v9958 = vpack.c.b16 %v9574, %v9566
    %v9959 = vpack.c.b16 %v9575, %v9567
    %v9960 = vpack.c.b16 %v9576, %v9568
    %v9961 = vpack.c.b16 %v9577, %v9569
    %v9962 = vpack.c.b16 %v9578, %v9570
    %v9963 = vpack.c.b16 %v9587, %v9579
    %v9964 = vpack.c.b16 %v9588, %v9580
    %v9965 = vpack.c.b16 %v9589, %v9581
    %v9966 = vpack.c.b16 %v9590, %v9582
    %v9967 = vpack.c.b16 %v9591, %v9583
    %v9968 = vpack.c.b16 %v9592, %v9584
    %v9969 = vpack.c.b16 %v9593, %v9585
    %v9970 = vpack.c.b16 %v9594, %v9586
    %v9971 = vpack.c.b16 %v9603, %v9595
    %v9972 = vpack.c.b16 %v9604, %v9596
    %v9973 = vpack.c.b16 %v9605, %v9597
    %v9974 = vpack.c.b16 %v9606, %v9598
    %v9975 = vpack.c.b16 %v9607, %v9599
    %v9976 = vpack.c.b16 %v9608, %v9600
    %v9977 = vpack.c.b16 %v9609, %v9601
    %v9978 = vpack.c.b16 %v9610, %v9602
    %v9979 = vpack.c.b16 %v9619, %v9611
    %v9980 = vpack.c.b16 %v9620, %v9612
    %v9981 = vpack.c.b16 %v9621, %v9613
    %v9982 = vpack.c.b16 %v9622, %v9614
    %v9983 = vpack.c.b16 %v9623, %v9615
    %v9984 = vpack.c.b16 %v9624, %v9616
    %v9985 = vpack.c.b16 %v9625, %v9617
    %v9986 = vpack.c.b16 %v9626, %v9618
    %v9987 = vpack.c.b16 %v9635, %v9627
    %v9988 = vpack.c.b16 %v9636, %v9628
    %v9989 = vpack.c.b16 %v9637, %v9629
    %v9990 = vpack.c.b16 %v9638, %v9630
    %v9991 = vpack.c.b16 %v9639, %v9631
    %v9992 = vpack.c.b16 %v9640, %v9632
    %v9993 = vpack.c.b16 %v9641, %v9633
    %v9994 = vpack.c.b16 %v9642, %v9634
    %v9995 = vpack.c.b16 %v9651, %v9643
    %v9996 = vpack.c.b16 %v9652, %v9644
    %v9997 = vpack.c.b16 %v9653, %v9645
    %v9998 = vpack.c.b16 %v9654, %v9646
    %v9999 = vpack.c.b16 %v9655, %v9647
    %v10000 = vpack.c.b16 %v9656, %v9648
    %v10001 = vpack.c.b16 %v9657, %v9649
    %v10002 = vpack.c.b16 %v9658, %v9650
    %v10003 = vpack.c.b16 %v9667, %v9659
    %v10004 = vpack.c.b16 %v9668, %v9660
    %v10005 = vpack.c.b16 %v9669, %v9661
    %v10006 = vpack.c.b16 %v9670, %v9662
    %v10007 = vpack.c.b16 %v9671, %v9663
    %v10008 = vpack.c.b16 %v9672, %v9664
    %v10009 = vpack.c.b16 %v9673, %v9665
    %v10010 = vpack.c.b16 %v9674, %v9666
    %v10011 = vpack.c.b16 %v9683, %v9675
    %v10012 = vpack.c.b16 %v9684, %v9676
    %v10013 = vpack.c.b16 %v9685, %v9677
    %v10014 = vpack.c.b16 %v9686, %v9678
    %v10015 = vpack.c.b16 %v9687, %v9679
    %v10016 = vpack.c.b16 %v9688, %v9680
    %v10017 = vpack.c.b16 %v9689, %v9681
    %v10018 = vpack.c.b16 %v9690, %v9682
    %v10019 = vpack.c.b16 %v9699, %v9691
    %v10020 = vpack.c.b16 %v9700, %v9692
    %v10021 = vpack.c.b16 %v9701, %v9693
    %v10022 = vpack.c.b16 %v9702, %v9694
    %v10023 = vpack.c.b16 %v9703, %v9695
    %v10024 = vpack.c.b16 %v9704, %v9696
    %v10025 = vpack.c.b16 %v9705, %v9697
    %v10026 = vpack.c.b16 %v9706, %v9698
    %v10027 = vpack.c.b16 %v9715, %v9707
    %v10028 = vpack.c.b16 %v9716, %v9708
    %v10029 = vpack.c.b16 %v9717, %v9709
    %v10030 = vpack.c.b16 %v9718, %v9710
    %v10031 = vpack.c.b16 %v9719, %v9711
    %v10032 = vpack.c.b16 %v9720, %v9712
    %v10033 = vpack.c.b16 %v9721, %v9713
    %v10034 = vpack.c.b16 %v9722, %v9714
    %v10035 = vpack.c.b16 %v9731, %v9723
    %v10036 = vpack.c.b16 %v9732, %v9724
    %v10037 = vpack.c.b16 %v9733, %v9725
    %v10038 = vpack.c.b16 %v9734, %v9726
    %v10039 = vpack.c.b16 %v9735, %v9727
    %v10040 = vpack.c.b16 %v9736, %v9728
    %v10041 = vpack.c.b16 %v9737, %v9729
    %v10042 = vpack.c.b16 %v9738, %v9730
    %v10043 = vpack.c.b16 %v9747, %v9739
    %v10044 = vpack.c.b16 %v9748, %v9740
    %v10045 = vpack.c.b16 %v9749, %v9741
    %v10046 = vpack.c.b16 %v9750, %v9742
    %v10047 = vpack.c.b16 %v9751, %v9743
    %v10048 = vpack.c.b16 %v9752, %v9744
    %v10049 = vpack.c.b16 %v9753, %v9745
    %v10050 = vpack.c.b16 %v9754, %v9746
    %v10051 = vpack.c.b16 %v9763, %v9755
    %v10052 = vpack.c.b16 %v9764, %v9756
    %v10053 = vpack.c.b16 %v9765, %v9757
    %v10054 = vpack.c.b16 %v9766, %v9758
    %v10055 = vpack.c.b16 %v9767, %v9759
    %v10056 = vpack.c.b16 %v9768, %v9760
    %v10057 = vpack.c.b16 %v9769, %v9761
    %v10058 = vpack.c.b16 %v9770, %v9762
    %v10059 = vpack.c.b16 %v9779, %v9771
    %v10060 = vpack.c.b16 %v9780, %v9772
    %v10061 = vpack.c.b16 %v9781, %v9773
    %v10062 = vpack.c.b16 %v9782, %v9774
    %v10063 = vpack.c.b16 %v9783, %v9775
    %v10064 = vpack.c.b16 %v9784, %v9776
    %v10065 = vpack.c.b16 %v9785, %v9777
    %v10066 = vpack.c.b16 %v9786, %v9778
    %v10067 = vpack.c.b16 %v9795, %v9787
    %v10068 = vpack.c.b16 %v9796, %v9788
    %v10069 = vpack.c.b16 %v9797, %v9789
    %v10070 = vpack.c.b16 %v9798, %v9790
    %v10071 = vpack.c.b16 %v9799, %v9791
    %v10072 = vpack.c.b16 %v9800, %v9792
    %v10073 = vpack.c.b16 %v9801, %v9793
    %v10074 = vpack.c.b16 %v9802, %v9794
    %v10075 = vpack.c.b16 %v9811, %v9803
    %v10076 = vpack.c.b16 %v9812, %v9804
    %v10077 = vpack.c.b16 %v9813, %v9805
    %v10078 = vpack.c.b16 %v9814, %v9806
    %v10079 = vpack.c.b16 %v9815, %v9807
    %v10080 = vpack.c.b16 %v9816, %v9808
    %v10081 = vpack.c.b16 %v9817, %v9809
    %v10082 = vpack.c.b16 %v9818, %v9810
    %v10083 = vpack.c.b16 %v9827, %v9819
    %v10084 = vpack.c.b16 %v9828, %v9820
    %v10085 = vpack.c.b16 %v9829, %v9821
    %v10086 = vpack.c.b16 %v9830, %v9822
    %v10087 = vpack.c.b16 %v9831, %v9823
    %v10088 = vpack.c.b16 %v9832, %v9824
    %v10089 = vpack.c.b16 %v9833, %v9825
    %v10090 = vpack.c.b16 %v9834, %v9826
    %10347 = vmatprep.subr.bf16.mxu0 %v9836
    %10348 = vmatpush1.bf16.msra.mxu0 %v9835
    %10349 = vmatprep.subr.bf16.mxu0 %v9844
    %10350 = vmatpush1.bf16.msra.mxu0 %v9843
    %10351 = vmatprep.subr.bf16.mxu0 %v9852
    %10352 = vmatpush1.bf16.msra.mxu0 %v9851
    %10353 = vmatprep.subr.bf16.mxu0 %v9860
    %10354 = vmatpush1.bf16.msra.mxu0 %v9859
    %10355 = vmatprep.subr.bf16.mxu0 %v9868
    %10356 = vmatpush1.bf16.msra.mxu0 %v9867
    %10357 = vmatprep.subr.bf16.mxu0 %v9876
    %10358 = vmatpush1.bf16.msra.mxu0 %v9875
    %10359 = vmatprep.subr.bf16.mxu0 %v9884
    %10360 = vmatpush1.bf16.msra.mxu0 %v9883
    %10361 = vmatprep.subr.bf16.mxu0 %v9892
    %10362 = vmatpush1.bf16.msra.mxu0 %v9891
    %10363 = vmatprep.subr.bf16.mxu0 %v9900
    %10364 = vmatpush1.bf16.msra.mxu0 %v9899
    %10365 = vmatprep.subr.bf16.mxu0 %v9908
    %10366 = vmatpush1.bf16.msra.mxu0 %v9907
    %10367 = vmatprep.subr.bf16.mxu0 %v9916
    %10368 = vmatpush1.bf16.msra.mxu0 %v9915
    %10369 = vmatprep.subr.bf16.mxu0 %v9924
    %10370 = vmatpush1.bf16.msra.mxu0 %v9923
    %10371 = vmatprep.subr.bf16.mxu0 %v9932
    %10372 = vmatpush1.bf16.msra.mxu0 %v9931
    %10373 = vmatprep.subr.bf16.mxu0 %v9940
    %10374 = vmatpush1.bf16.msra.mxu0 %v9939
    %10375 = vmatprep.subr.bf16.mxu0 %v9948
    %10376 = vmatpush1.bf16.msra.mxu0 %v9947
    %10377 = vmatprep.subr.bf16.mxu0 %v9956
    %10378 = vmatpush1.bf16.msra.mxu0 %v9955
    %10379 = vmatprep.mubr.bf16.mxu0 %v9052
    %10380 = vmatmul.mubr.bf16.gmra.mrb[0].mxu0 %v9051
    %v10381 = vpop.f32.mrb[0].mxu0
    %v10382 = vadd.f32 0.0, %v10381
    %v10383 = vpop.f32.mrb[0].mxu0
    %v10384 = vadd.f32 0.0, %v10383
    %v10385 = vpop.f32.mrb[0].mxu0
    %v10386 = vadd.f32 0.0, %v10385
    %v10387 = vpop.f32.mrb[0].mxu0
    %v10388 = vadd.f32 0.0, %v10387
    %10389 = vmatprep.mubr.bf16.mxu0 %v9056
    %10390 = vmatmul.mubr.bf16.gmra.mrb[0].mxu0 %v9055
    %v10391 = vpop.f32.mrb[0].mxu0
    %v10392 = vadd.f32 0.0, %v10391
    %v10393 = vpop.f32.mrb[0].mxu0
    %v10394 = vadd.f32 0.0, %v10393
    %v10395 = vpop.f32.mrb[0].mxu0
    %v10396 = vadd.f32 0.0, %v10395
    %v10397 = vpop.f32.mrb[0].mxu0
    %v10398 = vadd.f32 0.0, %v10397
    %10399 = vdwg.mxu0
    %10400 = vmatprep.subr.bf16.mxu0 %v9964
    %10401 = vmatpush1.bf16.msra.mxu0 %v9963
    %10402 = vmatprep.subr.bf16.mxu0 %v9972
    %10403 = vmatpush1.bf16.msra.mxu0 %v9971
    %10404 = vmatprep.subr.bf16.mxu0 %v9980
    %10405 = vmatpush1.bf16.msra.mxu0 %v9979
    %10406 = vmatprep.subr.bf16.mxu0 %v9988
    %10407 = vmatpush1.bf16.msra.mxu0 %v9987
    %10408 = vmatprep.subr.bf16.mxu0 %v9996
    %10409 = vmatpush1.bf16.msra.mxu0 %v9995
    %10410 = vmatprep.subr.bf16.mxu0 %v10004
    %10411 = vmatpush1.bf16.msra.mxu0 %v10003
    %10412 = vmatprep.subr.bf16.mxu0 %v10012
    %10413 = vmatpush1.bf16.msra.mxu0 %v10011
    %10414 = vmatprep.subr.bf16.mxu0 %v10020
    %10415 = vmatpush1.bf16.msra.mxu0 %v10019
    %10416 = vmatprep.subr.bf16.mxu0 %v10028
    %10417 = vmatpush1.bf16.msra.mxu0 %v10027
    %10418 = vmatprep.subr.bf16.mxu0 %v10036
    %10419 = vmatpush1.bf16.msra.mxu0 %v10035
    %10420 = vmatprep.subr.bf16.mxu0 %v10044
    %10421 = vmatpush1.bf16.msra.mxu0 %v10043
    %10422 = vmatprep.subr.bf16.mxu0 %v10052
    %10423 = vmatpush1.bf16.msra.mxu0 %v10051
    %10424 = vmatprep.subr.bf16.mxu0 %v10060
    %10425 = vmatpush1.bf16.msra.mxu0 %v10059
    %10426 = vmatprep.subr.bf16.mxu0 %v10068
    %10427 = vmatpush1.bf16.msra.mxu0 %v10067
    %10428 = vmatprep.subr.bf16.mxu0 %v10076
    %10429 = vmatpush1.bf16.msra.mxu0 %v10075
    %10430 = vmatprep.subr.bf16.mxu0 %v10084
    %10431 = vmatpush1.bf16.msra.mxu0 %v10083
    %10432 = vmatprep.mubr.bf16.mxu0 %v9054
    %10433 = vmatmul.mubr.bf16.gmra.mrb[0].mxu0 %v9053
    %v10434 = vpop.f32.mrb[0].mxu0
    %v10435 = vadd.f32 %v10382, %v10434
    %v10436 = vpop.f32.mrb[0].mxu0
    %v10437 = vadd.f32 %v10384, %v10436
    %v10438 = vpop.f32.mrb[0].mxu0
    %v10439 = vadd.f32 %v10386, %v10438
    %v10440 = vpop.f32.mrb[0].mxu0
    %v10441 = vadd.f32 %v10388, %v10440
    %10442 = vmatprep.mubr.bf16.mxu0 %v9058
    %10443 = vmatmul.mubr.bf16.gmra.mrb[0].mxu0 %v9057
    %v10444 = vpop.f32.mrb[0].mxu0
    %v10445 = vadd.f32 %v10392, %v10444
    %v10446 = vpop.f32.mrb[0].mxu0
    %v10447 = vadd.f32 %v10394, %v10446
    %v10448 = vpop.f32.mrb[0].mxu0
    %v10449 = vadd.f32 %v10396, %v10448
    %v10450 = vpop.f32.mrb[0].mxu0
    %v10451 = vadd.f32 %v10398, %v10450
    %10452 = vdwg.mxu0
    %10453 = vmatprep.subr.bf16.mxu0 %v9838
    %10454 = vmatpush1.bf16.msra.mxu0 %v9837
    %10455 = vmatprep.subr.bf16.mxu0 %v9846
    %10456 = vmatpush1.bf16.msra.mxu0 %v9845
    %10457 = vmatprep.subr.bf16.mxu0 %v9854
    %10458 = vmatpush1.bf16.msra.mxu0 %v9853
    %10459 = vmatprep.subr.bf16.mxu0 %v9862
    %10460 = vmatpush1.bf16.msra.mxu0 %v9861
    %10461 = vmatprep.subr.bf16.mxu0 %v9870
    %10462 = vmatpush1.bf16.msra.mxu0 %v9869
    %10463 = vmatprep.subr.bf16.mxu0 %v9878
    %10464 = vmatpush1.bf16.msra.mxu0 %v9877
    %10465 = vmatprep.subr.bf16.mxu0 %v9886
    %10466 = vmatpush1.bf16.msra.mxu0 %v9885
    %10467 = vmatprep.subr.bf16.mxu0 %v9894
    %10468 = vmatpush1.bf16.msra.mxu0 %v9893
    %10469 = vmatprep.subr.bf16.mxu0 %v9902
    %10470 = vmatpush1.bf16.msra.mxu0 %v9901
    %10471 = vmatprep.subr.bf16.mxu0 %v9910
    %10472 = vmatpush1.bf16.msra.mxu0 %v9909
    %10473 = vmatprep.subr.bf16.mxu0 %v9918
    %10474 = vmatpush1.bf16.msra.mxu0 %v9917
    %10475 = vmatprep.subr.bf16.mxu0 %v9926
    %10476 = vmatpush1.bf16.msra.mxu0 %v9925
    %10477 = vmatprep.subr.bf16.mxu0 %v9934
    %10478 = vmatpush1.bf16.msra.mxu0 %v9933
    %10479 = vmatprep.subr.bf16.mxu0 %v9942
    %10480 = vmatpush1.bf16.msra.mxu0 %v9941
    %10481 = vmatprep.subr.bf16.mxu0 %v9950
    %10482 = vmatpush1.bf16.msra.mxu0 %v9949
    %10483 = vmatprep.subr.bf16.mxu0 %v9958
    %10484 = vmatpush1.bf16.msra.mxu0 %v9957
    %10485 = vmatprep.mubr.bf16.mxu0 %v9052
    %10486 = vmatmul.mubr.bf16.gmra.mrb[0].mxu0 %v9051
    %v10487 = vpop.f32.mrb[0].mxu0
    %v10488 = vadd.f32 0.0, %v10487
    %v10489 = vpop.f32.mrb[0].mxu0
    %v10490 = vadd.f32 0.0, %v10489
    %v10491 = vpop.f32.mrb[0].mxu0
    %v10492 = vadd.f32 0.0, %v10491
    %v10493 = vpop.f32.mrb[0].mxu0
    %v10494 = vadd.f32 0.0, %v10493
    %10495 = vmatprep.mubr.bf16.mxu0 %v9056
    %10496 = vmatmul.mubr.bf16.gmra.mrb[0].mxu0 %v9055
    %v10497 = vpop.f32.mrb[0].mxu0
    %v10498 = vadd.f32 0.0, %v10497
    %v10499 = vpop.f32.mrb[0].mxu0
    %v10500 = vadd.f32 0.0, %v10499
    %v10501 = vpop.f32.mrb[0].mxu0
    %v10502 = vadd.f32 0.0, %v10501
    %v10503 = vpop.f32.mrb[0].mxu0
    %v10504 = vadd.f32 0.0, %v10503
    %10505 = vdwg.mxu0
    %10506 = vmatprep.subr.bf16.mxu0 %v9966
    %10507 = vmatpush1.bf16.msra.mxu0 %v9965
    %10508 = vmatprep.subr.bf16.mxu0 %v9974
    %10509 = vmatpush1.bf16.msra.mxu0 %v9973
    %10510 = vmatprep.subr.bf16.mxu0 %v9982
    %10511 = vmatpush1.bf16.msra.mxu0 %v9981
    %10512 = vmatprep.subr.bf16.mxu0 %v9990
    %10513 = vmatpush1.bf16.msra.mxu0 %v9989
    %10514 = vmatprep.subr.bf16.mxu0 %v9998
    %10515 = vmatpush1.bf16.msra.mxu0 %v9997
    %10516 = vmatprep.subr.bf16.mxu0 %v10006
    %10517 = vmatpush1.bf16.msra.mxu0 %v10005
    %10518 = vmatprep.subr.bf16.mxu0 %v10014
    %10519 = vmatpush1.bf16.msra.mxu0 %v10013
    %10520 = vmatprep.subr.bf16.mxu0 %v10022
    %10521 = vmatpush1.bf16.msra.mxu0 %v10021
    %10522 = vmatprep.subr.bf16.mxu0 %v10030
    %10523 = vmatpush1.bf16.msra.mxu0 %v10029
    %10524 = vmatprep.subr.bf16.mxu0 %v10038
    %10525 = vmatpush1.bf16.msra.mxu0 %v10037
    %10526 = vmatprep.subr.bf16.mxu0 %v10046
    %10527 = vmatpush1.bf16.msra.mxu0 %v10045
    %10528 = vmatprep.subr.bf16.mxu0 %v10054
    %10529 = vmatpush1.bf16.msra.mxu0 %v10053
    %10530 = vmatprep.subr.bf16.mxu0 %v10062
    %10531 = vmatpush1.bf16.msra.mxu0 %v10061
    %10532 = vmatprep.subr.bf16.mxu0 %v10070
    %10533 = vmatpush1.bf16.msra.mxu0 %v10069
    %10534 = vmatprep.subr.bf16.mxu0 %v10078
    %10535 = vmatpush1.bf16.msra.mxu0 %v10077
    %10536 = vmatprep.subr.bf16.mxu0 %v10086
    %10537 = vmatpush1.bf16.msra.mxu0 %v10085
    %10538 = vmatprep.mubr.bf16.mxu0 %v9054
    %10539 = vmatmul.mubr.bf16.gmra.mrb[0].mxu0 %v9053
    %v10540 = vpop.f32.mrb[0].mxu0
    %v10541 = vadd.f32 %v10488, %v10540
    %v10542 = vpop.f32.mrb[0].mxu0
    %v10543 = vadd.f32 %v10490, %v10542
    %v10544 = vpop.f32.mrb[0].mxu0
    %v10545 = vadd.f32 %v10492, %v10544
    %v10546 = vpop.f32.mrb[0].mxu0
    %v10547 = vadd.f32 %v10494, %v10546
    %10548 = vmatprep.mubr.bf16.mxu0 %v9058
    %10549 = vmatmul.mubr.bf16.gmra.mrb[0].mxu0 %v9057
    %v10550 = vpop.f32.mrb[0].mxu0
    %v10551 = vadd.f32 %v10498, %v10550
    %v10552 = vpop.f32.mrb[0].mxu0
    %v10553 = vadd.f32 %v10500, %v10552
    %v10554 = vpop.f32.mrb[0].mxu0
    %v10555 = vadd.f32 %v10502, %v10554
    %v10556 = vpop.f32.mrb[0].mxu0
    %v10557 = vadd.f32 %v10504, %v10556
    %10558 = vdwg.mxu0
    %10559 = vmatprep.subr.bf16.mxu0 %v9840
    %10560 = vmatpush1.bf16.msra.mxu0 %v9839
    %10561 = vmatprep.subr.bf16.mxu0 %v9848
    %10562 = vmatpush1.bf16.msra.mxu0 %v9847
    %10563 = vmatprep.subr.bf16.mxu0 %v9856
    %10564 = vmatpush1.bf16.msra.mxu0 %v9855
    %10565 = vmatprep.subr.bf16.mxu0 %v9864
    %10566 = vmatpush1.bf16.msra.mxu0 %v9863
    %10567 = vmatprep.subr.bf16.mxu0 %v9872
    %10568 = vmatpush1.bf16.msra.mxu0 %v9871
    %10569 = vmatprep.subr.bf16.mxu0 %v9880
    %10570 = vmatpush1.bf16.msra.mxu0 %v9879
    %10571 = vmatprep.subr.bf16.mxu0 %v9888
    %10572 = vmatpush1.bf16.msra.mxu0 %v9887
    %10573 = vmatprep.subr.bf16.mxu0 %v9896
    %10574 = vmatpush1.bf16.msra.mxu0 %v9895
    %10575 = vmatprep.subr.bf16.mxu0 %v9904
    %10576 = vmatpush1.bf16.msra.mxu0 %v9903
    %10577 = vmatprep.subr.bf16.mxu0 %v9912
    %10578 = vmatpush1.bf16.msra.mxu0 %v9911
    %10579 = vmatprep.subr.bf16.mxu0 %v9920
    %10580 = vmatpush1.bf16.msra.mxu0 %v9919
    %10581 = vmatprep.subr.bf16.mxu0 %v9928
    %10582 = vmatpush1.bf16.msra.mxu0 %v9927
    %10583 = vmatprep.subr.bf16.mxu0 %v9936
    %10584 = vmatpush1.bf16.msra.mxu0 %v9935
    %10585 = vmatprep.subr.bf16.mxu0 %v9944
    %10586 = vmatpush1.bf16.msra.mxu0 %v9943
    %10587 = vmatprep.subr.bf16.mxu0 %v9952
    %10588 = vmatpush1.bf16.msra.mxu0 %v9951
    %10589 = vmatprep.subr.bf16.mxu0 %v9960
    %10590 = vmatpush1.bf16.msra.mxu0 %v9959
    %10591 = vmatprep.mubr.bf16.mxu0 %v9052
    %10592 = vmatmul.mubr.bf16.gmra.mrb[0].mxu0 %v9051
    %v10593 = vpop.f32.mrb[0].mxu0
    %v10594 = vadd.f32 0.0, %v10593
    %v10595 = vpop.f32.mrb[0].mxu0
    %v10596 = vadd.f32 0.0, %v10595
    %v10597 = vpop.f32.mrb[0].mxu0
    %v10598 = vadd.f32 0.0, %v10597
    %v10599 = vpop.f32.mrb[0].mxu0
    %v10600 = vadd.f32 0.0, %v10599
    %10601 = vmatprep.mubr.bf16.mxu0 %v9056
    %10602 = vmatmul.mubr.bf16.gmra.mrb[0].mxu0 %v9055
    %v10603 = vpop.f32.mrb[0].mxu0
    %v10604 = vadd.f32 0.0, %v10603
    %v10605 = vpop.f32.mrb[0].mxu0
    %v10606 = vadd.f32 0.0, %v10605
    %v10607 = vpop.f32.mrb[0].mxu0
    %v10608 = vadd.f32 0.0, %v10607
    %v10609 = vpop.f32.mrb[0].mxu0
    %v10610 = vadd.f32 0.0, %v10609
    %10611 = vdwg.mxu0
    %10612 = vmatprep.subr.bf16.mxu0 %v9968
    %10613 = vmatpush1.bf16.msra.mxu0 %v9967
    %10614 = vmatprep.subr.bf16.mxu0 %v9976
    %10615 = vmatpush1.bf16.msra.mxu0 %v9975
    %10616 = vmatprep.subr.bf16.mxu0 %v9984
    %10617 = vmatpush1.bf16.msra.mxu0 %v9983
    %10618 = vmatprep.subr.bf16.mxu0 %v9992
    %10619 = vmatpush1.bf16.msra.mxu0 %v9991
    %10620 = vmatprep.subr.bf16.mxu0 %v10000
    %10621 = vmatpush1.bf16.msra.mxu0 %v9999
    %10622 = vmatprep.subr.bf16.mxu0 %v10008
    %10623 = vmatpush1.bf16.msra.mxu0 %v10007
    %10624 = vmatprep.subr.bf16.mxu0 %v10016
    %10625 = vmatpush1.bf16.msra.mxu0 %v10015
    %10626 = vmatprep.subr.bf16.mxu0 %v10024
    %10627 = vmatpush1.bf16.msra.mxu0 %v10023
    %10628 = vmatprep.subr.bf16.mxu0 %v10032
    %10629 = vmatpush1.bf16.msra.mxu0 %v10031
    %10630 = vmatprep.subr.bf16.mxu0 %v10040
    %10631 = vmatpush1.bf16.msra.mxu0 %v10039
    %10632 = vmatprep.subr.bf16.mxu0 %v10048
    %10633 = vmatpush1.bf16.msra.mxu0 %v10047
    %10634 = vmatprep.subr.bf16.mxu0 %v10056
    %10635 = vmatpush1.bf16.msra.mxu0 %v10055
    %10636 = vmatprep.subr.bf16.mxu0 %v10064
    %10637 = vmatpush1.bf16.msra.mxu0 %v10063
    %10638 = vmatprep.subr.bf16.mxu0 %v10072
    %10639 = vmatpush1.bf16.msra.mxu0 %v10071
    %10640 = vmatprep.subr.bf16.mxu0 %v10080
    %10641 = vmatpush1.bf16.msra.mxu0 %v10079
    %10642 = vmatprep.subr.bf16.mxu0 %v10088
    %10643 = vmatpush1.bf16.msra.mxu0 %v10087
    %10644 = vmatprep.mubr.bf16.mxu0 %v9054
    %10645 = vmatmul.mubr.bf16.gmra.mrb[0].mxu0 %v9053
    %v10646 = vpop.f32.mrb[0].mxu0
    %v10647 = vadd.f32 %v10594, %v10646
    %v10648 = vpop.f32.mrb[0].mxu0
    %v10649 = vadd.f32 %v10596, %v10648
    %v10650 = vpop.f32.mrb[0].mxu0
    %v10651 = vadd.f32 %v10598, %v10650
    %v10652 = vpop.f32.mrb[0].mxu0
    %v10653 = vadd.f32 %v10600, %v10652
    %10654 = vmatprep.mubr.bf16.mxu0 %v9058
    %10655 = vmatmul.mubr.bf16.gmra.mrb[0].mxu0 %v9057
    %v10656 = vpop.f32.mrb[0].mxu0
    %v10657 = vadd.f32 %v10604, %v10656
    %v10658 = vpop.f32.mrb[0].mxu0
    %v10659 = vadd.f32 %v10606, %v10658
    %v10660 = vpop.f32.mrb[0].mxu0
    %v10661 = vadd.f32 %v10608, %v10660
    %v10662 = vpop.f32.mrb[0].mxu0
    %v10663 = vadd.f32 %v10610, %v10662
    %10664 = vdwg.mxu0
    %10665 = vmatprep.subr.bf16.mxu0 %v9842
    %10666 = vmatpush1.bf16.msra.mxu0 %v9841
    %10667 = vmatprep.subr.bf16.mxu0 %v9850
    %10668 = vmatpush1.bf16.msra.mxu0 %v9849
    %10669 = vmatprep.subr.bf16.mxu0 %v9858
    %10670 = vmatpush1.bf16.msra.mxu0 %v9857
    %10671 = vmatprep.subr.bf16.mxu0 %v9866
    %10672 = vmatpush1.bf16.msra.mxu0 %v9865
    %10673 = vmatprep.subr.bf16.mxu0 %v9874
    %10674 = vmatpush1.bf16.msra.mxu0 %v9873
    %10675 = vmatprep.subr.bf16.mxu0 %v9882
    %10676 = vmatpush1.bf16.msra.mxu0 %v9881
    %10677 = vmatprep.subr.bf16.mxu0 %v9890
    %10678 = vmatpush1.bf16.msra.mxu0 %v9889
    %10679 = vmatprep.subr.bf16.mxu0 %v9898
    %10680 = vmatpush1.bf16.msra.mxu0 %v9897
    %10681 = vmatprep.subr.bf16.mxu0 %v9906
    %10682 = vmatpush1.bf16.msra.mxu0 %v9905
    %10683 = vmatprep.subr.bf16.mxu0 %v9914
    %10684 = vmatpush1.bf16.msra.mxu0 %v9913
    %10685 = vmatprep.subr.bf16.mxu0 %v9922
    %10686 = vmatpush1.bf16.msra.mxu0 %v9921
    %10687 = vmatprep.subr.bf16.mxu0 %v9930
    %10688 = vmatpush1.bf16.msra.mxu0 %v9929
    %10689 = vmatprep.subr.bf16.mxu0 %v9938
    %10690 = vmatpush1.bf16.msra.mxu0 %v9937
    %10691 = vmatprep.subr.bf16.mxu0 %v9946
    %10692 = vmatpush1.bf16.msra.mxu0 %v9945
    %10693 = vmatprep.subr.bf16.mxu0 %v9954
    %10694 = vmatpush1.bf16.msra.mxu0 %v9953
    %10695 = vmatprep.subr.bf16.mxu0 %v9962
    %10696 = vmatpush1.bf16.msra.mxu0 %v9961
    %10697 = vmatprep.mubr.bf16.mxu0 %v9052
    %10698 = vmatmul.mubr.bf16.gmra.mrb[0].mxu0 %v9051
    %v10699 = vpop.f32.mrb[0].mxu0
    %v10700 = vadd.f32 0.0, %v10699
    %v10701 = vpop.f32.mrb[0].mxu0
    %v10702 = vadd.f32 0.0, %v10701
    %v10703 = vpop.f32.mrb[0].mxu0
    %v10704 = vadd.f32 0.0, %v10703
    %v10705 = vpop.f32.mrb[0].mxu0
    %v10706 = vadd.f32 0.0, %v10705
    %10707 = vmatprep.mubr.bf16.mxu0 %v9056
    %10708 = vmatmul.mubr.bf16.gmra.mrb[0].mxu0 %v9055
    %v10709 = vpop.f32.mrb[0].mxu0
    %v10710 = vadd.f32 0.0, %v10709
    %v10711 = vpop.f32.mrb[0].mxu0
    %v10712 = vadd.f32 0.0, %v10711
    %v10713 = vpop.f32.mrb[0].mxu0
    %v10714 = vadd.f32 0.0, %v10713
    %v10715 = vpop.f32.mrb[0].mxu0
    %v10716 = vadd.f32 0.0, %v10715
    %10717 = vdwg.mxu0
    %10718 = vmatprep.subr.bf16.mxu0 %v9970
    %10719 = vmatpush1.bf16.msra.mxu0 %v9969
    %10720 = vmatprep.subr.bf16.mxu0 %v9978
    %10721 = vmatpush1.bf16.msra.mxu0 %v9977
    %10722 = vmatprep.subr.bf16.mxu0 %v9986
    %10723 = vmatpush1.bf16.msra.mxu0 %v9985
    %10724 = vmatprep.subr.bf16.mxu0 %v9994
    %10725 = vmatpush1.bf16.msra.mxu0 %v9993
    %10726 = vmatprep.subr.bf16.mxu0 %v10002
    %10727 = vmatpush1.bf16.msra.mxu0 %v10001
    %10728 = vmatprep.subr.bf16.mxu0 %v10010
    %10729 = vmatpush1.bf16.msra.mxu0 %v10009
    %10730 = vmatprep.subr.bf16.mxu0 %v10018
    %10731 = vmatpush1.bf16.msra.mxu0 %v10017
    %10732 = vmatprep.subr.bf16.mxu0 %v10026
    %10733 = vmatpush1.bf16.msra.mxu0 %v10025
    %10734 = vmatprep.subr.bf16.mxu0 %v10034
    %10735 = vmatpush1.bf16.msra.mxu0 %v10033
    %10736 = vmatprep.subr.bf16.mxu0 %v10042
    %10737 = vmatpush1.bf16.msra.mxu0 %v10041
    %10738 = vmatprep.subr.bf16.mxu0 %v10050
    %10739 = vmatpush1.bf16.msra.mxu0 %v10049
    %10740 = vmatprep.subr.bf16.mxu0 %v10058
    %10741 = vmatpush1.bf16.msra.mxu0 %v10057
    %10742 = vmatprep.subr.bf16.mxu0 %v10066
    %10743 = vmatpush1.bf16.msra.mxu0 %v10065
    %10744 = vmatprep.subr.bf16.mxu0 %v10074
    %10745 = vmatpush1.bf16.msra.mxu0 %v10073
    %10746 = vmatprep.subr.bf16.mxu0 %v10082
    %10747 = vmatpush1.bf16.msra.mxu0 %v10081
    %10748 = vmatprep.subr.bf16.mxu0 %v10090
    %10749 = vmatpush1.bf16.msra.mxu0 %v10089
    %10750 = vmatprep.mubr.bf16.mxu0 %v9054
    %10751 = vmatmul.mubr.bf16.gmra.mrb[0].mxu0 %v9053
    %v10752 = vpop.f32.mrb[0].mxu0
    %v10753 = vadd.f32 %v10700, %v10752
    %v10754 = vpop.f32.mrb[0].mxu0
    %v10755 = vadd.f32 %v10702, %v10754
    %v10756 = vpop.f32.mrb[0].mxu0
    %v10757 = vadd.f32 %v10704, %v10756
    %v10758 = vpop.f32.mrb[0].mxu0
    %v10759 = vadd.f32 %v10706, %v10758
    %10760 = vmatprep.mubr.bf16.mxu0 %v9058
    %10761 = vmatmul.mubr.bf16.gmra.mrb[0].mxu0 %v9057
    %v10762 = vpop.f32.mrb[0].mxu0
    %v10763 = vadd.f32 %v10710, %v10762
    %v10764 = vpop.f32.mrb[0].mxu0
    %v10765 = vadd.f32 %v10712, %v10764
    %v10766 = vpop.f32.mrb[0].mxu0
    %v10767 = vadd.f32 %v10714, %v10766
    %v10768 = vpop.f32.mrb[0].mxu0
    %v10769 = vadd.f32 %v10716, %v10768
    %10770 = vdwg.mxu0
    %v10771 = vadd.f32 %v8334, %v10435
    %v10772 = vadd.f32 %v8336, %v10437
    %v10773 = vadd.f32 %v8440, %v10541
    %v10774 = vadd.f32 %v8442, %v10543
    %v10775 = vadd.f32 %v8546, %v10647
    %v10776 = vadd.f32 %v8548, %v10649
    %v10777 = vadd.f32 %v8652, %v10753
    %v10778 = vadd.f32 %v8654, %v10755
    %v10779 = vadd.f32 %v8338, %v10439
    %v10780 = vadd.f32 %v8340, %v10441
    %v10781 = vadd.f32 %v8444, %v10545
    %v10782 = vadd.f32 %v8446, %v10547
    %v10783 = vadd.f32 %v8550, %v10651
    %v10784 = vadd.f32 %v8552, %v10653
    %v10785 = vadd.f32 %v8656, %v10757
    %v10786 = vadd.f32 %v8658, %v10759
    %v10787 = vadd.f32 %v8344, %v10445
    %v10788 = vadd.f32 %v8346, %v10447
    %v10789 = vadd.f32 %v8450, %v10551
    %v10790 = vadd.f32 %v8452, %v10553
    %v10791 = vadd.f32 %v8556, %v10657
    %v10792 = vadd.f32 %v8558, %v10659
    %v10793 = vadd.f32 %v8662, %v10763
    %v10794 = vadd.f32 %v8664, %v10765
    %v10795 = vadd.f32 %v8348, %v10449
    %v10796 = vadd.f32 %v8350, %v10451
    %v10797 = vadd.f32 %v8454, %v10555
    %v10798 = vadd.f32 %v8456, %v10557
    %v10799 = vadd.f32 %v8560, %v10661
    %v10800 = vadd.f32 %v8562, %v10663
    %v10801 = vadd.f32 %v8666, %v10767
    %v10802 = vadd.f32 %v8668, %v10769
    %v10804 = vlaneseq
    %v10805 = vshrl.u32 %v10804, 7
    %v10806 = vsub.s32 0, %v10805
    %v10807 = vrot.slane %v4574, %v10806
    %v10808 = vlaneseq
    %v10809 = vshrl.u32 %v10808, 7
    %v10810 = vsub.s32 1, %v10809
    %v10811 = vrot.slane %v4574, %v10810
    %v10812 = vlaneseq
    %v10813 = vshrl.u32 %v10812, 7
    %v10814 = vsub.s32 2, %v10813
    %v10815 = vrot.slane %v4574, %v10814
    %v10816 = vlaneseq
    %v10817 = vshrl.u32 %v10816, 7
    %v10818 = vsub.s32 3, %v10817
    %v10819 = vrot.slane %v4574, %v10818
    %v10820 = vlaneseq
    %v10821 = vshrl.u32 %v10820, 7
    %v10822 = vsub.s32 4, %v10821
    %v10823 = vrot.slane %v4574, %v10822
    %v10824 = vlaneseq
    %v10825 = vshrl.u32 %v10824, 7
    %v10826 = vsub.s32 5, %v10825
    %v10827 = vrot.slane %v4574, %v10826
    %v10828 = vlaneseq
    %v10829 = vshrl.u32 %v10828, 7
    %v10830 = vsub.s32 6, %v10829
    %v10831 = vrot.slane %v4574, %v10830
    %v10832 = vlaneseq
    %v10833 = vshrl.u32 %v10832, 7
    %v10834 = vsub.s32 7, %v10833
    %v10835 = vrot.slane %v4574, %v10834
    %v10844 = vadd.f32 %v10771, %v10807
    %v10845 = vadd.f32 %v10772, %v10811
    %v10846 = vadd.f32 %v10773, %v10815
    %v10847 = vadd.f32 %v10774, %v10819
    %v10848 = vadd.f32 %v10775, %v10823
    %v10849 = vadd.f32 %v10776, %v10827
    %v10850 = vadd.f32 %v10777, %v10831
    %v10851 = vadd.f32 %v10778, %v10835
    %v10852 = vadd.f32 %v10779, %v10807
    %v10853 = vadd.f32 %v10780, %v10811
    %v10854 = vadd.f32 %v10781, %v10815
    %v10855 = vadd.f32 %v10782, %v10819
    %v10856 = vadd.f32 %v10783, %v10823
    %v10857 = vadd.f32 %v10784, %v10827
    %v10858 = vadd.f32 %v10785, %v10831
    %v10859 = vadd.f32 %v10786, %v10835
    %v10860 = vadd.f32 %v10787, %v10807
    %v10861 = vadd.f32 %v10788, %v10811
    %v10862 = vadd.f32 %v10789, %v10815
    %v10863 = vadd.f32 %v10790, %v10819
    %v10864 = vadd.f32 %v10791, %v10823
    %v10865 = vadd.f32 %v10792, %v10827
    %v10866 = vadd.f32 %v10793, %v10831
    %v10867 = vadd.f32 %v10794, %v10835
    %v10868 = vadd.f32 %v10795, %v10807
    %v10869 = vadd.f32 %v10796, %v10811
    %v10870 = vadd.f32 %v10797, %v10815
    %v10871 = vadd.f32 %v10798, %v10819
    %v10872 = vadd.f32 %v10799, %v10823
    %v10873 = vadd.f32 %v10800, %v10827
    %v10874 = vadd.f32 %v10801, %v10831
    %v10875 = vadd.f32 %v10802, %v10835
    %v10876 = vmax.f32 %v10844, 0.0
    %v10877 = vmax.f32 %v10845, 0.0
    %v10878 = vmax.f32 %v10846, 0.0
    %v10879 = vmax.f32 %v10847, 0.0
    %v10880 = vmax.f32 %v10848, 0.0
    %v10881 = vmax.f32 %v10849, 0.0
    %v10882 = vmax.f32 %v10850, 0.0
    %v10883 = vmax.f32 %v10851, 0.0
    %v10884 = vmax.f32 %v10852, 0.0
    %v10885 = vmax.f32 %v10853, 0.0
    %v10886 = vmax.f32 %v10854, 0.0
    %v10887 = vmax.f32 %v10855, 0.0
    %v10888 = vmax.f32 %v10856, 0.0
    %v10889 = vmax.f32 %v10857, 0.0
    %v10890 = vmax.f32 %v10858, 0.0
    %v10891 = vmax.f32 %v10859, 0.0
    %v10892 = vmax.f32 %v10860, 0.0
    %v10893 = vmax.f32 %v10861, 0.0
    %v10894 = vmax.f32 %v10862, 0.0
    %v10895 = vmax.f32 %v10863, 0.0
    %v10896 = vmax.f32 %v10864, 0.0
    %v10897 = vmax.f32 %v10865, 0.0
    %v10898 = vmax.f32 %v10866, 0.0
    %v10899 = vmax.f32 %v10867, 0.0
    %v10900 = vmax.f32 %v10868, 0.0
    %v10901 = vmax.f32 %v10869, 0.0
    %v10902 = vmax.f32 %v10870, 0.0
    %v10903 = vmax.f32 %v10871, 0.0
    %v10904 = vmax.f32 %v10872, 0.0
    %v10905 = vmax.f32 %v10873, 0.0
    %v10906 = vmax.f32 %v10874, 0.0
    %v10907 = vmax.f32 %v10875, 0.0
    %v10908 = vmax.f32 %v10876, %v10880
    %v10909 = vmax.f32 %v10877, %v10881
    %v10910 = vmax.f32 %v10878, %v10882
    %v10911 = vmax.f32 %v10879, %v10883
    %v10912 = vmax.f32 %v10884, %v10888
    %v10913 = vmax.f32 %v10885, %v10889
    %v10914 = vmax.f32 %v10886, %v10890
    %v10915 = vmax.f32 %v10887, %v10891
    %v10916 = vmax.f32 %v10892, %v10896
    %v10917 = vmax.f32 %v10893, %v10897
    %v10918 = vmax.f32 %v10894, %v10898
    %v10919 = vmax.f32 %v10895, %v10899
    %v10920 = vmax.f32 %v10900, %v10904
    %v10921 = vmax.f32 %v10901, %v10905
    %v10922 = vmax.f32 %v10902, %v10906
    %v10923 = vmax.f32 %v10903, %v10907
    %v10940 = vcombine.low %v10908, %v10909
    %v10941 = vcombine.high %v10908, %v10909
    %v10942 = vcombine.low %v10910, %v10911
    %v10943 = vcombine.high %v10910, %v10911
    %v10945 = vunpack.c.l.s4 1983009808
    %v10946 = vunpack.c.0.s8 %v10945
    %v10947 = vlaneseq
    %v10948 = vshrl.u32 %v10947, 7
    %v10949 = vsub.s32 %v10946, %v10948
    %v10950 = vrot.slane %v10940, %v10949
    %v10952 = vunpack.c.l.s4 1983009808
    %v10953 = vunpack.c.0.s8 %v10952
    %v10954 = vlaneseq
    %v10955 = vshrl.u32 %v10954, 7
    %v10956 = vsub.s32 %v10953, %v10955
    %v10957 = vrot.slane %v10941, %v10956
    %v10959 = vunpack.c.l.s4 1983009808
    %v10960 = vunpack.c.0.s8 %v10959
    %v10961 = vlaneseq
    %v10962 = vshrl.u32 %v10961, 7
    %v10963 = vsub.s32 %v10960, %v10962
    %v10964 = vrot.slane %v10942, %v10963
    %v10966 = vunpack.c.l.s4 1983009808
    %v10967 = vunpack.c.0.s8 %v10966
    %v10968 = vlaneseq
    %v10969 = vshrl.u32 %v10968, 7
    %v10970 = vsub.s32 %v10967, %v10969
    %v10971 = vrot.slane %v10943, %v10970
    %v10972 = vcombine.low %v10950, %v10964
    %v10973 = vcombine.high %v10950, %v10964
    %v10974 = vcombine.low %v10957, %v10971
    %v10975 = vcombine.high %v10957, %v10971
    %v10976 = vcombine.low %v10912, %v10913
    %v10977 = vcombine.high %v10912, %v10913
    %v10978 = vcombine.low %v10914, %v10915
    %v10979 = vcombine.high %v10914, %v10915
    %v10981 = vunpack.c.l.s4 1983009808
    %v10982 = vunpack.c.0.s8 %v10981
    %v10983 = vlaneseq
    %v10984 = vshrl.u32 %v10983, 7
    %v10985 = vsub.s32 %v10982, %v10984
    %v10986 = vrot.slane %v10976, %v10985
    %v10988 = vunpack.c.l.s4 1983009808
    %v10989 = vunpack.c.0.s8 %v10988
    %v10990 = vlaneseq
    %v10991 = vshrl.u32 %v10990, 7
    %v10992 = vsub.s32 %v10989, %v10991
    %v10993 = vrot.slane %v10977, %v10992
    %v10995 = vunpack.c.l.s4 1983009808
    %v10996 = vunpack.c.0.s8 %v10995
    %v10997 = vlaneseq
    %v10998 = vshrl.u32 %v10997, 7
    %v10999 = vsub.s32 %v10996, %v10998
    %v11000 = vrot.slane %v10978, %v10999
    %v11002 = vunpack.c.l.s4 1983009808
    %v11003 = vunpack.c.0.s8 %v11002
    %v11004 = vlaneseq
    %v11005 = vshrl.u32 %v11004, 7
    %v11006 = vsub.s32 %v11003, %v11005
    %v11007 = vrot.slane %v10979, %v11006
    %v11008 = vcombine.low %v10986, %v11000
    %v11009 = vcombine.high %v10986, %v11000
    %v11010 = vcombine.low %v10993, %v11007
    %v11011 = vcombine.high %v10993, %v11007
    %v11012 = vcombine.low %v10916, %v10917
    %v11013 = vcombine.high %v10916, %v10917
    %v11014 = vcombine.low %v10918, %v10919
    %v11015 = vcombine.high %v10918, %v10919
    %v11017 = vunpack.c.l.s4 1983009808
    %v11018 = vunpack.c.0.s8 %v11017
    %v11019 = vlaneseq
    %v11020 = vshrl.u32 %v11019, 7
    %v11021 = vsub.s32 %v11018, %v11020
    %v11022 = vrot.slane %v11012, %v11021
    %v11024 = vunpack.c.l.s4 1983009808
    %v11025 = vunpack.c.0.s8 %v11024
    %v11026 = vlaneseq
    %v11027 = vshrl.u32 %v11026, 7
    %v11028 = vsub.s32 %v11025, %v11027
    %v11029 = vrot.slane %v11013, %v11028
    %v11031 = vunpack.c.l.s4 1983009808
    %v11032 = vunpack.c.0.s8 %v11031
    %v11033 = vlaneseq
    %v11034 = vshrl.u32 %v11033, 7
    %v11035 = vsub.s32 %v11032, %v11034
    %v11036 = vrot.slane %v11014, %v11035
    %v11038 = vunpack.c.l.s4 1983009808
    %v11039 = vunpack.c.0.s8 %v11038
    %v11040 = vlaneseq
    %v11041 = vshrl.u32 %v11040, 7
    %v11042 = vsub.s32 %v11039, %v11041
    %v11043 = vrot.slane %v11015, %v11042
    %v11044 = vcombine.low %v11022, %v11036
    %v11045 = vcombine.high %v11022, %v11036
    %v11046 = vcombine.low %v11029, %v11043
    %v11047 = vcombine.high %v11029, %v11043
    %v11048 = vcombine.low %v10920, %v10921
    %v11049 = vcombine.high %v10920, %v10921
    %v11050 = vcombine.low %v10922, %v10923
    %v11051 = vcombine.high %v10922, %v10923
    %v11053 = vunpack.c.l.s4 1983009808
    %v11054 = vunpack.c.0.s8 %v11053
    %v11055 = vlaneseq
    %v11056 = vshrl.u32 %v11055, 7
    %v11057 = vsub.s32 %v11054, %v11056
    %v11058 = vrot.slane %v11048, %v11057
    %v11060 = vunpack.c.l.s4 1983009808
    %v11061 = vunpack.c.0.s8 %v11060
    %v11062 = vlaneseq
    %v11063 = vshrl.u32 %v11062, 7
    %v11064 = vsub.s32 %v11061, %v11063
    %v11065 = vrot.slane %v11049, %v11064
    %v11067 = vunpack.c.l.s4 1983009808
    %v11068 = vunpack.c.0.s8 %v11067
    %v11069 = vlaneseq
    %v11070 = vshrl.u32 %v11069, 7
    %v11071 = vsub.s32 %v11068, %v11070
    %v11072 = vrot.slane %v11050, %v11071
    %v11074 = vunpack.c.l.s4 1983009808
    %v11075 = vunpack.c.0.s8 %v11074
    %v11076 = vlaneseq
    %v11077 = vshrl.u32 %v11076, 7
    %v11078 = vsub.s32 %v11075, %v11077
    %v11079 = vrot.slane %v11051, %v11078
    %v11080 = vcombine.low %v11058, %v11072
    %v11081 = vcombine.high %v11058, %v11072
    %v11082 = vcombine.low %v11065, %v11079
    %v11083 = vcombine.high %v11065, %v11079
    %v11100 = vrot.slane %v10972, 7
    %v11101 = vrot.slane %v11100, 2
    %v11102 = vrot.slane %v10973, 7
    %v11103 = vrot.slane %v11102, 2
    %v11104 = vrot.slane %v10974, 7
    %v11105 = vrot.slane %v11104, 2
    %v11106 = vrot.slane %v10975, 7
    %v11107 = vrot.slane %v11106, 2
    %v11108 = vrot.slane %v11008, 7
    %v11109 = vrot.slane %v11108, 2
    %v11110 = vrot.slane %v11009, 7
    %v11111 = vrot.slane %v11110, 2
    %v11112 = vrot.slane %v11010, 7
    %v11113 = vrot.slane %v11112, 2
    %v11114 = vrot.slane %v11011, 7
    %v11115 = vrot.slane %v11114, 2
    %v11116 = vrot.slane %v11044, 7
    %v11117 = vrot.slane %v11116, 2
    %v11118 = vrot.slane %v11045, 7
    %v11119 = vrot.slane %v11118, 2
    %v11120 = vrot.slane %v11046, 7
    %v11121 = vrot.slane %v11120, 2
    %v11122 = vrot.slane %v11047, 7
    %v11123 = vrot.slane %v11122, 2
    %v11124 = vrot.slane %v11080, 7
    %v11125 = vrot.slane %v11124, 2
    %v11126 = vrot.slane %v11081, 7
    %v11127 = vrot.slane %v11126, 2
    %v11128 = vrot.slane %v11082, 7
    %v11129 = vrot.slane %v11128, 2
    %v11130 = vrot.slane %v11083, 7
    %v11131 = vrot.slane %v11130, 2
    %v11148 = vmax.f32 %v10972, %v11101
    %v11149 = vmax.f32 %v10973, %v11103
    %v11150 = vmax.f32 %v10974, %v11105
    %v11151 = vmax.f32 %v10975, %v11107
    %v11152 = vmax.f32 %v11008, %v11109
    %v11153 = vmax.f32 %v11009, %v11111
    %v11154 = vmax.f32 %v11010, %v11113
    %v11155 = vmax.f32 %v11011, %v11115
    %v11156 = vmax.f32 %v11044, %v11117
    %v11157 = vmax.f32 %v11045, %v11119
    %v11158 = vmax.f32 %v11046, %v11121
    %v11159 = vmax.f32 %v11047, %v11123
    %v11160 = vmax.f32 %v11080, %v11125
    %v11161 = vmax.f32 %v11081, %v11127
    %v11162 = vmax.f32 %v11082, %v11129
    %v11163 = vmax.f32 %v11083, %v11131
    %v11180 = vlaneseq
    %v11181 = vshrl.u32 %v11180, 7
    %v11182 = vsub.s32 0, %v11181
    %v11183 = vrot.slane %v11148, %v11182
    %v11184 = vlaneseq
    %v11185 = vshrl.u32 %v11184, 7
    %v11186 = vsub.s32 2, %v11185
    %v11187 = vrot.slane %v11148, %v11186
    %v11188 = vlaneseq
    %v11189 = vshrl.u32 %v11188, 7
    %v11190 = vsub.s32 4, %v11189
    %v11191 = vrot.slane %v11148, %v11190
    %v11192 = vlaneseq
    %v11193 = vshrl.u32 %v11192, 7
    %v11194 = vsub.s32 6, %v11193
    %v11195 = vrot.slane %v11148, %v11194
    %v11196 = vlaneseq
    %v11197 = vshrl.u32 %v11196, 7
    %v11198 = vsub.s32 0, %v11197
    %v11199 = vrot.slane %v11149, %v11198
    %v11200 = vlaneseq
    %v11201 = vshrl.u32 %v11200, 7
    %v11202 = vsub.s32 2, %v11201
    %v11203 = vrot.slane %v11149, %v11202
    %v11204 = vlaneseq
    %v11205 = vshrl.u32 %v11204, 7
    %v11206 = vsub.s32 4, %v11205
    %v11207 = vrot.slane %v11149, %v11206
    %v11208 = vlaneseq
    %v11209 = vshrl.u32 %v11208, 7
    %v11210 = vsub.s32 6, %v11209
    %v11211 = vrot.slane %v11149, %v11210
    %v11212 = vlaneseq
    %v11213 = vshrl.u32 %v11212, 7
    %v11214 = vsub.s32 0, %v11213
    %v11215 = vrot.slane %v11150, %v11214
    %v11216 = vlaneseq
    %v11217 = vshrl.u32 %v11216, 7
    %v11218 = vsub.s32 2, %v11217
    %v11219 = vrot.slane %v11150, %v11218
    %v11220 = vlaneseq
    %v11221 = vshrl.u32 %v11220, 7
    %v11222 = vsub.s32 4, %v11221
    %v11223 = vrot.slane %v11150, %v11222
    %v11224 = vlaneseq
    %v11225 = vshrl.u32 %v11224, 7
    %v11226 = vsub.s32 6, %v11225
    %v11227 = vrot.slane %v11150, %v11226
    %v11228 = vlaneseq
    %v11229 = vshrl.u32 %v11228, 7
    %v11230 = vsub.s32 0, %v11229
    %v11231 = vrot.slane %v11151, %v11230
    %v11232 = vlaneseq
    %v11233 = vshrl.u32 %v11232, 7
    %v11234 = vsub.s32 2, %v11233
    %v11235 = vrot.slane %v11151, %v11234
    %v11236 = vlaneseq
    %v11237 = vshrl.u32 %v11236, 7
    %v11238 = vsub.s32 4, %v11237
    %v11239 = vrot.slane %v11151, %v11238
    %v11240 = vlaneseq
    %v11241 = vshrl.u32 %v11240, 7
    %v11242 = vsub.s32 6, %v11241
    %v11243 = vrot.slane %v11151, %v11242
    %v11244 = vlaneseq
    %v11245 = vshrl.u32 %v11244, 7
    %v11246 = vsub.s32 0, %v11245
    %v11247 = vrot.slane %v11152, %v11246
    %v11248 = vlaneseq
    %v11249 = vshrl.u32 %v11248, 7
    %v11250 = vsub.s32 2, %v11249
    %v11251 = vrot.slane %v11152, %v11250
    %v11252 = vlaneseq
    %v11253 = vshrl.u32 %v11252, 7
    %v11254 = vsub.s32 4, %v11253
    %v11255 = vrot.slane %v11152, %v11254
    %v11256 = vlaneseq
    %v11257 = vshrl.u32 %v11256, 7
    %v11258 = vsub.s32 6, %v11257
    %v11259 = vrot.slane %v11152, %v11258
    %v11260 = vlaneseq
    %v11261 = vshrl.u32 %v11260, 7
    %v11262 = vsub.s32 0, %v11261
    %v11263 = vrot.slane %v11153, %v11262
    %v11264 = vlaneseq
    %v11265 = vshrl.u32 %v11264, 7
    %v11266 = vsub.s32 2, %v11265
    %v11267 = vrot.slane %v11153, %v11266
    %v11268 = vlaneseq
    %v11269 = vshrl.u32 %v11268, 7
    %v11270 = vsub.s32 4, %v11269
    %v11271 = vrot.slane %v11153, %v11270
    %v11272 = vlaneseq
    %v11273 = vshrl.u32 %v11272, 7
    %v11274 = vsub.s32 6, %v11273
    %v11275 = vrot.slane %v11153, %v11274
    %v11276 = vlaneseq
    %v11277 = vshrl.u32 %v11276, 7
    %v11278 = vsub.s32 0, %v11277
    %v11279 = vrot.slane %v11154, %v11278
    %v11280 = vlaneseq
    %v11281 = vshrl.u32 %v11280, 7
    %v11282 = vsub.s32 2, %v11281
    %v11283 = vrot.slane %v11154, %v11282
    %v11284 = vlaneseq
    %v11285 = vshrl.u32 %v11284, 7
    %v11286 = vsub.s32 4, %v11285
    %v11287 = vrot.slane %v11154, %v11286
    %v11288 = vlaneseq
    %v11289 = vshrl.u32 %v11288, 7
    %v11290 = vsub.s32 6, %v11289
    %v11291 = vrot.slane %v11154, %v11290
    %v11292 = vlaneseq
    %v11293 = vshrl.u32 %v11292, 7
    %v11294 = vsub.s32 0, %v11293
    %v11295 = vrot.slane %v11155, %v11294
    %v11296 = vlaneseq
    %v11297 = vshrl.u32 %v11296, 7
    %v11298 = vsub.s32 2, %v11297
    %v11299 = vrot.slane %v11155, %v11298
    %v11300 = vlaneseq
    %v11301 = vshrl.u32 %v11300, 7
    %v11302 = vsub.s32 4, %v11301
    %v11303 = vrot.slane %v11155, %v11302
    %v11304 = vlaneseq
    %v11305 = vshrl.u32 %v11304, 7
    %v11306 = vsub.s32 6, %v11305
    %v11307 = vrot.slane %v11155, %v11306
    %v11308 = vlaneseq
    %v11309 = vshrl.u32 %v11308, 7
    %v11310 = vsub.s32 0, %v11309
    %v11311 = vrot.slane %v11156, %v11310
    %v11312 = vlaneseq
    %v11313 = vshrl.u32 %v11312, 7
    %v11314 = vsub.s32 2, %v11313
    %v11315 = vrot.slane %v11156, %v11314
    %v11316 = vlaneseq
    %v11317 = vshrl.u32 %v11316, 7
    %v11318 = vsub.s32 4, %v11317
    %v11319 = vrot.slane %v11156, %v11318
    %v11320 = vlaneseq
    %v11321 = vshrl.u32 %v11320, 7
    %v11322 = vsub.s32 6, %v11321
    %v11323 = vrot.slane %v11156, %v11322
    %v11324 = vlaneseq
    %v11325 = vshrl.u32 %v11324, 7
    %v11326 = vsub.s32 0, %v11325
    %v11327 = vrot.slane %v11157, %v11326
    %v11328 = vlaneseq
    %v11329 = vshrl.u32 %v11328, 7
    %v11330 = vsub.s32 2, %v11329
    %v11331 = vrot.slane %v11157, %v11330
    %v11332 = vlaneseq
    %v11333 = vshrl.u32 %v11332, 7
    %v11334 = vsub.s32 4, %v11333
    %v11335 = vrot.slane %v11157, %v11334
    %v11336 = vlaneseq
    %v11337 = vshrl.u32 %v11336, 7
    %v11338 = vsub.s32 6, %v11337
    %v11339 = vrot.slane %v11157, %v11338
    %v11340 = vlaneseq
    %v11341 = vshrl.u32 %v11340, 7
    %v11342 = vsub.s32 0, %v11341
    %v11343 = vrot.slane %v11158, %v11342
    %v11344 = vlaneseq
    %v11345 = vshrl.u32 %v11344, 7
    %v11346 = vsub.s32 2, %v11345
    %v11347 = vrot.slane %v11158, %v11346
    %v11348 = vlaneseq
    %v11349 = vshrl.u32 %v11348, 7
    %v11350 = vsub.s32 4, %v11349
    %v11351 = vrot.slane %v11158, %v11350
    %v11352 = vlaneseq
    %v11353 = vshrl.u32 %v11352, 7
    %v11354 = vsub.s32 6, %v11353
    %v11355 = vrot.slane %v11158, %v11354
    %v11356 = vlaneseq
    %v11357 = vshrl.u32 %v11356, 7
    %v11358 = vsub.s32 0, %v11357
    %v11359 = vrot.slane %v11159, %v11358
    %v11360 = vlaneseq
    %v11361 = vshrl.u32 %v11360, 7
    %v11362 = vsub.s32 2, %v11361
    %v11363 = vrot.slane %v11159, %v11362
    %v11364 = vlaneseq
    %v11365 = vshrl.u32 %v11364, 7
    %v11366 = vsub.s32 4, %v11365
    %v11367 = vrot.slane %v11159, %v11366
    %v11368 = vlaneseq
    %v11369 = vshrl.u32 %v11368, 7
    %v11370 = vsub.s32 6, %v11369
    %v11371 = vrot.slane %v11159, %v11370
    %v11372 = vlaneseq
    %v11373 = vshrl.u32 %v11372, 7
    %v11374 = vsub.s32 0, %v11373
    %v11375 = vrot.slane %v11160, %v11374
    %v11376 = vlaneseq
    %v11377 = vshrl.u32 %v11376, 7
    %v11378 = vsub.s32 2, %v11377
    %v11379 = vrot.slane %v11160, %v11378
    %v11380 = vlaneseq
    %v11381 = vshrl.u32 %v11380, 7
    %v11382 = vsub.s32 4, %v11381
    %v11383 = vrot.slane %v11160, %v11382
    %v11384 = vlaneseq
    %v11385 = vshrl.u32 %v11384, 7
    %v11386 = vsub.s32 6, %v11385
    %v11387 = vrot.slane %v11160, %v11386
    %v11388 = vlaneseq
    %v11389 = vshrl.u32 %v11388, 7
    %v11390 = vsub.s32 0, %v11389
    %v11391 = vrot.slane %v11161, %v11390
    %v11392 = vlaneseq
    %v11393 = vshrl.u32 %v11392, 7
    %v11394 = vsub.s32 2, %v11393
    %v11395 = vrot.slane %v11161, %v11394
    %v11396 = vlaneseq
    %v11397 = vshrl.u32 %v11396, 7
    %v11398 = vsub.s32 4, %v11397
    %v11399 = vrot.slane %v11161, %v11398
    %v11400 = vlaneseq
    %v11401 = vshrl.u32 %v11400, 7
    %v11402 = vsub.s32 6, %v11401
    %v11403 = vrot.slane %v11161, %v11402
    %v11404 = vlaneseq
    %v11405 = vshrl.u32 %v11404, 7
    %v11406 = vsub.s32 0, %v11405
    %v11407 = vrot.slane %v11162, %v11406
    %v11408 = vlaneseq
    %v11409 = vshrl.u32 %v11408, 7
    %v11410 = vsub.s32 2, %v11409
    %v11411 = vrot.slane %v11162, %v11410
    %v11412 = vlaneseq
    %v11413 = vshrl.u32 %v11412, 7
    %v11414 = vsub.s32 4, %v11413
    %v11415 = vrot.slane %v11162, %v11414
    %v11416 = vlaneseq
    %v11417 = vshrl.u32 %v11416, 7
    %v11418 = vsub.s32 6, %v11417
    %v11419 = vrot.slane %v11162, %v11418
    %v11420 = vlaneseq
    %v11421 = vshrl.u32 %v11420, 7
    %v11422 = vsub.s32 0, %v11421
    %v11423 = vrot.slane %v11163, %v11422
    %v11424 = vlaneseq
    %v11425 = vshrl.u32 %v11424, 7
    %v11426 = vsub.s32 2, %v11425
    %v11427 = vrot.slane %v11163, %v11426
    %v11428 = vlaneseq
    %v11429 = vshrl.u32 %v11428, 7
    %v11430 = vsub.s32 4, %v11429
    %v11431 = vrot.slane %v11163, %v11430
    %v11432 = vlaneseq
    %v11433 = vshrl.u32 %v11432, 7
    %v11434 = vsub.s32 6, %v11433
    %v11435 = vrot.slane %v11163, %v11434
    %v11500 = vpack.c.bf16 %v11183, %v11183
    %v11501 = vpack.c.bf16 %v11187, %v11187
    %v11502 = vpack.c.bf16 %v11191, %v11191
    %v11503 = vpack.c.bf16 %v11195, %v11195
    %v11504 = vpack.c.bf16 %v11199, %v11199
    %v11505 = vpack.c.bf16 %v11203, %v11203
    %v11506 = vpack.c.bf16 %v11207, %v11207
    %v11507 = vpack.c.bf16 %v11211, %v11211
    %v11508 = vpack.c.bf16 %v11215, %v11215
    %v11509 = vpack.c.bf16 %v11219, %v11219
    %v11510 = vpack.c.bf16 %v11223, %v11223
    %v11511 = vpack.c.bf16 %v11227, %v11227
    %v11512 = vpack.c.bf16 %v11231, %v11231
    %v11513 = vpack.c.bf16 %v11235, %v11235
    %v11514 = vpack.c.bf16 %v11239, %v11239
    %v11515 = vpack.c.bf16 %v11243, %v11243
    %v11516 = vpack.c.bf16 %v11247, %v11247
    %v11517 = vpack.c.bf16 %v11251, %v11251
    %v11518 = vpack.c.bf16 %v11255, %v11255
    %v11519 = vpack.c.bf16 %v11259, %v11259
    %v11520 = vpack.c.bf16 %v11263, %v11263
    %v11521 = vpack.c.bf16 %v11267, %v11267
    %v11522 = vpack.c.bf16 %v11271, %v11271
    %v11523 = vpack.c.bf16 %v11275, %v11275
    %v11524 = vpack.c.bf16 %v11279, %v11279
    %v11525 = vpack.c.bf16 %v11283, %v11283
    %v11526 = vpack.c.bf16 %v11287, %v11287
    %v11527 = vpack.c.bf16 %v11291, %v11291
    %v11528 = vpack.c.bf16 %v11295, %v11295
    %v11529 = vpack.c.bf16 %v11299, %v11299
    %v11530 = vpack.c.bf16 %v11303, %v11303
    %v11531 = vpack.c.bf16 %v11307, %v11307
    %v11532 = vpack.c.bf16 %v11311, %v11311
    %v11533 = vpack.c.bf16 %v11315, %v11315
    %v11534 = vpack.c.bf16 %v11319, %v11319
    %v11535 = vpack.c.bf16 %v11323, %v11323
    %v11536 = vpack.c.bf16 %v11327, %v11327
    %v11537 = vpack.c.bf16 %v11331, %v11331
    %v11538 = vpack.c.bf16 %v11335, %v11335
    %v11539 = vpack.c.bf16 %v11339, %v11339
    %v11540 = vpack.c.bf16 %v11343, %v11343
    %v11541 = vpack.c.bf16 %v11347, %v11347
    %v11542 = vpack.c.bf16 %v11351, %v11351
    %v11543 = vpack.c.bf16 %v11355, %v11355
    %v11544 = vpack.c.bf16 %v11359, %v11359
    %v11545 = vpack.c.bf16 %v11363, %v11363
    %v11546 = vpack.c.bf16 %v11367, %v11367
    %v11547 = vpack.c.bf16 %v11371, %v11371
    %v11548 = vpack.c.bf16 %v11375, %v11375
    %v11549 = vpack.c.bf16 %v11379, %v11379
    %v11550 = vpack.c.bf16 %v11383, %v11383
    %v11551 = vpack.c.bf16 %v11387, %v11387
    %v11552 = vpack.c.bf16 %v11391, %v11391
    %v11553 = vpack.c.bf16 %v11395, %v11395
    %v11554 = vpack.c.bf16 %v11399, %v11399
    %v11555 = vpack.c.bf16 %v11403, %v11403
    %v11556 = vpack.c.bf16 %v11407, %v11407
    %v11557 = vpack.c.bf16 %v11411, %v11411
    %v11558 = vpack.c.bf16 %v11415, %v11415
    %v11559 = vpack.c.bf16 %v11419, %v11419
    %v11560 = vpack.c.bf16 %v11423, %v11423
    %v11561 = vpack.c.bf16 %v11427, %v11427
    %v11562 = vpack.c.bf16 %v11431, %v11431
    %v11563 = vpack.c.bf16 %v11435, %v11435
    %v11628 = vunpack.c.l.b16 %v11500
    %v11629 = vunpack.c.l.b16 %v11501
    %v11630 = vunpack.c.l.b16 %v11502
    %v11631 = vunpack.c.l.b16 %v11503
    %v11632 = vunpack.c.l.b16 %v11504
    %v11633 = vunpack.c.l.b16 %v11505
    %v11634 = vunpack.c.l.b16 %v11506
    %v11635 = vunpack.c.l.b16 %v11507
    %v11636 = vunpack.c.l.b16 %v11508
    %v11637 = vunpack.c.l.b16 %v11509
    %v11638 = vunpack.c.l.b16 %v11510
    %v11639 = vunpack.c.l.b16 %v11511
    %v11640 = vunpack.c.l.b16 %v11512
    %v11641 = vunpack.c.l.b16 %v11513
    %v11642 = vunpack.c.l.b16 %v11514
    %v11643 = vunpack.c.l.b16 %v11515
    %v11644 = vunpack.c.l.b16 %v11516
    %v11645 = vunpack.c.l.b16 %v11517
    %v11646 = vunpack.c.l.b16 %v11518
    %v11647 = vunpack.c.l.b16 %v11519
    %v11648 = vunpack.c.l.b16 %v11520
    %v11649 = vunpack.c.l.b16 %v11521
    %v11650 = vunpack.c.l.b16 %v11522
    %v11651 = vunpack.c.l.b16 %v11523
    %v11652 = vunpack.c.l.b16 %v11524
    %v11653 = vunpack.c.l.b16 %v11525
    %v11654 = vunpack.c.l.b16 %v11526
    %v11655 = vunpack.c.l.b16 %v11527
    %v11656 = vunpack.c.l.b16 %v11528
    %v11657 = vunpack.c.l.b16 %v11529
    %v11658 = vunpack.c.l.b16 %v11530
    %v11659 = vunpack.c.l.b16 %v11531
    %v11660 = vunpack.c.l.b16 %v11532
    %v11661 = vunpack.c.l.b16 %v11533
    %v11662 = vunpack.c.l.b16 %v11534
    %v11663 = vunpack.c.l.b16 %v11535
    %v11664 = vunpack.c.l.b16 %v11536
    %v11665 = vunpack.c.l.b16 %v11537
    %v11666 = vunpack.c.l.b16 %v11538
    %v11667 = vunpack.c.l.b16 %v11539
    %v11668 = vunpack.c.l.b16 %v11540
    %v11669 = vunpack.c.l.b16 %v11541
    %v11670 = vunpack.c.l.b16 %v11542
    %v11671 = vunpack.c.l.b16 %v11543
    %v11672 = vunpack.c.l.b16 %v11544
    %v11673 = vunpack.c.l.b16 %v11545
    %v11674 = vunpack.c.l.b16 %v11546
    %v11675 = vunpack.c.l.b16 %v11547
    %v11676 = vunpack.c.l.b16 %v11548
    %v11677 = vunpack.c.l.b16 %v11549
    %v11678 = vunpack.c.l.b16 %v11550
    %v11679 = vunpack.c.l.b16 %v11551
    %v11680 = vunpack.c.l.b16 %v11552
    %v11681 = vunpack.c.l.b16 %v11553
    %v11682 = vunpack.c.l.b16 %v11554
    %v11683 = vunpack.c.l.b16 %v11555
    %v11684 = vunpack.c.l.b16 %v11556
    %v11685 = vunpack.c.l.b16 %v11557
    %v11686 = vunpack.c.l.b16 %v11558
    %v11687 = vunpack.c.l.b16 %v11559
    %v11688 = vunpack.c.l.b16 %v11560
    %v11689 = vunpack.c.l.b16 %v11561
    %v11690 = vunpack.c.l.b16 %v11562
    %v11691 = vunpack.c.l.b16 %v11563
    %v11692 = vpack.c.b16 %v11629, %v11628
    %v11693 = vpack.c.b16 %v11631, %v11630
    %v11694 = vpack.c.b16 %v11633, %v11632
    %v11695 = vpack.c.b16 %v11635, %v11634
    %v11696 = vpack.c.b16 %v11637, %v11636
    %v11697 = vpack.c.b16 %v11639, %v11638
    %v11698 = vpack.c.b16 %v11641, %v11640
    %v11699 = vpack.c.b16 %v11643, %v11642
    %v11700 = vpack.c.b16 %v11645, %v11644
    %v11701 = vpack.c.b16 %v11647, %v11646
    %v11702 = vpack.c.b16 %v11649, %v11648
    %v11703 = vpack.c.b16 %v11651, %v11650
    %v11704 = vpack.c.b16 %v11653, %v11652
    %v11705 = vpack.c.b16 %v11655, %v11654
    %v11706 = vpack.c.b16 %v11657, %v11656
    %v11707 = vpack.c.b16 %v11659, %v11658
    %v11708 = vpack.c.b16 %v11661, %v11660
    %v11709 = vpack.c.b16 %v11663, %v11662
    %v11710 = vpack.c.b16 %v11665, %v11664
    %v11711 = vpack.c.b16 %v11667, %v11666
    %v11712 = vpack.c.b16 %v11669, %v11668
    %v11713 = vpack.c.b16 %v11671, %v11670
    %v11714 = vpack.c.b16 %v11673, %v11672
    %v11715 = vpack.c.b16 %v11675, %v11674
    %v11716 = vpack.c.b16 %v11677, %v11676
    %v11717 = vpack.c.b16 %v11679, %v11678
    %v11718 = vpack.c.b16 %v11681, %v11680
    %v11719 = vpack.c.b16 %v11683, %v11682
    %v11720 = vpack.c.b16 %v11685, %v11684
    %v11721 = vpack.c.b16 %v11687, %v11686
    %v11722 = vpack.c.b16 %v11689, %v11688
    %v11723 = vpack.c.b16 %v11691, %v11690
    %v11724 = vunpack.c.l.b16 %v11692
    %v11725 = vunpack.c.h.b16 %v11692
    %v11726 = vunpack.c.l.b16 %v11693
    %v11727 = vunpack.c.h.b16 %v11693
    %v11728 = vunpack.c.l.b16 %v11694
    %v11729 = vunpack.c.h.b16 %v11694
    %v11730 = vunpack.c.l.b16 %v11695
    %v11731 = vunpack.c.h.b16 %v11695
    %v11732 = vunpack.c.l.b16 %v11696
    %v11733 = vunpack.c.h.b16 %v11696
    %v11734 = vunpack.c.l.b16 %v11697
    %v11735 = vunpack.c.h.b16 %v11697
    %v11736 = vunpack.c.l.b16 %v11698
    %v11737 = vunpack.c.h.b16 %v11698
    %v11738 = vunpack.c.l.b16 %v11699
    %v11739 = vunpack.c.h.b16 %v11699
    %v11740 = vunpack.c.l.b16 %v11700
    %v11741 = vunpack.c.h.b16 %v11700
    %v11742 = vunpack.c.l.b16 %v11701
    %v11743 = vunpack.c.h.b16 %v11701
    %v11744 = vunpack.c.l.b16 %v11702
    %v11745 = vunpack.c.h.b16 %v11702
    %v11746 = vunpack.c.l.b16 %v11703
    %v11747 = vunpack.c.h.b16 %v11703
    %v11748 = vunpack.c.l.b16 %v11704
    %v11749 = vunpack.c.h.b16 %v11704
    %v11750 = vunpack.c.l.b16 %v11705
    %v11751 = vunpack.c.h.b16 %v11705
    %v11752 = vunpack.c.l.b16 %v11706
    %v11753 = vunpack.c.h.b16 %v11706
    %v11754 = vunpack.c.l.b16 %v11707
    %v11755 = vunpack.c.h.b16 %v11707
    %v11756 = vunpack.c.l.b16 %v11708
    %v11757 = vunpack.c.h.b16 %v11708
    %v11758 = vunpack.c.l.b16 %v11709
    %v11759 = vunpack.c.h.b16 %v11709
    %v11760 = vunpack.c.l.b16 %v11710
    %v11761 = vunpack.c.h.b16 %v11710
    %v11762 = vunpack.c.l.b16 %v11711
    %v11763 = vunpack.c.h.b16 %v11711
    %v11764 = vunpack.c.l.b16 %v11712
    %v11765 = vunpack.c.h.b16 %v11712
    %v11766 = vunpack.c.l.b16 %v11713
    %v11767 = vunpack.c.h.b16 %v11713
    %v11768 = vunpack.c.l.b16 %v11714
    %v11769 = vunpack.c.h.b16 %v11714
    %v11770 = vunpack.c.l.b16 %v11715
    %v11771 = vunpack.c.h.b16 %v11715
    %v11772 = vunpack.c.l.b16 %v11716
    %v11773 = vunpack.c.h.b16 %v11716
    %v11774 = vunpack.c.l.b16 %v11717
    %v11775 = vunpack.c.h.b16 %v11717
    %v11776 = vunpack.c.l.b16 %v11718
    %v11777 = vunpack.c.h.b16 %v11718
    %v11778 = vunpack.c.l.b16 %v11719
    %v11779 = vunpack.c.h.b16 %v11719
    %v11780 = vunpack.c.l.b16 %v11720
    %v11781 = vunpack.c.h.b16 %v11720
    %v11782 = vunpack.c.l.b16 %v11721
    %v11783 = vunpack.c.h.b16 %v11721
    %v11784 = vunpack.c.l.b16 %v11722
    %v11785 = vunpack.c.h.b16 %v11722
    %v11786 = vunpack.c.l.b16 %v11723
    %v11787 = vunpack.c.h.b16 %v11723
    %v11788 = vrot.slane %v11728, 7
    %v11789 = vsel %vm4320, %v11788, %v11724
    %v11790 = vrot.slane %v11732, 6
    %v11791 = vsel %vm4323, %v11790, %v11789
    %v11792 = vrot.slane %v11736, 5
    %v11793 = vsel %vm4326, %v11792, %v11791
    %v11794 = vrot.slane %v11740, 4
    %v11795 = vsel %vm4329, %v11794, %v11793
    %v11796 = vrot.slane %v11744, 3
    %v11797 = vsel %vm4332, %v11796, %v11795
    %v11798 = vrot.slane %v11748, 2
    %v11799 = vsel %vm4335, %v11798, %v11797
    %v11800 = vrot.slane %v11752, 1
    %v11801 = vsel %vm4338, %v11800, %v11799
    %v11802 = vrot.slane %v11729, 7
    %v11803 = vsel %vm4320, %v11802, %v11725
    %v11804 = vrot.slane %v11733, 6
    %v11805 = vsel %vm4323, %v11804, %v11803
    %v11806 = vrot.slane %v11737, 5
    %v11807 = vsel %vm4326, %v11806, %v11805
    %v11808 = vrot.slane %v11741, 4
    %v11809 = vsel %vm4329, %v11808, %v11807
    %v11810 = vrot.slane %v11745, 3
    %v11811 = vsel %vm4332, %v11810, %v11809
    %v11812 = vrot.slane %v11749, 2
    %v11813 = vsel %vm4335, %v11812, %v11811
    %v11814 = vrot.slane %v11753, 1
    %v11815 = vsel %vm4338, %v11814, %v11813
    %v11816 = vrot.slane %v11730, 7
    %v11817 = vsel %vm4320, %v11816, %v11726
    %v11818 = vrot.slane %v11734, 6
    %v11819 = vsel %vm4323, %v11818, %v11817
    %v11820 = vrot.slane %v11738, 5
    %v11821 = vsel %vm4326, %v11820, %v11819
    %v11822 = vrot.slane %v11742, 4
    %v11823 = vsel %vm4329, %v11822, %v11821
    %v11824 = vrot.slane %v11746, 3
    %v11825 = vsel %vm4332, %v11824, %v11823
    %v11826 = vrot.slane %v11750, 2
    %v11827 = vsel %vm4335, %v11826, %v11825
    %v11828 = vrot.slane %v11754, 1
    %v11829 = vsel %vm4338, %v11828, %v11827
    %v11830 = vrot.slane %v11731, 7
    %v11831 = vsel %vm4320, %v11830, %v11727
    %v11832 = vrot.slane %v11735, 6
    %v11833 = vsel %vm4323, %v11832, %v11831
    %v11834 = vrot.slane %v11739, 5
    %v11835 = vsel %vm4326, %v11834, %v11833
    %v11836 = vrot.slane %v11743, 4
    %v11837 = vsel %vm4329, %v11836, %v11835
    %v11838 = vrot.slane %v11747, 3
    %v11839 = vsel %vm4332, %v11838, %v11837
    %v11840 = vrot.slane %v11751, 2
    %v11841 = vsel %vm4335, %v11840, %v11839
    %v11842 = vrot.slane %v11755, 1
    %v11843 = vsel %vm4338, %v11842, %v11841
    %v11844 = vrot.slane %v11760, 7
    %v11845 = vsel %vm4320, %v11844, %v11756
    %v11846 = vrot.slane %v11764, 6
    %v11847 = vsel %vm4323, %v11846, %v11845
    %v11848 = vrot.slane %v11768, 5
    %v11849 = vsel %vm4326, %v11848, %v11847
    %v11850 = vrot.slane %v11772, 4
    %v11851 = vsel %vm4329, %v11850, %v11849
    %v11852 = vrot.slane %v11776, 3
    %v11853 = vsel %vm4332, %v11852, %v11851
    %v11854 = vrot.slane %v11780, 2
    %v11855 = vsel %vm4335, %v11854, %v11853
    %v11856 = vrot.slane %v11784, 1
    %v11857 = vsel %vm4338, %v11856, %v11855
    %v11858 = vrot.slane %v11761, 7
    %v11859 = vsel %vm4320, %v11858, %v11757
    %v11860 = vrot.slane %v11765, 6
    %v11861 = vsel %vm4323, %v11860, %v11859
    %v11862 = vrot.slane %v11769, 5
    %v11863 = vsel %vm4326, %v11862, %v11861
    %v11864 = vrot.slane %v11773, 4
    %v11865 = vsel %vm4329, %v11864, %v11863
    %v11866 = vrot.slane %v11777, 3
    %v11867 = vsel %vm4332, %v11866, %v11865
    %v11868 = vrot.slane %v11781, 2
    %v11869 = vsel %vm4335, %v11868, %v11867
    %v11870 = vrot.slane %v11785, 1
    %v11871 = vsel %vm4338, %v11870, %v11869
    %v11872 = vrot.slane %v11762, 7
    %v11873 = vsel %vm4320, %v11872, %v11758
    %v11874 = vrot.slane %v11766, 6
    %v11875 = vsel %vm4323, %v11874, %v11873
    %v11876 = vrot.slane %v11770, 5
    %v11877 = vsel %vm4326, %v11876, %v11875
    %v11878 = vrot.slane %v11774, 4
    %v11879 = vsel %vm4329, %v11878, %v11877
    %v11880 = vrot.slane %v11778, 3
    %v11881 = vsel %vm4332, %v11880, %v11879
    %v11882 = vrot.slane %v11782, 2
    %v11883 = vsel %vm4335, %v11882, %v11881
    %v11884 = vrot.slane %v11786, 1
    %v11885 = vsel %vm4338, %v11884, %v11883
    %v11886 = vrot.slane %v11763, 7
    %v11887 = vsel %vm4320, %v11886, %v11759
    %v11888 = vrot.slane %v11767, 6
    %v11889 = vsel %vm4323, %v11888, %v11887
    %v11890 = vrot.slane %v11771, 5
    %v11891 = vsel %vm4326, %v11890, %v11889
    %v11892 = vrot.slane %v11775, 4
    %v11893 = vsel %vm4329, %v11892, %v11891
    %v11894 = vrot.slane %v11779, 3
    %v11895 = vsel %vm4332, %v11894, %v11893
    %v11896 = vrot.slane %v11783, 2
    %v11897 = vsel %vm4335, %v11896, %v11895
    %v11898 = vrot.slane %v11787, 1
    %v11899 = vsel %vm4338, %v11898, %v11897
    %v11900 = vpack.c.b16 %v11815, %v11801
    %v11901 = vpack.c.b16 %v11843, %v11829
    %v11902 = vpack.c.b16 %v11871, %v11857
    %v11903 = vpack.c.b16 %v11899, %v11885
    %11908 = vst [vmem:[%s5] sm:$0xff] %v11900
    %11909 = vst [vmem:[%s5 + $0x8] sm:$0xff] %v11901
    %11910 = vst [vmem:[%s5 + $0x10] sm:$0xff] %v11902
    %11911 = vst [vmem:[%s5 + $0x18] sm:$0xff] %v11903
    // Predicated region
    $region38: #{simple_cnn_forward.3} parent=1 // pred_check
      _
    $region39: #{simple_cnn_forward.3} parent=1 // pred_check_branch
      %11913 = sbr.rel (0) target = $region41
    $region40: #{simple_cnn_forward.3} parent=1 // pred_region
      _
    $region41: #{simple_cnn_forward.3} parent=1 // pred_fallthru
      _
    // Predicated region
    $region42: #{simple_cnn_forward.3} parent=1 // pred_check
      _
    $region43: #{simple_cnn_forward.3} parent=1 // pred_check_branch
      %11915 = sbr.rel (0) target = $region45
    $region44: #{simple_cnn_forward.3} parent=1 // pred_region
      _
    $region45: #{simple_cnn_forward.3} parent=1 // pred_fallthru
      _
    %11916 = vsyncpa [#allocation4], 1
    %11917 = vsyncpa [#allocation6], 1
    %11918 = vsyncpa [#allocation9], 1

</llo_original>
